<compile_context>
chip_gen: v7x
topology: tpu7x:2x2x1
jax: 0.10.0
libtpu: 0.0.40
codegen_flags: <defaults>
</compile_context>

<pallas_src>
import math
import functools

import jax
import jax.numpy as jnp
from jax import lax
from jax.experimental import pallas as pl
from jax.experimental.pallas import tpu as pltpu  # noqa: F401  (imported for TPU backend; no pltpu-specific params needed at these sizes)

LN_EPS = 1e-5
NEG_BIG = -1e9  # finite stand-in for -inf (avoids inf-inf -> NaN if a row is ever fully masked)


def _full_spec(shape):
    """Whole-array block for a grid=(1,) call."""
    zeros = (0,) * len(shape)
    return pl.BlockSpec(shape, lambda i, _z=zeros: _z)


def _layernorm_math(x, g, b):
    mu = jnp.mean(x, axis=-1, keepdims=True)
    var = jnp.mean((x - mu) ** 2, axis=-1, keepdims=True)
    return (x - mu) * lax.rsqrt(var + LN_EPS) * g + b


# --------------------------- fused MHA (+res+LN) ----------------------------

def _mha_ln_kernel(*refs, B, H, Dh, same_kv, has_mask):
    # ref order: xq, [xkv], wqkv, bqkv, wo, bo, ln_g, ln_b, [mask], out
    xq_ref = refs[0]
    base = 1 if same_kv else 2
    xkv_ref = xq_ref if same_kv else refs[1]
    wqkv_ref, bqkv_ref, wo_ref, bo_ref, g_ref, bb_ref = refs[base:base + 6]
    mask_ref = refs[base + 6] if has_mask else None
    o_ref = refs[-1]

    D = H * Dh
    scale = 1.0 / math.sqrt(Dh)

    wqkv = wqkv_ref[...]                       # (D, 3D)
    bqkv = bqkv_ref[...]                       # (1, 3D)
    wo = wo_ref[...]                           # (D, D)
    bo = bo_ref[...]                           # (1, D)
    g = g_ref[...]                             # (1, D)
    bb = bb_ref[...]                           # (1, D)
    mask = mask_ref[...] if has_mask else None # (Sq, Sk) additive

    for b in range(B):                         # static unroll; all work stays in VMEM
        xq = xq_ref[b]                         # (Sq, D)
        if same_kv:
            qkv = jnp.dot(xq, wqkv, preferred_element_type=jnp.float32) + bqkv   # (Sq, 3D), lane-dense
            q, k, v = qkv[:, :D], qkv[:, D:2 * D], qkv[:, 2 * D:]
        else:
            xkv = xkv_ref[b]                   # (Sk, D)
            q = jnp.dot(xq, wqkv[:, :D], preferred_element_type=jnp.float32) + bqkv[:, :D]
            kv = jnp.dot(xkv, wqkv[:, D:], preferred_element_type=jnp.float32) + bqkv[:, D:]
            k, v = kv[:, :D], kv[:, D:]

        # scaled dot-product attention per head; output projection accumulated per head
        # (ctx @ wo == sum_h ctx_h @ wo[h*Dh:(h+1)*Dh, :]) so no concat / merge transpose needed.
        attn = bo
        for h in range(H):
            sl = slice(h * Dh, (h + 1) * Dh)
            qh, kh, vh = q[:, sl], k[:, sl], v[:, sl]
            s = lax.dot_general(qh, kh, (((1,), (1,)), ((), ())),
                                preferred_element_type=jnp.float32) * scale       # (Sq, Sk)
            if has_mask:
                s = s + mask
            m = jnp.max(s, axis=-1, keepdims=True)
            p = jnp.exp(s - m)
            denom = jnp.sum(p, axis=-1, keepdims=True)
            p = p * pl.reciprocal(denom, approx=True)                             # EUP slot, free-ish
            ctx_h = jnp.dot(p, vh, preferred_element_type=jnp.float32)            # (Sq, Dh)
            attn = attn + jnp.dot(ctx_h, wo[h * Dh:(h + 1) * Dh, :],
                                  preferred_element_type=jnp.float32)

        # residual + LayerNorm epilogue
        o_ref[b] = _layernorm_math(xq + attn, g, bb)


def fused_mha_layernorm(xq, xkv, attn_p, ln_g, ln_b, num_heads, mask=None):
    """LayerNorm(xq + MHA(xq, kv, kv)) with kv = xq if xkv is None. Shapes: (B, Sq, D)."""
    B, Sq, D = xq.shape
    H = num_heads
    Dh = D // H
    same_kv = xkv is None
    has_mask = mask is not None

    inputs = [xq]
    if not same_kv:
        inputs.append(xkv)
    inputs += [attn_p["wqkv"], attn_p["bqkv"].reshape(1, 3 * D),
               attn_p["wo"], attn_p["bo"].reshape(1, D),
               ln_g.reshape(1, D), ln_b.reshape(1, D)]
    if has_mask:
        # sanitize -inf -> -1e9 (numerically identical here, NaN-safe in general)
        inputs.append(jnp.maximum(mask.astype(jnp.float32), jnp.float32(NEG_BIG)))

    kernel = functools.partial(_mha_ln_kernel, B=B, H=H, Dh=Dh,
                               same_kv=same_kv, has_mask=has_mask)
    return pl.pallas_call(
        kernel,
        out_shape=jax.ShapeDtypeStruct((B, Sq, D), jnp.float32),
        grid=(1,),
        in_specs=[_full_spec(a.shape) for a in inputs],
        out_specs=_full_spec((B, Sq, D)),
    )(*inputs)


# --------------------------- fused FFN (+res+LN) ----------------------------

def _ffn_ln_kernel(x_ref, w1_ref, b1_ref, w2_ref, b2_ref, g_ref, bb_ref, o_ref):
    x = x_ref[...]                                                           # (M, D)
    h = jnp.dot(x, w1_ref[...], preferred_element_type=jnp.float32) + b1_ref[...]
    h = jnp.maximum(h, 0.0)                                                  # (M, FF) stays in VMEM
    y = jnp.dot(h, w2_ref[...], preferred_element_type=jnp.float32) + b2_ref[...]
    o_ref[...] = _layernorm_math(x + y, g_ref[...], bb_ref[...])


def fused_ffn_layernorm(x, layer_p, ln_g, ln_b):
    """x: (M, D) -> LayerNorm(x + W2 relu(W1 x + b1) + b2)."""
    M, D = x.shape
    FF = layer_p["w1"].shape[1]
    args = [x, layer_p["w1"], layer_p["b1"].reshape(1, FF),
            layer_p["w2"], layer_p["b2"].reshape(1, D),
            ln_g.reshape(1, D), ln_b.reshape(1, D)]
    return pl.pallas_call(
        _ffn_ln_kernel,
        out_shape=jax.ShapeDtypeStruct((M, D), jnp.float32),
        grid=(1,),
        in_specs=[_full_spec(a.shape) for a in args],
        out_specs=_full_spec((M, D)),
    )(*args)


# ------------------------- standalone / fused norms --------------------------

def _ln_kernel(x_ref, g_ref, b_ref, o_ref):
    o_ref[...] = _layernorm_math(x_ref[...], g_ref[...], b_ref[...])


def layernorm(x, gamma, beta):
    M, D = x.shape
    args = [x, gamma.reshape(1, D), beta.reshape(1, D)]
    return pl.pallas_call(
        _ln_kernel,
        out_shape=jax.ShapeDtypeStruct((M, D), jnp.float32),
        grid=(1,),
        in_specs=[_full_spec(a.shape) for a in args],
        out_specs=_full_spec((M, D)),
    )(*args)


def _ln_linear_kernel(x_ref, g_ref, bb_ref, w_ref, b_ref, o_ref):
    z = _layernorm_math(x_ref[...], g_ref[...], bb_ref[...])
    o_ref[...] = jnp.dot(z, w_ref[...], preferred_element_type=jnp.float32) + b_ref[...]


def fused_layernorm_linear(x, gamma, beta, w, b):
    """Final decoder LayerNorm fused with the vocabulary projection."""
    M, D = x.shape
    N = w.shape[1]
    args = [x, gamma.reshape(1, D), beta.reshape(1, D), w, b.reshape(1, N)]
    return pl.pallas_call(
        _ln_linear_kernel,
        out_shape=jax.ShapeDtypeStruct((M, N), jnp.float32),
        grid=(1,),
        in_specs=[_full_spec(a.shape) for a in args],
        out_specs=_full_spec((M, N)),
    )(*args)


# --------------------------- model orchestration ----------------------------

def encoder_layer(x, p, num_heads):
    B, S, D = x.shape
    h = fused_mha_layernorm(x, None, p["self_attn"], p["ln1_g"], p["ln1_b"], num_heads)
    h = fused_ffn_layernorm(h.reshape(B * S, D), p, p["ln2_g"], p["ln2_b"])
    return h.reshape(B, S, D)


def decoder_layer(x, memory, p, num_heads, tgt_mask):
    B, S, D = x.shape
    h = fused_mha_layernorm(x, None, p["self_attn"], p["ln1_g"], p["ln1_b"],
                            num_heads, mask=tgt_mask)
    h = fused_mha_layernorm(h, memory, p["cross_attn"], p["ln2_g"], p["ln2_b"], num_heads)
    h = fused_ffn_layernorm(h.reshape(B * S, D), p, p["ln3_g"], p["ln3_b"])
    return h.reshape(B, S, D)


def make_pos_encoding(max_len, d):
    pos = jnp.arange(max_len, dtype=jnp.float32)[:, None]
    div = jnp.exp(jnp.arange(0, d, 2, dtype=jnp.float32) * (-math.log(10000.0) / d))
    pe = jnp.zeros((max_len, d), jnp.float32)
    pe = pe.at[:, 0::2].set(jnp.sin(pos * div))
    pe = pe.at[:, 1::2].set(jnp.cos(pos * div))
    return pe[:, None, :]  # (max_len, 1, d), like the torch buffer after unsqueeze+transpose


def get_target_mask(size):
    lower = jnp.tril(jnp.ones((size, size), jnp.float32))
    return jnp.where(lower == 0.0, -jnp.inf, 0.0).astype(jnp.float32)


def transformer_mkii_forward(params, source_ids, target_ids, target_mask, *, num_heads):
    D = params["embedding"].shape[1]
    scale = math.sqrt(D)
    src = jnp.take(params["embedding"], source_ids, axis=0) * scale   # (B, Ss, D)
    tgt = jnp.take(params["embedding"], target_ids, axis=0) * scale   # (B, St, D)

    pe = params["pos_encoding"]
    # reproduce PositionalEncoding quirk: slice by dim-0 (batch) of the batch-first tensor
    src = src + pe[: src.shape[0], :]
    tgt = tgt + pe[: tgt.shape[0], :]
    # TODO(synk): dropout is stochastic at train time; treated as identity (eval mode) here.

    memory = src
    for p in params["encoder_layers"]:
        memory = encoder_layer(memory, p, num_heads)
    Bm, Sm, _ = memory.shape
    memory = layernorm(memory.reshape(Bm * Sm, D),
                       params["enc_norm_g"], params["enc_norm_b"]).reshape(Bm, Sm, D)

    out = tgt
    for p in params["decoder_layers"]:
        out = decoder_layer(out, memory, p, num_heads, target_mask)
    Bo, So, _ = out.shape
    logits = fused_layernorm_linear(out.reshape(Bo * So, D),
                                    params["dec_norm_g"], params["dec_norm_b"],
                                    params["w_out"], params["b_out"])
    return logits.reshape(Bo, So, -1)


# ------------------------------- parameters ---------------------------------

def _mha_params(keys, d, scale=0.02):
    return {
        "wqkv": jax.random.normal(next(keys), (d, 3 * d), jnp.float32) * scale,
        "bqkv": jnp.zeros((3 * d,), jnp.float32),
        "wo": jax.random.normal(next(keys), (d, d), jnp.float32) * scale,
        "bo": jnp.zeros((d,), jnp.float32),
    }


def init_params(key, num_tokens, d, n_enc, n_dec, dim_ff, max_len):
    keys = iter(jax.random.split(key, 128))
    scale = 0.02

    def ffn_and_norms(extra_norm=False):
        p = {
            "w1": jax.random.normal(next(keys), (d, dim_ff), jnp.float32) * scale,
            "b1": jnp.zeros((dim_ff,), jnp.float32),
            "w2": jax.random.normal(next(keys), (dim_ff, d), jnp.float32) * scale,
            "b2": jnp.zeros((d,), jnp.float32),
            "ln1_g": jnp.ones((d,), jnp.float32), "ln1_b": jnp.zeros((d,), jnp.float32),
            "ln2_g": jnp.ones((d,), jnp.float32), "ln2_b": jnp.zeros((d,), jnp.float32),
        }
        if extra_norm:
            p["ln3_g"] = jnp.ones((d,), jnp.float32)
            p["ln3_b"] = jnp.zeros((d,), jnp.float32)
        return p

    enc_layers = []
    for _ in range(n_enc):
        p = {"self_attn": _mha_params(keys, d, scale)}
        p.update(ffn_and_norms(extra_norm=False))
        enc_layers.append(p)

    dec_layers = []
    for _ in range(n_dec):
        p = {"self_attn": _mha_params(keys, d, scale),
             "cross_attn": _mha_params(keys, d, scale)}
        p.update(ffn_and_norms(extra_norm=True))
        dec_layers.append(p)

    return {
        "embedding": jax.random.normal(next(keys), (num_tokens, d), jnp.float32),
        "pos_encoding": make_pos_encoding(max_len, d),
        "encoder_layers": enc_layers,
        "decoder_layers": dec_layers,
        "enc_norm_g": jnp.ones((d,), jnp.float32), "enc_norm_b": jnp.zeros((d,), jnp.float32),
        "dec_norm_g": jnp.ones((d,), jnp.float32), "dec_norm_b": jnp.zeros((d,), jnp.float32),
        "w_out": jax.random.normal(next(keys), (d, num_tokens), jnp.float32) * scale,
        "b_out": jnp.zeros((num_tokens,), jnp.float32),
    }


# ---------------------------------- main -------------------------------------

if __name__ == "__main__":
    num_tokens = 32
    embedding_dimention = 32
    num_heads = 4
    num_encoder_layers = 2
    num_decoder_layers = 2
    dim_feedforward = 2048          # nn.Transformer default
    pos_encoding_max_len = 64
    B, S_src, S_tgt = 2, 8, 8

    root = jax.random.PRNGKey(0)
    pkey, skey, tkey = jax.random.split(root, 3)

    params = init_params(pkey, num_tokens, embedding_dimention,
                         num_encoder_layers, num_decoder_layers,
                         dim_feedforward, pos_encoding_max_len)

    source = jax.random.randint(skey, (B, S_src), 0, num_tokens, dtype=jnp.int32)
    target = jax.random.randint(tkey, (B, S_tgt), 0, num_tokens, dtype=jnp.int32)
    tgt_mask = get_target_mask(S_tgt)

    fwd = jax.jit(functools.partial(transformer_mkii_forward, num_heads=num_heads))
    logits = fwd(params, source, target, tgt_mask)
    logits = jax.block_until_ready(logits)

    assert logits.shape == (B, S_tgt, num_tokens), logits.shape
    assert bool(jnp.all(jnp.isfinite(logits)))
    print("KERNEL_OK")
</pallas_src>

<mosaic_0001>
module attributes {stable_mosaic.version = 11 : i64} {
  func.func @_ln_kernel(%arg0: i32, %arg1: memref<16x32xf32, #tpu.memory_space<vmem>>, %arg2: memref<1x32xf32, #tpu.memory_space<vmem>>, %arg3: memref<1x32xf32, #tpu.memory_space<vmem>>, %arg4: memref<16x32xf32, #tpu.memory_space<vmem>>) attributes {dimension_semantics = [#tpu.dimension_semantics<arbitrary>], iteration_bounds = array<i64: 1>, scalar_prefetch = 0 : i64, scratch_operands = 0 : i64, tpu.core_type = #tpu.core_type<tc>, window_params = [{pipeline_mode = #tpu.pipeline_mode<synchronous>, transform_indices = @transform_0, window_bounds = array<i64: 16, 32>}, {pipeline_mode = #tpu.pipeline_mode<synchronous>, transform_indices = @transform_1, window_bounds = array<i64: 1, 32>}, {pipeline_mode = #tpu.pipeline_mode<synchronous>, transform_indices = @transform_2, window_bounds = array<i64: 1, 32>}, {pipeline_mode = #tpu.pipeline_mode<synchronous>, transform_indices = @transform_3, window_bounds = array<i64: 16, 32>}]} {
    %c0 = arith.constant 0 : index
    %c0_0 = arith.constant 0 : index
    %0 = vector.load %arg1[%c0, %c0_0] : memref<16x32xf32, #tpu.memory_space<vmem>>, vector<16x32xf32>
    %c0_1 = arith.constant 0 : index
    %c0_2 = arith.constant 0 : index
    %1 = vector.load %arg2[%c0_1, %c0_2] : memref<1x32xf32, #tpu.memory_space<vmem>>, vector<1x32xf32>
    %c0_3 = arith.constant 0 : index
    %c0_4 = arith.constant 0 : index
    %2 = vector.load %arg3[%c0_3, %c0_4] : memref<1x32xf32, #tpu.memory_space<vmem>>, vector<1x32xf32>
    %cst = arith.constant dense<0.000000e+00> : vector<16xf32>
    %3 = vector.multi_reduction <add>, %0, %cst [1] : vector<16x32xf32> to vector<16xf32>
    %4 = vector.shape_cast %3 : vector<16xf32> to vector<16x1xf32>
    %cst_5 = arith.constant 3.200000e+01 : f32
    %5 = vector.broadcast %cst_5 : f32 to vector<16x1xf32>
    %6 = arith.divf %4, %5 : vector<16x1xf32>
    %7 = vector.broadcast %6 : vector<16x1xf32> to vector<16x32xf32>
    %8 = arith.subf %0, %7 : vector<16x32xf32>
    %9 = arith.mulf %8, %8 : vector<16x32xf32>
    %cst_6 = arith.constant dense<0.000000e+00> : vector<16xf32>
    %10 = vector.multi_reduction <add>, %9, %cst_6 [1] : vector<16x32xf32> to vector<16xf32>
    %11 = vector.shape_cast %10 : vector<16xf32> to vector<16x1xf32>
    %cst_7 = arith.constant 3.200000e+01 : f32
    %12 = vector.broadcast %cst_7 : f32 to vector<16x1xf32>
    %13 = arith.divf %11, %12 : vector<16x1xf32>
    %14 = vector.broadcast %6 : vector<16x1xf32> to vector<16x32xf32>
    %15 = arith.subf %0, %14 : vector<16x32xf32>
    %cst_8 = arith.constant 9.99999974E-6 : f32
    %16 = vector.broadcast %cst_8 : f32 to vector<16x1xf32>
    %17 = arith.addf %13, %16 : vector<16x1xf32>
    %18 = math.rsqrt %17 : vector<16x1xf32>
    %19 = vector.broadcast %18 : vector<16x1xf32> to vector<16x32xf32>
    %20 = arith.mulf %15, %19 : vector<16x32xf32>
    %21 = vector.broadcast %1 : vector<1x32xf32> to vector<16x32xf32>
    %22 = arith.mulf %20, %21 : vector<16x32xf32>
    %23 = vector.broadcast %2 : vector<1x32xf32> to vector<16x32xf32>
    %24 = arith.addf %22, %23 : vector<16x32xf32>
    %c0_9 = arith.constant 0 : index
    %c0_10 = arith.constant 0 : index
    %25 = vector.load %arg4[%c0_9, %c0_10] : memref<16x32xf32, #tpu.memory_space<vmem>>, vector<16x32xf32>
    tpu.vector_store %arg4[%c0_9, %c0_10], %24 {strides = array<i32>} : memref<16x32xf32, #tpu.memory_space<vmem>>, vector<16x32xf32>,
    return
  }
  func.func @transform_0(%arg0: i32) -> (i32, i32) {
    %c0_i32 = arith.constant 0 : i32
    %c0_i32_0 = arith.constant 0 : i32
    %c0_i32_1 = arith.constant 0 : i32
    return %c0_i32, %c0_i32_0 : i32, i32
  }
  func.func @transform_1(%arg0: i32) -> (i32, i32) {
    %c0_i32 = arith.constant 0 : i32
    %c0_i32_0 = arith.constant 0 : i32
    %c0_i32_1 = arith.constant 0 : i32
    return %c0_i32, %c0_i32_0 : i32, i32
  }
  func.func @transform_2(%arg0: i32) -> (i32, i32) {
    %c0_i32 = arith.constant 0 : i32
    %c0_i32_0 = arith.constant 0 : i32
    %c0_i32_1 = arith.constant 0 : i32
    return %c0_i32, %c0_i32_0 : i32, i32
  }
  func.func @transform_3(%arg0: i32) -> (i32, i32) {
    %c0_i32 = arith.constant 0 : i32
    %c0_i32_0 = arith.constant 0 : i32
    %c0_i32_1 = arith.constant 0 : i32
    return %c0_i32, %c0_i32_0 : i32, i32
  }
}

module attributes {stable_mosaic.version = 11 : i64} {
  func.func @_ffn_ln_kernel(%arg0: i32, %arg1: memref<16x32xf32, #tpu.memory_space<vmem>>, %arg2: memref<32x2048xf32, #tpu.memory_space<vmem>>, %arg3: memref<1x2048xf32, #tpu.memory_space<vmem>>, %arg4: memref<2048x32xf32, #tpu.memory_space<vmem>>, %arg5: memref<1x32xf32, #tpu.memory_space<vmem>>, %arg6: memref<1x32xf32, #tpu.memory_space<vmem>>, %arg7: memref<1x32xf32, #tpu.memory_space<vmem>>, %arg8: memref<16x32xf32, #tpu.memory_space<vmem>>) attributes {dimension_semantics = [#tpu.dimension_semantics<arbitrary>], iteration_bounds = array<i64: 1>, scalar_prefetch = 0 : i64, scratch_operands = 0 : i64, tpu.core_type = #tpu.core_type<tc>, window_params = [{pipeline_mode = #tpu.pipeline_mode<synchronous>, transform_indices = @transform_0, window_bounds = array<i64: 16, 32>}, {pipeline_mode = #tpu.pipeline_mode<synchronous>, transform_indices = @transform_1, window_bounds = array<i64: 32, 2048>}, {pipeline_mode = #tpu.pipeline_mode<synchronous>, transform_indices = @transform_2, window_bounds = array<i64: 1, 2048>}, {pipeline_mode = #tpu.pipeline_mode<synchronous>, transform_indices = @transform_3, window_bounds = array<i64: 2048, 32>}, {pipeline_mode = #tpu.pipeline_mode<synchronous>, transform_indices = @transform_4, window_bounds = array<i64: 1, 32>}, {pipeline_mode = #tpu.pipeline_mode<synchronous>, transform_indices = @transform_5, window_bounds = array<i64: 1, 32>}, {pipeline_mode = #tpu.pipeline_mode<synchronous>, transform_indices = @transform_6, window_bounds = array<i64: 1, 32>}, {pipeline_mode = #tpu.pipeline_mode<synchronous>, transform_indices = @transform_7, window_bounds = array<i64: 16, 32>}]} {
    %c0 = arith.constant 0 : index
    %c0_0 = arith.constant 0 : index
    %0 = vector.load %arg1[%c0, %c0_0] : memref<16x32xf32, #tpu.memory_space<vmem>>, vector<16x32xf32>
    %c0_1 = arith.constant 0 : index
    %c0_2 = arith.constant 0 : index
    %1 = vector.load %arg2[%c0_1, %c0_2] : memref<32x2048xf32, #tpu.memory_space<vmem>>, vector<32x2048xf32>
    %cst = arith.constant dense<0.000000e+00> : vector<16x2048xf32>
    %2 = tpu.matmul %0, %1, %cst {dimension_numbers = #tpu.dot_dimension_numbers<[1], [0], [0], [1], [0, 0, 1, 1], [], []>} : vector<16x32xf32>, vector<32x2048xf32>, vector<16x2048xf32> -> vector<16x2048xf32>
    %c0_3 = arith.constant 0 : index
    %c0_4 = arith.constant 0 : index
    %3 = vector.load %arg3[%c0_3, %c0_4] : memref<1x2048xf32, #tpu.memory_space<vmem>>, vector<1x2048xf32>
    %4 = vector.broadcast %3 : vector<1x2048xf32> to vector<16x2048xf32>
    %5 = arith.addf %2, %4 : vector<16x2048xf32>
    %cst_5 = arith.constant 0.000000e+00 : f32
    %6 = vector.broadcast %cst_5 : f32 to vector<16x2048xf32>
    %7 = arith.maximumf %5, %6 : vector<16x2048xf32>
    %c0_6 = arith.constant 0 : index
    %c0_7 = arith.constant 0 : index
    %8 = vector.load %arg4[%c0_6, %c0_7] : memref<2048x32xf32, #tpu.memory_space<vmem>>, vector<2048x32xf32>
    %cst_8 = arith.constant dense<0.000000e+00> : vector<16x32xf32>
    %9 = tpu.matmul %7, %8, %cst_8 {dimension_numbers = #tpu.dot_dimension_numbers<[1], [0], [0], [1], [0, 0, 1, 1], [], []>} : vector<16x2048xf32>, vector<2048x32xf32>, vector<16x32xf32> -> vector<16x32xf32>
    %c0_9 = arith.constant 0 : index
    %c0_10 = arith.constant 0 : index
    %10 = vector.load %arg5[%c0_9, %c0_10] : memref<1x32xf32, #tpu.memory_space<vmem>>, vector<1x32xf32>
    %11 = vector.broadcast %10 : vector<1x32xf32> to vector<16x32xf32>
    %12 = arith.addf %9, %11 : vector<16x32xf32>
    %13 = arith.addf %0, %12 : vector<16x32xf32>
    %c0_11 = arith.constant 0 : index
    %c0_12 = arith.constant 0 : index
    %14 = vector.load %arg6[%c0_11, %c0_12] : memref<1x32xf32, #tpu.memory_space<vmem>>, vector<1x32xf32>
    %c0_13 = arith.constant 0 : index
    %c0_14 = arith.constant 0 : index
    %15 = vector.load %arg7[%c0_13, %c0_14] : memref<1x32xf32, #tpu.memory_space<vmem>>, vector<1x32xf32>
    %cst_15 = arith.constant dense<0.000000e+00> : vector<16xf32>
    %16 = vector.multi_reduction <add>, %13, %cst_15 [1] : vector<16x32xf32> to vector<16xf32>
    %17 = vector.shape_cast %16 : vector<16xf32> to vector<16x1xf32>
    %cst_16 = arith.constant 3.200000e+01 : f32
    %18 = vector.broadcast %cst_16 : f32 to vector<16x1xf32>
    %19 = arith.divf %17, %18 : vector<16x1xf32>
    %20 = vector.broadcast %19 : vector<16x1xf32> to vector<16x32xf32>
    %21 = arith.subf %13, %20 : vector<16x32xf32>
    %22 = arith.mulf %21, %21 : vector<16x32xf32>
    %cst_17 = arith.constant dense<0.000000e+00> : vector<16xf32>
    %23 = vector.multi_reduction <add>, %22, %cst_17 [1] : vector<16x32xf32> to vector<16xf32>
    %24 = vector.shape_cast %23 : vector<16xf32> to vector<16x1xf32>
    %cst_18 = arith.constant 3.200000e+01 : f32
    %25 = vector.broadcast %cst_18 : f32 to vector<16x1xf32>
    %26 = arith.divf %24, %25 : vector<16x1xf32>
    %27 = vector.broadcast %19 : vector<16x1xf32> to vector<16x32xf32>
    %28 = arith.subf %13, %27 : vector<16x32xf32>
    %cst_19 = arith.constant 9.99999974E-6 : f32
    %29 = vector.broadcast %cst_19 : f32 to vector<16x1xf32>
    %30 = arith.addf %26, %29 : vector<16x1xf32>
    %31 = math.rsqrt %30 : vector<16x1xf32>
    %32 = vector.broadcast %31 : vector<16x1xf32> to vector<16x32xf32>
    %33 = arith.mulf %28, %32 : vector<16x32xf32>
    %34 = vector.broadcast %14 : vector<1x32xf32> to vector<16x32xf32>
    %35 = arith.mulf %33, %34 : vector<16x32xf32>
    %36 = vector.broadcast %15 : vector<1x32xf32> to vector<16x32xf32>
    %37 = arith.addf %35, %36 : vector<16x32xf32>
    %c0_20 = arith.constant 0 : index
    %c0_21 = arith.constant 0 : index
    %38 = vector.load %arg8[%c0_20, %c0_21] : memref<16x32xf32, #tpu.memory_space<vmem>>, vector<16x32xf32>
    tpu.vector_store %arg8[%c0_20, %c0_21], %37 {strides = array<i32>} : memref<16x32xf32, #tpu.memory_space<vmem>>, vector<16x32xf32>,
    return
  }
  func.func @transform_0(%arg0: i32) -> (i32, i32) {
    %c0_i32 = arith.constant 0 : i32
    %c0_i32_0 = arith.constant 0 : i32
    %c0_i32_1 = arith.constant 0 : i32
    return %c0_i32, %c0_i32_0 : i32, i32
  }
  func.func @transform_1(%arg0: i32) -> (i32, i32) {
    %c0_i32 = arith.constant 0 : i32
    %c0_i32_0 = arith.constant 0 : i32
    %c0_i32_1 = arith.constant 0 : i32
    return %c0_i32, %c0_i32_0 : i32, i32
  }
  func.func @transform_2(%arg0: i32) -> (i32, i32) {
    %c0_i32 = arith.constant 0 : i32
    %c0_i32_0 = arith.constant 0 : i32
    %c0_i32_1 = arith.constant 0 : i32
    return %c0_i32, %c0_i32_0 : i32, i32
  }
  func.func @transform_3(%arg0: i32) -> (i32, i32) {
    %c0_i32 = arith.constant 0 : i32
    %c0_i32_0 = arith.constant 0 : i32
    %c0_i32_1 = arith.constant 0 : i32
    return %c0_i32, %c0_i32_0 : i32, i32
  }
  func.func @transform_4(%arg0: i32) -> (i32, i32) {
    %c0_i32 = arith.constant 0 : i32
    %c0_i32_0 = arith.constant 0 : i32
    %c0_i32_1 = arith.constant 0 : i32
    return %c0_i32, %c0_i32_0 : i32, i32
  }
  func.func @transform_5(%arg0: i32) -> (i32, i32) {
    %c0_i32 = arith.constant 0 : i32
    %c0_i32_0 = arith.constant 0 : i32
    %c0_i32_1 = arith.constant 0 : i32
    return %c0_i32, %c0_i32_0 : i32, i32
  }
  func.func @transform_6(%arg0: i32) -> (i32, i32) {
    %c0_i32 = arith.constant 0 : i32
    %c0_i32_0 = arith.constant 0 : i32
    %c0_i32_1 = arith.constant 0 : i32
    return %c0_i32, %c0_i32_0 : i32, i32
  }
  func.func @transform_7(%arg0: i32) -> (i32, i32) {
    %c0_i32 = arith.constant 0 : i32
    %c0_i32_0 = arith.constant 0 : i32
    %c0_i32_1 = arith.constant 0 : i32
    return %c0_i32, %c0_i32_0 : i32, i32
  }
}

module attributes {stable_mosaic.version = 11 : i64} {
  func.func @_mha_ln_kernel(%arg0: i32, %arg1: memref<2x8x32xf32, #tpu.memory_space<vmem>>, %arg2: memref<32x96xf32, #tpu.memory_space<vmem>>, %arg3: memref<1x96xf32, #tpu.memory_space<vmem>>, %arg4: memref<32x32xf32, #tpu.memory_space<vmem>>, %arg5: memref<1x32xf32, #tpu.memory_space<vmem>>, %arg6: memref<1x32xf32, #tpu.memory_space<vmem>>, %arg7: memref<1x32xf32, #tpu.memory_space<vmem>>, %arg8: memref<2x8x32xf32, #tpu.memory_space<vmem>>) attributes {dimension_semantics = [#tpu.dimension_semantics<arbitrary>], iteration_bounds = array<i64: 1>, scalar_prefetch = 0 : i64, scratch_operands = 0 : i64, tpu.core_type = #tpu.core_type<tc>, window_params = [{pipeline_mode = #tpu.pipeline_mode<synchronous>, transform_indices = @transform_0, window_bounds = array<i64: 2, 8, 32>}, {pipeline_mode = #tpu.pipeline_mode<synchronous>, transform_indices = @transform_1, window_bounds = array<i64: 32, 96>}, {pipeline_mode = #tpu.pipeline_mode<synchronous>, transform_indices = @transform_2, window_bounds = array<i64: 1, 96>}, {pipeline_mode = #tpu.pipeline_mode<synchronous>, transform_indices = @transform_3, window_bounds = array<i64: 32, 32>}, {pipeline_mode = #tpu.pipeline_mode<synchronous>, transform_indices = @transform_4, window_bounds = array<i64: 1, 32>}, {pipeline_mode = #tpu.pipeline_mode<synchronous>, transform_indices = @transform_5, window_bounds = array<i64: 1, 32>}, {pipeline_mode = #tpu.pipeline_mode<synchronous>, transform_indices = @transform_6, window_bounds = array<i64: 1, 32>}, {pipeline_mode = #tpu.pipeline_mode<synchronous>, transform_indices = @transform_7, window_bounds = array<i64: 2, 8, 32>}]} {
    %c0 = arith.constant 0 : index
    %c0_0 = arith.constant 0 : index
    %0 = vector.load %arg2[%c0, %c0_0] : memref<32x96xf32, #tpu.memory_space<vmem>>, vector<32x96xf32>
    %c0_1 = arith.constant 0 : index
    %c0_2 = arith.constant 0 : index
    %1 = vector.load %arg3[%c0_1, %c0_2] : memref<1x96xf32, #tpu.memory_space<vmem>>, vector<1x96xf32>
    %c0_3 = arith.constant 0 : index
    %c0_4 = arith.constant 0 : index
    %2 = vector.load %arg4[%c0_3, %c0_4] : memref<32x32xf32, #tpu.memory_space<vmem>>, vector<32x32xf32>
    %c0_5 = arith.constant 0 : index
    %c0_6 = arith.constant 0 : index
    %3 = vector.load %arg5[%c0_5, %c0_6] : memref<1x32xf32, #tpu.memory_space<vmem>>, vector<1x32xf32>
    %c0_7 = arith.constant 0 : index
    %c0_8 = arith.constant 0 : index
    %4 = vector.load %arg6[%c0_7, %c0_8] : memref<1x32xf32, #tpu.memory_space<vmem>>, vector<1x32xf32>
    %c0_9 = arith.constant 0 : index
    %c0_10 = arith.constant 0 : index
    %5 = vector.load %arg7[%c0_9, %c0_10] : memref<1x32xf32, #tpu.memory_space<vmem>>, vector<1x32xf32>
    %c0_11 = arith.constant 0 : index
    %c0_12 = arith.constant 0 : index
    %c0_13 = arith.constant 0 : index
    %6 = vector.load %arg1[%c0_11, %c0_12, %c0_13] : memref<2x8x32xf32, #tpu.memory_space<vmem>>, vector<1x8x32xf32>
    %7 = vector.shape_cast %6 : vector<1x8x32xf32> to vector<8x32xf32>
    %cst = arith.constant dense<0.000000e+00> : vector<8x96xf32>
    %8 = tpu.matmul %7, %0, %cst {dimension_numbers = #tpu.dot_dimension_numbers<[1], [0], [0], [1], [0, 0, 1, 1], [], []>} : vector<8x32xf32>, vector<32x96xf32>, vector<8x96xf32> -> vector<8x96xf32>
    %9 = vector.broadcast %1 : vector<1x96xf32> to vector<8x96xf32>
    %10 = arith.addf %8, %9 : vector<8x96xf32>
    %11 = vector.extract_strided_slice %10 {offsets = [0, 0], sizes = [8, 32], strides = [1, 1]} : vector<8x96xf32> to vector<8x32xf32>
    %12 = vector.extract_strided_slice %10 {offsets = [0, 32], sizes = [8, 32], strides = [1, 1]} : vector<8x96xf32> to vector<8x32xf32>
    %13 = vector.extract_strided_slice %10 {offsets = [0, 64], sizes = [8, 32], strides = [1, 1]} : vector<8x96xf32> to vector<8x32xf32>
    %14 = vector.extract_strided_slice %11 {offsets = [0, 0], sizes = [8, 8], strides = [1, 1]} : vector<8x32xf32> to vector<8x8xf32>
    %15 = vector.extract_strided_slice %12 {offsets = [0, 0], sizes = [8, 8], strides = [1, 1]} : vector<8x32xf32> to vector<8x8xf32>
    %16 = vector.extract_strided_slice %13 {offsets = [0, 0], sizes = [8, 8], strides = [1, 1]} : vector<8x32xf32> to vector<8x8xf32>
    %cst_14 = arith.constant dense<0.000000e+00> : vector<8x8xf32>
    %17 = tpu.matmul %14, %15, %cst_14 {dimension_numbers = #tpu.dot_dimension_numbers<[1], [1], [0], [0], [0, 0, 1, 0], [], []>} : vector<8x8xf32>, vector<8x8xf32>, vector<8x8xf32> -> vector<8x8xf32>
    %cst_15 = arith.constant 0.353553385 : f32
    %18 = vector.broadcast %cst_15 : f32 to vector<8x8xf32>
    %19 = arith.mulf %17, %18 : vector<8x8xf32>
    %cst_16 = arith.constant dense<0xFF800000> : vector<8xf32>
    %20 = vector.multi_reduction <maximumf>, %19, %cst_16 [1] : vector<8x8xf32> to vector<8xf32>
    %21 = vector.shape_cast %20 : vector<8xf32> to vector<8x1xf32>
    %22 = vector.broadcast %21 : vector<8x1xf32> to vector<8x8xf32>
    %23 = arith.subf %19, %22 : vector<8x8xf32>
    %24 = math.exp %23 : vector<8x8xf32>
    %cst_17 = arith.constant dense<0.000000e+00> : vector<8xf32>
    %25 = vector.multi_reduction <add>, %24, %cst_17 [1] : vector<8x8xf32> to vector<8xf32>
    %26 = vector.shape_cast %25 : vector<8xf32> to vector<8x1xf32>
    %27 = tpu.reciprocal %26 {approx = true} : vector<8x1xf32> -> vector<8x1xf32>
    %28 = vector.broadcast %27 : vector<8x1xf32> to vector<8x8xf32>
    %29 = arith.mulf %24, %28 : vector<8x8xf32>
    %cst_18 = arith.constant dense<0.000000e+00> : vector<8x8xf32>
    %30 = tpu.matmul %29, %16, %cst_18 {dimension_numbers = #tpu.dot_dimension_numbers<[1], [0], [0], [1], [0, 0, 1, 1], [], []>} : vector<8x8xf32>, vector<8x8xf32>, vector<8x8xf32> -> vector<8x8xf32>
    %31 = vector.extract_strided_slice %2 {offsets = [0, 0], sizes = [8, 32], strides = [1, 1]} : vector<32x32xf32> to vector<8x32xf32>
    %cst_19 = arith.constant dense<0.000000e+00> : vector<8x32xf32>
    %32 = tpu.matmul %30, %31, %cst_19 {dimension_numbers = #tpu.dot_dimension_numbers<[1], [0], [0], [1], [0, 0, 1, 1], [], []>} : vector<8x8xf32>, vector<8x32xf32>, vector<8x32xf32> -> vector<8x32xf32>
    %33 = vector.broadcast %3 : vector<1x32xf32> to vector<8x32xf32>
    %34 = arith.addf %33, %32 : vector<8x32xf32>
    %35 = vector.extract_strided_slice %11 {offsets = [0, 8], sizes = [8, 8], strides = [1, 1]} : vector<8x32xf32> to vector<8x8xf32>
    %36 = vector.extract_strided_slice %12 {offsets = [0, 8], sizes = [8, 8], strides = [1, 1]} : vector<8x32xf32> to vector<8x8xf32>
    %37 = vector.extract_strided_slice %13 {offsets = [0, 8], sizes = [8, 8], strides = [1, 1]} : vector<8x32xf32> to vector<8x8xf32>
    %cst_20 = arith.constant dense<0.000000e+00> : vector<8x8xf32>
    %38 = tpu.matmul %35, %36, %cst_20 {dimension_numbers = #tpu.dot_dimension_numbers<[1], [1], [0], [0], [0, 0, 1, 0], [], []>} : vector<8x8xf32>, vector<8x8xf32>, vector<8x8xf32> -> vector<8x8xf32>
    %cst_21 = arith.constant 0.353553385 : f32
    %39 = vector.broadcast %cst_21 : f32 to vector<8x8xf32>
    %40 = arith.mulf %38, %39 : vector<8x8xf32>
    %cst_22 = arith.constant dense<0xFF800000> : vector<8xf32>
    %41 = vector.multi_reduction <maximumf>, %40, %cst_22 [1] : vector<8x8xf32> to vector<8xf32>
    %42 = vector.shape_cast %41 : vector<8xf32> to vector<8x1xf32>
    %43 = vector.broadcast %42 : vector<8x1xf32> to vector<8x8xf32>
    %44 = arith.subf %40, %43 : vector<8x8xf32>
    %45 = math.exp %44 : vector<8x8xf32>
    %cst_23 = arith.constant dense<0.000000e+00> : vector<8xf32>
    %46 = vector.multi_reduction <add>, %45, %cst_23 [1] : vector<8x8xf32> to vector<8xf32>
    %47 = vector.shape_cast %46 : vector<8xf32> to vector<8x1xf32>
    %48 = tpu.reciprocal %47 {approx = true} : vector<8x1xf32> -> vector<8x1xf32>
    %49 = vector.broadcast %48 : vector<8x1xf32> to vector<8x8xf32>
    %50 = arith.mulf %45, %49 : vector<8x8xf32>
    %cst_24 = arith.constant dense<0.000000e+00> : vector<8x8xf32>
    %51 = tpu.matmul %50, %37, %cst_24 {dimension_numbers = #tpu.dot_dimension_numbers<[1], [0], [0], [1], [0, 0, 1, 1], [], []>} : vector<8x8xf32>, vector<8x8xf32>, vector<8x8xf32> -> vector<8x8xf32>
    %52 = vector.extract_strided_slice %2 {offsets = [8, 0], sizes = [8, 32], strides = [1, 1]} : vector<32x32xf32> to vector<8x32xf32>
    %cst_25 = arith.constant dense<0.000000e+00> : vector<8x32xf32>
    %53 = tpu.matmul %51, %52, %cst_25 {dimension_numbers = #tpu.dot_dimension_numbers<[1], [0], [0], [1], [0, 0, 1, 1], [], []>} : vector<8x8xf32>, vector<8x32xf32>, vector<8x32xf32> -> vector<8x32xf32>
    %54 = arith.addf %34, %53 : vector<8x32xf32>
    %55 = vector.extract_strided_slice %11 {offsets = [0, 16], sizes = [8, 8], strides = [1, 1]} : vector<8x32xf32> to vector<8x8xf32>
    %56 = vector.extract_strided_slice %12 {offsets = [0, 16], sizes = [8, 8], strides = [1, 1]} : vector<8x32xf32> to vector<8x8xf32>
    %57 = vector.extract_strided_slice %13 {offsets = [0, 16], sizes = [8, 8], strides = [1, 1]} : vector<8x32xf32> to vector<8x8xf32>
    %cst_26 = arith.constant dense<0.000000e+00> : vector<8x8xf32>
    %58 = tpu.matmul %55, %56, %cst_26 {dimension_numbers = #tpu.dot_dimension_numbers<[1], [1], [0], [0], [0, 0, 1, 0], [], []>} : vector<8x8xf32>, vector<8x8xf32>, vector<8x8xf32> -> vector<8x8xf32>
    %cst_27 = arith.constant 0.353553385 : f32
    %59 = vector.broadcast %cst_27 : f32 to vector<8x8xf32>
    %60 = arith.mulf %58, %59 : vector<8x8xf32>
    %cst_28 = arith.constant dense<0xFF800000> : vector<8xf32>
    %61 = vector.multi_reduction <maximumf>, %60, %cst_28 [1] : vector<8x8xf32> to vector<8xf32>
    %62 = vector.shape_cast %61 : vector<8xf32> to vector<8x1xf32>
    %63 = vector.broadcast %62 : vector<8x1xf32> to vector<8x8xf32>
    %64 = arith.subf %60, %63 : vector<8x8xf32>
    %65 = math.exp %64 : vector<8x8xf32>
    %cst_29 = arith.constant dense<0.000000e+00> : vector<8xf32>
    %66 = vector.multi_reduction <add>, %65, %cst_29 [1] : vector<8x8xf32> to vector<8xf32>
    %67 = vector.shape_cast %66 : vector<8xf32> to vector<8x1xf32>
    %68 = tpu.reciprocal %67 {approx = true} : vector<8x1xf32> -> vector<8x1xf32>
    %69 = vector.broadcast %68 : vector<8x1xf32> to vector<8x8xf32>
    %70 = arith.mulf %65, %69 : vector<8x8xf32>
    %cst_30 = arith.constant dense<0.000000e+00> : vector<8x8xf32>
    %71 = tpu.matmul %70, %57, %cst_30 {dimension_numbers = #tpu.dot_dimension_numbers<[1], [0], [0], [1], [0, 0, 1, 1], [], []>} : vector<8x8xf32>, vector<8x8xf32>, vector<8x8xf32> -> vector<8x8xf32>
    %72 = vector.extract_strided_slice %2 {offsets = [16, 0], sizes = [8, 32], strides = [1, 1]} : vector<32x32xf32> to vector<8x32xf32>
    %cst_31 = arith.constant dense<0.000000e+00> : vector<8x32xf32>
    %73 = tpu.matmul %71, %72, %cst_31 {dimension_numbers = #tpu.dot_dimension_numbers<[1], [0], [0], [1], [0, 0, 1, 1], [], []>} : vector<8x8xf32>, vector<8x32xf32>, vector<8x32xf32> -> vector<8x32xf32>
    %74 = arith.addf %54, %73 : vector<8x32xf32>
    %75 = vector.extract_strided_slice %11 {offsets = [0, 24], sizes = [8, 8], strides = [1, 1]} : vector<8x32xf32> to vector<8x8xf32>
    %76 = vector.extract_strided_slice %12 {offsets = [0, 24], sizes = [8, 8], strides = [1, 1]} : vector<8x32xf32> to vector<8x8xf32>
    %77 = vector.extract_strided_slice %13 {offsets = [0, 24], sizes = [8, 8], strides = [1, 1]} : vector<8x32xf32> to vector<8x8xf32>
    %cst_32 = arith.constant dense<0.000000e+00> : vector<8x8xf32>
    %78 = tpu.matmul %75, %76, %cst_32 {dimension_numbers = #tpu.dot_dimension_numbers<[1], [1], [0], [0], [0, 0, 1, 0], [], []>} : vector<8x8xf32>, vector<8x8xf32>, vector<8x8xf32> -> vector<8x8xf32>
    %cst_33 = arith.constant 0.353553385 : f32
    %79 = vector.broadcast %cst_33 : f32 to vector<8x8xf32>
    %80 = arith.mulf %78, %79 : vector<8x8xf32>
    %cst_34 = arith.constant dense<0xFF800000> : vector<8xf32>
    %81 = vector.multi_reduction <maximumf>, %80, %cst_34 [1] : vector<8x8xf32> to vector<8xf32>
    %82 = vector.shape_cast %81 : vector<8xf32> to vector<8x1xf32>
    %83 = vector.broadcast %82 : vector<8x1xf32> to vector<8x8xf32>
    %84 = arith.subf %80, %83 : vector<8x8xf32>
    %85 = math.exp %84 : vector<8x8xf32>
    %cst_35 = arith.constant dense<0.000000e+00> : vector<8xf32>
    %86 = vector.multi_reduction <add>, %85, %cst_35 [1] : vector<8x8xf32> to vector<8xf32>
    %87 = vector.shape_cast %86 : vector<8xf32> to vector<8x1xf32>
    %88 = tpu.reciprocal %87 {approx = true} : vector<8x1xf32> -> vector<8x1xf32>
    %89 = vector.broadcast %88 : vector<8x1xf32> to vector<8x8xf32>
    %90 = arith.mulf %85, %89 : vector<8x8xf32>
    %cst_36 = arith.constant dense<0.000000e+00> : vector<8x8xf32>
    %91 = tpu.matmul %90, %77, %cst_36 {dimension_numbers = #tpu.dot_dimension_numbers<[1], [0], [0], [1], [0, 0, 1, 1], [], []>} : vector<8x8xf32>, vector<8x8xf32>, vector<8x8xf32> -> vector<8x8xf32>
    %92 = vector.extract_strided_slice %2 {offsets = [24, 0], sizes = [8, 32], strides = [1, 1]} : vector<32x32xf32> to vector<8x32xf32>
    %cst_37 = arith.constant dense<0.000000e+00> : vector<8x32xf32>
    %93 = tpu.matmul %91, %92, %cst_37 {dimension_numbers = #tpu.dot_dimension_numbers<[1], [0], [0], [1], [0, 0, 1, 1], [], []>} : vector<8x8xf32>, vector<8x32xf32>, vector<8x32xf32> -> vector<8x32xf32>
    %94 = arith.addf %74, %93 : vector<8x32xf32>
    %95 = arith.addf %7, %94 : vector<8x32xf32>
    %cst_38 = arith.constant dense<0.000000e+00> : vector<8xf32>
    %96 = vector.multi_reduction <add>, %95, %cst_38 [1] : vector<8x32xf32> to vector<8xf32>
    %97 = vector.shape_cast %96 : vector<8xf32> to vector<8x1xf32>
    %cst_39 = arith.constant 3.200000e+01 : f32
    %98 = vector.broadcast %cst_39 : f32 to vector<8x1xf32>
    %99 = arith.divf %97, %98 : vector<8x1xf32>
    %100 = vector.broadcast %99 : vector<8x1xf32> to vector<8x32xf32>
    %101 = arith.subf %95, %100 : vector<8x32xf32>
    %102 = arith.mulf %101, %101 : vector<8x32xf32>
    %cst_40 = arith.constant dense<0.000000e+00> : vector<8xf32>
    %103 = vector.multi_reduction <add>, %102, %cst_40 [1] : vector<8x32xf32> to vector<8xf32>
    %104 = vector.shape_cast %103 : vector<8xf32> to vector<8x1xf32>
    %cst_41 = arith.constant 3.200000e+01 : f32
    %105 = vector.broadcast %cst_41 : f32 to vector<8x1xf32>
    %106 = arith.divf %104, %105 : vector<8x1xf32>
    %107 = vector.broadcast %99 : vector<8x1xf32> to vector<8x32xf32>
    %108 = arith.subf %95, %107 : vector<8x32xf32>
    %cst_42 = arith.constant 9.99999974E-6 : f32
    %109 = vector.broadcast %cst_42 : f32 to vector<8x1xf32>
    %110 = arith.addf %106, %109 : vector<8x1xf32>
    %111 = math.rsqrt %110 : vector<8x1xf32>
    %112 = vector.broadcast %111 : vector<8x1xf32> to vector<8x32xf32>
    %113 = arith.mulf %108, %112 : vector<8x32xf32>
    %114 = vector.broadcast %4 : vector<1x32xf32> to vector<8x32xf32>
    %115 = arith.mulf %113, %114 : vector<8x32xf32>
    %116 = vector.broadcast %5 : vector<1x32xf32> to vector<8x32xf32>
    %117 = arith.addf %115, %116 : vector<8x32xf32>
    %c0_43 = arith.constant 0 : index
    %c0_44 = arith.constant 0 : index
    %c0_45 = arith.constant 0 : index
    %118 = vector.load %arg8[%c0_43, %c0_44, %c0_45] : memref<2x8x32xf32, #tpu.memory_space<vmem>>, vector<1x8x32xf32>
    %119 = vector.shape_cast %118 : vector<1x8x32xf32> to vector<8x32xf32>
    %120 = vector.shape_cast %117 : vector<8x32xf32> to vector<1x8x32xf32>
    tpu.vector_store %arg8[%c0_43, %c0_44, %c0_45], %120 {strides = array<i32>} : memref<2x8x32xf32, #tpu.memory_space<vmem>>, vector<1x8x32xf32>,
    %c1 = arith.constant 1 : index
    %c0_46 = arith.constant 0 : index
    %c0_47 = arith.constant 0 : index
    %121 = vector.load %arg1[%c1, %c0_46, %c0_47] : memref<2x8x32xf32, #tpu.memory_space<vmem>>, vector<1x8x32xf32>
    %122 = vector.shape_cast %121 : vector<1x8x32xf32> to vector<8x32xf32>
    %cst_48 = arith.constant dense<0.000000e+00> : vector<8x96xf32>
    %123 = tpu.matmul %122, %0, %cst_48 {dimension_numbers = #tpu.dot_dimension_numbers<[1], [0], [0], [1], [0, 0, 1, 1], [], []>} : vector<8x32xf32>, vector<32x96xf32>, vector<8x96xf32> -> vector<8x96xf32>
    %124 = vector.broadcast %1 : vector<1x96xf32> to vector<8x96xf32>
    %125 = arith.addf %123, %124 : vector<8x96xf32>
    %126 = vector.extract_strided_slice %125 {offsets = [0, 0], sizes = [8, 32], strides = [1, 1]} : vector<8x96xf32> to vector<8x32xf32>
    %127 = vector.extract_strided_slice %125 {offsets = [0, 32], sizes = [8, 32], strides = [1, 1]} : vector<8x96xf32> to vector<8x32xf32>
    %128 = vector.extract_strided_slice %125 {offsets = [0, 64], sizes = [8, 32], strides = [1, 1]} : vector<8x96xf32> to vector<8x32xf32>
    %129 = vector.extract_strided_slice %126 {offsets = [0, 0], sizes = [8, 8], strides = [1, 1]} : vector<8x32xf32> to vector<8x8xf32>
    %130 = vector.extract_strided_slice %127 {offsets = [0, 0], sizes = [8, 8], strides = [1, 1]} : vector<8x32xf32> to vector<8x8xf32>
    %131 = vector.extract_strided_slice %128 {offsets = [0, 0], sizes = [8, 8], strides = [1, 1]} : vector<8x32xf32> to vector<8x8xf32>
    %cst_49 = arith.constant dense<0.000000e+00> : vector<8x8xf32>
    %132 = tpu.matmul %129, %130, %cst_49 {dimension_numbers = #tpu.dot_dimension_numbers<[1], [1], [0], [0], [0, 0, 1, 0], [], []>} : vector<8x8xf32>, vector<8x8xf32>, vector<8x8xf32> -> vector<8x8xf32>
    %cst_50 = arith.constant 0.353553385 : f32
    %133 = vector.broadcast %cst_50 : f32 to vector<8x8xf32>
    %134 = arith.mulf %132, %133 : vector<8x8xf32>
    %cst_51 = arith.constant dense<0xFF800000> : vector<8xf32>
    %135 = vector.multi_reduction <maximumf>, %134, %cst_51 [1] : vector<8x8xf32> to vector<8xf32>
    %136 = vector.shape_cast %135 : vector<8xf32> to vector<8x1xf32>
    %137 = vector.broadcast %136 : vector<8x1xf32> to vector<8x8xf32>
    %138 = arith.subf %134, %137 : vector<8x8xf32>
    %139 = math.exp %138 : vector<8x8xf32>
    %cst_52 = arith.constant dense<0.000000e+00> : vector<8xf32>
    %140 = vector.multi_reduction <add>, %139, %cst_52 [1] : vector<8x8xf32> to vector<8xf32>
    %141 = vector.shape_cast %140 : vector<8xf32> to vector<8x1xf32>
    %142 = tpu.reciprocal %141 {approx = true} : vector<8x1xf32> -> vector<8x1xf32>
    %143 = vector.broadcast %142 : vector<8x1xf32> to vector<8x8xf32>
    %144 = arith.mulf %139, %143 : vector<8x8xf32>
    %cst_53 = arith.constant dense<0.000000e+00> : vector<8x8xf32>
    %145 = tpu.matmul %144, %131, %cst_53 {dimension_numbers = #tpu.dot_dimension_numbers<[1], [0], [0], [1], [0, 0, 1, 1], [], []>} : vector<8x8xf32>, vector<8x8xf32>, vector<8x8xf32> -> vector<8x8xf32>
    %146 = vector.extract_strided_slice %2 {offsets = [0, 0], sizes = [8, 32], strides = [1, 1]} : vector<32x32xf32> to vector<8x32xf32>
    %cst_54 = arith.constant dense<0.000000e+00> : vector<8x32xf32>
    %147 = tpu.matmul %145, %146, %cst_54 {dimension_numbers = #tpu.dot_dimension_numbers<[1], [0], [0], [1], [0, 0, 1, 1], [], []>} : vector<8x8xf32>, vector<8x32xf32>, vector<8x32xf32> -> vector<8x32xf32>
    %148 = vector.broadcast %3 : vector<1x32xf32> to vector<8x32xf32>
    %149 = arith.addf %148, %147 : vector<8x32xf32>
    %150 = vector.extract_strided_slice %126 {offsets = [0, 8], sizes = [8, 8], strides = [1, 1]} : vector<8x32xf32> to vector<8x8xf32>
    %151 = vector.extract_strided_slice %127 {offsets = [0, 8], sizes = [8, 8], strides = [1, 1]} : vector<8x32xf32> to vector<8x8xf32>
    %152 = vector.extract_strided_slice %128 {offsets = [0, 8], sizes = [8, 8], strides = [1, 1]} : vector<8x32xf32> to vector<8x8xf32>
    %cst_55 = arith.constant dense<0.000000e+00> : vector<8x8xf32>
    %153 = tpu.matmul %150, %151, %cst_55 {dimension_numbers = #tpu.dot_dimension_numbers<[1], [1], [0], [0], [0, 0, 1, 0], [], []>} : vector<8x8xf32>, vector<8x8xf32>, vector<8x8xf32> -> vector<8x8xf32>
    %cst_56 = arith.constant 0.353553385 : f32
    %154 = vector.broadcast %cst_56 : f32 to vector<8x8xf32>
    %155 = arith.mulf %153, %154 : vector<8x8xf32>
    %cst_57 = arith.constant dense<0xFF800000> : vector<8xf32>
    %156 = vector.multi_reduction <maximumf>, %155, %cst_57 [1] : vector<8x8xf32> to vector<8xf32>
    %157 = vector.shape_cast %156 : vector<8xf32> to vector<8x1xf32>
    %158 = vector.broadcast %157 : vector<8x1xf32> to vector<8x8xf32>
    %159 = arith.subf %155, %158 : vector<8x8xf32>
    %160 = math.exp %159 : vector<8x8xf32>
    %cst_58 = arith.constant dense<0.000000e+00> : vector<8xf32>
    %161 = vector.multi_reduction <add>, %160, %cst_58 [1] : vector<8x8xf32> to vector<8xf32>
    %162 = vector.shape_cast %161 : vector<8xf32> to vector<8x1xf32>
    %163 = tpu.reciprocal %162 {approx = true} : vector<8x1xf32> -> vector<8x1xf32>
    %164 = vector.broadcast %163 : vector<8x1xf32> to vector<8x8xf32>
    %165 = arith.mulf %160, %164 : vector<8x8xf32>
    %cst_59 = arith.constant dense<0.000000e+00> : vector<8x8xf32>
    %166 = tpu.matmul %165, %152, %cst_59 {dimension_numbers = #tpu.dot_dimension_numbers<[1], [0], [0], [1], [0, 0, 1, 1], [], []>} : vector<8x8xf32>, vector<8x8xf32>, vector<8x8xf32> -> vector<8x8xf32>
    %167 = vector.extract_strided_slice %2 {offsets = [8, 0], sizes = [8, 32], strides = [1, 1]} : vector<32x32xf32> to vector<8x32xf32>
    %cst_60 = arith.constant dense<0.000000e+00> : vector<8x32xf32>
    %168 = tpu.matmul %166, %167, %cst_60 {dimension_numbers = #tpu.dot_dimension_numbers<[1], [0], [0], [1], [0, 0, 1, 1], [], []>} : vector<8x8xf32>, vector<8x32xf32>, vector<8x32xf32> -> vector<8x32xf32>
    %169 = arith.addf %149, %168 : vector<8x32xf32>
    %170 = vector.extract_strided_slice %126 {offsets = [0, 16], sizes = [8, 8], strides = [1, 1]} : vector<8x32xf32> to vector<8x8xf32>
    %171 = vector.extract_strided_slice %127 {offsets = [0, 16], sizes = [8, 8], strides = [1, 1]} : vector<8x32xf32> to vector<8x8xf32>
    %172 = vector.extract_strided_slice %128 {offsets = [0, 16], sizes = [8, 8], strides = [1, 1]} : vector<8x32xf32> to vector<8x8xf32>
    %cst_61 = arith.constant dense<0.000000e+00> : vector<8x8xf32>
    %173 = tpu.matmul %170, %171, %cst_61 {dimension_numbers = #tpu.dot_dimension_numbers<[1], [1], [0], [0], [0, 0, 1, 0], [], []>} : vector<8x8xf32>, vector<8x8xf32>, vector<8x8xf32> -> vector<8x8xf32>
    %cst_62 = arith.constant 0.353553385 : f32
    %174 = vector.broadcast %cst_62 : f32 to vector<8x8xf32>
    %175 = arith.mulf %173, %174 : vector<8x8xf32>
    %cst_63 = arith.constant dense<0xFF800000> : vector<8xf32>
    %176 = vector.multi_reduction <maximumf>, %175, %cst_63 [1] : vector<8x8xf32> to vector<8xf32>
    %177 = vector.shape_cast %176 : vector<8xf32> to vector<8x1xf32>
    %178 = vector.broadcast %177 : vector<8x1xf32> to vector<8x8xf32>
    %179 = arith.subf %175, %178 : vector<8x8xf32>
    %180 = math.exp %179 : vector<8x8xf32>
    %cst_64 = arith.constant dense<0.000000e+00> : vector<8xf32>
    %181 = vector.multi_reduction <add>, %180, %cst_64 [1] : vector<8x8xf32> to vector<8xf32>
    %182 = vector.shape_cast %181 : vector<8xf32> to vector<8x1xf32>
    %183 = tpu.reciprocal %182 {approx = true} : vector<8x1xf32> -> vector<8x1xf32>
    %184 = vector.broadcast %183 : vector<8x1xf32> to vector<8x8xf32>
    %185 = arith.mulf %180, %184 : vector<8x8xf32>
    %cst_65 = arith.constant dense<0.000000e+00> : vector<8x8xf32>
    %186 = tpu.matmul %185, %172, %cst_65 {dimension_numbers = #tpu.dot_dimension_numbers<[1], [0], [0], [1], [0, 0, 1, 1], [], []>} : vector<8x8xf32>, vector<8x8xf32>, vector<8x8xf32> -> vector<8x8xf32>
    %187 = vector.extract_strided_slice %2 {offsets = [16, 0], sizes = [8, 32], strides = [1, 1]} : vector<32x32xf32> to vector<8x32xf32>
    %cst_66 = arith.constant dense<0.000000e+00> : vector<8x32xf32>
    %188 = tpu.matmul %186, %187, %cst_66 {dimension_numbers = #tpu.dot_dimension_numbers<[1], [0], [0], [1], [0, 0, 1, 1], [], []>} : vector<8x8xf32>, vector<8x32xf32>, vector<8x32xf32> -> vector<8x32xf32>
    %189 = arith.addf %169, %188 : vector<8x32xf32>
    %190 = vector.extract_strided_slice %126 {offsets = [0, 24], sizes = [8, 8], strides = [1, 1]} : vector<8x32xf32> to vector<8x8xf32>
    %191 = vector.extract_strided_slice %127 {offsets = [0, 24], sizes = [8, 8], strides = [1, 1]} : vector<8x32xf32> to vector<8x8xf32>
    %192 = vector.extract_strided_slice %128 {offsets = [0, 24], sizes = [8, 8], strides = [1, 1]} : vector<8x32xf32> to vector<8x8xf32>
    %cst_67 = arith.constant dense<0.000000e+00> : vector<8x8xf32>
    %193 = tpu.matmul %190, %191, %cst_67 {dimension_numbers = #tpu.dot_dimension_numbers<[1], [1], [0], [0], [0, 0, 1, 0], [], []>} : vector<8x8xf32>, vector<8x8xf32>, vector<8x8xf32> -> vector<8x8xf32>
    %cst_68 = arith.constant 0.353553385 : f32
    %194 = vector.broadcast %cst_68 : f32 to vector<8x8xf32>
    %195 = arith.mulf %193, %194 : vector<8x8xf32>
    %cst_69 = arith.constant dense<0xFF800000> : vector<8xf32>
    %196 = vector.multi_reduction <maximumf>, %195, %cst_69 [1] : vector<8x8xf32> to vector<8xf32>
    %197 = vector.shape_cast %196 : vector<8xf32> to vector<8x1xf32>
    %198 = vector.broadcast %197 : vector<8x1xf32> to vector<8x8xf32>
    %199 = arith.subf %195, %198 : vector<8x8xf32>
    %200 = math.exp %199 : vector<8x8xf32>
    %cst_70 = arith.constant dense<0.000000e+00> : vector<8xf32>
    %201 = vector.multi_reduction <add>, %200, %cst_70 [1] : vector<8x8xf32> to vector<8xf32>
    %202 = vector.shape_cast %201 : vector<8xf32> to vector<8x1xf32>
    %203 = tpu.reciprocal %202 {approx = true} : vector<8x1xf32> -> vector<8x1xf32>
    %204 = vector.broadcast %203 : vector<8x1xf32> to vector<8x8xf32>
    %205 = arith.mulf %200, %204 : vector<8x8xf32>
    %cst_71 = arith.constant dense<0.000000e+00> : vector<8x8xf32>
    %206 = tpu.matmul %205, %192, %cst_71 {dimension_numbers = #tpu.dot_dimension_numbers<[1], [0], [0], [1], [0, 0, 1, 1], [], []>} : vector<8x8xf32>, vector<8x8xf32>, vector<8x8xf32> -> vector<8x8xf32>
    %207 = vector.extract_strided_slice %2 {offsets = [24, 0], sizes = [8, 32], strides = [1, 1]} : vector<32x32xf32> to vector<8x32xf32>
    %cst_72 = arith.constant dense<0.000000e+00> : vector<8x32xf32>
    %208 = tpu.matmul %206, %207, %cst_72 {dimension_numbers = #tpu.dot_dimension_numbers<[1], [0], [0], [1], [0, 0, 1, 1], [], []>} : vector<8x8xf32>, vector<8x32xf32>, vector<8x32xf32> -> vector<8x32xf32>
    %209 = arith.addf %189, %208 : vector<8x32xf32>
    %210 = arith.addf %122, %209 : vector<8x32xf32>
    %cst_73 = arith.constant dense<0.000000e+00> : vector<8xf32>
    %211 = vector.multi_reduction <add>, %210, %cst_73 [1] : vector<8x32xf32> to vector<8xf32>
    %212 = vector.shape_cast %211 : vector<8xf32> to vector<8x1xf32>
    %cst_74 = arith.constant 3.200000e+01 : f32
    %213 = vector.broadcast %cst_74 : f32 to vector<8x1xf32>
    %214 = arith.divf %212, %213 : vector<8x1xf32>
    %215 = vector.broadcast %214 : vector<8x1xf32> to vector<8x32xf32>
    %216 = arith.subf %210, %215 : vector<8x32xf32>
    %217 = arith.mulf %216, %216 : vector<8x32xf32>
    %cst_75 = arith.constant dense<0.000000e+00> : vector<8xf32>
    %218 = vector.multi_reduction <add>, %217, %cst_75 [1] : vector<8x32xf32> to vector<8xf32>
    %219 = vector.shape_cast %218 : vector<8xf32> to vector<8x1xf32>
    %cst_76 = arith.constant 3.200000e+01 : f32
    %220 = vector.broadcast %cst_76 : f32 to vector<8x1xf32>
    %221 = arith.divf %219, %220 : vector<8x1xf32>
    %222 = vector.broadcast %214 : vector<8x1xf32> to vector<8x32xf32>
    %223 = arith.subf %210, %222 : vector<8x32xf32>
    %cst_77 = arith.constant 9.99999974E-6 : f32
    %224 = vector.broadcast %cst_77 : f32 to vector<8x1xf32>
    %225 = arith.addf %221, %224 : vector<8x1xf32>
    %226 = math.rsqrt %225 : vector<8x1xf32>
    %227 = vector.broadcast %226 : vector<8x1xf32> to vector<8x32xf32>
    %228 = arith.mulf %223, %227 : vector<8x32xf32>
    %229 = vector.broadcast %4 : vector<1x32xf32> to vector<8x32xf32>
    %230 = arith.mulf %228, %229 : vector<8x32xf32>
    %231 = vector.broadcast %5 : vector<1x32xf32> to vector<8x32xf32>
    %232 = arith.addf %230, %231 : vector<8x32xf32>
    %c1_78 = arith.constant 1 : index
    %c0_79 = arith.constant 0 : index
    %c0_80 = arith.constant 0 : index
    %233 = vector.load %arg8[%c1_78, %c0_79, %c0_80] : memref<2x8x32xf32, #tpu.memory_space<vmem>>, vector<1x8x32xf32>
    %234 = vector.shape_cast %233 : vector<1x8x32xf32> to vector<8x32xf32>
    %235 = vector.shape_cast %232 : vector<8x32xf32> to vector<1x8x32xf32>
    tpu.vector_store %arg8[%c1_78, %c0_79, %c0_80], %235 {strides = array<i32>} : memref<2x8x32xf32, #tpu.memory_space<vmem>>, vector<1x8x32xf32>,
    return
  }
  func.func @transform_0(%arg0: i32) -> (i32, i32, i32) {
    %c0_i32 = arith.constant 0 : i32
    %c0_i32_0 = arith.constant 0 : i32
    %c0_i32_1 = arith.constant 0 : i32
    %c0_i32_2 = arith.constant 0 : i32
    return %c0_i32, %c0_i32_0, %c0_i32_1 : i32, i32, i32
  }
  func.func @transform_1(%arg0: i32) -> (i32, i32) {
    %c0_i32 = arith.constant 0 : i32
    %c0_i32_0 = arith.constant 0 : i32
    %c0_i32_1 = arith.constant 0 : i32
    return %c0_i32, %c0_i32_0 : i32, i32
  }
  func.func @transform_2(%arg0: i32) -> (i32, i32) {
    %c0_i32 = arith.constant 0 : i32
    %c0_i32_0 = arith.constant 0 : i32
    %c0_i32_1 = arith.constant 0 : i32
    return %c0_i32, %c0_i32_0 : i32, i32
  }
  func.func @transform_3(%arg0: i32) -> (i32, i32) {
    %c0_i32 = arith.constant 0 : i32
    %c0_i32_0 = arith.constant 0 : i32
    %c0_i32_1 = arith.constant 0 : i32
    return %c0_i32, %c0_i32_0 : i32, i32
  }
  func.func @transform_4(%arg0: i32) -> (i32, i32) {
    %c0_i32 = arith.constant 0 : i32
    %c0_i32_0 = arith.constant 0 : i32
    %c0_i32_1 = arith.constant 0 : i32
    return %c0_i32, %c0_i32_0 : i32, i32
  }
  func.func @transform_5(%arg0: i32) -> (i32, i32) {
    %c0_i32 = arith.constant 0 : i32
    %c0_i32_0 = arith.constant 0 : i32
    %c0_i32_1 = arith.constant 0 : i32
    return %c0_i32, %c0_i32_0 : i32, i32
  }
  func.func @transform_6(%arg0: i32) -> (i32, i32) {
    %c0_i32 = arith.constant 0 : i32
    %c0_i32_0 = arith.constant 0 : i32
    %c0_i32_1 = arith.constant 0 : i32
    return %c0_i32, %c0_i32_0 : i32, i32
  }
  func.func @transform_7(%arg0: i32) -> (i32, i32, i32) {
    %c0_i32 = arith.constant 0 : i32
    %c0_i32_0 = arith.constant 0 : i32
    %c0_i32_1 = arith.constant 0 : i32
    %c0_i32_2 = arith.constant 0 : i32
    return %c0_i32, %c0_i32_0, %c0_i32_1 : i32, i32, i32
  }
}

module attributes {stable_mosaic.version = 11 : i64} {
  func.func @_mha_ln_kernel(%arg0: i32, %arg1: memref<2x8x32xf32, #tpu.memory_space<vmem>>, %arg2: memref<32x96xf32, #tpu.memory_space<vmem>>, %arg3: memref<1x96xf32, #tpu.memory_space<vmem>>, %arg4: memref<32x32xf32, #tpu.memory_space<vmem>>, %arg5: memref<1x32xf32, #tpu.memory_space<vmem>>, %arg6: memref<1x32xf32, #tpu.memory_space<vmem>>, %arg7: memref<1x32xf32, #tpu.memory_space<vmem>>, %arg8: memref<8x8xf32, #tpu.memory_space<vmem>>, %arg9: memref<2x8x32xf32, #tpu.memory_space<vmem>>) attributes {dimension_semantics = [#tpu.dimension_semantics<arbitrary>], iteration_bounds = array<i64: 1>, scalar_prefetch = 0 : i64, scratch_operands = 0 : i64, tpu.core_type = #tpu.core_type<tc>, window_params = [{pipeline_mode = #tpu.pipeline_mode<synchronous>, transform_indices = @transform_0, window_bounds = array<i64: 2, 8, 32>}, {pipeline_mode = #tpu.pipeline_mode<synchronous>, transform_indices = @transform_1, window_bounds = array<i64: 32, 96>}, {pipeline_mode = #tpu.pipeline_mode<synchronous>, transform_indices = @transform_2, window_bounds = array<i64: 1, 96>}, {pipeline_mode = #tpu.pipeline_mode<synchronous>, transform_indices = @transform_3, window_bounds = array<i64: 32, 32>}, {pipeline_mode = #tpu.pipeline_mode<synchronous>, transform_indices = @transform_4, window_bounds = array<i64: 1, 32>}, {pipeline_mode = #tpu.pipeline_mode<synchronous>, transform_indices = @transform_5, window_bounds = array<i64: 1, 32>}, {pipeline_mode = #tpu.pipeline_mode<synchronous>, transform_indices = @transform_6, window_bounds = array<i64: 1, 32>}, {pipeline_mode = #tpu.pipeline_mode<synchronous>, transform_indices = @transform_7, window_bounds = array<i64: 8, 8>}, {pipeline_mode = #tpu.pipeline_mode<synchronous>, transform_indices = @transform_8, window_bounds = array<i64: 2, 8, 32>}]} {
    %c0 = arith.constant 0 : index
    %c0_0 = arith.constant 0 : index
    %0 = vector.load %arg2[%c0, %c0_0] : memref<32x96xf32, #tpu.memory_space<vmem>>, vector<32x96xf32>
    %c0_1 = arith.constant 0 : index
    %c0_2 = arith.constant 0 : index
    %1 = vector.load %arg3[%c0_1, %c0_2] : memref<1x96xf32, #tpu.memory_space<vmem>>, vector<1x96xf32>
    %c0_3 = arith.constant 0 : index
    %c0_4 = arith.constant 0 : index
    %2 = vector.load %arg4[%c0_3, %c0_4] : memref<32x32xf32, #tpu.memory_space<vmem>>, vector<32x32xf32>
    %c0_5 = arith.constant 0 : index
    %c0_6 = arith.constant 0 : index
    %3 = vector.load %arg5[%c0_5, %c0_6] : memref<1x32xf32, #tpu.memory_space<vmem>>, vector<1x32xf32>
    %c0_7 = arith.constant 0 : index
    %c0_8 = arith.constant 0 : index
    %4 = vector.load %arg6[%c0_7, %c0_8] : memref<1x32xf32, #tpu.memory_space<vmem>>, vector<1x32xf32>
    %c0_9 = arith.constant 0 : index
    %c0_10 = arith.constant 0 : index
    %5 = vector.load %arg7[%c0_9, %c0_10] : memref<1x32xf32, #tpu.memory_space<vmem>>, vector<1x32xf32>
    %c0_11 = arith.constant 0 : index
    %c0_12 = arith.constant 0 : index
    %6 = vector.load %arg8[%c0_11, %c0_12] : memref<8x8xf32, #tpu.memory_space<vmem>>, vector<8x8xf32>
    %c0_13 = arith.constant 0 : index
    %c0_14 = arith.constant 0 : index
    %c0_15 = arith.constant 0 : index
    %7 = vector.load %arg1[%c0_13, %c0_14, %c0_15] : memref<2x8x32xf32, #tpu.memory_space<vmem>>, vector<1x8x32xf32>
    %8 = vector.shape_cast %7 : vector<1x8x32xf32> to vector<8x32xf32>
    %cst = arith.constant dense<0.000000e+00> : vector<8x96xf32>
    %9 = tpu.matmul %8, %0, %cst {dimension_numbers = #tpu.dot_dimension_numbers<[1], [0], [0], [1], [0, 0, 1, 1], [], []>} : vector<8x32xf32>, vector<32x96xf32>, vector<8x96xf32> -> vector<8x96xf32>
    %10 = vector.broadcast %1 : vector<1x96xf32> to vector<8x96xf32>
    %11 = arith.addf %9, %10 : vector<8x96xf32>
    %12 = vector.extract_strided_slice %11 {offsets = [0, 0], sizes = [8, 32], strides = [1, 1]} : vector<8x96xf32> to vector<8x32xf32>
    %13 = vector.extract_strided_slice %11 {offsets = [0, 32], sizes = [8, 32], strides = [1, 1]} : vector<8x96xf32> to vector<8x32xf32>
    %14 = vector.extract_strided_slice %11 {offsets = [0, 64], sizes = [8, 32], strides = [1, 1]} : vector<8x96xf32> to vector<8x32xf32>
    %15 = vector.extract_strided_slice %12 {offsets = [0, 0], sizes = [8, 8], strides = [1, 1]} : vector<8x32xf32> to vector<8x8xf32>
    %16 = vector.extract_strided_slice %13 {offsets = [0, 0], sizes = [8, 8], strides = [1, 1]} : vector<8x32xf32> to vector<8x8xf32>
    %17 = vector.extract_strided_slice %14 {offsets = [0, 0], sizes = [8, 8], strides = [1, 1]} : vector<8x32xf32> to vector<8x8xf32>
    %cst_16 = arith.constant dense<0.000000e+00> : vector<8x8xf32>
    %18 = tpu.matmul %15, %16, %cst_16 {dimension_numbers = #tpu.dot_dimension_numbers<[1], [1], [0], [0], [0, 0, 1, 0], [], []>} : vector<8x8xf32>, vector<8x8xf32>, vector<8x8xf32> -> vector<8x8xf32>
    %cst_17 = arith.constant 0.353553385 : f32
    %19 = vector.broadcast %cst_17 : f32 to vector<8x8xf32>
    %20 = arith.mulf %18, %19 : vector<8x8xf32>
    %21 = arith.addf %20, %6 : vector<8x8xf32>
    %cst_18 = arith.constant dense<0xFF800000> : vector<8xf32>
    %22 = vector.multi_reduction <maximumf>, %21, %cst_18 [1] : vector<8x8xf32> to vector<8xf32>
    %23 = vector.shape_cast %22 : vector<8xf32> to vector<8x1xf32>
    %24 = vector.broadcast %23 : vector<8x1xf32> to vector<8x8xf32>
    %25 = arith.subf %21, %24 : vector<8x8xf32>
    %26 = math.exp %25 : vector<8x8xf32>
    %cst_19 = arith.constant dense<0.000000e+00> : vector<8xf32>
    %27 = vector.multi_reduction <add>, %26, %cst_19 [1] : vector<8x8xf32> to vector<8xf32>
    %28 = vector.shape_cast %27 : vector<8xf32> to vector<8x1xf32>
    %29 = tpu.reciprocal %28 {approx = true} : vector<8x1xf32> -> vector<8x1xf32>
    %30 = vector.broadcast %29 : vector<8x1xf32> to vector<8x8xf32>
    %31 = arith.mulf %26, %30 : vector<8x8xf32>
    %cst_20 = arith.constant dense<0.000000e+00> : vector<8x8xf32>
    %32 = tpu.matmul %31, %17, %cst_20 {dimension_numbers = #tpu.dot_dimension_numbers<[1], [0], [0], [1], [0, 0, 1, 1], [], []>} : vector<8x8xf32>, vector<8x8xf32>, vector<8x8xf32> -> vector<8x8xf32>
    %33 = vector.extract_strided_slice %2 {offsets = [0, 0], sizes = [8, 32], strides = [1, 1]} : vector<32x32xf32> to vector<8x32xf32>
    %cst_21 = arith.constant dense<0.000000e+00> : vector<8x32xf32>
    %34 = tpu.matmul %32, %33, %cst_21 {dimension_numbers = #tpu.dot_dimension_numbers<[1], [0], [0], [1], [0, 0, 1, 1], [], []>} : vector<8x8xf32>, vector<8x32xf32>, vector<8x32xf32> -> vector<8x32xf32>
    %35 = vector.broadcast %3 : vector<1x32xf32> to vector<8x32xf32>
    %36 = arith.addf %35, %34 : vector<8x32xf32>
    %37 = vector.extract_strided_slice %12 {offsets = [0, 8], sizes = [8, 8], strides = [1, 1]} : vector<8x32xf32> to vector<8x8xf32>
    %38 = vector.extract_strided_slice %13 {offsets = [0, 8], sizes = [8, 8], strides = [1, 1]} : vector<8x32xf32> to vector<8x8xf32>
    %39 = vector.extract_strided_slice %14 {offsets = [0, 8], sizes = [8, 8], strides = [1, 1]} : vector<8x32xf32> to vector<8x8xf32>
    %cst_22 = arith.constant dense<0.000000e+00> : vector<8x8xf32>
    %40 = tpu.matmul %37, %38, %cst_22 {dimension_numbers = #tpu.dot_dimension_numbers<[1], [1], [0], [0], [0, 0, 1, 0], [], []>} : vector<8x8xf32>, vector<8x8xf32>, vector<8x8xf32> -> vector<8x8xf32>
    %cst_23 = arith.constant 0.353553385 : f32
    %41 = vector.broadcast %cst_23 : f32 to vector<8x8xf32>
    %42 = arith.mulf %40, %41 : vector<8x8xf32>
    %43 = arith.addf %42, %6 : vector<8x8xf32>
    %cst_24 = arith.constant dense<0xFF800000> : vector<8xf32>
    %44 = vector.multi_reduction <maximumf>, %43, %cst_24 [1] : vector<8x8xf32> to vector<8xf32>
    %45 = vector.shape_cast %44 : vector<8xf32> to vector<8x1xf32>
    %46 = vector.broadcast %45 : vector<8x1xf32> to vector<8x8xf32>
    %47 = arith.subf %43, %46 : vector<8x8xf32>
    %48 = math.exp %47 : vector<8x8xf32>
    %cst_25 = arith.constant dense<0.000000e+00> : vector<8xf32>
    %49 = vector.multi_reduction <add>, %48, %cst_25 [1] : vector<8x8xf32> to vector<8xf32>
    %50 = vector.shape_cast %49 : vector<8xf32> to vector<8x1xf32>
    %51 = tpu.reciprocal %50 {approx = true} : vector<8x1xf32> -> vector<8x1xf32>
    %52 = vector.broadcast %51 : vector<8x1xf32> to vector<8x8xf32>
    %53 = arith.mulf %48, %52 : vector<8x8xf32>
    %cst_26 = arith.constant dense<0.000000e+00> : vector<8x8xf32>
    %54 = tpu.matmul %53, %39, %cst_26 {dimension_numbers = #tpu.dot_dimension_numbers<[1], [0], [0], [1], [0, 0, 1, 1], [], []>} : vector<8x8xf32>, vector<8x8xf32>, vector<8x8xf32> -> vector<8x8xf32>
    %55 = vector.extract_strided_slice %2 {offsets = [8, 0], sizes = [8, 32], strides = [1, 1]} : vector<32x32xf32> to vector<8x32xf32>
    %cst_27 = arith.constant dense<0.000000e+00> : vector<8x32xf32>
    %56 = tpu.matmul %54, %55, %cst_27 {dimension_numbers = #tpu.dot_dimension_numbers<[1], [0], [0], [1], [0, 0, 1, 1], [], []>} : vector<8x8xf32>, vector<8x32xf32>, vector<8x32xf32> -> vector<8x32xf32>
    %57 = arith.addf %36, %56 : vector<8x32xf32>
    %58 = vector.extract_strided_slice %12 {offsets = [0, 16], sizes = [8, 8], strides = [1, 1]} : vector<8x32xf32> to vector<8x8xf32>
    %59 = vector.extract_strided_slice %13 {offsets = [0, 16], sizes = [8, 8], strides = [1, 1]} : vector<8x32xf32> to vector<8x8xf32>
    %60 = vector.extract_strided_slice %14 {offsets = [0, 16], sizes = [8, 8], strides = [1, 1]} : vector<8x32xf32> to vector<8x8xf32>
    %cst_28 = arith.constant dense<0.000000e+00> : vector<8x8xf32>
    %61 = tpu.matmul %58, %59, %cst_28 {dimension_numbers = #tpu.dot_dimension_numbers<[1], [1], [0], [0], [0, 0, 1, 0], [], []>} : vector<8x8xf32>, vector<8x8xf32>, vector<8x8xf32> -> vector<8x8xf32>
    %cst_29 = arith.constant 0.353553385 : f32
    %62 = vector.broadcast %cst_29 : f32 to vector<8x8xf32>
    %63 = arith.mulf %61, %62 : vector<8x8xf32>
    %64 = arith.addf %63, %6 : vector<8x8xf32>
    %cst_30 = arith.constant dense<0xFF800000> : vector<8xf32>
    %65 = vector.multi_reduction <maximumf>, %64, %cst_30 [1] : vector<8x8xf32> to vector<8xf32>
    %66 = vector.shape_cast %65 : vector<8xf32> to vector<8x1xf32>
    %67 = vector.broadcast %66 : vector<8x1xf32> to vector<8x8xf32>
    %68 = arith.subf %64, %67 : vector<8x8xf32>
    %69 = math.exp %68 : vector<8x8xf32>
    %cst_31 = arith.constant dense<0.000000e+00> : vector<8xf32>
    %70 = vector.multi_reduction <add>, %69, %cst_31 [1] : vector<8x8xf32> to vector<8xf32>
    %71 = vector.shape_cast %70 : vector<8xf32> to vector<8x1xf32>
    %72 = tpu.reciprocal %71 {approx = true} : vector<8x1xf32> -> vector<8x1xf32>
    %73 = vector.broadcast %72 : vector<8x1xf32> to vector<8x8xf32>
    %74 = arith.mulf %69, %73 : vector<8x8xf32>
    %cst_32 = arith.constant dense<0.000000e+00> : vector<8x8xf32>
    %75 = tpu.matmul %74, %60, %cst_32 {dimension_numbers = #tpu.dot_dimension_numbers<[1], [0], [0], [1], [0, 0, 1, 1], [], []>} : vector<8x8xf32>, vector<8x8xf32>, vector<8x8xf32> -> vector<8x8xf32>
    %76 = vector.extract_strided_slice %2 {offsets = [16, 0], sizes = [8, 32], strides = [1, 1]} : vector<32x32xf32> to vector<8x32xf32>
    %cst_33 = arith.constant dense<0.000000e+00> : vector<8x32xf32>
    %77 = tpu.matmul %75, %76, %cst_33 {dimension_numbers = #tpu.dot_dimension_numbers<[1], [0], [0], [1], [0, 0, 1, 1], [], []>} : vector<8x8xf32>, vector<8x32xf32>, vector<8x32xf32> -> vector<8x32xf32>
    %78 = arith.addf %57, %77 : vector<8x32xf32>
    %79 = vector.extract_strided_slice %12 {offsets = [0, 24], sizes = [8, 8], strides = [1, 1]} : vector<8x32xf32> to vector<8x8xf32>
    %80 = vector.extract_strided_slice %13 {offsets = [0, 24], sizes = [8, 8], strides = [1, 1]} : vector<8x32xf32> to vector<8x8xf32>
    %81 = vector.extract_strided_slice %14 {offsets = [0, 24], sizes = [8, 8], strides = [1, 1]} : vector<8x32xf32> to vector<8x8xf32>
    %cst_34 = arith.constant dense<0.000000e+00> : vector<8x8xf32>
    %82 = tpu.matmul %79, %80, %cst_34 {dimension_numbers = #tpu.dot_dimension_numbers<[1], [1], [0], [0], [0, 0, 1, 0], [], []>} : vector<8x8xf32>, vector<8x8xf32>, vector<8x8xf32> -> vector<8x8xf32>
    %cst_35 = arith.constant 0.353553385 : f32
    %83 = vector.broadcast %cst_35 : f32 to vector<8x8xf32>
    %84 = arith.mulf %82, %83 : vector<8x8xf32>
    %85 = arith.addf %84, %6 : vector<8x8xf32>
    %cst_36 = arith.constant dense<0xFF800000> : vector<8xf32>
    %86 = vector.multi_reduction <maximumf>, %85, %cst_36 [1] : vector<8x8xf32> to vector<8xf32>
    %87 = vector.shape_cast %86 : vector<8xf32> to vector<8x1xf32>
    %88 = vector.broadcast %87 : vector<8x1xf32> to vector<8x8xf32>
    %89 = arith.subf %85, %88 : vector<8x8xf32>
    %90 = math.exp %89 : vector<8x8xf32>
    %cst_37 = arith.constant dense<0.000000e+00> : vector<8xf32>
    %91 = vector.multi_reduction <add>, %90, %cst_37 [1] : vector<8x8xf32> to vector<8xf32>
    %92 = vector.shape_cast %91 : vector<8xf32> to vector<8x1xf32>
    %93 = tpu.reciprocal %92 {approx = true} : vector<8x1xf32> -> vector<8x1xf32>
    %94 = vector.broadcast %93 : vector<8x1xf32> to vector<8x8xf32>
    %95 = arith.mulf %90, %94 : vector<8x8xf32>
    %cst_38 = arith.constant dense<0.000000e+00> : vector<8x8xf32>
    %96 = tpu.matmul %95, %81, %cst_38 {dimension_numbers = #tpu.dot_dimension_numbers<[1], [0], [0], [1], [0, 0, 1, 1], [], []>} : vector<8x8xf32>, vector<8x8xf32>, vector<8x8xf32> -> vector<8x8xf32>
    %97 = vector.extract_strided_slice %2 {offsets = [24, 0], sizes = [8, 32], strides = [1, 1]} : vector<32x32xf32> to vector<8x32xf32>
    %cst_39 = arith.constant dense<0.000000e+00> : vector<8x32xf32>
    %98 = tpu.matmul %96, %97, %cst_39 {dimension_numbers = #tpu.dot_dimension_numbers<[1], [0], [0], [1], [0, 0, 1, 1], [], []>} : vector<8x8xf32>, vector<8x32xf32>, vector<8x32xf32> -> vector<8x32xf32>
    %99 = arith.addf %78, %98 : vector<8x32xf32>
    %100 = arith.addf %8, %99 : vector<8x32xf32>
    %cst_40 = arith.constant dense<0.000000e+00> : vector<8xf32>
    %101 = vector.multi_reduction <add>, %100, %cst_40 [1] : vector<8x32xf32> to vector<8xf32>
    %102 = vector.shape_cast %101 : vector<8xf32> to vector<8x1xf32>
    %cst_41 = arith.constant 3.200000e+01 : f32
    %103 = vector.broadcast %cst_41 : f32 to vector<8x1xf32>
    %104 = arith.divf %102, %103 : vector<8x1xf32>
    %105 = vector.broadcast %104 : vector<8x1xf32> to vector<8x32xf32>
    %106 = arith.subf %100, %105 : vector<8x32xf32>
    %107 = arith.mulf %106, %106 : vector<8x32xf32>
    %cst_42 = arith.constant dense<0.000000e+00> : vector<8xf32>
    %108 = vector.multi_reduction <add>, %107, %cst_42 [1] : vector<8x32xf32> to vector<8xf32>
    %109 = vector.shape_cast %108 : vector<8xf32> to vector<8x1xf32>
    %cst_43 = arith.constant 3.200000e+01 : f32
    %110 = vector.broadcast %cst_43 : f32 to vector<8x1xf32>
    %111 = arith.divf %109, %110 : vector<8x1xf32>
    %112 = vector.broadcast %104 : vector<8x1xf32> to vector<8x32xf32>
    %113 = arith.subf %100, %112 : vector<8x32xf32>
    %cst_44 = arith.constant 9.99999974E-6 : f32
    %114 = vector.broadcast %cst_44 : f32 to vector<8x1xf32>
    %115 = arith.addf %111, %114 : vector<8x1xf32>
    %116 = math.rsqrt %115 : vector<8x1xf32>
    %117 = vector.broadcast %116 : vector<8x1xf32> to vector<8x32xf32>
    %118 = arith.mulf %113, %117 : vector<8x32xf32>
    %119 = vector.broadcast %4 : vector<1x32xf32> to vector<8x32xf32>
    %120 = arith.mulf %118, %119 : vector<8x32xf32>
    %121 = vector.broadcast %5 : vector<1x32xf32> to vector<8x32xf32>
    %122 = arith.addf %120, %121 : vector<8x32xf32>
    %c0_45 = arith.constant 0 : index
    %c0_46 = arith.constant 0 : index
    %c0_47 = arith.constant 0 : index
    %123 = vector.load %arg9[%c0_45, %c0_46, %c0_47] : memref<2x8x32xf32, #tpu.memory_space<vmem>>, vector<1x8x32xf32>
    %124 = vector.shape_cast %123 : vector<1x8x32xf32> to vector<8x32xf32>
    %125 = vector.shape_cast %122 : vector<8x32xf32> to vector<1x8x32xf32>
    tpu.vector_store %arg9[%c0_45, %c0_46, %c0_47], %125 {strides = array<i32>} : memref<2x8x32xf32, #tpu.memory_space<vmem>>, vector<1x8x32xf32>,
    %c1 = arith.constant 1 : index
    %c0_48 = arith.constant 0 : index
    %c0_49 = arith.constant 0 : index
    %126 = vector.load %arg1[%c1, %c0_48, %c0_49] : memref<2x8x32xf32, #tpu.memory_space<vmem>>, vector<1x8x32xf32>
    %127 = vector.shape_cast %126 : vector<1x8x32xf32> to vector<8x32xf32>
    %cst_50 = arith.constant dense<0.000000e+00> : vector<8x96xf32>
    %128 = tpu.matmul %127, %0, %cst_50 {dimension_numbers = #tpu.dot_dimension_numbers<[1], [0], [0], [1], [0, 0, 1, 1], [], []>} : vector<8x32xf32>, vector<32x96xf32>, vector<8x96xf32> -> vector<8x96xf32>
    %129 = vector.broadcast %1 : vector<1x96xf32> to vector<8x96xf32>
    %130 = arith.addf %128, %129 : vector<8x96xf32>
    %131 = vector.extract_strided_slice %130 {offsets = [0, 0], sizes = [8, 32], strides = [1, 1]} : vector<8x96xf32> to vector<8x32xf32>
    %132 = vector.extract_strided_slice %130 {offsets = [0, 32], sizes = [8, 32], strides = [1, 1]} : vector<8x96xf32> to vector<8x32xf32>
    %133 = vector.extract_strided_slice %130 {offsets = [0, 64], sizes = [8, 32], strides = [1, 1]} : vector<8x96xf32> to vector<8x32xf32>
    %134 = vector.extract_strided_slice %131 {offsets = [0, 0], sizes = [8, 8], strides = [1, 1]} : vector<8x32xf32> to vector<8x8xf32>
    %135 = vector.extract_strided_slice %132 {offsets = [0, 0], sizes = [8, 8], strides = [1, 1]} : vector<8x32xf32> to vector<8x8xf32>
    %136 = vector.extract_strided_slice %133 {offsets = [0, 0], sizes = [8, 8], strides = [1, 1]} : vector<8x32xf32> to vector<8x8xf32>
    %cst_51 = arith.constant dense<0.000000e+00> : vector<8x8xf32>
    %137 = tpu.matmul %134, %135, %cst_51 {dimension_numbers = #tpu.dot_dimension_numbers<[1], [1], [0], [0], [0, 0, 1, 0], [], []>} : vector<8x8xf32>, vector<8x8xf32>, vector<8x8xf32> -> vector<8x8xf32>
    %cst_52 = arith.constant 0.353553385 : f32
    %138 = vector.broadcast %cst_52 : f32 to vector<8x8xf32>
    %139 = arith.mulf %137, %138 : vector<8x8xf32>
    %140 = arith.addf %139, %6 : vector<8x8xf32>
    %cst_53 = arith.constant dense<0xFF800000> : vector<8xf32>
    %141 = vector.multi_reduction <maximumf>, %140, %cst_53 [1] : vector<8x8xf32> to vector<8xf32>
    %142 = vector.shape_cast %141 : vector<8xf32> to vector<8x1xf32>
    %143 = vector.broadcast %142 : vector<8x1xf32> to vector<8x8xf32>
    %144 = arith.subf %140, %143 : vector<8x8xf32>
    %145 = math.exp %144 : vector<8x8xf32>
    %cst_54 = arith.constant dense<0.000000e+00> : vector<8xf32>
    %146 = vector.multi_reduction <add>, %145, %cst_54 [1] : vector<8x8xf32> to vector<8xf32>
    %147 = vector.shape_cast %146 : vector<8xf32> to vector<8x1xf32>
    %148 = tpu.reciprocal %147 {approx = true} : vector<8x1xf32> -> vector<8x1xf32>
    %149 = vector.broadcast %148 : vector<8x1xf32> to vector<8x8xf32>
    %150 = arith.mulf %145, %149 : vector<8x8xf32>
    %cst_55 = arith.constant dense<0.000000e+00> : vector<8x8xf32>
    %151 = tpu.matmul %150, %136, %cst_55 {dimension_numbers = #tpu.dot_dimension_numbers<[1], [0], [0], [1], [0, 0, 1, 1], [], []>} : vector<8x8xf32>, vector<8x8xf32>, vector<8x8xf32> -> vector<8x8xf32>
    %152 = vector.extract_strided_slice %2 {offsets = [0, 0], sizes = [8, 32], strides = [1, 1]} : vector<32x32xf32> to vector<8x32xf32>
    %cst_56 = arith.constant dense<0.000000e+00> : vector<8x32xf32>
    %153 = tpu.matmul %151, %152, %cst_56 {dimension_numbers = #tpu.dot_dimension_numbers<[1], [0], [0], [1], [0, 0, 1, 1], [], []>} : vector<8x8xf32>, vector<8x32xf32>, vector<8x32xf32> -> vector<8x32xf32>
    %154 = vector.broadcast %3 : vector<1x32xf32> to vector<8x32xf32>
    %155 = arith.addf %154, %153 : vector<8x32xf32>
    %156 = vector.extract_strided_slice %131 {offsets = [0, 8], sizes = [8, 8], strides = [1, 1]} : vector<8x32xf32> to vector<8x8xf32>
    %157 = vector.extract_strided_slice %132 {offsets = [0, 8], sizes = [8, 8], strides = [1, 1]} : vector<8x32xf32> to vector<8x8xf32>
    %158 = vector.extract_strided_slice %133 {offsets = [0, 8], sizes = [8, 8], strides = [1, 1]} : vector<8x32xf32> to vector<8x8xf32>
    %cst_57 = arith.constant dense<0.000000e+00> : vector<8x8xf32>
    %159 = tpu.matmul %156, %157, %cst_57 {dimension_numbers = #tpu.dot_dimension_numbers<[1], [1], [0], [0], [0, 0, 1, 0], [], []>} : vector<8x8xf32>, vector<8x8xf32>, vector<8x8xf32> -> vector<8x8xf32>
    %cst_58 = arith.constant 0.353553385 : f32
    %160 = vector.broadcast %cst_58 : f32 to vector<8x8xf32>
    %161 = arith.mulf %159, %160 : vector<8x8xf32>
    %162 = arith.addf %161, %6 : vector<8x8xf32>
    %cst_59 = arith.constant dense<0xFF800000> : vector<8xf32>
    %163 = vector.multi_reduction <maximumf>, %162, %cst_59 [1] : vector<8x8xf32> to vector<8xf32>
    %164 = vector.shape_cast %163 : vector<8xf32> to vector<8x1xf32>
    %165 = vector.broadcast %164 : vector<8x1xf32> to vector<8x8xf32>
    %166 = arith.subf %162, %165 : vector<8x8xf32>
    %167 = math.exp %166 : vector<8x8xf32>
    %cst_60 = arith.constant dense<0.000000e+00> : vector<8xf32>
    %168 = vector.multi_reduction <add>, %167, %cst_60 [1] : vector<8x8xf32> to vector<8xf32>
    %169 = vector.shape_cast %168 : vector<8xf32> to vector<8x1xf32>
    %170 = tpu.reciprocal %169 {approx = true} : vector<8x1xf32> -> vector<8x1xf32>
    %171 = vector.broadcast %170 : vector<8x1xf32> to vector<8x8xf32>
    %172 = arith.mulf %167, %171 : vector<8x8xf32>
    %cst_61 = arith.constant dense<0.000000e+00> : vector<8x8xf32>
    %173 = tpu.matmul %172, %158, %cst_61 {dimension_numbers = #tpu.dot_dimension_numbers<[1], [0], [0], [1], [0, 0, 1, 1], [], []>} : vector<8x8xf32>, vector<8x8xf32>, vector<8x8xf32> -> vector<8x8xf32>
    %174 = vector.extract_strided_slice %2 {offsets = [8, 0], sizes = [8, 32], strides = [1, 1]} : vector<32x32xf32> to vector<8x32xf32>
    %cst_62 = arith.constant dense<0.000000e+00> : vector<8x32xf32>
    %175 = tpu.matmul %173, %174, %cst_62 {dimension_numbers = #tpu.dot_dimension_numbers<[1], [0], [0], [1], [0, 0, 1, 1], [], []>} : vector<8x8xf32>, vector<8x32xf32>, vector<8x32xf32> -> vector<8x32xf32>
    %176 = arith.addf %155, %175 : vector<8x32xf32>
    %177 = vector.extract_strided_slice %131 {offsets = [0, 16], sizes = [8, 8], strides = [1, 1]} : vector<8x32xf32> to vector<8x8xf32>
    %178 = vector.extract_strided_slice %132 {offsets = [0, 16], sizes = [8, 8], strides = [1, 1]} : vector<8x32xf32> to vector<8x8xf32>
    %179 = vector.extract_strided_slice %133 {offsets = [0, 16], sizes = [8, 8], strides = [1, 1]} : vector<8x32xf32> to vector<8x8xf32>
    %cst_63 = arith.constant dense<0.000000e+00> : vector<8x8xf32>
    %180 = tpu.matmul %177, %178, %cst_63 {dimension_numbers = #tpu.dot_dimension_numbers<[1], [1], [0], [0], [0, 0, 1, 0], [], []>} : vector<8x8xf32>, vector<8x8xf32>, vector<8x8xf32> -> vector<8x8xf32>
    %cst_64 = arith.constant 0.353553385 : f32
    %181 = vector.broadcast %cst_64 : f32 to vector<8x8xf32>
    %182 = arith.mulf %180, %181 : vector<8x8xf32>
    %183 = arith.addf %182, %6 : vector<8x8xf32>
    %cst_65 = arith.constant dense<0xFF800000> : vector<8xf32>
    %184 = vector.multi_reduction <maximumf>, %183, %cst_65 [1] : vector<8x8xf32> to vector<8xf32>
    %185 = vector.shape_cast %184 : vector<8xf32> to vector<8x1xf32>
    %186 = vector.broadcast %185 : vector<8x1xf32> to vector<8x8xf32>
    %187 = arith.subf %183, %186 : vector<8x8xf32>
    %188 = math.exp %187 : vector<8x8xf32>
    %cst_66 = arith.constant dense<0.000000e+00> : vector<8xf32>
    %189 = vector.multi_reduction <add>, %188, %cst_66 [1] : vector<8x8xf32> to vector<8xf32>
    %190 = vector.shape_cast %189 : vector<8xf32> to vector<8x1xf32>
    %191 = tpu.reciprocal %190 {approx = true} : vector<8x1xf32> -> vector<8x1xf32>
    %192 = vector.broadcast %191 : vector<8x1xf32> to vector<8x8xf32>
    %193 = arith.mulf %188, %192 : vector<8x8xf32>
    %cst_67 = arith.constant dense<0.000000e+00> : vector<8x8xf32>
    %194 = tpu.matmul %193, %179, %cst_67 {dimension_numbers = #tpu.dot_dimension_numbers<[1], [0], [0], [1], [0, 0, 1, 1], [], []>} : vector<8x8xf32>, vector<8x8xf32>, vector<8x8xf32> -> vector<8x8xf32>
    %195 = vector.extract_strided_slice %2 {offsets = [16, 0], sizes = [8, 32], strides = [1, 1]} : vector<32x32xf32> to vector<8x32xf32>
    %cst_68 = arith.constant dense<0.000000e+00> : vector<8x32xf32>
    %196 = tpu.matmul %194, %195, %cst_68 {dimension_numbers = #tpu.dot_dimension_numbers<[1], [0], [0], [1], [0, 0, 1, 1], [], []>} : vector<8x8xf32>, vector<8x32xf32>, vector<8x32xf32> -> vector<8x32xf32>
    %197 = arith.addf %176, %196 : vector<8x32xf32>
    %198 = vector.extract_strided_slice %131 {offsets = [0, 24], sizes = [8, 8], strides = [1, 1]} : vector<8x32xf32> to vector<8x8xf32>
    %199 = vector.extract_strided_slice %132 {offsets = [0, 24], sizes = [8, 8], strides = [1, 1]} : vector<8x32xf32> to vector<8x8xf32>
    %200 = vector.extract_strided_slice %133 {offsets = [0, 24], sizes = [8, 8], strides = [1, 1]} : vector<8x32xf32> to vector<8x8xf32>
    %cst_69 = arith.constant dense<0.000000e+00> : vector<8x8xf32>
    %201 = tpu.matmul %198, %199, %cst_69 {dimension_numbers = #tpu.dot_dimension_numbers<[1], [1], [0], [0], [0, 0, 1, 0], [], []>} : vector<8x8xf32>, vector<8x8xf32>, vector<8x8xf32> -> vector<8x8xf32>
    %cst_70 = arith.constant 0.353553385 : f32
    %202 = vector.broadcast %cst_70 : f32 to vector<8x8xf32>
    %203 = arith.mulf %201, %202 : vector<8x8xf32>
    %204 = arith.addf %203, %6 : vector<8x8xf32>
    %cst_71 = arith.constant dense<0xFF800000> : vector<8xf32>
    %205 = vector.multi_reduction <maximumf>, %204, %cst_71 [1] : vector<8x8xf32> to vector<8xf32>
    %206 = vector.shape_cast %205 : vector<8xf32> to vector<8x1xf32>
    %207 = vector.broadcast %206 : vector<8x1xf32> to vector<8x8xf32>
    %208 = arith.subf %204, %207 : vector<8x8xf32>
    %209 = math.exp %208 : vector<8x8xf32>
    %cst_72 = arith.constant dense<0.000000e+00> : vector<8xf32>
    %210 = vector.multi_reduction <add>, %209, %cst_72 [1] : vector<8x8xf32> to vector<8xf32>
    %211 = vector.shape_cast %210 : vector<8xf32> to vector<8x1xf32>
    %212 = tpu.reciprocal %211 {approx = true} : vector<8x1xf32> -> vector<8x1xf32>
    %213 = vector.broadcast %212 : vector<8x1xf32> to vector<8x8xf32>
    %214 = arith.mulf %209, %213 : vector<8x8xf32>
    %cst_73 = arith.constant dense<0.000000e+00> : vector<8x8xf32>
    %215 = tpu.matmul %214, %200, %cst_73 {dimension_numbers = #tpu.dot_dimension_numbers<[1], [0], [0], [1], [0, 0, 1, 1], [], []>} : vector<8x8xf32>, vector<8x8xf32>, vector<8x8xf32> -> vector<8x8xf32>
    %216 = vector.extract_strided_slice %2 {offsets = [24, 0], sizes = [8, 32], strides = [1, 1]} : vector<32x32xf32> to vector<8x32xf32>
    %cst_74 = arith.constant dense<0.000000e+00> : vector<8x32xf32>
    %217 = tpu.matmul %215, %216, %cst_74 {dimension_numbers = #tpu.dot_dimension_numbers<[1], [0], [0], [1], [0, 0, 1, 1], [], []>} : vector<8x8xf32>, vector<8x32xf32>, vector<8x32xf32> -> vector<8x32xf32>
    %218 = arith.addf %197, %217 : vector<8x32xf32>
    %219 = arith.addf %127, %218 : vector<8x32xf32>
    %cst_75 = arith.constant dense<0.000000e+00> : vector<8xf32>
    %220 = vector.multi_reduction <add>, %219, %cst_75 [1] : vector<8x32xf32> to vector<8xf32>
    %221 = vector.shape_cast %220 : vector<8xf32> to vector<8x1xf32>
    %cst_76 = arith.constant 3.200000e+01 : f32
    %222 = vector.broadcast %cst_76 : f32 to vector<8x1xf32>
    %223 = arith.divf %221, %222 : vector<8x1xf32>
    %224 = vector.broadcast %223 : vector<8x1xf32> to vector<8x32xf32>
    %225 = arith.subf %219, %224 : vector<8x32xf32>
    %226 = arith.mulf %225, %225 : vector<8x32xf32>
    %cst_77 = arith.constant dense<0.000000e+00> : vector<8xf32>
    %227 = vector.multi_reduction <add>, %226, %cst_77 [1] : vector<8x32xf32> to vector<8xf32>
    %228 = vector.shape_cast %227 : vector<8xf32> to vector<8x1xf32>
    %cst_78 = arith.constant 3.200000e+01 : f32
    %229 = vector.broadcast %cst_78 : f32 to vector<8x1xf32>
    %230 = arith.divf %228, %229 : vector<8x1xf32>
    %231 = vector.broadcast %223 : vector<8x1xf32> to vector<8x32xf32>
    %232 = arith.subf %219, %231 : vector<8x32xf32>
    %cst_79 = arith.constant 9.99999974E-6 : f32
    %233 = vector.broadcast %cst_79 : f32 to vector<8x1xf32>
    %234 = arith.addf %230, %233 : vector<8x1xf32>
    %235 = math.rsqrt %234 : vector<8x1xf32>
    %236 = vector.broadcast %235 : vector<8x1xf32> to vector<8x32xf32>
    %237 = arith.mulf %232, %236 : vector<8x32xf32>
    %238 = vector.broadcast %4 : vector<1x32xf32> to vector<8x32xf32>
    %239 = arith.mulf %237, %238 : vector<8x32xf32>
    %240 = vector.broadcast %5 : vector<1x32xf32> to vector<8x32xf32>
    %241 = arith.addf %239, %240 : vector<8x32xf32>
    %c1_80 = arith.constant 1 : index
    %c0_81 = arith.constant 0 : index
    %c0_82 = arith.constant 0 : index
    %242 = vector.load %arg9[%c1_80, %c0_81, %c0_82] : memref<2x8x32xf32, #tpu.memory_space<vmem>>, vector<1x8x32xf32>
    %243 = vector.shape_cast %242 : vector<1x8x32xf32> to vector<8x32xf32>
    %244 = vector.shape_cast %241 : vector<8x32xf32> to vector<1x8x32xf32>
    tpu.vector_store %arg9[%c1_80, %c0_81, %c0_82], %244 {strides = array<i32>} : memref<2x8x32xf32, #tpu.memory_space<vmem>>, vector<1x8x32xf32>,
    return
  }
  func.func @transform_0(%arg0: i32) -> (i32, i32, i32) {
    %c0_i32 = arith.constant 0 : i32
    %c0_i32_0 = arith.constant 0 : i32
    %c0_i32_1 = arith.constant 0 : i32
    %c0_i32_2 = arith.constant 0 : i32
    return %c0_i32, %c0_i32_0, %c0_i32_1 : i32, i32, i32
  }
  func.func @transform_1(%arg0: i32) -> (i32, i32) {
    %c0_i32 = arith.constant 0 : i32
    %c0_i32_0 = arith.constant 0 : i32
    %c0_i32_1 = arith.constant 0 : i32
    return %c0_i32, %c0_i32_0 : i32, i32
  }
  func.func @transform_2(%arg0: i32) -> (i32, i32) {
    %c0_i32 = arith.constant 0 : i32
    %c0_i32_0 = arith.constant 0 : i32
    %c0_i32_1 = arith.constant 0 : i32
    return %c0_i32, %c0_i32_0 : i32, i32
  }
  func.func @transform_3(%arg0: i32) -> (i32, i32) {
    %c0_i32 = arith.constant 0 : i32
    %c0_i32_0 = arith.constant 0 : i32
    %c0_i32_1 = arith.constant 0 : i32
    return %c0_i32, %c0_i32_0 : i32, i32
  }
  func.func @transform_4(%arg0: i32) -> (i32, i32) {
    %c0_i32 = arith.constant 0 : i32
    %c0_i32_0 = arith.constant 0 : i32
    %c0_i32_1 = arith.constant 0 : i32
    return %c0_i32, %c0_i32_0 : i32, i32
  }
  func.func @transform_5(%arg0: i32) -> (i32, i32) {
    %c0_i32 = arith.constant 0 : i32
    %c0_i32_0 = arith.constant 0 : i32
    %c0_i32_1 = arith.constant 0 : i32
    return %c0_i32, %c0_i32_0 : i32, i32
  }
  func.func @transform_6(%arg0: i32) -> (i32, i32) {
    %c0_i32 = arith.constant 0 : i32
    %c0_i32_0 = arith.constant 0 : i32
    %c0_i32_1 = arith.constant 0 : i32
    return %c0_i32, %c0_i32_0 : i32, i32
  }
  func.func @transform_7(%arg0: i32) -> (i32, i32) {
    %c0_i32 = arith.constant 0 : i32
    %c0_i32_0 = arith.constant 0 : i32
    %c0_i32_1 = arith.constant 0 : i32
    return %c0_i32, %c0_i32_0 : i32, i32
  }
  func.func @transform_8(%arg0: i32) -> (i32, i32, i32) {
    %c0_i32 = arith.constant 0 : i32
    %c0_i32_0 = arith.constant 0 : i32
    %c0_i32_1 = arith.constant 0 : i32
    %c0_i32_2 = arith.constant 0 : i32
    return %c0_i32, %c0_i32_0, %c0_i32_1 : i32, i32, i32
  }
}

module attributes {stable_mosaic.version = 11 : i64} {
  func.func @_mha_ln_kernel(%arg0: i32, %arg1: memref<2x8x32xf32, #tpu.memory_space<vmem>>, %arg2: memref<2x8x32xf32, #tpu.memory_space<vmem>>, %arg3: memref<32x96xf32, #tpu.memory_space<vmem>>, %arg4: memref<1x96xf32, #tpu.memory_space<vmem>>, %arg5: memref<32x32xf32, #tpu.memory_space<vmem>>, %arg6: memref<1x32xf32, #tpu.memory_space<vmem>>, %arg7: memref<1x32xf32, #tpu.memory_space<vmem>>, %arg8: memref<1x32xf32, #tpu.memory_space<vmem>>, %arg9: memref<2x8x32xf32, #tpu.memory_space<vmem>>) attributes {dimension_semantics = [#tpu.dimension_semantics<arbitrary>], iteration_bounds = array<i64: 1>, scalar_prefetch = 0 : i64, scratch_operands = 0 : i64, tpu.core_type = #tpu.core_type<tc>, window_params = [{pipeline_mode = #tpu.pipeline_mode<synchronous>, transform_indices = @transform_0, window_bounds = array<i64: 2, 8, 32>}, {pipeline_mode = #tpu.pipeline_mode<synchronous>, transform_indices = @transform_1, window_bounds = array<i64: 2, 8, 32>}, {pipeline_mode = #tpu.pipeline_mode<synchronous>, transform_indices = @transform_2, window_bounds = array<i64: 32, 96>}, {pipeline_mode = #tpu.pipeline_mode<synchronous>, transform_indices = @transform_3, window_bounds = array<i64: 1, 96>}, {pipeline_mode = #tpu.pipeline_mode<synchronous>, transform_indices = @transform_4, window_bounds = array<i64: 32, 32>}, {pipeline_mode = #tpu.pipeline_mode<synchronous>, transform_indices = @transform_5, window_bounds = array<i64: 1, 32>}, {pipeline_mode = #tpu.pipeline_mode<synchronous>, transform_indices = @transform_6, window_bounds = array<i64: 1, 32>}, {pipeline_mode = #tpu.pipeline_mode<synchronous>, transform_indices = @transform_7, window_bounds = array<i64: 1, 32>}, {pipeline_mode = #tpu.pipeline_mode<synchronous>, transform_indices = @transform_8, window_bounds = array<i64: 2, 8, 32>}]} {
    %c0 = arith.constant 0 : index
    %c0_0 = arith.constant 0 : index
    %0 = vector.load %arg3[%c0, %c0_0] : memref<32x96xf32, #tpu.memory_space<vmem>>, vector<32x96xf32>
    %c0_1 = arith.constant 0 : index
    %c0_2 = arith.constant 0 : index
    %1 = vector.load %arg4[%c0_1, %c0_2] : memref<1x96xf32, #tpu.memory_space<vmem>>, vector<1x96xf32>
    %c0_3 = arith.constant 0 : index
    %c0_4 = arith.constant 0 : index
    %2 = vector.load %arg5[%c0_3, %c0_4] : memref<32x32xf32, #tpu.memory_space<vmem>>, vector<32x32xf32>
    %c0_5 = arith.constant 0 : index
    %c0_6 = arith.constant 0 : index
    %3 = vector.load %arg6[%c0_5, %c0_6] : memref<1x32xf32, #tpu.memory_space<vmem>>, vector<1x32xf32>
    %c0_7 = arith.constant 0 : index
    %c0_8 = arith.constant 0 : index
    %4 = vector.load %arg7[%c0_7, %c0_8] : memref<1x32xf32, #tpu.memory_space<vmem>>, vector<1x32xf32>
    %c0_9 = arith.constant 0 : index
    %c0_10 = arith.constant 0 : index
    %5 = vector.load %arg8[%c0_9, %c0_10] : memref<1x32xf32, #tpu.memory_space<vmem>>, vector<1x32xf32>
    %c0_11 = arith.constant 0 : index
    %c0_12 = arith.constant 0 : index
    %c0_13 = arith.constant 0 : index
    %6 = vector.load %arg1[%c0_11, %c0_12, %c0_13] : memref<2x8x32xf32, #tpu.memory_space<vmem>>, vector<1x8x32xf32>
    %7 = vector.shape_cast %6 : vector<1x8x32xf32> to vector<8x32xf32>
    %c0_14 = arith.constant 0 : index
    %c0_15 = arith.constant 0 : index
    %c0_16 = arith.constant 0 : index
    %8 = vector.load %arg2[%c0_14, %c0_15, %c0_16] : memref<2x8x32xf32, #tpu.memory_space<vmem>>, vector<1x8x32xf32>
    %9 = vector.shape_cast %8 : vector<1x8x32xf32> to vector<8x32xf32>
    %10 = vector.extract_strided_slice %0 {offsets = [0, 0], sizes = [32, 32], strides = [1, 1]} : vector<32x96xf32> to vector<32x32xf32>
    %cst = arith.constant dense<0.000000e+00> : vector<8x32xf32>
    %11 = tpu.matmul %7, %10, %cst {dimension_numbers = #tpu.dot_dimension_numbers<[1], [0], [0], [1], [0, 0, 1, 1], [], []>} : vector<8x32xf32>, vector<32x32xf32>, vector<8x32xf32> -> vector<8x32xf32>
    %12 = vector.extract_strided_slice %1 {offsets = [0, 0], sizes = [1, 32], strides = [1, 1]} : vector<1x96xf32> to vector<1x32xf32>
    %13 = vector.broadcast %12 : vector<1x32xf32> to vector<8x32xf32>
    %14 = arith.addf %11, %13 : vector<8x32xf32>
    %15 = vector.extract_strided_slice %0 {offsets = [0, 32], sizes = [32, 64], strides = [1, 1]} : vector<32x96xf32> to vector<32x64xf32>
    %cst_17 = arith.constant dense<0.000000e+00> : vector<8x64xf32>
    %16 = tpu.matmul %9, %15, %cst_17 {dimension_numbers = #tpu.dot_dimension_numbers<[1], [0], [0], [1], [0, 0, 1, 1], [], []>} : vector<8x32xf32>, vector<32x64xf32>, vector<8x64xf32> -> vector<8x64xf32>
    %17 = vector.extract_strided_slice %1 {offsets = [0, 32], sizes = [1, 64], strides = [1, 1]} : vector<1x96xf32> to vector<1x64xf32>
    %18 = vector.broadcast %17 : vector<1x64xf32> to vector<8x64xf32>
    %19 = arith.addf %16, %18 : vector<8x64xf32>
    %20 = vector.extract_strided_slice %19 {offsets = [0, 0], sizes = [8, 32], strides = [1, 1]} : vector<8x64xf32> to vector<8x32xf32>
    %21 = vector.extract_strided_slice %19 {offsets = [0, 32], sizes = [8, 32], strides = [1, 1]} : vector<8x64xf32> to vector<8x32xf32>
    %22 = vector.extract_strided_slice %14 {offsets = [0, 0], sizes = [8, 8], strides = [1, 1]} : vector<8x32xf32> to vector<8x8xf32>
    %23 = vector.extract_strided_slice %20 {offsets = [0, 0], sizes = [8, 8], strides = [1, 1]} : vector<8x32xf32> to vector<8x8xf32>
    %24 = vector.extract_strided_slice %21 {offsets = [0, 0], sizes = [8, 8], strides = [1, 1]} : vector<8x32xf32> to vector<8x8xf32>
    %cst_18 = arith.constant dense<0.000000e+00> : vector<8x8xf32>
    %25 = tpu.matmul %22, %23, %cst_18 {dimension_numbers = #tpu.dot_dimension_numbers<[1], [1], [0], [0], [0, 0, 1, 0], [], []>} : vector<8x8xf32>, vector<8x8xf32>, vector<8x8xf32> -> vector<8x8xf32>
    %cst_19 = arith.constant 0.353553385 : f32
    %26 = vector.broadcast %cst_19 : f32 to vector<8x8xf32>
    %27 = arith.mulf %25, %26 : vector<8x8xf32>
    %cst_20 = arith.constant dense<0xFF800000> : vector<8xf32>
    %28 = vector.multi_reduction <maximumf>, %27, %cst_20 [1] : vector<8x8xf32> to vector<8xf32>
    %29 = vector.shape_cast %28 : vector<8xf32> to vector<8x1xf32>
    %30 = vector.broadcast %29 : vector<8x1xf32> to vector<8x8xf32>
    %31 = arith.subf %27, %30 : vector<8x8xf32>
    %32 = math.exp %31 : vector<8x8xf32>
    %cst_21 = arith.constant dense<0.000000e+00> : vector<8xf32>
    %33 = vector.multi_reduction <add>, %32, %cst_21 [1] : vector<8x8xf32> to vector<8xf32>
    %34 = vector.shape_cast %33 : vector<8xf32> to vector<8x1xf32>
    %35 = tpu.reciprocal %34 {approx = true} : vector<8x1xf32> -> vector<8x1xf32>
    %36 = vector.broadcast %35 : vector<8x1xf32> to vector<8x8xf32>
    %37 = arith.mulf %32, %36 : vector<8x8xf32>
    %cst_22 = arith.constant dense<0.000000e+00> : vector<8x8xf32>
    %38 = tpu.matmul %37, %24, %cst_22 {dimension_numbers = #tpu.dot_dimension_numbers<[1], [0], [0], [1], [0, 0, 1, 1], [], []>} : vector<8x8xf32>, vector<8x8xf32>, vector<8x8xf32> -> vector<8x8xf32>
    %39 = vector.extract_strided_slice %2 {offsets = [0, 0], sizes = [8, 32], strides = [1, 1]} : vector<32x32xf32> to vector<8x32xf32>
    %cst_23 = arith.constant dense<0.000000e+00> : vector<8x32xf32>
    %40 = tpu.matmul %38, %39, %cst_23 {dimension_numbers = #tpu.dot_dimension_numbers<[1], [0], [0], [1], [0, 0, 1, 1], [], []>} : vector<8x8xf32>, vector<8x32xf32>, vector<8x32xf32> -> vector<8x32xf32>
    %41 = vector.broadcast %3 : vector<1x32xf32> to vector<8x32xf32>
    %42 = arith.addf %41, %40 : vector<8x32xf32>
    %43 = vector.extract_strided_slice %14 {offsets = [0, 8], sizes = [8, 8], strides = [1, 1]} : vector<8x32xf32> to vector<8x8xf32>
    %44 = vector.extract_strided_slice %20 {offsets = [0, 8], sizes = [8, 8], strides = [1, 1]} : vector<8x32xf32> to vector<8x8xf32>
    %45 = vector.extract_strided_slice %21 {offsets = [0, 8], sizes = [8, 8], strides = [1, 1]} : vector<8x32xf32> to vector<8x8xf32>
    %cst_24 = arith.constant dense<0.000000e+00> : vector<8x8xf32>
    %46 = tpu.matmul %43, %44, %cst_24 {dimension_numbers = #tpu.dot_dimension_numbers<[1], [1], [0], [0], [0, 0, 1, 0], [], []>} : vector<8x8xf32>, vector<8x8xf32>, vector<8x8xf32> -> vector<8x8xf32>
    %cst_25 = arith.constant 0.353553385 : f32
    %47 = vector.broadcast %cst_25 : f32 to vector<8x8xf32>
    %48 = arith.mulf %46, %47 : vector<8x8xf32>
    %cst_26 = arith.constant dense<0xFF800000> : vector<8xf32>
    %49 = vector.multi_reduction <maximumf>, %48, %cst_26 [1] : vector<8x8xf32> to vector<8xf32>
    %50 = vector.shape_cast %49 : vector<8xf32> to vector<8x1xf32>
    %51 = vector.broadcast %50 : vector<8x1xf32> to vector<8x8xf32>
    %52 = arith.subf %48, %51 : vector<8x8xf32>
    %53 = math.exp %52 : vector<8x8xf32>
    %cst_27 = arith.constant dense<0.000000e+00> : vector<8xf32>
    %54 = vector.multi_reduction <add>, %53, %cst_27 [1] : vector<8x8xf32> to vector<8xf32>
    %55 = vector.shape_cast %54 : vector<8xf32> to vector<8x1xf32>
    %56 = tpu.reciprocal %55 {approx = true} : vector<8x1xf32> -> vector<8x1xf32>
    %57 = vector.broadcast %56 : vector<8x1xf32> to vector<8x8xf32>
    %58 = arith.mulf %53, %57 : vector<8x8xf32>
    %cst_28 = arith.constant dense<0.000000e+00> : vector<8x8xf32>
    %59 = tpu.matmul %58, %45, %cst_28 {dimension_numbers = #tpu.dot_dimension_numbers<[1], [0], [0], [1], [0, 0, 1, 1], [], []>} : vector<8x8xf32>, vector<8x8xf32>, vector<8x8xf32> -> vector<8x8xf32>
    %60 = vector.extract_strided_slice %2 {offsets = [8, 0], sizes = [8, 32], strides = [1, 1]} : vector<32x32xf32> to vector<8x32xf32>
    %cst_29 = arith.constant dense<0.000000e+00> : vector<8x32xf32>
    %61 = tpu.matmul %59, %60, %cst_29 {dimension_numbers = #tpu.dot_dimension_numbers<[1], [0], [0], [1], [0, 0, 1, 1], [], []>} : vector<8x8xf32>, vector<8x32xf32>, vector<8x32xf32> -> vector<8x32xf32>
    %62 = arith.addf %42, %61 : vector<8x32xf32>
    %63 = vector.extract_strided_slice %14 {offsets = [0, 16], sizes = [8, 8], strides = [1, 1]} : vector<8x32xf32> to vector<8x8xf32>
    %64 = vector.extract_strided_slice %20 {offsets = [0, 16], sizes = [8, 8], strides = [1, 1]} : vector<8x32xf32> to vector<8x8xf32>
    %65 = vector.extract_strided_slice %21 {offsets = [0, 16], sizes = [8, 8], strides = [1, 1]} : vector<8x32xf32> to vector<8x8xf32>
    %cst_30 = arith.constant dense<0.000000e+00> : vector<8x8xf32>
    %66 = tpu.matmul %63, %64, %cst_30 {dimension_numbers = #tpu.dot_dimension_numbers<[1], [1], [0], [0], [0, 0, 1, 0], [], []>} : vector<8x8xf32>, vector<8x8xf32>, vector<8x8xf32> -> vector<8x8xf32>
    %cst_31 = arith.constant 0.353553385 : f32
    %67 = vector.broadcast %cst_31 : f32 to vector<8x8xf32>
    %68 = arith.mulf %66, %67 : vector<8x8xf32>
    %cst_32 = arith.constant dense<0xFF800000> : vector<8xf32>
    %69 = vector.multi_reduction <maximumf>, %68, %cst_32 [1] : vector<8x8xf32> to vector<8xf32>
    %70 = vector.shape_cast %69 : vector<8xf32> to vector<8x1xf32>
    %71 = vector.broadcast %70 : vector<8x1xf32> to vector<8x8xf32>
    %72 = arith.subf %68, %71 : vector<8x8xf32>
    %73 = math.exp %72 : vector<8x8xf32>
    %cst_33 = arith.constant dense<0.000000e+00> : vector<8xf32>
    %74 = vector.multi_reduction <add>, %73, %cst_33 [1] : vector<8x8xf32> to vector<8xf32>
    %75 = vector.shape_cast %74 : vector<8xf32> to vector<8x1xf32>
    %76 = tpu.reciprocal %75 {approx = true} : vector<8x1xf32> -> vector<8x1xf32>
    %77 = vector.broadcast %76 : vector<8x1xf32> to vector<8x8xf32>
    %78 = arith.mulf %73, %77 : vector<8x8xf32>
    %cst_34 = arith.constant dense<0.000000e+00> : vector<8x8xf32>
    %79 = tpu.matmul %78, %65, %cst_34 {dimension_numbers = #tpu.dot_dimension_numbers<[1], [0], [0], [1], [0, 0, 1, 1], [], []>} : vector<8x8xf32>, vector<8x8xf32>, vector<8x8xf32> -> vector<8x8xf32>
    %80 = vector.extract_strided_slice %2 {offsets = [16, 0], sizes = [8, 32], strides = [1, 1]} : vector<32x32xf32> to vector<8x32xf32>
    %cst_35 = arith.constant dense<0.000000e+00> : vector<8x32xf32>
    %81 = tpu.matmul %79, %80, %cst_35 {dimension_numbers = #tpu.dot_dimension_numbers<[1], [0], [0], [1], [0, 0, 1, 1], [], []>} : vector<8x8xf32>, vector<8x32xf32>, vector<8x32xf32> -> vector<8x32xf32>
    %82 = arith.addf %62, %81 : vector<8x32xf32>
    %83 = vector.extract_strided_slice %14 {offsets = [0, 24], sizes = [8, 8], strides = [1, 1]} : vector<8x32xf32> to vector<8x8xf32>
    %84 = vector.extract_strided_slice %20 {offsets = [0, 24], sizes = [8, 8], strides = [1, 1]} : vector<8x32xf32> to vector<8x8xf32>
    %85 = vector.extract_strided_slice %21 {offsets = [0, 24], sizes = [8, 8], strides = [1, 1]} : vector<8x32xf32> to vector<8x8xf32>
    %cst_36 = arith.constant dense<0.000000e+00> : vector<8x8xf32>
    %86 = tpu.matmul %83, %84, %cst_36 {dimension_numbers = #tpu.dot_dimension_numbers<[1], [1], [0], [0], [0, 0, 1, 0], [], []>} : vector<8x8xf32>, vector<8x8xf32>, vector<8x8xf32> -> vector<8x8xf32>
    %cst_37 = arith.constant 0.353553385 : f32
    %87 = vector.broadcast %cst_37 : f32 to vector<8x8xf32>
    %88 = arith.mulf %86, %87 : vector<8x8xf32>
    %cst_38 = arith.constant dense<0xFF800000> : vector<8xf32>
    %89 = vector.multi_reduction <maximumf>, %88, %cst_38 [1] : vector<8x8xf32> to vector<8xf32>
    %90 = vector.shape_cast %89 : vector<8xf32> to vector<8x1xf32>
    %91 = vector.broadcast %90 : vector<8x1xf32> to vector<8x8xf32>
    %92 = arith.subf %88, %91 : vector<8x8xf32>
    %93 = math.exp %92 : vector<8x8xf32>
    %cst_39 = arith.constant dense<0.000000e+00> : vector<8xf32>
    %94 = vector.multi_reduction <add>, %93, %cst_39 [1] : vector<8x8xf32> to vector<8xf32>
    %95 = vector.shape_cast %94 : vector<8xf32> to vector<8x1xf32>
    %96 = tpu.reciprocal %95 {approx = true} : vector<8x1xf32> -> vector<8x1xf32>
    %97 = vector.broadcast %96 : vector<8x1xf32> to vector<8x8xf32>
    %98 = arith.mulf %93, %97 : vector<8x8xf32>
    %cst_40 = arith.constant dense<0.000000e+00> : vector<8x8xf32>
    %99 = tpu.matmul %98, %85, %cst_40 {dimension_numbers = #tpu.dot_dimension_numbers<[1], [0], [0], [1], [0, 0, 1, 1], [], []>} : vector<8x8xf32>, vector<8x8xf32>, vector<8x8xf32> -> vector<8x8xf32>
    %100 = vector.extract_strided_slice %2 {offsets = [24, 0], sizes = [8, 32], strides = [1, 1]} : vector<32x32xf32> to vector<8x32xf32>
    %cst_41 = arith.constant dense<0.000000e+00> : vector<8x32xf32>
    %101 = tpu.matmul %99, %100, %cst_41 {dimension_numbers = #tpu.dot_dimension_numbers<[1], [0], [0], [1], [0, 0, 1, 1], [], []>} : vector<8x8xf32>, vector<8x32xf32>, vector<8x32xf32> -> vector<8x32xf32>
    %102 = arith.addf %82, %101 : vector<8x32xf32>
    %103 = arith.addf %7, %102 : vector<8x32xf32>
    %cst_42 = arith.constant dense<0.000000e+00> : vector<8xf32>
    %104 = vector.multi_reduction <add>, %103, %cst_42 [1] : vector<8x32xf32> to vector<8xf32>
    %105 = vector.shape_cast %104 : vector<8xf32> to vector<8x1xf32>
    %cst_43 = arith.constant 3.200000e+01 : f32
    %106 = vector.broadcast %cst_43 : f32 to vector<8x1xf32>
    %107 = arith.divf %105, %106 : vector<8x1xf32>
    %108 = vector.broadcast %107 : vector<8x1xf32> to vector<8x32xf32>
    %109 = arith.subf %103, %108 : vector<8x32xf32>
    %110 = arith.mulf %109, %109 : vector<8x32xf32>
    %cst_44 = arith.constant dense<0.000000e+00> : vector<8xf32>
    %111 = vector.multi_reduction <add>, %110, %cst_44 [1] : vector<8x32xf32> to vector<8xf32>
    %112 = vector.shape_cast %111 : vector<8xf32> to vector<8x1xf32>
    %cst_45 = arith.constant 3.200000e+01 : f32
    %113 = vector.broadcast %cst_45 : f32 to vector<8x1xf32>
    %114 = arith.divf %112, %113 : vector<8x1xf32>
    %115 = vector.broadcast %107 : vector<8x1xf32> to vector<8x32xf32>
    %116 = arith.subf %103, %115 : vector<8x32xf32>
    %cst_46 = arith.constant 9.99999974E-6 : f32
    %117 = vector.broadcast %cst_46 : f32 to vector<8x1xf32>
    %118 = arith.addf %114, %117 : vector<8x1xf32>
    %119 = math.rsqrt %118 : vector<8x1xf32>
    %120 = vector.broadcast %119 : vector<8x1xf32> to vector<8x32xf32>
    %121 = arith.mulf %116, %120 : vector<8x32xf32>
    %122 = vector.broadcast %4 : vector<1x32xf32> to vector<8x32xf32>
    %123 = arith.mulf %121, %122 : vector<8x32xf32>
    %124 = vector.broadcast %5 : vector<1x32xf32> to vector<8x32xf32>
    %125 = arith.addf %123, %124 : vector<8x32xf32>
    %c0_47 = arith.constant 0 : index
    %c0_48 = arith.constant 0 : index
    %c0_49 = arith.constant 0 : index
    %126 = vector.load %arg9[%c0_47, %c0_48, %c0_49] : memref<2x8x32xf32, #tpu.memory_space<vmem>>, vector<1x8x32xf32>
    %127 = vector.shape_cast %126 : vector<1x8x32xf32> to vector<8x32xf32>
    %128 = vector.shape_cast %125 : vector<8x32xf32> to vector<1x8x32xf32>
    tpu.vector_store %arg9[%c0_47, %c0_48, %c0_49], %128 {strides = array<i32>} : memref<2x8x32xf32, #tpu.memory_space<vmem>>, vector<1x8x32xf32>,
    %c1 = arith.constant 1 : index
    %c0_50 = arith.constant 0 : index
    %c0_51 = arith.constant 0 : index
    %129 = vector.load %arg1[%c1, %c0_50, %c0_51] : memref<2x8x32xf32, #tpu.memory_space<vmem>>, vector<1x8x32xf32>
    %130 = vector.shape_cast %129 : vector<1x8x32xf32> to vector<8x32xf32>
    %c1_52 = arith.constant 1 : index
    %c0_53 = arith.constant 0 : index
    %c0_54 = arith.constant 0 : index
    %131 = vector.load %arg2[%c1_52, %c0_53, %c0_54] : memref<2x8x32xf32, #tpu.memory_space<vmem>>, vector<1x8x32xf32>
    %132 = vector.shape_cast %131 : vector<1x8x32xf32> to vector<8x32xf32>
    %133 = vector.extract_strided_slice %0 {offsets = [0, 0], sizes = [32, 32], strides = [1, 1]} : vector<32x96xf32> to vector<32x32xf32>
    %cst_55 = arith.constant dense<0.000000e+00> : vector<8x32xf32>
    %134 = tpu.matmul %130, %133, %cst_55 {dimension_numbers = #tpu.dot_dimension_numbers<[1], [0], [0], [1], [0, 0, 1, 1], [], []>} : vector<8x32xf32>, vector<32x32xf32>, vector<8x32xf32> -> vector<8x32xf32>
    %135 = vector.extract_strided_slice %1 {offsets = [0, 0], sizes = [1, 32], strides = [1, 1]} : vector<1x96xf32> to vector<1x32xf32>
    %136 = vector.broadcast %135 : vector<1x32xf32> to vector<8x32xf32>
    %137 = arith.addf %134, %136 : vector<8x32xf32>
    %138 = vector.extract_strided_slice %0 {offsets = [0, 32], sizes = [32, 64], strides = [1, 1]} : vector<32x96xf32> to vector<32x64xf32>
    %cst_56 = arith.constant dense<0.000000e+00> : vector<8x64xf32>
    %139 = tpu.matmul %132, %138, %cst_56 {dimension_numbers = #tpu.dot_dimension_numbers<[1], [0], [0], [1], [0, 0, 1, 1], [], []>} : vector<8x32xf32>, vector<32x64xf32>, vector<8x64xf32> -> vector<8x64xf32>
    %140 = vector.extract_strided_slice %1 {offsets = [0, 32], sizes = [1, 64], strides = [1, 1]} : vector<1x96xf32> to vector<1x64xf32>
    %141 = vector.broadcast %140 : vector<1x64xf32> to vector<8x64xf32>
    %142 = arith.addf %139, %141 : vector<8x64xf32>
    %143 = vector.extract_strided_slice %142 {offsets = [0, 0], sizes = [8, 32], strides = [1, 1]} : vector<8x64xf32> to vector<8x32xf32>
    %144 = vector.extract_strided_slice %142 {offsets = [0, 32], sizes = [8, 32], strides = [1, 1]} : vector<8x64xf32> to vector<8x32xf32>
    %145 = vector.extract_strided_slice %137 {offsets = [0, 0], sizes = [8, 8], strides = [1, 1]} : vector<8x32xf32> to vector<8x8xf32>
    %146 = vector.extract_strided_slice %143 {offsets = [0, 0], sizes = [8, 8], strides = [1, 1]} : vector<8x32xf32> to vector<8x8xf32>
    %147 = vector.extract_strided_slice %144 {offsets = [0, 0], sizes = [8, 8], strides = [1, 1]} : vector<8x32xf32> to vector<8x8xf32>
    %cst_57 = arith.constant dense<0.000000e+00> : vector<8x8xf32>
    %148 = tpu.matmul %145, %146, %cst_57 {dimension_numbers = #tpu.dot_dimension_numbers<[1], [1], [0], [0], [0, 0, 1, 0], [], []>} : vector<8x8xf32>, vector<8x8xf32>, vector<8x8xf32> -> vector<8x8xf32>
    %cst_58 = arith.constant 0.353553385 : f32
    %149 = vector.broadcast %cst_58 : f32 to vector<8x8xf32>
    %150 = arith.mulf %148, %149 : vector<8x8xf32>
    %cst_59 = arith.constant dense<0xFF800000> : vector<8xf32>
    %151 = vector.multi_reduction <maximumf>, %150, %cst_59 [1] : vector<8x8xf32> to vector<8xf32>
    %152 = vector.shape_cast %151 : vector<8xf32> to vector<8x1xf32>
    %153 = vector.broadcast %152 : vector<8x1xf32> to vector<8x8xf32>
    %154 = arith.subf %150, %153 : vector<8x8xf32>
    %155 = math.exp %154 : vector<8x8xf32>
    %cst_60 = arith.constant dense<0.000000e+00> : vector<8xf32>
    %156 = vector.multi_reduction <add>, %155, %cst_60 [1] : vector<8x8xf32> to vector<8xf32>
    %157 = vector.shape_cast %156 : vector<8xf32> to vector<8x1xf32>
    %158 = tpu.reciprocal %157 {approx = true} : vector<8x1xf32> -> vector<8x1xf32>
    %159 = vector.broadcast %158 : vector<8x1xf32> to vector<8x8xf32>
    %160 = arith.mulf %155, %159 : vector<8x8xf32>
    %cst_61 = arith.constant dense<0.000000e+00> : vector<8x8xf32>
    %161 = tpu.matmul %160, %147, %cst_61 {dimension_numbers = #tpu.dot_dimension_numbers<[1], [0], [0], [1], [0, 0, 1, 1], [], []>} : vector<8x8xf32>, vector<8x8xf32>, vector<8x8xf32> -> vector<8x8xf32>
    %162 = vector.extract_strided_slice %2 {offsets = [0, 0], sizes = [8, 32], strides = [1, 1]} : vector<32x32xf32> to vector<8x32xf32>
    %cst_62 = arith.constant dense<0.000000e+00> : vector<8x32xf32>
    %163 = tpu.matmul %161, %162, %cst_62 {dimension_numbers = #tpu.dot_dimension_numbers<[1], [0], [0], [1], [0, 0, 1, 1], [], []>} : vector<8x8xf32>, vector<8x32xf32>, vector<8x32xf32> -> vector<8x32xf32>
    %164 = vector.broadcast %3 : vector<1x32xf32> to vector<8x32xf32>
    %165 = arith.addf %164, %163 : vector<8x32xf32>
    %166 = vector.extract_strided_slice %137 {offsets = [0, 8], sizes = [8, 8], strides = [1, 1]} : vector<8x32xf32> to vector<8x8xf32>
    %167 = vector.extract_strided_slice %143 {offsets = [0, 8], sizes = [8, 8], strides = [1, 1]} : vector<8x32xf32> to vector<8x8xf32>
    %168 = vector.extract_strided_slice %144 {offsets = [0, 8], sizes = [8, 8], strides = [1, 1]} : vector<8x32xf32> to vector<8x8xf32>
    %cst_63 = arith.constant dense<0.000000e+00> : vector<8x8xf32>
    %169 = tpu.matmul %166, %167, %cst_63 {dimension_numbers = #tpu.dot_dimension_numbers<[1], [1], [0], [0], [0, 0, 1, 0], [], []>} : vector<8x8xf32>, vector<8x8xf32>, vector<8x8xf32> -> vector<8x8xf32>
    %cst_64 = arith.constant 0.353553385 : f32
    %170 = vector.broadcast %cst_64 : f32 to vector<8x8xf32>
    %171 = arith.mulf %169, %170 : vector<8x8xf32>
    %cst_65 = arith.constant dense<0xFF800000> : vector<8xf32>
    %172 = vector.multi_reduction <maximumf>, %171, %cst_65 [1] : vector<8x8xf32> to vector<8xf32>
    %173 = vector.shape_cast %172 : vector<8xf32> to vector<8x1xf32>
    %174 = vector.broadcast %173 : vector<8x1xf32> to vector<8x8xf32>
    %175 = arith.subf %171, %174 : vector<8x8xf32>
    %176 = math.exp %175 : vector<8x8xf32>
    %cst_66 = arith.constant dense<0.000000e+00> : vector<8xf32>
    %177 = vector.multi_reduction <add>, %176, %cst_66 [1] : vector<8x8xf32> to vector<8xf32>
    %178 = vector.shape_cast %177 : vector<8xf32> to vector<8x1xf32>
    %179 = tpu.reciprocal %178 {approx = true} : vector<8x1xf32> -> vector<8x1xf32>
    %180 = vector.broadcast %179 : vector<8x1xf32> to vector<8x8xf32>
    %181 = arith.mulf %176, %180 : vector<8x8xf32>
    %cst_67 = arith.constant dense<0.000000e+00> : vector<8x8xf32>
    %182 = tpu.matmul %181, %168, %cst_67 {dimension_numbers = #tpu.dot_dimension_numbers<[1], [0], [0], [1], [0, 0, 1, 1], [], []>} : vector<8x8xf32>, vector<8x8xf32>, vector<8x8xf32> -> vector<8x8xf32>
    %183 = vector.extract_strided_slice %2 {offsets = [8, 0], sizes = [8, 32], strides = [1, 1]} : vector<32x32xf32> to vector<8x32xf32>
    %cst_68 = arith.constant dense<0.000000e+00> : vector<8x32xf32>
    %184 = tpu.matmul %182, %183, %cst_68 {dimension_numbers = #tpu.dot_dimension_numbers<[1], [0], [0], [1], [0, 0, 1, 1], [], []>} : vector<8x8xf32>, vector<8x32xf32>, vector<8x32xf32> -> vector<8x32xf32>
    %185 = arith.addf %165, %184 : vector<8x32xf32>
    %186 = vector.extract_strided_slice %137 {offsets = [0, 16], sizes = [8, 8], strides = [1, 1]} : vector<8x32xf32> to vector<8x8xf32>
    %187 = vector.extract_strided_slice %143 {offsets = [0, 16], sizes = [8, 8], strides = [1, 1]} : vector<8x32xf32> to vector<8x8xf32>
    %188 = vector.extract_strided_slice %144 {offsets = [0, 16], sizes = [8, 8], strides = [1, 1]} : vector<8x32xf32> to vector<8x8xf32>
    %cst_69 = arith.constant dense<0.000000e+00> : vector<8x8xf32>
    %189 = tpu.matmul %186, %187, %cst_69 {dimension_numbers = #tpu.dot_dimension_numbers<[1], [1], [0], [0], [0, 0, 1, 0], [], []>} : vector<8x8xf32>, vector<8x8xf32>, vector<8x8xf32> -> vector<8x8xf32>
    %cst_70 = arith.constant 0.353553385 : f32
    %190 = vector.broadcast %cst_70 : f32 to vector<8x8xf32>
    %191 = arith.mulf %189, %190 : vector<8x8xf32>
    %cst_71 = arith.constant dense<0xFF800000> : vector<8xf32>
    %192 = vector.multi_reduction <maximumf>, %191, %cst_71 [1] : vector<8x8xf32> to vector<8xf32>
    %193 = vector.shape_cast %192 : vector<8xf32> to vector<8x1xf32>
    %194 = vector.broadcast %193 : vector<8x1xf32> to vector<8x8xf32>
    %195 = arith.subf %191, %194 : vector<8x8xf32>
    %196 = math.exp %195 : vector<8x8xf32>
    %cst_72 = arith.constant dense<0.000000e+00> : vector<8xf32>
    %197 = vector.multi_reduction <add>, %196, %cst_72 [1] : vector<8x8xf32> to vector<8xf32>
    %198 = vector.shape_cast %197 : vector<8xf32> to vector<8x1xf32>
    %199 = tpu.reciprocal %198 {approx = true} : vector<8x1xf32> -> vector<8x1xf32>
    %200 = vector.broadcast %199 : vector<8x1xf32> to vector<8x8xf32>
    %201 = arith.mulf %196, %200 : vector<8x8xf32>
    %cst_73 = arith.constant dense<0.000000e+00> : vector<8x8xf32>
    %202 = tpu.matmul %201, %188, %cst_73 {dimension_numbers = #tpu.dot_dimension_numbers<[1], [0], [0], [1], [0, 0, 1, 1], [], []>} : vector<8x8xf32>, vector<8x8xf32>, vector<8x8xf32> -> vector<8x8xf32>
    %203 = vector.extract_strided_slice %2 {offsets = [16, 0], sizes = [8, 32], strides = [1, 1]} : vector<32x32xf32> to vector<8x32xf32>
    %cst_74 = arith.constant dense<0.000000e+00> : vector<8x32xf32>
    %204 = tpu.matmul %202, %203, %cst_74 {dimension_numbers = #tpu.dot_dimension_numbers<[1], [0], [0], [1], [0, 0, 1, 1], [], []>} : vector<8x8xf32>, vector<8x32xf32>, vector<8x32xf32> -> vector<8x32xf32>
    %205 = arith.addf %185, %204 : vector<8x32xf32>
    %206 = vector.extract_strided_slice %137 {offsets = [0, 24], sizes = [8, 8], strides = [1, 1]} : vector<8x32xf32> to vector<8x8xf32>
    %207 = vector.extract_strided_slice %143 {offsets = [0, 24], sizes = [8, 8], strides = [1, 1]} : vector<8x32xf32> to vector<8x8xf32>
    %208 = vector.extract_strided_slice %144 {offsets = [0, 24], sizes = [8, 8], strides = [1, 1]} : vector<8x32xf32> to vector<8x8xf32>
    %cst_75 = arith.constant dense<0.000000e+00> : vector<8x8xf32>
    %209 = tpu.matmul %206, %207, %cst_75 {dimension_numbers = #tpu.dot_dimension_numbers<[1], [1], [0], [0], [0, 0, 1, 0], [], []>} : vector<8x8xf32>, vector<8x8xf32>, vector<8x8xf32> -> vector<8x8xf32>
    %cst_76 = arith.constant 0.353553385 : f32
    %210 = vector.broadcast %cst_76 : f32 to vector<8x8xf32>
    %211 = arith.mulf %209, %210 : vector<8x8xf32>
    %cst_77 = arith.constant dense<0xFF800000> : vector<8xf32>
    %212 = vector.multi_reduction <maximumf>, %211, %cst_77 [1] : vector<8x8xf32> to vector<8xf32>
    %213 = vector.shape_cast %212 : vector<8xf32> to vector<8x1xf32>
    %214 = vector.broadcast %213 : vector<8x1xf32> to vector<8x8xf32>
    %215 = arith.subf %211, %214 : vector<8x8xf32>
    %216 = math.exp %215 : vector<8x8xf32>
    %cst_78 = arith.constant dense<0.000000e+00> : vector<8xf32>
    %217 = vector.multi_reduction <add>, %216, %cst_78 [1] : vector<8x8xf32> to vector<8xf32>
    %218 = vector.shape_cast %217 : vector<8xf32> to vector<8x1xf32>
    %219 = tpu.reciprocal %218 {approx = true} : vector<8x1xf32> -> vector<8x1xf32>
    %220 = vector.broadcast %219 : vector<8x1xf32> to vector<8x8xf32>
    %221 = arith.mulf %216, %220 : vector<8x8xf32>
    %cst_79 = arith.constant dense<0.000000e+00> : vector<8x8xf32>
    %222 = tpu.matmul %221, %208, %cst_79 {dimension_numbers = #tpu.dot_dimension_numbers<[1], [0], [0], [1], [0, 0, 1, 1], [], []>} : vector<8x8xf32>, vector<8x8xf32>, vector<8x8xf32> -> vector<8x8xf32>
    %223 = vector.extract_strided_slice %2 {offsets = [24, 0], sizes = [8, 32], strides = [1, 1]} : vector<32x32xf32> to vector<8x32xf32>
    %cst_80 = arith.constant dense<0.000000e+00> : vector<8x32xf32>
    %224 = tpu.matmul %222, %223, %cst_80 {dimension_numbers = #tpu.dot_dimension_numbers<[1], [0], [0], [1], [0, 0, 1, 1], [], []>} : vector<8x8xf32>, vector<8x32xf32>, vector<8x32xf32> -> vector<8x32xf32>
    %225 = arith.addf %205, %224 : vector<8x32xf32>
    %226 = arith.addf %130, %225 : vector<8x32xf32>
    %cst_81 = arith.constant dense<0.000000e+00> : vector<8xf32>
    %227 = vector.multi_reduction <add>, %226, %cst_81 [1] : vector<8x32xf32> to vector<8xf32>
    %228 = vector.shape_cast %227 : vector<8xf32> to vector<8x1xf32>
    %cst_82 = arith.constant 3.200000e+01 : f32
    %229 = vector.broadcast %cst_82 : f32 to vector<8x1xf32>
    %230 = arith.divf %228, %229 : vector<8x1xf32>
    %231 = vector.broadcast %230 : vector<8x1xf32> to vector<8x32xf32>
    %232 = arith.subf %226, %231 : vector<8x32xf32>
    %233 = arith.mulf %232, %232 : vector<8x32xf32>
    %cst_83 = arith.constant dense<0.000000e+00> : vector<8xf32>
    %234 = vector.multi_reduction <add>, %233, %cst_83 [1] : vector<8x32xf32> to vector<8xf32>
    %235 = vector.shape_cast %234 : vector<8xf32> to vector<8x1xf32>
    %cst_84 = arith.constant 3.200000e+01 : f32
    %236 = vector.broadcast %cst_84 : f32 to vector<8x1xf32>
    %237 = arith.divf %235, %236 : vector<8x1xf32>
    %238 = vector.broadcast %230 : vector<8x1xf32> to vector<8x32xf32>
    %239 = arith.subf %226, %238 : vector<8x32xf32>
    %cst_85 = arith.constant 9.99999974E-6 : f32
    %240 = vector.broadcast %cst_85 : f32 to vector<8x1xf32>
    %241 = arith.addf %237, %240 : vector<8x1xf32>
    %242 = math.rsqrt %241 : vector<8x1xf32>
    %243 = vector.broadcast %242 : vector<8x1xf32> to vector<8x32xf32>
    %244 = arith.mulf %239, %243 : vector<8x32xf32>
    %245 = vector.broadcast %4 : vector<1x32xf32> to vector<8x32xf32>
    %246 = arith.mulf %244, %245 : vector<8x32xf32>
    %247 = vector.broadcast %5 : vector<1x32xf32> to vector<8x32xf32>
    %248 = arith.addf %246, %247 : vector<8x32xf32>
    %c1_86 = arith.constant 1 : index
    %c0_87 = arith.constant 0 : index
    %c0_88 = arith.constant 0 : index
    %249 = vector.load %arg9[%c1_86, %c0_87, %c0_88] : memref<2x8x32xf32, #tpu.memory_space<vmem>>, vector<1x8x32xf32>
    %250 = vector.shape_cast %249 : vector<1x8x32xf32> to vector<8x32xf32>
    %251 = vector.shape_cast %248 : vector<8x32xf32> to vector<1x8x32xf32>
    tpu.vector_store %arg9[%c1_86, %c0_87, %c0_88], %251 {strides = array<i32>} : memref<2x8x32xf32, #tpu.memory_space<vmem>>, vector<1x8x32xf32>,
    return
  }
  func.func @transform_0(%arg0: i32) -> (i32, i32, i32) {
    %c0_i32 = arith.constant 0 : i32
    %c0_i32_0 = arith.constant 0 : i32
    %c0_i32_1 = arith.constant 0 : i32
    %c0_i32_2 = arith.constant 0 : i32
    return %c0_i32, %c0_i32_0, %c0_i32_1 : i32, i32, i32
  }
  func.func @transform_1(%arg0: i32) -> (i32, i32, i32) {
    %c0_i32 = arith.constant 0 : i32
    %c0_i32_0 = arith.constant 0 : i32
    %c0_i32_1 = arith.constant 0 : i32
    %c0_i32_2 = arith.constant 0 : i32
    return %c0_i32, %c0_i32_0, %c0_i32_1 : i32, i32, i32
  }
  func.func @transform_2(%arg0: i32) -> (i32, i32) {
    %c0_i32 = arith.constant 0 : i32
    %c0_i32_0 = arith.constant 0 : i32
    %c0_i32_1 = arith.constant 0 : i32
    return %c0_i32, %c0_i32_0 : i32, i32
  }
  func.func @transform_3(%arg0: i32) -> (i32, i32) {
    %c0_i32 = arith.constant 0 : i32
    %c0_i32_0 = arith.constant 0 : i32
    %c0_i32_1 = arith.constant 0 : i32
    return %c0_i32, %c0_i32_0 : i32, i32
  }
  func.func @transform_4(%arg0: i32) -> (i32, i32) {
    %c0_i32 = arith.constant 0 : i32
    %c0_i32_0 = arith.constant 0 : i32
    %c0_i32_1 = arith.constant 0 : i32
    return %c0_i32, %c0_i32_0 : i32, i32
  }
  func.func @transform_5(%arg0: i32) -> (i32, i32) {
    %c0_i32 = arith.constant 0 : i32
    %c0_i32_0 = arith.constant 0 : i32
    %c0_i32_1 = arith.constant 0 : i32
    return %c0_i32, %c0_i32_0 : i32, i32
  }
  func.func @transform_6(%arg0: i32) -> (i32, i32) {
    %c0_i32 = arith.constant 0 : i32
    %c0_i32_0 = arith.constant 0 : i32
    %c0_i32_1 = arith.constant 0 : i32
    return %c0_i32, %c0_i32_0 : i32, i32
  }
  func.func @transform_7(%arg0: i32) -> (i32, i32) {
    %c0_i32 = arith.constant 0 : i32
    %c0_i32_0 = arith.constant 0 : i32
    %c0_i32_1 = arith.constant 0 : i32
    return %c0_i32, %c0_i32_0 : i32, i32
  }
  func.func @transform_8(%arg0: i32) -> (i32, i32, i32) {
    %c0_i32 = arith.constant 0 : i32
    %c0_i32_0 = arith.constant 0 : i32
    %c0_i32_1 = arith.constant 0 : i32
    %c0_i32_2 = arith.constant 0 : i32
    return %c0_i32, %c0_i32_0, %c0_i32_1 : i32, i32, i32
  }
}

module attributes {stable_mosaic.version = 11 : i64} {
  func.func @_ln_linear_kernel(%arg0: i32, %arg1: memref<16x32xf32, #tpu.memory_space<vmem>>, %arg2: memref<1x32xf32, #tpu.memory_space<vmem>>, %arg3: memref<1x32xf32, #tpu.memory_space<vmem>>, %arg4: memref<32x32xf32, #tpu.memory_space<vmem>>, %arg5: memref<1x32xf32, #tpu.memory_space<vmem>>, %arg6: memref<16x32xf32, #tpu.memory_space<vmem>>) attributes {dimension_semantics = [#tpu.dimension_semantics<arbitrary>], iteration_bounds = array<i64: 1>, scalar_prefetch = 0 : i64, scratch_operands = 0 : i64, tpu.core_type = #tpu.core_type<tc>, window_params = [{pipeline_mode = #tpu.pipeline_mode<synchronous>, transform_indices = @transform_0, window_bounds = array<i64: 16, 32>}, {pipeline_mode = #tpu.pipeline_mode<synchronous>, transform_indices = @transform_1, window_bounds = array<i64: 1, 32>}, {pipeline_mode = #tpu.pipeline_mode<synchronous>, transform_indices = @transform_2, window_bounds = array<i64: 1, 32>}, {pipeline_mode = #tpu.pipeline_mode<synchronous>, transform_indices = @transform_3, window_bounds = array<i64: 32, 32>}, {pipeline_mode = #tpu.pipeline_mode<synchronous>, transform_indices = @transform_4, window_bounds = array<i64: 1, 32>}, {pipeline_mode = #tpu.pipeline_mode<synchronous>, transform_indices = @transform_5, window_bounds = array<i64: 16, 32>}]} {
    %c0 = arith.constant 0 : index
    %c0_0 = arith.constant 0 : index
    %0 = vector.load %arg1[%c0, %c0_0] : memref<16x32xf32, #tpu.memory_space<vmem>>, vector<16x32xf32>
    %c0_1 = arith.constant 0 : index
    %c0_2 = arith.constant 0 : index
    %1 = vector.load %arg2[%c0_1, %c0_2] : memref<1x32xf32, #tpu.memory_space<vmem>>, vector<1x32xf32>
    %c0_3 = arith.constant 0 : index
    %c0_4 = arith.constant 0 : index
    %2 = vector.load %arg3[%c0_3, %c0_4] : memref<1x32xf32, #tpu.memory_space<vmem>>, vector<1x32xf32>
    %cst = arith.constant dense<0.000000e+00> : vector<16xf32>
    %3 = vector.multi_reduction <add>, %0, %cst [1] : vector<16x32xf32> to vector<16xf32>
    %4 = vector.shape_cast %3 : vector<16xf32> to vector<16x1xf32>
    %cst_5 = arith.constant 3.200000e+01 : f32
    %5 = vector.broadcast %cst_5 : f32 to vector<16x1xf32>
    %6 = arith.divf %4, %5 : vector<16x1xf32>
    %7 = vector.broadcast %6 : vector<16x1xf32> to vector<16x32xf32>
    %8 = arith.subf %0, %7 : vector<16x32xf32>
    %9 = arith.mulf %8, %8 : vector<16x32xf32>
    %cst_6 = arith.constant dense<0.000000e+00> : vector<16xf32>
    %10 = vector.multi_reduction <add>, %9, %cst_6 [1] : vector<16x32xf32> to vector<16xf32>
    %11 = vector.shape_cast %10 : vector<16xf32> to vector<16x1xf32>
    %cst_7 = arith.constant 3.200000e+01 : f32
    %12 = vector.broadcast %cst_7 : f32 to vector<16x1xf32>
    %13 = arith.divf %11, %12 : vector<16x1xf32>
    %14 = vector.broadcast %6 : vector<16x1xf32> to vector<16x32xf32>
    %15 = arith.subf %0, %14 : vector<16x32xf32>
    %cst_8 = arith.constant 9.99999974E-6 : f32
    %16 = vector.broadcast %cst_8 : f32 to vector<16x1xf32>
    %17 = arith.addf %13, %16 : vector<16x1xf32>
    %18 = math.rsqrt %17 : vector<16x1xf32>
    %19 = vector.broadcast %18 : vector<16x1xf32> to vector<16x32xf32>
    %20 = arith.mulf %15, %19 : vector<16x32xf32>
    %21 = vector.broadcast %1 : vector<1x32xf32> to vector<16x32xf32>
    %22 = arith.mulf %20, %21 : vector<16x32xf32>
    %23 = vector.broadcast %2 : vector<1x32xf32> to vector<16x32xf32>
    %24 = arith.addf %22, %23 : vector<16x32xf32>
    %c0_9 = arith.constant 0 : index
    %c0_10 = arith.constant 0 : index
    %25 = vector.load %arg4[%c0_9, %c0_10] : memref<32x32xf32, #tpu.memory_space<vmem>>, vector<32x32xf32>
    %cst_11 = arith.constant dense<0.000000e+00> : vector<16x32xf32>
    %26 = tpu.matmul %24, %25, %cst_11 {dimension_numbers = #tpu.dot_dimension_numbers<[1], [0], [0], [1], [0, 0, 1, 1], [], []>} : vector<16x32xf32>, vector<32x32xf32>, vector<16x32xf32> -> vector<16x32xf32>
    %c0_12 = arith.constant 0 : index
    %c0_13 = arith.constant 0 : index
    %27 = vector.load %arg5[%c0_12, %c0_13] : memref<1x32xf32, #tpu.memory_space<vmem>>, vector<1x32xf32>
    %28 = vector.broadcast %27 : vector<1x32xf32> to vector<16x32xf32>
    %29 = arith.addf %26, %28 : vector<16x32xf32>
    %c0_14 = arith.constant 0 : index
    %c0_15 = arith.constant 0 : index
    %30 = vector.load %arg6[%c0_14, %c0_15] : memref<16x32xf32, #tpu.memory_space<vmem>>, vector<16x32xf32>
    tpu.vector_store %arg6[%c0_14, %c0_15], %29 {strides = array<i32>} : memref<16x32xf32, #tpu.memory_space<vmem>>, vector<16x32xf32>,
    return
  }
  func.func @transform_0(%arg0: i32) -> (i32, i32) {
    %c0_i32 = arith.constant 0 : i32
    %c0_i32_0 = arith.constant 0 : i32
    %c0_i32_1 = arith.constant 0 : i32
    return %c0_i32, %c0_i32_0 : i32, i32
  }
  func.func @transform_1(%arg0: i32) -> (i32, i32) {
    %c0_i32 = arith.constant 0 : i32
    %c0_i32_0 = arith.constant 0 : i32
    %c0_i32_1 = arith.constant 0 : i32
    return %c0_i32, %c0_i32_0 : i32, i32
  }
  func.func @transform_2(%arg0: i32) -> (i32, i32) {
    %c0_i32 = arith.constant 0 : i32
    %c0_i32_0 = arith.constant 0 : i32
    %c0_i32_1 = arith.constant 0 : i32
    return %c0_i32, %c0_i32_0 : i32, i32
  }
  func.func @transform_3(%arg0: i32) -> (i32, i32) {
    %c0_i32 = arith.constant 0 : i32
    %c0_i32_0 = arith.constant 0 : i32
    %c0_i32_1 = arith.constant 0 : i32
    return %c0_i32, %c0_i32_0 : i32, i32
  }
  func.func @transform_4(%arg0: i32) -> (i32, i32) {
    %c0_i32 = arith.constant 0 : i32
    %c0_i32_0 = arith.constant 0 : i32
    %c0_i32_1 = arith.constant 0 : i32
    return %c0_i32, %c0_i32_0 : i32, i32
  }
  func.func @transform_5(%arg0: i32) -> (i32, i32) {
    %c0_i32 = arith.constant 0 : i32
    %c0_i32_0 = arith.constant 0 : i32
    %c0_i32_1 = arith.constant 0 : i32
    return %c0_i32, %c0_i32_0 : i32, i32
  }
}

</mosaic_0001>

<llo_original>
// kernel: transformer_mkii_forward.16
$region0: #{transformer_mkii_forward.16}
  #allocation0 [shape = 'u32[]', space=smem, size = 0x4, offset = 0x4, fixed_abs, tag = 'smem constant byte address 0x4 - core index']
  #allocation1 [shape = 'u32[144,128]{1,0:T(1,128)}', space=vmem, size = 0x12000, scoped, tag = 'internal scratch']
  %s0 = inlined_call_operand.vmem [shape: f32[16,32], index: 0, kind: input, shape index: {}]
  %s1 = inlined_call_operand.vmem [shape: f32[1,32], index: 1, kind: input, shape index: {}]
  %s2 = inlined_call_operand.vmem [shape: f32[1,32], index: 2, kind: input, shape index: {}]
  %s3 = inlined_call_operand.vmem [shape: f32[16,32], index: 3, kind: output, shape index: {}]
  %s4 = sld [smem:[#allocation0]]
  $region22: #{transformer_mkii_forward.16} parent=0
    _
  %s6 = ssub.s32 1, %s4
  %s7 = scalar_select 0, %s6, %s4
  // Predicated region
  $region2: #{transformer_mkii_forward.16} parent=0 // pred_check
    _
  $region3: #{transformer_mkii_forward.16} parent=0 // pred_check_branch
    %9 = sbr.rel (0) target = $region5
  $region4: #{transformer_mkii_forward.16} parent=0 // pred_region
    _
  $region5: #{transformer_mkii_forward.16} parent=0 // pred_fallthru
    _
  // Predicated region
  $region6: #{transformer_mkii_forward.16} parent=0 // pred_check
    _
  $region7: #{transformer_mkii_forward.16} parent=0 // pred_check_branch
    %11 = sbr.rel (0) target = $region9
  $region8: #{transformer_mkii_forward.16} parent=0 // pred_region
    _
  $region9: #{transformer_mkii_forward.16} parent=0 // pred_fallthru
    _
  // Predicated region
  $region10: #{transformer_mkii_forward.16} parent=0 // pred_check
    _
  $region11: #{transformer_mkii_forward.16} parent=0 // pred_check_branch
    %13 = sbr.rel (0) target = $region13
  $region12: #{transformer_mkii_forward.16} parent=0 // pred_region
    _
  $region13: #{transformer_mkii_forward.16} parent=0 // pred_fallthru
    _
  %v14 = vld [vmem:[%s0] sm:$0xff]
  %v15 = vld [vmem:[%s0 + $0x8] sm:$0xff]
  %v16 = vld [vmem:[%s1] sm:$0x1]
  %v17 = vld [vmem:[%s2] sm:$0x1]
  %vm18 = vcmask 261120
  %v19 = vsel %vm18, %v14, 0.0
  %20 = vadd.xlane.f32.xlu0 %v19
  %v21 = vpop.xlane.xlu0 %20
  %v22 = vsel %vm18, %v15, 0.0
  %23 = vadd.xlane.f32.xlu0 %v22
  %v24 = vpop.xlane.xlu0 %23
  %v25 = vrcp.pop 32.0
  %v26 = vmul.f32 %v21, %v25
  %v27 = vmul.f32 %v24, %v25
  %v28 = vsub.f32 %v14, %v26
  %v29 = vsub.f32 %v15, %v27
  %v30 = vmul.f32 %v28, %v28
  %v31 = vmul.f32 %v29, %v29
  %v32 = vsel %vm18, %v30, 0.0
  %33 = vadd.xlane.f32.xlu0 %v32
  %v34 = vpop.xlane.xlu0 %33
  %v35 = vsel %vm18, %v31, 0.0
  %36 = vadd.xlane.f32.xlu0 %v35
  %v37 = vpop.xlane.xlu0 %36
  %v38 = vmul.f32 %v34, %v25
  %v39 = vmul.f32 %v37, %v25
  %v40 = vadd.f32 %v38, 1e-05
  %v41 = vadd.f32 %v39, 1e-05
  %v42 = vrsqrt.pop %v40
  %v43 = vrsqrt.pop %v41
  %v44 = vmul.f32 %v28, %v42
  %v45 = vmul.f32 %v29, %v43
  %v47 = vlaneseq
  %v48 = vshrl.u32 %v47, 7
  %v49 = vsub.s32 0, %v48
  %v50 = vrot.slane %v16, %v49
  %v52 = vmul.f32 %v44, %v50
  %v53 = vmul.f32 %v45, %v50
  %v55 = vlaneseq
  %v56 = vshrl.u32 %v55, 7
  %v57 = vsub.s32 0, %v56
  %v58 = vrot.slane %v17, %v57
  %v60 = vadd.f32 %v52, %v58
  %v61 = vadd.f32 %v53, %v58
  %62 = vst.msk [vmem:[%s3] sm:$0xff] %vm18, %v60
  %63 = vst.msk [vmem:[%s3 + $0x8] sm:$0xff] %vm18, %v61
  // Predicated region
  $region14: #{transformer_mkii_forward.16} parent=0 // pred_check
    _
  $region15: #{transformer_mkii_forward.16} parent=0 // pred_check_branch
    %65 = sbr.rel (0) target = $region17
  $region16: #{transformer_mkii_forward.16} parent=0 // pred_region
    _
  $region17: #{transformer_mkii_forward.16} parent=0 // pred_fallthru
    _
  // Predicated region
  $region18: #{transformer_mkii_forward.16} parent=0 // pred_check
    _
  $region19: #{transformer_mkii_forward.16} parent=0 // pred_check_branch
    %67 = sbr.rel (0) target = $region21
  $region20: #{transformer_mkii_forward.16} parent=0 // pred_region
    _
  $region21: #{transformer_mkii_forward.16} parent=0 // pred_fallthru
    _

// kernel: transformer_mkii_forward.13
$region0: #{transformer_mkii_forward.13}
  #allocation0 [shape = 'u32[]', space=smem, size = 0x4, offset = 0x4, fixed_abs, tag = 'smem constant byte address 0x4 - core index']
  #allocation1 [shape = 'u32[144,128]{1,0:T(1,128)}', space=vmem, size = 0x12000, scoped, tag = 'internal scratch']
  %s0 = inlined_call_operand.vmem [shape: f32[16,32], index: 0, kind: input, shape index: {}]
  %s1 = inlined_call_operand.vmem [shape: f32[32,2048], index: 1, kind: input, shape index: {}]
  %s2 = inlined_call_operand.vmem [shape: f32[1,2048], index: 2, kind: input, shape index: {}]
  %s3 = inlined_call_operand.vmem [shape: f32[2048,32], index: 3, kind: input, shape index: {}]
  %s4 = inlined_call_operand.vmem [shape: f32[1,32], index: 4, kind: input, shape index: {}]
  %s5 = inlined_call_operand.vmem [shape: f32[1,32], index: 5, kind: input, shape index: {}]
  %s6 = inlined_call_operand.vmem [shape: f32[1,32], index: 6, kind: input, shape index: {}]
  %s7 = inlined_call_operand.vmem [shape: f32[16,32], index: 7, kind: output, shape index: {}]
  %s8 = sld [smem:[#allocation0]]
  $region38: #{transformer_mkii_forward.13} parent=0
    _
  %s10 = ssub.s32 1, %s8
  %s11 = scalar_select 0, %s10, %s8
  // Predicated region
  $region2: #{transformer_mkii_forward.13} parent=0 // pred_check
    _
  $region3: #{transformer_mkii_forward.13} parent=0 // pred_check_branch
    %13 = sbr.rel (0) target = $region5
  $region4: #{transformer_mkii_forward.13} parent=0 // pred_region
    _
  $region5: #{transformer_mkii_forward.13} parent=0 // pred_fallthru
    _
  // Predicated region
  $region6: #{transformer_mkii_forward.13} parent=0 // pred_check
    _
  $region7: #{transformer_mkii_forward.13} parent=0 // pred_check_branch
    %15 = sbr.rel (0) target = $region9
  $region8: #{transformer_mkii_forward.13} parent=0 // pred_region
    _
  $region9: #{transformer_mkii_forward.13} parent=0 // pred_fallthru
    _
  // Predicated region
  $region10: #{transformer_mkii_forward.13} parent=0 // pred_check
    _
  $region11: #{transformer_mkii_forward.13} parent=0 // pred_check_branch
    %17 = sbr.rel (0) target = $region13
  $region12: #{transformer_mkii_forward.13} parent=0 // pred_region
    _
  $region13: #{transformer_mkii_forward.13} parent=0 // pred_fallthru
    _
  // Predicated region
  $region14: #{transformer_mkii_forward.13} parent=0 // pred_check
    _
  $region15: #{transformer_mkii_forward.13} parent=0 // pred_check_branch
    %19 = sbr.rel (0) target = $region17
  $region16: #{transformer_mkii_forward.13} parent=0 // pred_region
    _
  $region17: #{transformer_mkii_forward.13} parent=0 // pred_fallthru
    _
  // Predicated region
  $region18: #{transformer_mkii_forward.13} parent=0 // pred_check
    _
  $region19: #{transformer_mkii_forward.13} parent=0 // pred_check_branch
    %21 = sbr.rel (0) target = $region21
  $region20: #{transformer_mkii_forward.13} parent=0 // pred_region
    _
  $region21: #{transformer_mkii_forward.13} parent=0 // pred_fallthru
    _
  // Predicated region
  $region22: #{transformer_mkii_forward.13} parent=0 // pred_check
    _
  $region23: #{transformer_mkii_forward.13} parent=0 // pred_check_branch
    %23 = sbr.rel (0) target = $region25
  $region24: #{transformer_mkii_forward.13} parent=0 // pred_region
    _
  $region25: #{transformer_mkii_forward.13} parent=0 // pred_fallthru
    _
  // Predicated region
  $region26: #{transformer_mkii_forward.13} parent=0 // pred_check
    _
  $region27: #{transformer_mkii_forward.13} parent=0 // pred_check_branch
    %25 = sbr.rel (0) target = $region29
  $region28: #{transformer_mkii_forward.13} parent=0 // pred_region
    _
  $region29: #{transformer_mkii_forward.13} parent=0 // pred_fallthru
    _
  %v26 = vld [vmem:[%s0] sm:$0xff]
  %v27 = vld [vmem:[%s0 + $0x8] sm:$0xff]
  %v28 = vld [vmem:[%s1] sm:$0xff]
  %v29 = vld [vmem:[%s1 + $0x8] sm:$0xff]
  %v30 = vld [vmem:[%s1 + $0x10] sm:$0xff]
  %v31 = vld [vmem:[%s1 + $0x18] sm:$0xff]
  %v32 = vld [vmem:[%s1 + $0x20] sm:$0xff]
  %v33 = vld [vmem:[%s1 + $0x28] sm:$0xff]
  %v34 = vld [vmem:[%s1 + $0x30] sm:$0xff]
  %v35 = vld [vmem:[%s1 + $0x38] sm:$0xff]
  %v36 = vld [vmem:[%s1 + $0x40] sm:$0xff]
  %v37 = vld [vmem:[%s1 + $0x48] sm:$0xff]
  %v38 = vld [vmem:[%s1 + $0x50] sm:$0xff]
  %v39 = vld [vmem:[%s1 + $0x58] sm:$0xff]
  %v40 = vld [vmem:[%s1 + $0x60] sm:$0xff]
  %v41 = vld [vmem:[%s1 + $0x68] sm:$0xff]
  %v42 = vld [vmem:[%s1 + $0x70] sm:$0xff]
  %v43 = vld [vmem:[%s1 + $0x78] sm:$0xff]
  %v44 = vld [vmem:[%s1 + $0x80] sm:$0xff]
  %v45 = vld [vmem:[%s1 + $0x88] sm:$0xff]
  %v46 = vld [vmem:[%s1 + $0x90] sm:$0xff]
  %v47 = vld [vmem:[%s1 + $0x98] sm:$0xff]
  %v48 = vld [vmem:[%s1 + $0xa0] sm:$0xff]
  %v49 = vld [vmem:[%s1 + $0xa8] sm:$0xff]
  %v50 = vld [vmem:[%s1 + $0xb0] sm:$0xff]
  %v51 = vld [vmem:[%s1 + $0xb8] sm:$0xff]
  %v52 = vld [vmem:[%s1 + $0xc0] sm:$0xff]
  %v53 = vld [vmem:[%s1 + $0xc8] sm:$0xff]
  %v54 = vld [vmem:[%s1 + $0xd0] sm:$0xff]
  %v55 = vld [vmem:[%s1 + $0xd8] sm:$0xff]
  %v56 = vld [vmem:[%s1 + $0xe0] sm:$0xff]
  %v57 = vld [vmem:[%s1 + $0xe8] sm:$0xff]
  %v58 = vld [vmem:[%s1 + $0xf0] sm:$0xff]
  %v59 = vld [vmem:[%s1 + $0xf8] sm:$0xff]
  %v60 = vld [vmem:[%s1 + $0x100] sm:$0xff]
  %v61 = vld [vmem:[%s1 + $0x108] sm:$0xff]
  %v62 = vld [vmem:[%s1 + $0x110] sm:$0xff]
  %v63 = vld [vmem:[%s1 + $0x118] sm:$0xff]
  %v64 = vld [vmem:[%s1 + $0x120] sm:$0xff]
  %v65 = vld [vmem:[%s1 + $0x128] sm:$0xff]
  %v66 = vld [vmem:[%s1 + $0x130] sm:$0xff]
  %v67 = vld [vmem:[%s1 + $0x138] sm:$0xff]
  %v68 = vld [vmem:[%s1 + $0x140] sm:$0xff]
  %v69 = vld [vmem:[%s1 + $0x148] sm:$0xff]
  %v70 = vld [vmem:[%s1 + $0x150] sm:$0xff]
  %v71 = vld [vmem:[%s1 + $0x158] sm:$0xff]
  %v72 = vld [vmem:[%s1 + $0x160] sm:$0xff]
  %v73 = vld [vmem:[%s1 + $0x168] sm:$0xff]
  %v74 = vld [vmem:[%s1 + $0x170] sm:$0xff]
  %v75 = vld [vmem:[%s1 + $0x178] sm:$0xff]
  %v76 = vld [vmem:[%s1 + $0x180] sm:$0xff]
  %v77 = vld [vmem:[%s1 + $0x188] sm:$0xff]
  %v78 = vld [vmem:[%s1 + $0x190] sm:$0xff]
  %v79 = vld [vmem:[%s1 + $0x198] sm:$0xff]
  %v80 = vld [vmem:[%s1 + $0x1a0] sm:$0xff]
  %v81 = vld [vmem:[%s1 + $0x1a8] sm:$0xff]
  %v82 = vld [vmem:[%s1 + $0x1b0] sm:$0xff]
  %v83 = vld [vmem:[%s1 + $0x1b8] sm:$0xff]
  %v84 = vld [vmem:[%s1 + $0x1c0] sm:$0xff]
  %v85 = vld [vmem:[%s1 + $0x1c8] sm:$0xff]
  %v86 = vld [vmem:[%s1 + $0x1d0] sm:$0xff]
  %v87 = vld [vmem:[%s1 + $0x1d8] sm:$0xff]
  %v88 = vld [vmem:[%s1 + $0x1e0] sm:$0xff]
  %v89 = vld [vmem:[%s1 + $0x1e8] sm:$0xff]
  %v90 = vld [vmem:[%s1 + $0x1f0] sm:$0xff]
  %v91 = vld [vmem:[%s1 + $0x1f8] sm:$0xff]
  %v92 = vld [vmem:[%s2] sm:$0xff]
  %v93 = vld [vmem:[%s2 + $0x8] sm:$0xff]
  %v96 = vlaneseq
  %v97 = vshrl.u32 %v96, 7
  %v98 = vsub.s32 0, %v97
  %v99 = vrot.slane %v92, %v98
  %v100 = vlaneseq
  %v101 = vshrl.u32 %v100, 7
  %v102 = vsub.s32 1, %v101
  %v103 = vrot.slane %v92, %v102
  %v104 = vlaneseq
  %v105 = vshrl.u32 %v104, 7
  %v106 = vsub.s32 2, %v105
  %v107 = vrot.slane %v92, %v106
  %v108 = vlaneseq
  %v109 = vshrl.u32 %v108, 7
  %v110 = vsub.s32 3, %v109
  %v111 = vrot.slane %v92, %v110
  %v112 = vlaneseq
  %v113 = vshrl.u32 %v112, 7
  %v114 = vsub.s32 4, %v113
  %v115 = vrot.slane %v92, %v114
  %v116 = vlaneseq
  %v117 = vshrl.u32 %v116, 7
  %v118 = vsub.s32 5, %v117
  %v119 = vrot.slane %v92, %v118
  %v120 = vlaneseq
  %v121 = vshrl.u32 %v120, 7
  %v122 = vsub.s32 6, %v121
  %v123 = vrot.slane %v92, %v122
  %v124 = vlaneseq
  %v125 = vshrl.u32 %v124, 7
  %v126 = vsub.s32 7, %v125
  %v127 = vrot.slane %v92, %v126
  %v128 = vlaneseq
  %v129 = vshrl.u32 %v128, 7
  %v130 = vsub.s32 0, %v129
  %v131 = vrot.slane %v93, %v130
  %v132 = vlaneseq
  %v133 = vshrl.u32 %v132, 7
  %v134 = vsub.s32 1, %v133
  %v135 = vrot.slane %v93, %v134
  %v136 = vlaneseq
  %v137 = vshrl.u32 %v136, 7
  %v138 = vsub.s32 2, %v137
  %v139 = vrot.slane %v93, %v138
  %v140 = vlaneseq
  %v141 = vshrl.u32 %v140, 7
  %v142 = vsub.s32 3, %v141
  %v143 = vrot.slane %v93, %v142
  %v144 = vlaneseq
  %v145 = vshrl.u32 %v144, 7
  %v146 = vsub.s32 4, %v145
  %v147 = vrot.slane %v93, %v146
  %v148 = vlaneseq
  %v149 = vshrl.u32 %v148, 7
  %v150 = vsub.s32 5, %v149
  %v151 = vrot.slane %v93, %v150
  %v152 = vlaneseq
  %v153 = vshrl.u32 %v152, 7
  %v154 = vsub.s32 6, %v153
  %v155 = vrot.slane %v93, %v154
  %v156 = vlaneseq
  %v157 = vshrl.u32 %v156, 7
  %v158 = vsub.s32 7, %v157
  %v159 = vrot.slane %v93, %v158
  %vm176 = vcmask 261120
  %v178 = vsel %vm176, %v26, 0
  %v181 = vsel %vm176, %v27, 0
  %183 = vmatprep.subr.mxu0 %v29
  %184 = vmatpush1.msra.mxu0 %v28
  %185 = vmatprep.subr.mxu0 %v45
  %186 = vmatpush1.msra.mxu0 %v44
  %187 = vmatprep.subr.mxu0 %v61
  %188 = vmatpush1.msra.mxu0 %v60
  %189 = vmatprep.subr.mxu0 %v77
  %190 = vmatpush1.msra.mxu0 %v76
  %191 = vmatprep.subr.mxu0 0.0
  %192 = vmatpush1.msra.mxu0 0.0
  %193 = vmatprep.subr.mxu0 0.0
  %194 = vmatpush1.msra.mxu0 0.0
  %195 = vmatprep.subr.mxu0 0.0
  %196 = vmatpush1.msra.mxu0 0.0
  %197 = vmatprep.subr.mxu0 0.0
  %198 = vmatpush1.msra.mxu0 0.0
  %199 = vmatprep.subr.mxu0 0.0
  %200 = vmatpush1.msra.mxu0 0.0
  %201 = vmatprep.subr.mxu0 0.0
  %202 = vmatpush1.msra.mxu0 0.0
  %203 = vmatprep.subr.mxu0 0.0
  %204 = vmatpush1.msra.mxu0 0.0
  %205 = vmatprep.subr.mxu0 0.0
  %206 = vmatpush1.msra.mxu0 0.0
  %207 = vmatprep.subr.mxu0 0.0
  %208 = vmatpush1.msra.mxu0 0.0
  %209 = vmatprep.subr.mxu0 0.0
  %210 = vmatpush1.msra.mxu0 0.0
  %211 = vmatprep.subr.mxu0 0.0
  %212 = vmatpush1.msra.mxu0 0.0
  %213 = vmatprep.subr.mxu0 0.0
  %214 = vmatpush1.msra.mxu0 0.0
  %215 = vmatprep.subr.mxu0 0.0
  %216 = vmatpush1.msra.mxu0 0.0
  %217 = vmatprep.subr.mxu0 0.0
  %218 = vmatpush1.msra.mxu0 0.0
  %219 = vmatprep.subr.mxu0 0.0
  %220 = vmatpush1.msra.mxu0 0.0
  %221 = vmatprep.subr.mxu0 0.0
  %222 = vmatpush1.msra.mxu0 0.0
  %223 = vmatprep.subr.mxu0 0.0
  %224 = vmatpush1.msra.mxu0 0.0
  %225 = vmatprep.subr.mxu0 0.0
  %226 = vmatpush1.msra.mxu0 0.0
  %227 = vmatprep.subr.mxu0 0.0
  %228 = vmatpush1.msra.mxu0 0.0
  %229 = vmatprep.subr.mxu0 0.0
  %230 = vmatpush1.msra.mxu0 0.0
  %231 = vmatprep.subr.mxu0 0.0
  %232 = vmatpush1.msra.mxu0 0.0
  %233 = vmatprep.subr.mxu0 0.0
  %234 = vmatpush1.msra.mxu0 0.0
  %235 = vmatprep.subr.mxu0 0.0
  %236 = vmatpush1.msra.mxu0 0.0
  %237 = vmatprep.subr.mxu0 0.0
  %238 = vmatpush1.msra.mxu0 0.0
  %239 = vmatprep.subr.mxu0 0.0
  %240 = vmatpush1.msra.mxu0 0.0
  %241 = vmatprep.subr.mxu0 0.0
  %242 = vmatpush1.msra.mxu0 0.0
  %243 = vmatprep.subr.mxu0 0.0
  %244 = vmatpush1.msra.mxu0 0.0
  %245 = vmatprep.subr.mxu0 0.0
  %246 = vmatpush1.msra.mxu0 0.0
  %247 = vmatprep.mubr.f32.mxu0 0.0
  %248 = vmatmul.mubr.f32.gmra.mrb[0].mxu0 %v178
  %v249 = vpop.f32.mrb[0].mxu0
  %v250 = vadd.f32 %v99, %v249
  %v251 = vpop.f32.mrb[0].mxu0
  %v252 = vadd.f32 %v103, %v251
  %253 = vmatprep.mubr.f32.mxu0 0.0
  %254 = vmatmul.mubr.f32.gmra.mrb[0].mxu0 %v181
  %v255 = vpop.f32.mrb[0].mxu0
  %v256 = vadd.f32 %v99, %v255
  %v257 = vpop.f32.mrb[0].mxu0
  %v258 = vadd.f32 %v103, %v257
  %259 = vdwg.mxu0
  %260 = vmatprep.subr.mxu0 %v31
  %261 = vmatpush1.msra.mxu0 %v30
  %262 = vmatprep.subr.mxu0 %v47
  %263 = vmatpush1.msra.mxu0 %v46
  %264 = vmatprep.subr.mxu0 %v63
  %265 = vmatpush1.msra.mxu0 %v62
  %266 = vmatprep.subr.mxu0 %v79
  %267 = vmatpush1.msra.mxu0 %v78
  %268 = vmatprep.subr.mxu0 0.0
  %269 = vmatpush1.msra.mxu0 0.0
  %270 = vmatprep.subr.mxu0 0.0
  %271 = vmatpush1.msra.mxu0 0.0
  %272 = vmatprep.subr.mxu0 0.0
  %273 = vmatpush1.msra.mxu0 0.0
  %274 = vmatprep.subr.mxu0 0.0
  %275 = vmatpush1.msra.mxu0 0.0
  %276 = vmatprep.subr.mxu0 0.0
  %277 = vmatpush1.msra.mxu0 0.0
  %278 = vmatprep.subr.mxu0 0.0
  %279 = vmatpush1.msra.mxu0 0.0
  %280 = vmatprep.subr.mxu0 0.0
  %281 = vmatpush1.msra.mxu0 0.0
  %282 = vmatprep.subr.mxu0 0.0
  %283 = vmatpush1.msra.mxu0 0.0
  %284 = vmatprep.subr.mxu0 0.0
  %285 = vmatpush1.msra.mxu0 0.0
  %286 = vmatprep.subr.mxu0 0.0
  %287 = vmatpush1.msra.mxu0 0.0
  %288 = vmatprep.subr.mxu0 0.0
  %289 = vmatpush1.msra.mxu0 0.0
  %290 = vmatprep.subr.mxu0 0.0
  %291 = vmatpush1.msra.mxu0 0.0
  %292 = vmatprep.subr.mxu0 0.0
  %293 = vmatpush1.msra.mxu0 0.0
  %294 = vmatprep.subr.mxu0 0.0
  %295 = vmatpush1.msra.mxu0 0.0
  %296 = vmatprep.subr.mxu0 0.0
  %297 = vmatpush1.msra.mxu0 0.0
  %298 = vmatprep.subr.mxu0 0.0
  %299 = vmatpush1.msra.mxu0 0.0
  %300 = vmatprep.subr.mxu0 0.0
  %301 = vmatpush1.msra.mxu0 0.0
  %302 = vmatprep.subr.mxu0 0.0
  %303 = vmatpush1.msra.mxu0 0.0
  %304 = vmatprep.subr.mxu0 0.0
  %305 = vmatpush1.msra.mxu0 0.0
  %306 = vmatprep.subr.mxu0 0.0
  %307 = vmatpush1.msra.mxu0 0.0
  %308 = vmatprep.subr.mxu0 0.0
  %309 = vmatpush1.msra.mxu0 0.0
  %310 = vmatprep.subr.mxu0 0.0
  %311 = vmatpush1.msra.mxu0 0.0
  %312 = vmatprep.subr.mxu0 0.0
  %313 = vmatpush1.msra.mxu0 0.0
  %314 = vmatprep.subr.mxu0 0.0
  %315 = vmatpush1.msra.mxu0 0.0
  %316 = vmatprep.subr.mxu0 0.0
  %317 = vmatpush1.msra.mxu0 0.0
  %318 = vmatprep.subr.mxu0 0.0
  %319 = vmatpush1.msra.mxu0 0.0
  %320 = vmatprep.subr.mxu0 0.0
  %321 = vmatpush1.msra.mxu0 0.0
  %322 = vmatprep.subr.mxu0 0.0
  %323 = vmatpush1.msra.mxu0 0.0
  %324 = vmatprep.mubr.f32.mxu0 0.0
  %325 = vmatmul.mubr.f32.gmra.mrb[0].mxu0 %v178
  %v326 = vpop.f32.mrb[0].mxu0
  %v327 = vadd.f32 %v107, %v326
  %v328 = vpop.f32.mrb[0].mxu0
  %v329 = vadd.f32 %v111, %v328
  %330 = vmatprep.mubr.f32.mxu0 0.0
  %331 = vmatmul.mubr.f32.gmra.mrb[0].mxu0 %v181
  %v332 = vpop.f32.mrb[0].mxu0
  %v333 = vadd.f32 %v107, %v332
  %v334 = vpop.f32.mrb[0].mxu0
  %v335 = vadd.f32 %v111, %v334
  %336 = vdwg.mxu0
  %337 = vmatprep.subr.mxu0 %v33
  %338 = vmatpush1.msra.mxu0 %v32
  %339 = vmatprep.subr.mxu0 %v49
  %340 = vmatpush1.msra.mxu0 %v48
  %341 = vmatprep.subr.mxu0 %v65
  %342 = vmatpush1.msra.mxu0 %v64
  %343 = vmatprep.subr.mxu0 %v81
  %344 = vmatpush1.msra.mxu0 %v80
  %345 = vmatprep.subr.mxu0 0.0
  %346 = vmatpush1.msra.mxu0 0.0
  %347 = vmatprep.subr.mxu0 0.0
  %348 = vmatpush1.msra.mxu0 0.0
  %349 = vmatprep.subr.mxu0 0.0
  %350 = vmatpush1.msra.mxu0 0.0
  %351 = vmatprep.subr.mxu0 0.0
  %352 = vmatpush1.msra.mxu0 0.0
  %353 = vmatprep.subr.mxu0 0.0
  %354 = vmatpush1.msra.mxu0 0.0
  %355 = vmatprep.subr.mxu0 0.0
  %356 = vmatpush1.msra.mxu0 0.0
  %357 = vmatprep.subr.mxu0 0.0
  %358 = vmatpush1.msra.mxu0 0.0
  %359 = vmatprep.subr.mxu0 0.0
  %360 = vmatpush1.msra.mxu0 0.0
  %361 = vmatprep.subr.mxu0 0.0
  %362 = vmatpush1.msra.mxu0 0.0
  %363 = vmatprep.subr.mxu0 0.0
  %364 = vmatpush1.msra.mxu0 0.0
  %365 = vmatprep.subr.mxu0 0.0
  %366 = vmatpush1.msra.mxu0 0.0
  %367 = vmatprep.subr.mxu0 0.0
  %368 = vmatpush1.msra.mxu0 0.0
  %369 = vmatprep.subr.mxu0 0.0
  %370 = vmatpush1.msra.mxu0 0.0
  %371 = vmatprep.subr.mxu0 0.0
  %372 = vmatpush1.msra.mxu0 0.0
  %373 = vmatprep.subr.mxu0 0.0
  %374 = vmatpush1.msra.mxu0 0.0
  %375 = vmatprep.subr.mxu0 0.0
  %376 = vmatpush1.msra.mxu0 0.0
  %377 = vmatprep.subr.mxu0 0.0
  %378 = vmatpush1.msra.mxu0 0.0
  %379 = vmatprep.subr.mxu0 0.0
  %380 = vmatpush1.msra.mxu0 0.0
  %381 = vmatprep.subr.mxu0 0.0
  %382 = vmatpush1.msra.mxu0 0.0
  %383 = vmatprep.subr.mxu0 0.0
  %384 = vmatpush1.msra.mxu0 0.0
  %385 = vmatprep.subr.mxu0 0.0
  %386 = vmatpush1.msra.mxu0 0.0
  %387 = vmatprep.subr.mxu0 0.0
  %388 = vmatpush1.msra.mxu0 0.0
  %389 = vmatprep.subr.mxu0 0.0
  %390 = vmatpush1.msra.mxu0 0.0
  %391 = vmatprep.subr.mxu0 0.0
  %392 = vmatpush1.msra.mxu0 0.0
  %393 = vmatprep.subr.mxu0 0.0
  %394 = vmatpush1.msra.mxu0 0.0
  %395 = vmatprep.subr.mxu0 0.0
  %396 = vmatpush1.msra.mxu0 0.0
  %397 = vmatprep.subr.mxu0 0.0
  %398 = vmatpush1.msra.mxu0 0.0
  %399 = vmatprep.subr.mxu0 0.0
  %400 = vmatpush1.msra.mxu0 0.0
  %401 = vmatprep.mubr.f32.mxu0 0.0
  %402 = vmatmul.mubr.f32.gmra.mrb[0].mxu0 %v178
  %v403 = vpop.f32.mrb[0].mxu0
  %v404 = vadd.f32 %v115, %v403
  %v405 = vpop.f32.mrb[0].mxu0
  %v406 = vadd.f32 %v119, %v405
  %407 = vmatprep.mubr.f32.mxu0 0.0
  %408 = vmatmul.mubr.f32.gmra.mrb[0].mxu0 %v181
  %v409 = vpop.f32.mrb[0].mxu0
  %v410 = vadd.f32 %v115, %v409
  %v411 = vpop.f32.mrb[0].mxu0
  %v412 = vadd.f32 %v119, %v411
  %413 = vdwg.mxu0
  %414 = vmatprep.subr.mxu0 %v35
  %415 = vmatpush1.msra.mxu0 %v34
  %416 = vmatprep.subr.mxu0 %v51
  %417 = vmatpush1.msra.mxu0 %v50
  %418 = vmatprep.subr.mxu0 %v67
  %419 = vmatpush1.msra.mxu0 %v66
  %420 = vmatprep.subr.mxu0 %v83
  %421 = vmatpush1.msra.mxu0 %v82
  %422 = vmatprep.subr.mxu0 0.0
  %423 = vmatpush1.msra.mxu0 0.0
  %424 = vmatprep.subr.mxu0 0.0
  %425 = vmatpush1.msra.mxu0 0.0
  %426 = vmatprep.subr.mxu0 0.0
  %427 = vmatpush1.msra.mxu0 0.0
  %428 = vmatprep.subr.mxu0 0.0
  %429 = vmatpush1.msra.mxu0 0.0
  %430 = vmatprep.subr.mxu0 0.0
  %431 = vmatpush1.msra.mxu0 0.0
  %432 = vmatprep.subr.mxu0 0.0
  %433 = vmatpush1.msra.mxu0 0.0
  %434 = vmatprep.subr.mxu0 0.0
  %435 = vmatpush1.msra.mxu0 0.0
  %436 = vmatprep.subr.mxu0 0.0
  %437 = vmatpush1.msra.mxu0 0.0
  %438 = vmatprep.subr.mxu0 0.0
  %439 = vmatpush1.msra.mxu0 0.0
  %440 = vmatprep.subr.mxu0 0.0
  %441 = vmatpush1.msra.mxu0 0.0
  %442 = vmatprep.subr.mxu0 0.0
  %443 = vmatpush1.msra.mxu0 0.0
  %444 = vmatprep.subr.mxu0 0.0
  %445 = vmatpush1.msra.mxu0 0.0
  %446 = vmatprep.subr.mxu0 0.0
  %447 = vmatpush1.msra.mxu0 0.0
  %448 = vmatprep.subr.mxu0 0.0
  %449 = vmatpush1.msra.mxu0 0.0
  %450 = vmatprep.subr.mxu0 0.0
  %451 = vmatpush1.msra.mxu0 0.0
  %452 = vmatprep.subr.mxu0 0.0
  %453 = vmatpush1.msra.mxu0 0.0
  %454 = vmatprep.subr.mxu0 0.0
  %455 = vmatpush1.msra.mxu0 0.0
  %456 = vmatprep.subr.mxu0 0.0
  %457 = vmatpush1.msra.mxu0 0.0
  %458 = vmatprep.subr.mxu0 0.0
  %459 = vmatpush1.msra.mxu0 0.0
  %460 = vmatprep.subr.mxu0 0.0
  %461 = vmatpush1.msra.mxu0 0.0
  %462 = vmatprep.subr.mxu0 0.0
  %463 = vmatpush1.msra.mxu0 0.0
  %464 = vmatprep.subr.mxu0 0.0
  %465 = vmatpush1.msra.mxu0 0.0
  %466 = vmatprep.subr.mxu0 0.0
  %467 = vmatpush1.msra.mxu0 0.0
  %468 = vmatprep.subr.mxu0 0.0
  %469 = vmatpush1.msra.mxu0 0.0
  %470 = vmatprep.subr.mxu0 0.0
  %471 = vmatpush1.msra.mxu0 0.0
  %472 = vmatprep.subr.mxu0 0.0
  %473 = vmatpush1.msra.mxu0 0.0
  %474 = vmatprep.subr.mxu0 0.0
  %475 = vmatpush1.msra.mxu0 0.0
  %476 = vmatprep.subr.mxu0 0.0
  %477 = vmatpush1.msra.mxu0 0.0
  %478 = vmatprep.mubr.f32.mxu0 0.0
  %479 = vmatmul.mubr.f32.gmra.mrb[0].mxu0 %v178
  %v480 = vpop.f32.mrb[0].mxu0
  %v481 = vadd.f32 %v123, %v480
  %v482 = vpop.f32.mrb[0].mxu0
  %v483 = vadd.f32 %v127, %v482
  %484 = vmatprep.mubr.f32.mxu0 0.0
  %485 = vmatmul.mubr.f32.gmra.mrb[0].mxu0 %v181
  %v486 = vpop.f32.mrb[0].mxu0
  %v487 = vadd.f32 %v123, %v486
  %v488 = vpop.f32.mrb[0].mxu0
  %v489 = vadd.f32 %v127, %v488
  %490 = vdwg.mxu0
  %491 = vmatprep.subr.mxu0 %v37
  %492 = vmatpush1.msra.mxu0 %v36
  %493 = vmatprep.subr.mxu0 %v53
  %494 = vmatpush1.msra.mxu0 %v52
  %495 = vmatprep.subr.mxu0 %v69
  %496 = vmatpush1.msra.mxu0 %v68
  %497 = vmatprep.subr.mxu0 %v85
  %498 = vmatpush1.msra.mxu0 %v84
  %499 = vmatprep.subr.mxu0 0.0
  %500 = vmatpush1.msra.mxu0 0.0
  %501 = vmatprep.subr.mxu0 0.0
  %502 = vmatpush1.msra.mxu0 0.0
  %503 = vmatprep.subr.mxu0 0.0
  %504 = vmatpush1.msra.mxu0 0.0
  %505 = vmatprep.subr.mxu0 0.0
  %506 = vmatpush1.msra.mxu0 0.0
  %507 = vmatprep.subr.mxu0 0.0
  %508 = vmatpush1.msra.mxu0 0.0
  %509 = vmatprep.subr.mxu0 0.0
  %510 = vmatpush1.msra.mxu0 0.0
  %511 = vmatprep.subr.mxu0 0.0
  %512 = vmatpush1.msra.mxu0 0.0
  %513 = vmatprep.subr.mxu0 0.0
  %514 = vmatpush1.msra.mxu0 0.0
  %515 = vmatprep.subr.mxu0 0.0
  %516 = vmatpush1.msra.mxu0 0.0
  %517 = vmatprep.subr.mxu0 0.0
  %518 = vmatpush1.msra.mxu0 0.0
  %519 = vmatprep.subr.mxu0 0.0
  %520 = vmatpush1.msra.mxu0 0.0
  %521 = vmatprep.subr.mxu0 0.0
  %522 = vmatpush1.msra.mxu0 0.0
  %523 = vmatprep.subr.mxu0 0.0
  %524 = vmatpush1.msra.mxu0 0.0
  %525 = vmatprep.subr.mxu0 0.0
  %526 = vmatpush1.msra.mxu0 0.0
  %527 = vmatprep.subr.mxu0 0.0
  %528 = vmatpush1.msra.mxu0 0.0
  %529 = vmatprep.subr.mxu0 0.0
  %530 = vmatpush1.msra.mxu0 0.0
  %531 = vmatprep.subr.mxu0 0.0
  %532 = vmatpush1.msra.mxu0 0.0
  %533 = vmatprep.subr.mxu0 0.0
  %534 = vmatpush1.msra.mxu0 0.0
  %535 = vmatprep.subr.mxu0 0.0
  %536 = vmatpush1.msra.mxu0 0.0
  %537 = vmatprep.subr.mxu0 0.0
  %538 = vmatpush1.msra.mxu0 0.0
  %539 = vmatprep.subr.mxu0 0.0
  %540 = vmatpush1.msra.mxu0 0.0
  %541 = vmatprep.subr.mxu0 0.0
  %542 = vmatpush1.msra.mxu0 0.0
  %543 = vmatprep.subr.mxu0 0.0
  %544 = vmatpush1.msra.mxu0 0.0
  %545 = vmatprep.subr.mxu0 0.0
  %546 = vmatpush1.msra.mxu0 0.0
  %547 = vmatprep.subr.mxu0 0.0
  %548 = vmatpush1.msra.mxu0 0.0
  %549 = vmatprep.subr.mxu0 0.0
  %550 = vmatpush1.msra.mxu0 0.0
  %551 = vmatprep.subr.mxu0 0.0
  %552 = vmatpush1.msra.mxu0 0.0
  %553 = vmatprep.subr.mxu0 0.0
  %554 = vmatpush1.msra.mxu0 0.0
  %555 = vmatprep.mubr.f32.mxu0 0.0
  %556 = vmatmul.mubr.f32.gmra.mrb[0].mxu0 %v178
  %v557 = vpop.f32.mrb[0].mxu0
  %v558 = vadd.f32 %v131, %v557
  %v559 = vpop.f32.mrb[0].mxu0
  %v560 = vadd.f32 %v135, %v559
  %561 = vmatprep.mubr.f32.mxu0 0.0
  %562 = vmatmul.mubr.f32.gmra.mrb[0].mxu0 %v181
  %v563 = vpop.f32.mrb[0].mxu0
  %v564 = vadd.f32 %v131, %v563
  %v565 = vpop.f32.mrb[0].mxu0
  %v566 = vadd.f32 %v135, %v565
  %567 = vdwg.mxu0
  %568 = vmatprep.subr.mxu0 %v39
  %569 = vmatpush1.msra.mxu0 %v38
  %570 = vmatprep.subr.mxu0 %v55
  %571 = vmatpush1.msra.mxu0 %v54
  %572 = vmatprep.subr.mxu0 %v71
  %573 = vmatpush1.msra.mxu0 %v70
  %574 = vmatprep.subr.mxu0 %v87
  %575 = vmatpush1.msra.mxu0 %v86
  %576 = vmatprep.subr.mxu0 0.0
  %577 = vmatpush1.msra.mxu0 0.0
  %578 = vmatprep.subr.mxu0 0.0
  %579 = vmatpush1.msra.mxu0 0.0
  %580 = vmatprep.subr.mxu0 0.0
  %581 = vmatpush1.msra.mxu0 0.0
  %582 = vmatprep.subr.mxu0 0.0
  %583 = vmatpush1.msra.mxu0 0.0
  %584 = vmatprep.subr.mxu0 0.0
  %585 = vmatpush1.msra.mxu0 0.0
  %586 = vmatprep.subr.mxu0 0.0
  %587 = vmatpush1.msra.mxu0 0.0
  %588 = vmatprep.subr.mxu0 0.0
  %589 = vmatpush1.msra.mxu0 0.0
  %590 = vmatprep.subr.mxu0 0.0
  %591 = vmatpush1.msra.mxu0 0.0
  %592 = vmatprep.subr.mxu0 0.0
  %593 = vmatpush1.msra.mxu0 0.0
  %594 = vmatprep.subr.mxu0 0.0
  %595 = vmatpush1.msra.mxu0 0.0
  %596 = vmatprep.subr.mxu0 0.0
  %597 = vmatpush1.msra.mxu0 0.0
  %598 = vmatprep.subr.mxu0 0.0
  %599 = vmatpush1.msra.mxu0 0.0
  %600 = vmatprep.subr.mxu0 0.0
  %601 = vmatpush1.msra.mxu0 0.0
  %602 = vmatprep.subr.mxu0 0.0
  %603 = vmatpush1.msra.mxu0 0.0
  %604 = vmatprep.subr.mxu0 0.0
  %605 = vmatpush1.msra.mxu0 0.0
  %606 = vmatprep.subr.mxu0 0.0
  %607 = vmatpush1.msra.mxu0 0.0
  %608 = vmatprep.subr.mxu0 0.0
  %609 = vmatpush1.msra.mxu0 0.0
  %610 = vmatprep.subr.mxu0 0.0
  %611 = vmatpush1.msra.mxu0 0.0
  %612 = vmatprep.subr.mxu0 0.0
  %613 = vmatpush1.msra.mxu0 0.0
  %614 = vmatprep.subr.mxu0 0.0
  %615 = vmatpush1.msra.mxu0 0.0
  %616 = vmatprep.subr.mxu0 0.0
  %617 = vmatpush1.msra.mxu0 0.0
  %618 = vmatprep.subr.mxu0 0.0
  %619 = vmatpush1.msra.mxu0 0.0
  %620 = vmatprep.subr.mxu0 0.0
  %621 = vmatpush1.msra.mxu0 0.0
  %622 = vmatprep.subr.mxu0 0.0
  %623 = vmatpush1.msra.mxu0 0.0
  %624 = vmatprep.subr.mxu0 0.0
  %625 = vmatpush1.msra.mxu0 0.0
  %626 = vmatprep.subr.mxu0 0.0
  %627 = vmatpush1.msra.mxu0 0.0
  %628 = vmatprep.subr.mxu0 0.0
  %629 = vmatpush1.msra.mxu0 0.0
  %630 = vmatprep.subr.mxu0 0.0
  %631 = vmatpush1.msra.mxu0 0.0
  %632 = vmatprep.mubr.f32.mxu0 0.0
  %633 = vmatmul.mubr.f32.gmra.mrb[0].mxu0 %v178
  %v634 = vpop.f32.mrb[0].mxu0
  %v635 = vadd.f32 %v139, %v634
  %v636 = vpop.f32.mrb[0].mxu0
  %v637 = vadd.f32 %v143, %v636
  %638 = vmatprep.mubr.f32.mxu0 0.0
  %639 = vmatmul.mubr.f32.gmra.mrb[0].mxu0 %v181
  %v640 = vpop.f32.mrb[0].mxu0
  %v641 = vadd.f32 %v139, %v640
  %v642 = vpop.f32.mrb[0].mxu0
  %v643 = vadd.f32 %v143, %v642
  %644 = vdwg.mxu0
  %645 = vmatprep.subr.mxu0 %v41
  %646 = vmatpush1.msra.mxu0 %v40
  %647 = vmatprep.subr.mxu0 %v57
  %648 = vmatpush1.msra.mxu0 %v56
  %649 = vmatprep.subr.mxu0 %v73
  %650 = vmatpush1.msra.mxu0 %v72
  %651 = vmatprep.subr.mxu0 %v89
  %652 = vmatpush1.msra.mxu0 %v88
  %653 = vmatprep.subr.mxu0 0.0
  %654 = vmatpush1.msra.mxu0 0.0
  %655 = vmatprep.subr.mxu0 0.0
  %656 = vmatpush1.msra.mxu0 0.0
  %657 = vmatprep.subr.mxu0 0.0
  %658 = vmatpush1.msra.mxu0 0.0
  %659 = vmatprep.subr.mxu0 0.0
  %660 = vmatpush1.msra.mxu0 0.0
  %661 = vmatprep.subr.mxu0 0.0
  %662 = vmatpush1.msra.mxu0 0.0
  %663 = vmatprep.subr.mxu0 0.0
  %664 = vmatpush1.msra.mxu0 0.0
  %665 = vmatprep.subr.mxu0 0.0
  %666 = vmatpush1.msra.mxu0 0.0
  %667 = vmatprep.subr.mxu0 0.0
  %668 = vmatpush1.msra.mxu0 0.0
  %669 = vmatprep.subr.mxu0 0.0
  %670 = vmatpush1.msra.mxu0 0.0
  %671 = vmatprep.subr.mxu0 0.0
  %672 = vmatpush1.msra.mxu0 0.0
  %673 = vmatprep.subr.mxu0 0.0
  %674 = vmatpush1.msra.mxu0 0.0
  %675 = vmatprep.subr.mxu0 0.0
  %676 = vmatpush1.msra.mxu0 0.0
  %677 = vmatprep.subr.mxu0 0.0
  %678 = vmatpush1.msra.mxu0 0.0
  %679 = vmatprep.subr.mxu0 0.0
  %680 = vmatpush1.msra.mxu0 0.0
  %681 = vmatprep.subr.mxu0 0.0
  %682 = vmatpush1.msra.mxu0 0.0
  %683 = vmatprep.subr.mxu0 0.0
  %684 = vmatpush1.msra.mxu0 0.0
  %685 = vmatprep.subr.mxu0 0.0
  %686 = vmatpush1.msra.mxu0 0.0
  %687 = vmatprep.subr.mxu0 0.0
  %688 = vmatpush1.msra.mxu0 0.0
  %689 = vmatprep.subr.mxu0 0.0
  %690 = vmatpush1.msra.mxu0 0.0
  %691 = vmatprep.subr.mxu0 0.0
  %692 = vmatpush1.msra.mxu0 0.0
  %693 = vmatprep.subr.mxu0 0.0
  %694 = vmatpush1.msra.mxu0 0.0
  %695 = vmatprep.subr.mxu0 0.0
  %696 = vmatpush1.msra.mxu0 0.0
  %697 = vmatprep.subr.mxu0 0.0
  %698 = vmatpush1.msra.mxu0 0.0
  %699 = vmatprep.subr.mxu0 0.0
  %700 = vmatpush1.msra.mxu0 0.0
  %701 = vmatprep.subr.mxu0 0.0
  %702 = vmatpush1.msra.mxu0 0.0
  %703 = vmatprep.subr.mxu0 0.0
  %704 = vmatpush1.msra.mxu0 0.0
  %705 = vmatprep.subr.mxu0 0.0
  %706 = vmatpush1.msra.mxu0 0.0
  %707 = vmatprep.subr.mxu0 0.0
  %708 = vmatpush1.msra.mxu0 0.0
  %709 = vmatprep.mubr.f32.mxu0 0.0
  %710 = vmatmul.mubr.f32.gmra.mrb[0].mxu0 %v178
  %v711 = vpop.f32.mrb[0].mxu0
  %v712 = vadd.f32 %v147, %v711
  %v713 = vpop.f32.mrb[0].mxu0
  %v714 = vadd.f32 %v151, %v713
  %715 = vmatprep.mubr.f32.mxu0 0.0
  %716 = vmatmul.mubr.f32.gmra.mrb[0].mxu0 %v181
  %v717 = vpop.f32.mrb[0].mxu0
  %v718 = vadd.f32 %v147, %v717
  %v719 = vpop.f32.mrb[0].mxu0
  %v720 = vadd.f32 %v151, %v719
  %721 = vdwg.mxu0
  %722 = vmatprep.subr.mxu0 %v43
  %723 = vmatpush1.msra.mxu0 %v42
  %724 = vmatprep.subr.mxu0 %v59
  %725 = vmatpush1.msra.mxu0 %v58
  %726 = vmatprep.subr.mxu0 %v75
  %727 = vmatpush1.msra.mxu0 %v74
  %728 = vmatprep.subr.mxu0 %v91
  %729 = vmatpush1.msra.mxu0 %v90
  %730 = vmatprep.subr.mxu0 0.0
  %731 = vmatpush1.msra.mxu0 0.0
  %732 = vmatprep.subr.mxu0 0.0
  %733 = vmatpush1.msra.mxu0 0.0
  %734 = vmatprep.subr.mxu0 0.0
  %735 = vmatpush1.msra.mxu0 0.0
  %736 = vmatprep.subr.mxu0 0.0
  %737 = vmatpush1.msra.mxu0 0.0
  %738 = vmatprep.subr.mxu0 0.0
  %739 = vmatpush1.msra.mxu0 0.0
  %740 = vmatprep.subr.mxu0 0.0
  %741 = vmatpush1.msra.mxu0 0.0
  %742 = vmatprep.subr.mxu0 0.0
  %743 = vmatpush1.msra.mxu0 0.0
  %744 = vmatprep.subr.mxu0 0.0
  %745 = vmatpush1.msra.mxu0 0.0
  %746 = vmatprep.subr.mxu0 0.0
  %747 = vmatpush1.msra.mxu0 0.0
  %748 = vmatprep.subr.mxu0 0.0
  %749 = vmatpush1.msra.mxu0 0.0
  %750 = vmatprep.subr.mxu0 0.0
  %751 = vmatpush1.msra.mxu0 0.0
  %752 = vmatprep.subr.mxu0 0.0
  %753 = vmatpush1.msra.mxu0 0.0
  %754 = vmatprep.subr.mxu0 0.0
  %755 = vmatpush1.msra.mxu0 0.0
  %756 = vmatprep.subr.mxu0 0.0
  %757 = vmatpush1.msra.mxu0 0.0
  %758 = vmatprep.subr.mxu0 0.0
  %759 = vmatpush1.msra.mxu0 0.0
  %760 = vmatprep.subr.mxu0 0.0
  %761 = vmatpush1.msra.mxu0 0.0
  %762 = vmatprep.subr.mxu0 0.0
  %763 = vmatpush1.msra.mxu0 0.0
  %764 = vmatprep.subr.mxu0 0.0
  %765 = vmatpush1.msra.mxu0 0.0
  %766 = vmatprep.subr.mxu0 0.0
  %767 = vmatpush1.msra.mxu0 0.0
  %768 = vmatprep.subr.mxu0 0.0
  %769 = vmatpush1.msra.mxu0 0.0
  %770 = vmatprep.subr.mxu0 0.0
  %771 = vmatpush1.msra.mxu0 0.0
  %772 = vmatprep.subr.mxu0 0.0
  %773 = vmatpush1.msra.mxu0 0.0
  %774 = vmatprep.subr.mxu0 0.0
  %775 = vmatpush1.msra.mxu0 0.0
  %776 = vmatprep.subr.mxu0 0.0
  %777 = vmatpush1.msra.mxu0 0.0
  %778 = vmatprep.subr.mxu0 0.0
  %779 = vmatpush1.msra.mxu0 0.0
  %780 = vmatprep.subr.mxu0 0.0
  %781 = vmatpush1.msra.mxu0 0.0
  %782 = vmatprep.subr.mxu0 0.0
  %783 = vmatpush1.msra.mxu0 0.0
  %784 = vmatprep.subr.mxu0 0.0
  %785 = vmatpush1.msra.mxu0 0.0
  %786 = vmatprep.mubr.f32.mxu0 0.0
  %787 = vmatmul.mubr.f32.gmra.mrb[0].mxu0 %v178
  %v788 = vpop.f32.mrb[0].mxu0
  %v789 = vadd.f32 %v155, %v788
  %v790 = vpop.f32.mrb[0].mxu0
  %v791 = vadd.f32 %v159, %v790
  %792 = vmatprep.mubr.f32.mxu0 0.0
  %793 = vmatmul.mubr.f32.gmra.mrb[0].mxu0 %v181
  %v794 = vpop.f32.mrb[0].mxu0
  %v795 = vadd.f32 %v155, %v794
  %v796 = vpop.f32.mrb[0].mxu0
  %v797 = vadd.f32 %v159, %v796
  %798 = vdwg.mxu0
  %v799 = vmax.f32 %v250, 0.0
  %v800 = vmax.f32 %v252, 0.0
  %v801 = vmax.f32 %v327, 0.0
  %v802 = vmax.f32 %v329, 0.0
  %v803 = vmax.f32 %v404, 0.0
  %v804 = vmax.f32 %v406, 0.0
  %v805 = vmax.f32 %v481, 0.0
  %v806 = vmax.f32 %v483, 0.0
  %v807 = vmax.f32 %v558, 0.0
  %v808 = vmax.f32 %v560, 0.0
  %v809 = vmax.f32 %v635, 0.0
  %v810 = vmax.f32 %v637, 0.0
  %v811 = vmax.f32 %v712, 0.0
  %v812 = vmax.f32 %v714, 0.0
  %v813 = vmax.f32 %v789, 0.0
  %v814 = vmax.f32 %v791, 0.0
  %v815 = vmax.f32 %v256, 0.0
  %v816 = vmax.f32 %v258, 0.0
  %v817 = vmax.f32 %v333, 0.0
  %v818 = vmax.f32 %v335, 0.0
  %v819 = vmax.f32 %v410, 0.0
  %v820 = vmax.f32 %v412, 0.0
  %v821 = vmax.f32 %v487, 0.0
  %v822 = vmax.f32 %v489, 0.0
  %v823 = vmax.f32 %v564, 0.0
  %v824 = vmax.f32 %v566, 0.0
  %v825 = vmax.f32 %v641, 0.0
  %v826 = vmax.f32 %v643, 0.0
  %v827 = vmax.f32 %v718, 0.0
  %v828 = vmax.f32 %v720, 0.0
  %v829 = vmax.f32 %v795, 0.0
  %v830 = vmax.f32 %v797, 0.0
  %v831 = vld [vmem:[%s3] sm:$0xff]
  %v832 = vld [vmem:[%s3 + $0x8] sm:$0xff]
  %v833 = vld [vmem:[%s3 + $0x10] sm:$0xff]
  %v834 = vld [vmem:[%s3 + $0x18] sm:$0xff]
  %v835 = vld [vmem:[%s3 + $0x20] sm:$0xff]
  %v836 = vld [vmem:[%s3 + $0x28] sm:$0xff]
  %v837 = vld [vmem:[%s3 + $0x30] sm:$0xff]
  %v838 = vld [vmem:[%s3 + $0x38] sm:$0xff]
  %v839 = vld [vmem:[%s3 + $0x40] sm:$0xff]
  %v840 = vld [vmem:[%s3 + $0x48] sm:$0xff]
  %v841 = vld [vmem:[%s3 + $0x50] sm:$0xff]
  %v842 = vld [vmem:[%s3 + $0x58] sm:$0xff]
  %v843 = vld [vmem:[%s3 + $0x60] sm:$0xff]
  %v844 = vld [vmem:[%s3 + $0x68] sm:$0xff]
  %v845 = vld [vmem:[%s3 + $0x70] sm:$0xff]
  %v846 = vld [vmem:[%s3 + $0x78] sm:$0xff]
  %v847 = vld [vmem:[%s3 + $0x80] sm:$0xff]
  %v848 = vld [vmem:[%s3 + $0x88] sm:$0xff]
  %v849 = vld [vmem:[%s3 + $0x90] sm:$0xff]
  %v850 = vld [vmem:[%s3 + $0x98] sm:$0xff]
  %v851 = vld [vmem:[%s3 + $0xa0] sm:$0xff]
  %v852 = vld [vmem:[%s3 + $0xa8] sm:$0xff]
  %v853 = vld [vmem:[%s3 + $0xb0] sm:$0xff]
  %v854 = vld [vmem:[%s3 + $0xb8] sm:$0xff]
  %v855 = vld [vmem:[%s3 + $0xc0] sm:$0xff]
  %v856 = vld [vmem:[%s3 + $0xc8] sm:$0xff]
  %v857 = vld [vmem:[%s3 + $0xd0] sm:$0xff]
  %v858 = vld [vmem:[%s3 + $0xd8] sm:$0xff]
  %v859 = vld [vmem:[%s3 + $0xe0] sm:$0xff]
  %v860 = vld [vmem:[%s3 + $0xe8] sm:$0xff]
  %v861 = vld [vmem:[%s3 + $0xf0] sm:$0xff]
  %v862 = vld [vmem:[%s3 + $0xf8] sm:$0xff]
  %v863 = vld [vmem:[%s3 + $0x100] sm:$0xff]
  %v864 = vld [vmem:[%s3 + $0x108] sm:$0xff]
  %v865 = vld [vmem:[%s3 + $0x110] sm:$0xff]
  %v866 = vld [vmem:[%s3 + $0x118] sm:$0xff]
  %v867 = vld [vmem:[%s3 + $0x120] sm:$0xff]
  %v868 = vld [vmem:[%s3 + $0x128] sm:$0xff]
  %v869 = vld [vmem:[%s3 + $0x130] sm:$0xff]
  %v870 = vld [vmem:[%s3 + $0x138] sm:$0xff]
  %v871 = vld [vmem:[%s3 + $0x140] sm:$0xff]
  %v872 = vld [vmem:[%s3 + $0x148] sm:$0xff]
  %v873 = vld [vmem:[%s3 + $0x150] sm:$0xff]
  %v874 = vld [vmem:[%s3 + $0x158] sm:$0xff]
  %v875 = vld [vmem:[%s3 + $0x160] sm:$0xff]
  %v876 = vld [vmem:[%s3 + $0x168] sm:$0xff]
  %v877 = vld [vmem:[%s3 + $0x170] sm:$0xff]
  %v878 = vld [vmem:[%s3 + $0x178] sm:$0xff]
  %v879 = vld [vmem:[%s3 + $0x180] sm:$0xff]
  %v880 = vld [vmem:[%s3 + $0x188] sm:$0xff]
  %v881 = vld [vmem:[%s3 + $0x190] sm:$0xff]
  %v882 = vld [vmem:[%s3 + $0x198] sm:$0xff]
  %v883 = vld [vmem:[%s3 + $0x1a0] sm:$0xff]
  %v884 = vld [vmem:[%s3 + $0x1a8] sm:$0xff]
  %v885 = vld [vmem:[%s3 + $0x1b0] sm:$0xff]
  %v886 = vld [vmem:[%s3 + $0x1b8] sm:$0xff]
  %v887 = vld [vmem:[%s3 + $0x1c0] sm:$0xff]
  %v888 = vld [vmem:[%s3 + $0x1c8] sm:$0xff]
  %v889 = vld [vmem:[%s3 + $0x1d0] sm:$0xff]
  %v890 = vld [vmem:[%s3 + $0x1d8] sm:$0xff]
  %v891 = vld [vmem:[%s3 + $0x1e0] sm:$0xff]
  %v892 = vld [vmem:[%s3 + $0x1e8] sm:$0xff]
  %v893 = vld [vmem:[%s3 + $0x1f0] sm:$0xff]
  %v894 = vld [vmem:[%s3 + $0x1f8] sm:$0xff]
  %v895 = vld [vmem:[%s3 + $0x200] sm:$0xff]
  %v896 = vld [vmem:[%s3 + $0x208] sm:$0xff]
  %v897 = vld [vmem:[%s3 + $0x210] sm:$0xff]
  %v898 = vld [vmem:[%s3 + $0x218] sm:$0xff]
  %v899 = vld [vmem:[%s3 + $0x220] sm:$0xff]
  %v900 = vld [vmem:[%s3 + $0x228] sm:$0xff]
  %v901 = vld [vmem:[%s3 + $0x230] sm:$0xff]
  %v902 = vld [vmem:[%s3 + $0x238] sm:$0xff]
  %v903 = vld [vmem:[%s3 + $0x240] sm:$0xff]
  %v904 = vld [vmem:[%s3 + $0x248] sm:$0xff]
  %v905 = vld [vmem:[%s3 + $0x250] sm:$0xff]
  %v906 = vld [vmem:[%s3 + $0x258] sm:$0xff]
  %v907 = vld [vmem:[%s3 + $0x260] sm:$0xff]
  %v908 = vld [vmem:[%s3 + $0x268] sm:$0xff]
  %v909 = vld [vmem:[%s3 + $0x270] sm:$0xff]
  %v910 = vld [vmem:[%s3 + $0x278] sm:$0xff]
  %v911 = vld [vmem:[%s3 + $0x280] sm:$0xff]
  %v912 = vld [vmem:[%s3 + $0x288] sm:$0xff]
  %v913 = vld [vmem:[%s3 + $0x290] sm:$0xff]
  %v914 = vld [vmem:[%s3 + $0x298] sm:$0xff]
  %v915 = vld [vmem:[%s3 + $0x2a0] sm:$0xff]
  %v916 = vld [vmem:[%s3 + $0x2a8] sm:$0xff]
  %v917 = vld [vmem:[%s3 + $0x2b0] sm:$0xff]
  %v918 = vld [vmem:[%s3 + $0x2b8] sm:$0xff]
  %v919 = vld [vmem:[%s3 + $0x2c0] sm:$0xff]
  %v920 = vld [vmem:[%s3 + $0x2c8] sm:$0xff]
  %v921 = vld [vmem:[%s3 + $0x2d0] sm:$0xff]
  %v922 = vld [vmem:[%s3 + $0x2d8] sm:$0xff]
  %v923 = vld [vmem:[%s3 + $0x2e0] sm:$0xff]
  %v924 = vld [vmem:[%s3 + $0x2e8] sm:$0xff]
  %v925 = vld [vmem:[%s3 + $0x2f0] sm:$0xff]
  %v926 = vld [vmem:[%s3 + $0x2f8] sm:$0xff]
  %v927 = vld [vmem:[%s3 + $0x300] sm:$0xff]
  %v928 = vld [vmem:[%s3 + $0x308] sm:$0xff]
  %v929 = vld [vmem:[%s3 + $0x310] sm:$0xff]
  %v930 = vld [vmem:[%s3 + $0x318] sm:$0xff]
  %v931 = vld [vmem:[%s3 + $0x320] sm:$0xff]
  %v932 = vld [vmem:[%s3 + $0x328] sm:$0xff]
  %v933 = vld [vmem:[%s3 + $0x330] sm:$0xff]
  %v934 = vld [vmem:[%s3 + $0x338] sm:$0xff]
  %v935 = vld [vmem:[%s3 + $0x340] sm:$0xff]
  %v936 = vld [vmem:[%s3 + $0x348] sm:$0xff]
  %v937 = vld [vmem:[%s3 + $0x350] sm:$0xff]
  %v938 = vld [vmem:[%s3 + $0x358] sm:$0xff]
  %v939 = vld [vmem:[%s3 + $0x360] sm:$0xff]
  %v940 = vld [vmem:[%s3 + $0x368] sm:$0xff]
  %v941 = vld [vmem:[%s3 + $0x370] sm:$0xff]
  %v942 = vld [vmem:[%s3 + $0x378] sm:$0xff]
  %v943 = vld [vmem:[%s3 + $0x380] sm:$0xff]
  %v944 = vld [vmem:[%s3 + $0x388] sm:$0xff]
  %v945 = vld [vmem:[%s3 + $0x390] sm:$0xff]
  %v946 = vld [vmem:[%s3 + $0x398] sm:$0xff]
  %v947 = vld [vmem:[%s3 + $0x3a0] sm:$0xff]
  %v948 = vld [vmem:[%s3 + $0x3a8] sm:$0xff]
  %v949 = vld [vmem:[%s3 + $0x3b0] sm:$0xff]
  %v950 = vld [vmem:[%s3 + $0x3b8] sm:$0xff]
  %v951 = vld [vmem:[%s3 + $0x3c0] sm:$0xff]
  %v952 = vld [vmem:[%s3 + $0x3c8] sm:$0xff]
  %v953 = vld [vmem:[%s3 + $0x3d0] sm:$0xff]
  %v954 = vld [vmem:[%s3 + $0x3d8] sm:$0xff]
  %v955 = vld [vmem:[%s3 + $0x3e0] sm:$0xff]
  %v956 = vld [vmem:[%s3 + $0x3e8] sm:$0xff]
  %v957 = vld [vmem:[%s3 + $0x3f0] sm:$0xff]
  %v958 = vld [vmem:[%s3 + $0x3f8] sm:$0xff]
  %v959 = vld [vmem:[%s3 + $0x400] sm:$0xff]
  %v960 = vld [vmem:[%s3 + $0x408] sm:$0xff]
  %v961 = vld [vmem:[%s3 + $0x410] sm:$0xff]
  %v962 = vld [vmem:[%s3 + $0x418] sm:$0xff]
  %v963 = vld [vmem:[%s3 + $0x420] sm:$0xff]
  %v964 = vld [vmem:[%s3 + $0x428] sm:$0xff]
  %v965 = vld [vmem:[%s3 + $0x430] sm:$0xff]
  %v966 = vld [vmem:[%s3 + $0x438] sm:$0xff]
  %v967 = vld [vmem:[%s3 + $0x440] sm:$0xff]
  %v968 = vld [vmem:[%s3 + $0x448] sm:$0xff]
  %v969 = vld [vmem:[%s3 + $0x450] sm:$0xff]
  %v970 = vld [vmem:[%s3 + $0x458] sm:$0xff]
  %v971 = vld [vmem:[%s3 + $0x460] sm:$0xff]
  %v972 = vld [vmem:[%s3 + $0x468] sm:$0xff]
  %v973 = vld [vmem:[%s3 + $0x470] sm:$0xff]
  %v974 = vld [vmem:[%s3 + $0x478] sm:$0xff]
  %v975 = vld [vmem:[%s3 + $0x480] sm:$0xff]
  %v976 = vld [vmem:[%s3 + $0x488] sm:$0xff]
  %v977 = vld [vmem:[%s3 + $0x490] sm:$0xff]
  %v978 = vld [vmem:[%s3 + $0x498] sm:$0xff]
  %v979 = vld [vmem:[%s3 + $0x4a0] sm:$0xff]
  %v980 = vld [vmem:[%s3 + $0x4a8] sm:$0xff]
  %v981 = vld [vmem:[%s3 + $0x4b0] sm:$0xff]
  %v982 = vld [vmem:[%s3 + $0x4b8] sm:$0xff]
  %v983 = vld [vmem:[%s3 + $0x4c0] sm:$0xff]
  %v984 = vld [vmem:[%s3 + $0x4c8] sm:$0xff]
  %v985 = vld [vmem:[%s3 + $0x4d0] sm:$0xff]
  %v986 = vld [vmem:[%s3 + $0x4d8] sm:$0xff]
  %v987 = vld [vmem:[%s3 + $0x4e0] sm:$0xff]
  %v988 = vld [vmem:[%s3 + $0x4e8] sm:$0xff]
  %v989 = vld [vmem:[%s3 + $0x4f0] sm:$0xff]
  %v990 = vld [vmem:[%s3 + $0x4f8] sm:$0xff]
  %v991 = vld [vmem:[%s3 + $0x500] sm:$0xff]
  %v992 = vld [vmem:[%s3 + $0x508] sm:$0xff]
  %v993 = vld [vmem:[%s3 + $0x510] sm:$0xff]
  %v994 = vld [vmem:[%s3 + $0x518] sm:$0xff]
  %v995 = vld [vmem:[%s3 + $0x520] sm:$0xff]
  %v996 = vld [vmem:[%s3 + $0x528] sm:$0xff]
  %v997 = vld [vmem:[%s3 + $0x530] sm:$0xff]
  %v998 = vld [vmem:[%s3 + $0x538] sm:$0xff]
  %v999 = vld [vmem:[%s3 + $0x540] sm:$0xff]
  %v1000 = vld [vmem:[%s3 + $0x548] sm:$0xff]
  %v1001 = vld [vmem:[%s3 + $0x550] sm:$0xff]
  %v1002 = vld [vmem:[%s3 + $0x558] sm:$0xff]
  %v1003 = vld [vmem:[%s3 + $0x560] sm:$0xff]
  %v1004 = vld [vmem:[%s3 + $0x568] sm:$0xff]
  %v1005 = vld [vmem:[%s3 + $0x570] sm:$0xff]
  %v1006 = vld [vmem:[%s3 + $0x578] sm:$0xff]
  %v1007 = vld [vmem:[%s3 + $0x580] sm:$0xff]
  %v1008 = vld [vmem:[%s3 + $0x588] sm:$0xff]
  %v1009 = vld [vmem:[%s3 + $0x590] sm:$0xff]
  %v1010 = vld [vmem:[%s3 + $0x598] sm:$0xff]
  %v1011 = vld [vmem:[%s3 + $0x5a0] sm:$0xff]
  %v1012 = vld [vmem:[%s3 + $0x5a8] sm:$0xff]
  %v1013 = vld [vmem:[%s3 + $0x5b0] sm:$0xff]
  %v1014 = vld [vmem:[%s3 + $0x5b8] sm:$0xff]
  %v1015 = vld [vmem:[%s3 + $0x5c0] sm:$0xff]
  %v1016 = vld [vmem:[%s3 + $0x5c8] sm:$0xff]
  %v1017 = vld [vmem:[%s3 + $0x5d0] sm:$0xff]
  %v1018 = vld [vmem:[%s3 + $0x5d8] sm:$0xff]
  %v1019 = vld [vmem:[%s3 + $0x5e0] sm:$0xff]
  %v1020 = vld [vmem:[%s3 + $0x5e8] sm:$0xff]
  %v1021 = vld [vmem:[%s3 + $0x5f0] sm:$0xff]
  %v1022 = vld [vmem:[%s3 + $0x5f8] sm:$0xff]
  %v1023 = vld [vmem:[%s3 + $0x600] sm:$0xff]
  %v1024 = vld [vmem:[%s3 + $0x608] sm:$0xff]
  %v1025 = vld [vmem:[%s3 + $0x610] sm:$0xff]
  %v1026 = vld [vmem:[%s3 + $0x618] sm:$0xff]
  %v1027 = vld [vmem:[%s3 + $0x620] sm:$0xff]
  %v1028 = vld [vmem:[%s3 + $0x628] sm:$0xff]
  %v1029 = vld [vmem:[%s3 + $0x630] sm:$0xff]
  %v1030 = vld [vmem:[%s3 + $0x638] sm:$0xff]
  %v1031 = vld [vmem:[%s3 + $0x640] sm:$0xff]
  %v1032 = vld [vmem:[%s3 + $0x648] sm:$0xff]
  %v1033 = vld [vmem:[%s3 + $0x650] sm:$0xff]
  %v1034 = vld [vmem:[%s3 + $0x658] sm:$0xff]
  %v1035 = vld [vmem:[%s3 + $0x660] sm:$0xff]
  %v1036 = vld [vmem:[%s3 + $0x668] sm:$0xff]
  %v1037 = vld [vmem:[%s3 + $0x670] sm:$0xff]
  %v1038 = vld [vmem:[%s3 + $0x678] sm:$0xff]
  %v1039 = vld [vmem:[%s3 + $0x680] sm:$0xff]
  %v1040 = vld [vmem:[%s3 + $0x688] sm:$0xff]
  %v1041 = vld [vmem:[%s3 + $0x690] sm:$0xff]
  %v1042 = vld [vmem:[%s3 + $0x698] sm:$0xff]
  %v1043 = vld [vmem:[%s3 + $0x6a0] sm:$0xff]
  %v1044 = vld [vmem:[%s3 + $0x6a8] sm:$0xff]
  %v1045 = vld [vmem:[%s3 + $0x6b0] sm:$0xff]
  %v1046 = vld [vmem:[%s3 + $0x6b8] sm:$0xff]
  %v1047 = vld [vmem:[%s3 + $0x6c0] sm:$0xff]
  %v1048 = vld [vmem:[%s3 + $0x6c8] sm:$0xff]
  %v1049 = vld [vmem:[%s3 + $0x6d0] sm:$0xff]
  %v1050 = vld [vmem:[%s3 + $0x6d8] sm:$0xff]
  %v1051 = vld [vmem:[%s3 + $0x6e0] sm:$0xff]
  %v1052 = vld [vmem:[%s3 + $0x6e8] sm:$0xff]
  %v1053 = vld [vmem:[%s3 + $0x6f0] sm:$0xff]
  %v1054 = vld [vmem:[%s3 + $0x6f8] sm:$0xff]
  %v1055 = vld [vmem:[%s3 + $0x700] sm:$0xff]
  %v1056 = vld [vmem:[%s3 + $0x708] sm:$0xff]
  %v1057 = vld [vmem:[%s3 + $0x710] sm:$0xff]
  %v1058 = vld [vmem:[%s3 + $0x718] sm:$0xff]
  %v1059 = vld [vmem:[%s3 + $0x720] sm:$0xff]
  %v1060 = vld [vmem:[%s3 + $0x728] sm:$0xff]
  %v1061 = vld [vmem:[%s3 + $0x730] sm:$0xff]
  %v1062 = vld [vmem:[%s3 + $0x738] sm:$0xff]
  %v1063 = vld [vmem:[%s3 + $0x740] sm:$0xff]
  %v1064 = vld [vmem:[%s3 + $0x748] sm:$0xff]
  %v1065 = vld [vmem:[%s3 + $0x750] sm:$0xff]
  %v1066 = vld [vmem:[%s3 + $0x758] sm:$0xff]
  %v1067 = vld [vmem:[%s3 + $0x760] sm:$0xff]
  %v1068 = vld [vmem:[%s3 + $0x768] sm:$0xff]
  %v1069 = vld [vmem:[%s3 + $0x770] sm:$0xff]
  %v1070 = vld [vmem:[%s3 + $0x778] sm:$0xff]
  %v1071 = vld [vmem:[%s3 + $0x780] sm:$0xff]
  %v1072 = vld [vmem:[%s3 + $0x788] sm:$0xff]
  %v1073 = vld [vmem:[%s3 + $0x790] sm:$0xff]
  %v1074 = vld [vmem:[%s3 + $0x798] sm:$0xff]
  %v1075 = vld [vmem:[%s3 + $0x7a0] sm:$0xff]
  %v1076 = vld [vmem:[%s3 + $0x7a8] sm:$0xff]
  %v1077 = vld [vmem:[%s3 + $0x7b0] sm:$0xff]
  %v1078 = vld [vmem:[%s3 + $0x7b8] sm:$0xff]
  %v1079 = vld [vmem:[%s3 + $0x7c0] sm:$0xff]
  %v1080 = vld [vmem:[%s3 + $0x7c8] sm:$0xff]
  %v1081 = vld [vmem:[%s3 + $0x7d0] sm:$0xff]
  %v1082 = vld [vmem:[%s3 + $0x7d8] sm:$0xff]
  %v1083 = vld [vmem:[%s3 + $0x7e0] sm:$0xff]
  %v1084 = vld [vmem:[%s3 + $0x7e8] sm:$0xff]
  %v1085 = vld [vmem:[%s3 + $0x7f0] sm:$0xff]
  %v1086 = vld [vmem:[%s3 + $0x7f8] sm:$0xff]
  %v1087 = vld [vmem:[%s4] sm:$0x1]
  %v1089 = vlaneseq
  %v1090 = vshrl.u32 %v1089, 7
  %v1091 = vsub.s32 0, %v1090
  %v1092 = vrot.slane %v1087, %v1091
  %1094 = vmatprep.subr.mxu0 0.0
  %1095 = vmatpush1.msra.mxu0 %v831
  %1096 = vmatprep.subr.mxu0 0.0
  %1097 = vmatpush1.msra.mxu0 %v832
  %1098 = vmatprep.subr.mxu0 0.0
  %1099 = vmatpush1.msra.mxu0 %v833
  %1100 = vmatprep.subr.mxu0 0.0
  %1101 = vmatpush1.msra.mxu0 %v834
  %1102 = vmatprep.subr.mxu0 0.0
  %1103 = vmatpush1.msra.mxu0 %v835
  %1104 = vmatprep.subr.mxu0 0.0
  %1105 = vmatpush1.msra.mxu0 %v836
  %1106 = vmatprep.subr.mxu0 0.0
  %1107 = vmatpush1.msra.mxu0 %v837
  %1108 = vmatprep.subr.mxu0 0.0
  %1109 = vmatpush1.msra.mxu0 %v838
  %1110 = vmatprep.subr.mxu0 0.0
  %1111 = vmatpush1.msra.mxu0 %v839
  %1112 = vmatprep.subr.mxu0 0.0
  %1113 = vmatpush1.msra.mxu0 %v840
  %1114 = vmatprep.subr.mxu0 0.0
  %1115 = vmatpush1.msra.mxu0 %v841
  %1116 = vmatprep.subr.mxu0 0.0
  %1117 = vmatpush1.msra.mxu0 %v842
  %1118 = vmatprep.subr.mxu0 0.0
  %1119 = vmatpush1.msra.mxu0 %v843
  %1120 = vmatprep.subr.mxu0 0.0
  %1121 = vmatpush1.msra.mxu0 %v844
  %1122 = vmatprep.subr.mxu0 0.0
  %1123 = vmatpush1.msra.mxu0 %v845
  %1124 = vmatprep.subr.mxu0 0.0
  %1125 = vmatpush1.msra.mxu0 %v846
  %1126 = vmatprep.subr.mxu0 0.0
  %1127 = vmatpush1.msra.mxu0 %v847
  %1128 = vmatprep.subr.mxu0 0.0
  %1129 = vmatpush1.msra.mxu0 %v848
  %1130 = vmatprep.subr.mxu0 0.0
  %1131 = vmatpush1.msra.mxu0 %v849
  %1132 = vmatprep.subr.mxu0 0.0
  %1133 = vmatpush1.msra.mxu0 %v850
  %1134 = vmatprep.subr.mxu0 0.0
  %1135 = vmatpush1.msra.mxu0 %v851
  %1136 = vmatprep.subr.mxu0 0.0
  %1137 = vmatpush1.msra.mxu0 %v852
  %1138 = vmatprep.subr.mxu0 0.0
  %1139 = vmatpush1.msra.mxu0 %v853
  %1140 = vmatprep.subr.mxu0 0.0
  %1141 = vmatpush1.msra.mxu0 %v854
  %1142 = vmatprep.subr.mxu0 0.0
  %1143 = vmatpush1.msra.mxu0 %v855
  %1144 = vmatprep.subr.mxu0 0.0
  %1145 = vmatpush1.msra.mxu0 %v856
  %1146 = vmatprep.subr.mxu0 0.0
  %1147 = vmatpush1.msra.mxu0 %v857
  %1148 = vmatprep.subr.mxu0 0.0
  %1149 = vmatpush1.msra.mxu0 %v858
  %1150 = vmatprep.subr.mxu0 0.0
  %1151 = vmatpush1.msra.mxu0 %v859
  %1152 = vmatprep.subr.mxu0 0.0
  %1153 = vmatpush1.msra.mxu0 %v860
  %1154 = vmatprep.subr.mxu0 0.0
  %1155 = vmatpush1.msra.mxu0 %v861
  %1156 = vmatprep.subr.mxu0 0.0
  %1157 = vmatpush1.msra.mxu0 %v862
  %1158 = vmatprep.mubr.f32.mxu0 %v800
  %1159 = vmatmul.mubr.f32.gmra.mrb[0].mxu0 %v799
  %v1160 = vpop.f32.mrb[0].mxu0
  %v1161 = vadd.f32 %v1092, %v1160
  %v1162 = vpop.f32.mrb[0].mxu0
  %1163 = vmatprep.mubr.f32.mxu0 %v816
  %1164 = vmatmul.mubr.f32.gmra.mrb[0].mxu0 %v815
  %v1165 = vpop.f32.mrb[0].mxu0
  %v1166 = vadd.f32 %v1092, %v1165
  %v1167 = vpop.f32.mrb[0].mxu0
  %1168 = vdwg.mxu0
  %1169 = vmatprep.subr.mxu0 0.0
  %1170 = vmatpush1.msra.mxu0 %v863
  %1171 = vmatprep.subr.mxu0 0.0
  %1172 = vmatpush1.msra.mxu0 %v864
  %1173 = vmatprep.subr.mxu0 0.0
  %1174 = vmatpush1.msra.mxu0 %v865
  %1175 = vmatprep.subr.mxu0 0.0
  %1176 = vmatpush1.msra.mxu0 %v866
  %1177 = vmatprep.subr.mxu0 0.0
  %1178 = vmatpush1.msra.mxu0 %v867
  %1179 = vmatprep.subr.mxu0 0.0
  %1180 = vmatpush1.msra.mxu0 %v868
  %1181 = vmatprep.subr.mxu0 0.0
  %1182 = vmatpush1.msra.mxu0 %v869
  %1183 = vmatprep.subr.mxu0 0.0
  %1184 = vmatpush1.msra.mxu0 %v870
  %1185 = vmatprep.subr.mxu0 0.0
  %1186 = vmatpush1.msra.mxu0 %v871
  %1187 = vmatprep.subr.mxu0 0.0
  %1188 = vmatpush1.msra.mxu0 %v872
  %1189 = vmatprep.subr.mxu0 0.0
  %1190 = vmatpush1.msra.mxu0 %v873
  %1191 = vmatprep.subr.mxu0 0.0
  %1192 = vmatpush1.msra.mxu0 %v874
  %1193 = vmatprep.subr.mxu0 0.0
  %1194 = vmatpush1.msra.mxu0 %v875
  %1195 = vmatprep.subr.mxu0 0.0
  %1196 = vmatpush1.msra.mxu0 %v876
  %1197 = vmatprep.subr.mxu0 0.0
  %1198 = vmatpush1.msra.mxu0 %v877
  %1199 = vmatprep.subr.mxu0 0.0
  %1200 = vmatpush1.msra.mxu0 %v878
  %1201 = vmatprep.subr.mxu0 0.0
  %1202 = vmatpush1.msra.mxu0 %v879
  %1203 = vmatprep.subr.mxu0 0.0
  %1204 = vmatpush1.msra.mxu0 %v880
  %1205 = vmatprep.subr.mxu0 0.0
  %1206 = vmatpush1.msra.mxu0 %v881
  %1207 = vmatprep.subr.mxu0 0.0
  %1208 = vmatpush1.msra.mxu0 %v882
  %1209 = vmatprep.subr.mxu0 0.0
  %1210 = vmatpush1.msra.mxu0 %v883
  %1211 = vmatprep.subr.mxu0 0.0
  %1212 = vmatpush1.msra.mxu0 %v884
  %1213 = vmatprep.subr.mxu0 0.0
  %1214 = vmatpush1.msra.mxu0 %v885
  %1215 = vmatprep.subr.mxu0 0.0
  %1216 = vmatpush1.msra.mxu0 %v886
  %1217 = vmatprep.subr.mxu0 0.0
  %1218 = vmatpush1.msra.mxu0 %v887
  %1219 = vmatprep.subr.mxu0 0.0
  %1220 = vmatpush1.msra.mxu0 %v888
  %1221 = vmatprep.subr.mxu0 0.0
  %1222 = vmatpush1.msra.mxu0 %v889
  %1223 = vmatprep.subr.mxu0 0.0
  %1224 = vmatpush1.msra.mxu0 %v890
  %1225 = vmatprep.subr.mxu0 0.0
  %1226 = vmatpush1.msra.mxu0 %v891
  %1227 = vmatprep.subr.mxu0 0.0
  %1228 = vmatpush1.msra.mxu0 %v892
  %1229 = vmatprep.subr.mxu0 0.0
  %1230 = vmatpush1.msra.mxu0 %v893
  %1231 = vmatprep.subr.mxu0 0.0
  %1232 = vmatpush1.msra.mxu0 %v894
  %1233 = vmatprep.mubr.f32.mxu0 %v802
  %1234 = vmatmul.mubr.f32.gmra.mrb[0].mxu0 %v801
  %v1235 = vpop.f32.mrb[0].mxu0
  %v1236 = vadd.f32 %v1161, %v1235
  %v1237 = vpop.f32.mrb[0].mxu0
  %1238 = vmatprep.mubr.f32.mxu0 %v818
  %1239 = vmatmul.mubr.f32.gmra.mrb[0].mxu0 %v817
  %v1240 = vpop.f32.mrb[0].mxu0
  %v1241 = vadd.f32 %v1166, %v1240
  %v1242 = vpop.f32.mrb[0].mxu0
  %1243 = vdwg.mxu0
  %1244 = vmatprep.subr.mxu0 0.0
  %1245 = vmatpush1.msra.mxu0 %v895
  %1246 = vmatprep.subr.mxu0 0.0
  %1247 = vmatpush1.msra.mxu0 %v896
  %1248 = vmatprep.subr.mxu0 0.0
  %1249 = vmatpush1.msra.mxu0 %v897
  %1250 = vmatprep.subr.mxu0 0.0
  %1251 = vmatpush1.msra.mxu0 %v898
  %1252 = vmatprep.subr.mxu0 0.0
  %1253 = vmatpush1.msra.mxu0 %v899
  %1254 = vmatprep.subr.mxu0 0.0
  %1255 = vmatpush1.msra.mxu0 %v900
  %1256 = vmatprep.subr.mxu0 0.0
  %1257 = vmatpush1.msra.mxu0 %v901
  %1258 = vmatprep.subr.mxu0 0.0
  %1259 = vmatpush1.msra.mxu0 %v902
  %1260 = vmatprep.subr.mxu0 0.0
  %1261 = vmatpush1.msra.mxu0 %v903
  %1262 = vmatprep.subr.mxu0 0.0
  %1263 = vmatpush1.msra.mxu0 %v904
  %1264 = vmatprep.subr.mxu0 0.0
  %1265 = vmatpush1.msra.mxu0 %v905
  %1266 = vmatprep.subr.mxu0 0.0
  %1267 = vmatpush1.msra.mxu0 %v906
  %1268 = vmatprep.subr.mxu0 0.0
  %1269 = vmatpush1.msra.mxu0 %v907
  %1270 = vmatprep.subr.mxu0 0.0
  %1271 = vmatpush1.msra.mxu0 %v908
  %1272 = vmatprep.subr.mxu0 0.0
  %1273 = vmatpush1.msra.mxu0 %v909
  %1274 = vmatprep.subr.mxu0 0.0
  %1275 = vmatpush1.msra.mxu0 %v910
  %1276 = vmatprep.subr.mxu0 0.0
  %1277 = vmatpush1.msra.mxu0 %v911
  %1278 = vmatprep.subr.mxu0 0.0
  %1279 = vmatpush1.msra.mxu0 %v912
  %1280 = vmatprep.subr.mxu0 0.0
  %1281 = vmatpush1.msra.mxu0 %v913
  %1282 = vmatprep.subr.mxu0 0.0
  %1283 = vmatpush1.msra.mxu0 %v914
  %1284 = vmatprep.subr.mxu0 0.0
  %1285 = vmatpush1.msra.mxu0 %v915
  %1286 = vmatprep.subr.mxu0 0.0
  %1287 = vmatpush1.msra.mxu0 %v916
  %1288 = vmatprep.subr.mxu0 0.0
  %1289 = vmatpush1.msra.mxu0 %v917
  %1290 = vmatprep.subr.mxu0 0.0
  %1291 = vmatpush1.msra.mxu0 %v918
  %1292 = vmatprep.subr.mxu0 0.0
  %1293 = vmatpush1.msra.mxu0 %v919
  %1294 = vmatprep.subr.mxu0 0.0
  %1295 = vmatpush1.msra.mxu0 %v920
  %1296 = vmatprep.subr.mxu0 0.0
  %1297 = vmatpush1.msra.mxu0 %v921
  %1298 = vmatprep.subr.mxu0 0.0
  %1299 = vmatpush1.msra.mxu0 %v922
  %1300 = vmatprep.subr.mxu0 0.0
  %1301 = vmatpush1.msra.mxu0 %v923
  %1302 = vmatprep.subr.mxu0 0.0
  %1303 = vmatpush1.msra.mxu0 %v924
  %1304 = vmatprep.subr.mxu0 0.0
  %1305 = vmatpush1.msra.mxu0 %v925
  %1306 = vmatprep.subr.mxu0 0.0
  %1307 = vmatpush1.msra.mxu0 %v926
  %1308 = vmatprep.mubr.f32.mxu0 %v804
  %1309 = vmatmul.mubr.f32.gmra.mrb[0].mxu0 %v803
  %v1310 = vpop.f32.mrb[0].mxu0
  %v1311 = vadd.f32 %v1236, %v1310
  %v1312 = vpop.f32.mrb[0].mxu0
  %1313 = vmatprep.mubr.f32.mxu0 %v820
  %1314 = vmatmul.mubr.f32.gmra.mrb[0].mxu0 %v819
  %v1315 = vpop.f32.mrb[0].mxu0
  %v1316 = vadd.f32 %v1241, %v1315
  %v1317 = vpop.f32.mrb[0].mxu0
  %1318 = vdwg.mxu0
  %1319 = vmatprep.subr.mxu0 0.0
  %1320 = vmatpush1.msra.mxu0 %v927
  %1321 = vmatprep.subr.mxu0 0.0
  %1322 = vmatpush1.msra.mxu0 %v928
  %1323 = vmatprep.subr.mxu0 0.0
  %1324 = vmatpush1.msra.mxu0 %v929
  %1325 = vmatprep.subr.mxu0 0.0
  %1326 = vmatpush1.msra.mxu0 %v930
  %1327 = vmatprep.subr.mxu0 0.0
  %1328 = vmatpush1.msra.mxu0 %v931
  %1329 = vmatprep.subr.mxu0 0.0
  %1330 = vmatpush1.msra.mxu0 %v932
  %1331 = vmatprep.subr.mxu0 0.0
  %1332 = vmatpush1.msra.mxu0 %v933
  %1333 = vmatprep.subr.mxu0 0.0
  %1334 = vmatpush1.msra.mxu0 %v934
  %1335 = vmatprep.subr.mxu0 0.0
  %1336 = vmatpush1.msra.mxu0 %v935
  %1337 = vmatprep.subr.mxu0 0.0
  %1338 = vmatpush1.msra.mxu0 %v936
  %1339 = vmatprep.subr.mxu0 0.0
  %1340 = vmatpush1.msra.mxu0 %v937
  %1341 = vmatprep.subr.mxu0 0.0
  %1342 = vmatpush1.msra.mxu0 %v938
  %1343 = vmatprep.subr.mxu0 0.0
  %1344 = vmatpush1.msra.mxu0 %v939
  %1345 = vmatprep.subr.mxu0 0.0
  %1346 = vmatpush1.msra.mxu0 %v940
  %1347 = vmatprep.subr.mxu0 0.0
  %1348 = vmatpush1.msra.mxu0 %v941
  %1349 = vmatprep.subr.mxu0 0.0
  %1350 = vmatpush1.msra.mxu0 %v942
  %1351 = vmatprep.subr.mxu0 0.0
  %1352 = vmatpush1.msra.mxu0 %v943
  %1353 = vmatprep.subr.mxu0 0.0
  %1354 = vmatpush1.msra.mxu0 %v944
  %1355 = vmatprep.subr.mxu0 0.0
  %1356 = vmatpush1.msra.mxu0 %v945
  %1357 = vmatprep.subr.mxu0 0.0
  %1358 = vmatpush1.msra.mxu0 %v946
  %1359 = vmatprep.subr.mxu0 0.0
  %1360 = vmatpush1.msra.mxu0 %v947
  %1361 = vmatprep.subr.mxu0 0.0
  %1362 = vmatpush1.msra.mxu0 %v948
  %1363 = vmatprep.subr.mxu0 0.0
  %1364 = vmatpush1.msra.mxu0 %v949
  %1365 = vmatprep.subr.mxu0 0.0
  %1366 = vmatpush1.msra.mxu0 %v950
  %1367 = vmatprep.subr.mxu0 0.0
  %1368 = vmatpush1.msra.mxu0 %v951
  %1369 = vmatprep.subr.mxu0 0.0
  %1370 = vmatpush1.msra.mxu0 %v952
  %1371 = vmatprep.subr.mxu0 0.0
  %1372 = vmatpush1.msra.mxu0 %v953
  %1373 = vmatprep.subr.mxu0 0.0
  %1374 = vmatpush1.msra.mxu0 %v954
  %1375 = vmatprep.subr.mxu0 0.0
  %1376 = vmatpush1.msra.mxu0 %v955
  %1377 = vmatprep.subr.mxu0 0.0
  %1378 = vmatpush1.msra.mxu0 %v956
  %1379 = vmatprep.subr.mxu0 0.0
  %1380 = vmatpush1.msra.mxu0 %v957
  %1381 = vmatprep.subr.mxu0 0.0
  %1382 = vmatpush1.msra.mxu0 %v958
  %1383 = vmatprep.mubr.f32.mxu0 %v806
  %1384 = vmatmul.mubr.f32.gmra.mrb[0].mxu0 %v805
  %v1385 = vpop.f32.mrb[0].mxu0
  %v1386 = vadd.f32 %v1311, %v1385
  %v1387 = vpop.f32.mrb[0].mxu0
  %1388 = vmatprep.mubr.f32.mxu0 %v822
  %1389 = vmatmul.mubr.f32.gmra.mrb[0].mxu0 %v821
  %v1390 = vpop.f32.mrb[0].mxu0
  %v1391 = vadd.f32 %v1316, %v1390
  %v1392 = vpop.f32.mrb[0].mxu0
  %1393 = vdwg.mxu0
  %1394 = vmatprep.subr.mxu0 0.0
  %1395 = vmatpush1.msra.mxu0 %v959
  %1396 = vmatprep.subr.mxu0 0.0
  %1397 = vmatpush1.msra.mxu0 %v960
  %1398 = vmatprep.subr.mxu0 0.0
  %1399 = vmatpush1.msra.mxu0 %v961
  %1400 = vmatprep.subr.mxu0 0.0
  %1401 = vmatpush1.msra.mxu0 %v962
  %1402 = vmatprep.subr.mxu0 0.0
  %1403 = vmatpush1.msra.mxu0 %v963
  %1404 = vmatprep.subr.mxu0 0.0
  %1405 = vmatpush1.msra.mxu0 %v964
  %1406 = vmatprep.subr.mxu0 0.0
  %1407 = vmatpush1.msra.mxu0 %v965
  %1408 = vmatprep.subr.mxu0 0.0
  %1409 = vmatpush1.msra.mxu0 %v966
  %1410 = vmatprep.subr.mxu0 0.0
  %1411 = vmatpush1.msra.mxu0 %v967
  %1412 = vmatprep.subr.mxu0 0.0
  %1413 = vmatpush1.msra.mxu0 %v968
  %1414 = vmatprep.subr.mxu0 0.0
  %1415 = vmatpush1.msra.mxu0 %v969
  %1416 = vmatprep.subr.mxu0 0.0
  %1417 = vmatpush1.msra.mxu0 %v970
  %1418 = vmatprep.subr.mxu0 0.0
  %1419 = vmatpush1.msra.mxu0 %v971
  %1420 = vmatprep.subr.mxu0 0.0
  %1421 = vmatpush1.msra.mxu0 %v972
  %1422 = vmatprep.subr.mxu0 0.0
  %1423 = vmatpush1.msra.mxu0 %v973
  %1424 = vmatprep.subr.mxu0 0.0
  %1425 = vmatpush1.msra.mxu0 %v974
  %1426 = vmatprep.subr.mxu0 0.0
  %1427 = vmatpush1.msra.mxu0 %v975
  %1428 = vmatprep.subr.mxu0 0.0
  %1429 = vmatpush1.msra.mxu0 %v976
  %1430 = vmatprep.subr.mxu0 0.0
  %1431 = vmatpush1.msra.mxu0 %v977
  %1432 = vmatprep.subr.mxu0 0.0
  %1433 = vmatpush1.msra.mxu0 %v978
  %1434 = vmatprep.subr.mxu0 0.0
  %1435 = vmatpush1.msra.mxu0 %v979
  %1436 = vmatprep.subr.mxu0 0.0
  %1437 = vmatpush1.msra.mxu0 %v980
  %1438 = vmatprep.subr.mxu0 0.0
  %1439 = vmatpush1.msra.mxu0 %v981
  %1440 = vmatprep.subr.mxu0 0.0
  %1441 = vmatpush1.msra.mxu0 %v982
  %1442 = vmatprep.subr.mxu0 0.0
  %1443 = vmatpush1.msra.mxu0 %v983
  %1444 = vmatprep.subr.mxu0 0.0
  %1445 = vmatpush1.msra.mxu0 %v984
  %1446 = vmatprep.subr.mxu0 0.0
  %1447 = vmatpush1.msra.mxu0 %v985
  %1448 = vmatprep.subr.mxu0 0.0
  %1449 = vmatpush1.msra.mxu0 %v986
  %1450 = vmatprep.subr.mxu0 0.0
  %1451 = vmatpush1.msra.mxu0 %v987
  %1452 = vmatprep.subr.mxu0 0.0
  %1453 = vmatpush1.msra.mxu0 %v988
  %1454 = vmatprep.subr.mxu0 0.0
  %1455 = vmatpush1.msra.mxu0 %v989
  %1456 = vmatprep.subr.mxu0 0.0
  %1457 = vmatpush1.msra.mxu0 %v990
  %1458 = vmatprep.mubr.f32.mxu0 %v808
  %1459 = vmatmul.mubr.f32.gmra.mrb[0].mxu0 %v807
  %v1460 = vpop.f32.mrb[0].mxu0
  %v1461 = vadd.f32 %v1386, %v1460
  %v1462 = vpop.f32.mrb[0].mxu0
  %1463 = vmatprep.mubr.f32.mxu0 %v824
  %1464 = vmatmul.mubr.f32.gmra.mrb[0].mxu0 %v823
  %v1465 = vpop.f32.mrb[0].mxu0
  %v1466 = vadd.f32 %v1391, %v1465
  %v1467 = vpop.f32.mrb[0].mxu0
  %1468 = vdwg.mxu0
  %1469 = vmatprep.subr.mxu0 0.0
  %1470 = vmatpush1.msra.mxu0 %v991
  %1471 = vmatprep.subr.mxu0 0.0
  %1472 = vmatpush1.msra.mxu0 %v992
  %1473 = vmatprep.subr.mxu0 0.0
  %1474 = vmatpush1.msra.mxu0 %v993
  %1475 = vmatprep.subr.mxu0 0.0
  %1476 = vmatpush1.msra.mxu0 %v994
  %1477 = vmatprep.subr.mxu0 0.0
  %1478 = vmatpush1.msra.mxu0 %v995
  %1479 = vmatprep.subr.mxu0 0.0
  %1480 = vmatpush1.msra.mxu0 %v996
  %1481 = vmatprep.subr.mxu0 0.0
  %1482 = vmatpush1.msra.mxu0 %v997
  %1483 = vmatprep.subr.mxu0 0.0
  %1484 = vmatpush1.msra.mxu0 %v998
  %1485 = vmatprep.subr.mxu0 0.0
  %1486 = vmatpush1.msra.mxu0 %v999
  %1487 = vmatprep.subr.mxu0 0.0
  %1488 = vmatpush1.msra.mxu0 %v1000
  %1489 = vmatprep.subr.mxu0 0.0
  %1490 = vmatpush1.msra.mxu0 %v1001
  %1491 = vmatprep.subr.mxu0 0.0
  %1492 = vmatpush1.msra.mxu0 %v1002
  %1493 = vmatprep.subr.mxu0 0.0
  %1494 = vmatpush1.msra.mxu0 %v1003
  %1495 = vmatprep.subr.mxu0 0.0
  %1496 = vmatpush1.msra.mxu0 %v1004
  %1497 = vmatprep.subr.mxu0 0.0
  %1498 = vmatpush1.msra.mxu0 %v1005
  %1499 = vmatprep.subr.mxu0 0.0
  %1500 = vmatpush1.msra.mxu0 %v1006
  %1501 = vmatprep.subr.mxu0 0.0
  %1502 = vmatpush1.msra.mxu0 %v1007
  %1503 = vmatprep.subr.mxu0 0.0
  %1504 = vmatpush1.msra.mxu0 %v1008
  %1505 = vmatprep.subr.mxu0 0.0
  %1506 = vmatpush1.msra.mxu0 %v1009
  %1507 = vmatprep.subr.mxu0 0.0
  %1508 = vmatpush1.msra.mxu0 %v1010
  %1509 = vmatprep.subr.mxu0 0.0
  %1510 = vmatpush1.msra.mxu0 %v1011
  %1511 = vmatprep.subr.mxu0 0.0
  %1512 = vmatpush1.msra.mxu0 %v1012
  %1513 = vmatprep.subr.mxu0 0.0
  %1514 = vmatpush1.msra.mxu0 %v1013
  %1515 = vmatprep.subr.mxu0 0.0
  %1516 = vmatpush1.msra.mxu0 %v1014
  %1517 = vmatprep.subr.mxu0 0.0
  %1518 = vmatpush1.msra.mxu0 %v1015
  %1519 = vmatprep.subr.mxu0 0.0
  %1520 = vmatpush1.msra.mxu0 %v1016
  %1521 = vmatprep.subr.mxu0 0.0
  %1522 = vmatpush1.msra.mxu0 %v1017
  %1523 = vmatprep.subr.mxu0 0.0
  %1524 = vmatpush1.msra.mxu0 %v1018
  %1525 = vmatprep.subr.mxu0 0.0
  %1526 = vmatpush1.msra.mxu0 %v1019
  %1527 = vmatprep.subr.mxu0 0.0
  %1528 = vmatpush1.msra.mxu0 %v1020
  %1529 = vmatprep.subr.mxu0 0.0
  %1530 = vmatpush1.msra.mxu0 %v1021
  %1531 = vmatprep.subr.mxu0 0.0
  %1532 = vmatpush1.msra.mxu0 %v1022
  %1533 = vmatprep.mubr.f32.mxu0 %v810
  %1534 = vmatmul.mubr.f32.gmra.mrb[0].mxu0 %v809
  %v1535 = vpop.f32.mrb[0].mxu0
  %v1536 = vadd.f32 %v1461, %v1535
  %v1537 = vpop.f32.mrb[0].mxu0
  %1538 = vmatprep.mubr.f32.mxu0 %v826
  %1539 = vmatmul.mubr.f32.gmra.mrb[0].mxu0 %v825
  %v1540 = vpop.f32.mrb[0].mxu0
  %v1541 = vadd.f32 %v1466, %v1540
  %v1542 = vpop.f32.mrb[0].mxu0
  %1543 = vdwg.mxu0
  %1544 = vmatprep.subr.mxu0 0.0
  %1545 = vmatpush1.msra.mxu0 %v1023
  %1546 = vmatprep.subr.mxu0 0.0
  %1547 = vmatpush1.msra.mxu0 %v1024
  %1548 = vmatprep.subr.mxu0 0.0
  %1549 = vmatpush1.msra.mxu0 %v1025
  %1550 = vmatprep.subr.mxu0 0.0
  %1551 = vmatpush1.msra.mxu0 %v1026
  %1552 = vmatprep.subr.mxu0 0.0
  %1553 = vmatpush1.msra.mxu0 %v1027
  %1554 = vmatprep.subr.mxu0 0.0
  %1555 = vmatpush1.msra.mxu0 %v1028
  %1556 = vmatprep.subr.mxu0 0.0
  %1557 = vmatpush1.msra.mxu0 %v1029
  %1558 = vmatprep.subr.mxu0 0.0
  %1559 = vmatpush1.msra.mxu0 %v1030
  %1560 = vmatprep.subr.mxu0 0.0
  %1561 = vmatpush1.msra.mxu0 %v1031
  %1562 = vmatprep.subr.mxu0 0.0
  %1563 = vmatpush1.msra.mxu0 %v1032
  %1564 = vmatprep.subr.mxu0 0.0
  %1565 = vmatpush1.msra.mxu0 %v1033
  %1566 = vmatprep.subr.mxu0 0.0
  %1567 = vmatpush1.msra.mxu0 %v1034
  %1568 = vmatprep.subr.mxu0 0.0
  %1569 = vmatpush1.msra.mxu0 %v1035
  %1570 = vmatprep.subr.mxu0 0.0
  %1571 = vmatpush1.msra.mxu0 %v1036
  %1572 = vmatprep.subr.mxu0 0.0
  %1573 = vmatpush1.msra.mxu0 %v1037
  %1574 = vmatprep.subr.mxu0 0.0
  %1575 = vmatpush1.msra.mxu0 %v1038
  %1576 = vmatprep.subr.mxu0 0.0
  %1577 = vmatpush1.msra.mxu0 %v1039
  %1578 = vmatprep.subr.mxu0 0.0
  %1579 = vmatpush1.msra.mxu0 %v1040
  %1580 = vmatprep.subr.mxu0 0.0
  %1581 = vmatpush1.msra.mxu0 %v1041
  %1582 = vmatprep.subr.mxu0 0.0
  %1583 = vmatpush1.msra.mxu0 %v1042
  %1584 = vmatprep.subr.mxu0 0.0
  %1585 = vmatpush1.msra.mxu0 %v1043
  %1586 = vmatprep.subr.mxu0 0.0
  %1587 = vmatpush1.msra.mxu0 %v1044
  %1588 = vmatprep.subr.mxu0 0.0
  %1589 = vmatpush1.msra.mxu0 %v1045
  %1590 = vmatprep.subr.mxu0 0.0
  %1591 = vmatpush1.msra.mxu0 %v1046
  %1592 = vmatprep.subr.mxu0 0.0
  %1593 = vmatpush1.msra.mxu0 %v1047
  %1594 = vmatprep.subr.mxu0 0.0
  %1595 = vmatpush1.msra.mxu0 %v1048
  %1596 = vmatprep.subr.mxu0 0.0
  %1597 = vmatpush1.msra.mxu0 %v1049
  %1598 = vmatprep.subr.mxu0 0.0
  %1599 = vmatpush1.msra.mxu0 %v1050
  %1600 = vmatprep.subr.mxu0 0.0
  %1601 = vmatpush1.msra.mxu0 %v1051
  %1602 = vmatprep.subr.mxu0 0.0
  %1603 = vmatpush1.msra.mxu0 %v1052
  %1604 = vmatprep.subr.mxu0 0.0
  %1605 = vmatpush1.msra.mxu0 %v1053
  %1606 = vmatprep.subr.mxu0 0.0
  %1607 = vmatpush1.msra.mxu0 %v1054
  %1608 = vmatprep.mubr.f32.mxu0 %v812
  %1609 = vmatmul.mubr.f32.gmra.mrb[0].mxu0 %v811
  %v1610 = vpop.f32.mrb[0].mxu0
  %v1611 = vadd.f32 %v1536, %v1610
  %v1612 = vpop.f32.mrb[0].mxu0
  %1613 = vmatprep.mubr.f32.mxu0 %v828
  %1614 = vmatmul.mubr.f32.gmra.mrb[0].mxu0 %v827
  %v1615 = vpop.f32.mrb[0].mxu0
  %v1616 = vadd.f32 %v1541, %v1615
  %v1617 = vpop.f32.mrb[0].mxu0
  %1618 = vdwg.mxu0
  %1619 = vmatprep.subr.mxu0 0.0
  %1620 = vmatpush1.msra.mxu0 %v1055
  %1621 = vmatprep.subr.mxu0 0.0
  %1622 = vmatpush1.msra.mxu0 %v1056
  %1623 = vmatprep.subr.mxu0 0.0
  %1624 = vmatpush1.msra.mxu0 %v1057
  %1625 = vmatprep.subr.mxu0 0.0
  %1626 = vmatpush1.msra.mxu0 %v1058
  %1627 = vmatprep.subr.mxu0 0.0
  %1628 = vmatpush1.msra.mxu0 %v1059
  %1629 = vmatprep.subr.mxu0 0.0
  %1630 = vmatpush1.msra.mxu0 %v1060
  %1631 = vmatprep.subr.mxu0 0.0
  %1632 = vmatpush1.msra.mxu0 %v1061
  %1633 = vmatprep.subr.mxu0 0.0
  %1634 = vmatpush1.msra.mxu0 %v1062
  %1635 = vmatprep.subr.mxu0 0.0
  %1636 = vmatpush1.msra.mxu0 %v1063
  %1637 = vmatprep.subr.mxu0 0.0
  %1638 = vmatpush1.msra.mxu0 %v1064
  %1639 = vmatprep.subr.mxu0 0.0
  %1640 = vmatpush1.msra.mxu0 %v1065
  %1641 = vmatprep.subr.mxu0 0.0
  %1642 = vmatpush1.msra.mxu0 %v1066
  %1643 = vmatprep.subr.mxu0 0.0
  %1644 = vmatpush1.msra.mxu0 %v1067
  %1645 = vmatprep.subr.mxu0 0.0
  %1646 = vmatpush1.msra.mxu0 %v1068
  %1647 = vmatprep.subr.mxu0 0.0
  %1648 = vmatpush1.msra.mxu0 %v1069
  %1649 = vmatprep.subr.mxu0 0.0
  %1650 = vmatpush1.msra.mxu0 %v1070
  %1651 = vmatprep.subr.mxu0 0.0
  %1652 = vmatpush1.msra.mxu0 %v1071
  %1653 = vmatprep.subr.mxu0 0.0
  %1654 = vmatpush1.msra.mxu0 %v1072
  %1655 = vmatprep.subr.mxu0 0.0
  %1656 = vmatpush1.msra.mxu0 %v1073
  %1657 = vmatprep.subr.mxu0 0.0
  %1658 = vmatpush1.msra.mxu0 %v1074
  %1659 = vmatprep.subr.mxu0 0.0
  %1660 = vmatpush1.msra.mxu0 %v1075
  %1661 = vmatprep.subr.mxu0 0.0
  %1662 = vmatpush1.msra.mxu0 %v1076
  %1663 = vmatprep.subr.mxu0 0.0
  %1664 = vmatpush1.msra.mxu0 %v1077
  %1665 = vmatprep.subr.mxu0 0.0
  %1666 = vmatpush1.msra.mxu0 %v1078
  %1667 = vmatprep.subr.mxu0 0.0
  %1668 = vmatpush1.msra.mxu0 %v1079
  %1669 = vmatprep.subr.mxu0 0.0
  %1670 = vmatpush1.msra.mxu0 %v1080
  %1671 = vmatprep.subr.mxu0 0.0
  %1672 = vmatpush1.msra.mxu0 %v1081
  %1673 = vmatprep.subr.mxu0 0.0
  %1674 = vmatpush1.msra.mxu0 %v1082
  %1675 = vmatprep.subr.mxu0 0.0
  %1676 = vmatpush1.msra.mxu0 %v1083
  %1677 = vmatprep.subr.mxu0 0.0
  %1678 = vmatpush1.msra.mxu0 %v1084
  %1679 = vmatprep.subr.mxu0 0.0
  %1680 = vmatpush1.msra.mxu0 %v1085
  %1681 = vmatprep.subr.mxu0 0.0
  %1682 = vmatpush1.msra.mxu0 %v1086
  %1683 = vmatprep.mubr.f32.mxu0 %v814
  %1684 = vmatmul.mubr.f32.gmra.mrb[0].mxu0 %v813
  %v1685 = vpop.f32.mrb[0].mxu0
  %v1686 = vadd.f32 %v1611, %v1685
  %v1687 = vpop.f32.mrb[0].mxu0
  %1688 = vmatprep.mubr.f32.mxu0 %v830
  %1689 = vmatmul.mubr.f32.gmra.mrb[0].mxu0 %v829
  %v1690 = vpop.f32.mrb[0].mxu0
  %v1691 = vadd.f32 %v1616, %v1690
  %v1692 = vpop.f32.mrb[0].mxu0
  %1693 = vdwg.mxu0
  %v1694 = vadd.f32 %v26, %v1686
  %v1695 = vadd.f32 %v27, %v1691
  %v1696 = vld [vmem:[%s5] sm:$0x1]
  %v1697 = vld [vmem:[%s6] sm:$0x1]
  %v1698 = vsel %vm176, %v1694, 0.0
  %1699 = vadd.xlane.f32.xlu0 %v1698
  %v1700 = vpop.xlane.xlu0 %1699
  %v1701 = vsel %vm176, %v1695, 0.0
  %1702 = vadd.xlane.f32.xlu0 %v1701
  %v1703 = vpop.xlane.xlu0 %1702
  %v1704 = vrcp.pop 32.0
  %v1705 = vmul.f32 %v1700, %v1704
  %v1706 = vmul.f32 %v1703, %v1704
  %v1707 = vsub.f32 %v1694, %v1705
  %v1708 = vsub.f32 %v1695, %v1706
  %v1709 = vmul.f32 %v1707, %v1707
  %v1710 = vmul.f32 %v1708, %v1708
  %v1711 = vsel %vm176, %v1709, 0.0
  %1712 = vadd.xlane.f32.xlu0 %v1711
  %v1713 = vpop.xlane.xlu0 %1712
  %v1714 = vsel %vm176, %v1710, 0.0
  %1715 = vadd.xlane.f32.xlu0 %v1714
  %v1716 = vpop.xlane.xlu0 %1715
  %v1717 = vmul.f32 %v1713, %v1704
  %v1718 = vmul.f32 %v1716, %v1704
  %v1719 = vadd.f32 %v1717, 1e-05
  %v1720 = vadd.f32 %v1718, 1e-05
  %v1721 = vrsqrt.pop %v1719
  %v1722 = vrsqrt.pop %v1720
  %v1723 = vmul.f32 %v1707, %v1721
  %v1724 = vmul.f32 %v1708, %v1722
  %v1726 = vlaneseq
  %v1727 = vshrl.u32 %v1726, 7
  %v1728 = vsub.s32 0, %v1727
  %v1729 = vrot.slane %v1696, %v1728
  %v1731 = vmul.f32 %v1723, %v1729
  %v1732 = vmul.f32 %v1724, %v1729
  %v1734 = vlaneseq
  %v1735 = vshrl.u32 %v1734, 7
  %v1736 = vsub.s32 0, %v1735
  %v1737 = vrot.slane %v1697, %v1736
  %v1739 = vadd.f32 %v1731, %v1737
  %v1740 = vadd.f32 %v1732, %v1737
  %1741 = vst.msk [vmem:[%s7] sm:$0xff] %vm176, %v1739
  %1742 = vst.msk [vmem:[%s7 + $0x8] sm:$0xff] %vm176, %v1740
  // Predicated region
  $region30: #{transformer_mkii_forward.13} parent=0 // pred_check
    _
  $region31: #{transformer_mkii_forward.13} parent=0 // pred_check_branch
    %1744 = sbr.rel (0) target = $region33
  $region32: #{transformer_mkii_forward.13} parent=0 // pred_region
    _
  $region33: #{transformer_mkii_forward.13} parent=0 // pred_fallthru
    _
  // Predicated region
  $region34: #{transformer_mkii_forward.13} parent=0 // pred_check
    _
  $region35: #{transformer_mkii_forward.13} parent=0 // pred_check_branch
    %1746 = sbr.rel (0) target = $region37
  $region36: #{transformer_mkii_forward.13} parent=0 // pred_region
    _
  $region37: #{transformer_mkii_forward.13} parent=0 // pred_fallthru
    _

// kernel: transformer_mkii_forward.12
$region0: #{transformer_mkii_forward.12}
  #allocation0 [shape = 'u32[]', space=smem, size = 0x4, offset = 0x4, fixed_abs, tag = 'smem constant byte address 0x4 - core index']
  #allocation1 [shape = 'u32[144,128]{1,0:T(1,128)}', space=vmem, size = 0x12000, scoped, tag = 'internal scratch']
  %s0 = inlined_call_operand.vmem [shape: f32[2,8,32], index: 0, kind: input, shape index: {}]
  %s1 = inlined_call_operand.vmem [shape: f32[32,96], index: 1, kind: input, shape index: {}]
  %s2 = inlined_call_operand.vmem [shape: f32[1,96], index: 2, kind: input, shape index: {}]
  %s3 = inlined_call_operand.vmem [shape: f32[32,32], index: 3, kind: input, shape index: {}]
  %s4 = inlined_call_operand.vmem [shape: f32[1,32], index: 4, kind: input, shape index: {}]
  %s5 = inlined_call_operand.vmem [shape: f32[1,32], index: 5, kind: input, shape index: {}]
  %s6 = inlined_call_operand.vmem [shape: f32[1,32], index: 6, kind: input, shape index: {}]
  %s7 = inlined_call_operand.vmem [shape: f32[2,8,32], index: 7, kind: output, shape index: {}]
  %s8 = sld [smem:[#allocation0]]
  $region38: #{transformer_mkii_forward.12} parent=0
    _
  %s10 = ssub.s32 1, %s8
  %s11 = scalar_select 0, %s10, %s8
  // Predicated region
  $region2: #{transformer_mkii_forward.12} parent=0 // pred_check
    _
  $region3: #{transformer_mkii_forward.12} parent=0 // pred_check_branch
    %13 = sbr.rel (0) target = $region5
  $region4: #{transformer_mkii_forward.12} parent=0 // pred_region
    _
  $region5: #{transformer_mkii_forward.12} parent=0 // pred_fallthru
    _
  // Predicated region
  $region6: #{transformer_mkii_forward.12} parent=0 // pred_check
    _
  $region7: #{transformer_mkii_forward.12} parent=0 // pred_check_branch
    %15 = sbr.rel (0) target = $region9
  $region8: #{transformer_mkii_forward.12} parent=0 // pred_region
    _
  $region9: #{transformer_mkii_forward.12} parent=0 // pred_fallthru
    _
  // Predicated region
  $region10: #{transformer_mkii_forward.12} parent=0 // pred_check
    _
  $region11: #{transformer_mkii_forward.12} parent=0 // pred_check_branch
    %17 = sbr.rel (0) target = $region13
  $region12: #{transformer_mkii_forward.12} parent=0 // pred_region
    _
  $region13: #{transformer_mkii_forward.12} parent=0 // pred_fallthru
    _
  // Predicated region
  $region14: #{transformer_mkii_forward.12} parent=0 // pred_check
    _
  $region15: #{transformer_mkii_forward.12} parent=0 // pred_check_branch
    %19 = sbr.rel (0) target = $region17
  $region16: #{transformer_mkii_forward.12} parent=0 // pred_region
    _
  $region17: #{transformer_mkii_forward.12} parent=0 // pred_fallthru
    _
  // Predicated region
  $region18: #{transformer_mkii_forward.12} parent=0 // pred_check
    _
  $region19: #{transformer_mkii_forward.12} parent=0 // pred_check_branch
    %21 = sbr.rel (0) target = $region21
  $region20: #{transformer_mkii_forward.12} parent=0 // pred_region
    _
  $region21: #{transformer_mkii_forward.12} parent=0 // pred_fallthru
    _
  // Predicated region
  $region22: #{transformer_mkii_forward.12} parent=0 // pred_check
    _
  $region23: #{transformer_mkii_forward.12} parent=0 // pred_check_branch
    %23 = sbr.rel (0) target = $region25
  $region24: #{transformer_mkii_forward.12} parent=0 // pred_region
    _
  $region25: #{transformer_mkii_forward.12} parent=0 // pred_fallthru
    _
  // Predicated region
  $region26: #{transformer_mkii_forward.12} parent=0 // pred_check
    _
  $region27: #{transformer_mkii_forward.12} parent=0 // pred_check_branch
    %25 = sbr.rel (0) target = $region29
  $region28: #{transformer_mkii_forward.12} parent=0 // pred_region
    _
  $region29: #{transformer_mkii_forward.12} parent=0 // pred_fallthru
    _
  %v26 = vld [vmem:[%s1] sm:$0xff]
  %v27 = vld [vmem:[%s1 + $0x8] sm:$0xff]
  %v28 = vld [vmem:[%s1 + $0x10] sm:$0xff]
  %v29 = vld [vmem:[%s1 + $0x18] sm:$0xff]
  %v30 = vld [vmem:[%s2] sm:$0x1]
  %v31 = vld [vmem:[%s3] sm:$0xff]
  %v32 = vld [vmem:[%s3 + $0x8] sm:$0xff]
  %v33 = vld [vmem:[%s3 + $0x10] sm:$0xff]
  %v34 = vld [vmem:[%s3 + $0x18] sm:$0xff]
  %v35 = vld [vmem:[%s4] sm:$0x1]
  %v36 = vld [vmem:[%s5] sm:$0x1]
  %v37 = vld [vmem:[%s6] sm:$0x1]
  %v38 = vld [vmem:[%s0] sm:$0xff]
  %v40 = vlaneseq
  %v41 = vshrl.u32 %v40, 7
  %v42 = vsub.s32 0, %v41
  %v43 = vrot.slane %v30, %v42
  %vm45 = vcmask 261120
  %v47 = vsel %vm45, %v38, 0
  %49 = vmatprep.subr.mxu0 0.0
  %50 = vmatpush1.msra.mxu0 %v26
  %51 = vmatprep.subr.mxu0 0.0
  %52 = vmatpush1.msra.mxu0 %v27
  %53 = vmatprep.subr.mxu0 0.0
  %54 = vmatpush1.msra.mxu0 %v28
  %55 = vmatprep.subr.mxu0 0.0
  %56 = vmatpush1.msra.mxu0 %v29
  %57 = vmatprep.subr.mxu0 0.0
  %58 = vmatpush1.msra.mxu0 0.0
  %59 = vmatprep.subr.mxu0 0.0
  %60 = vmatpush1.msra.mxu0 0.0
  %61 = vmatprep.subr.mxu0 0.0
  %62 = vmatpush1.msra.mxu0 0.0
  %63 = vmatprep.subr.mxu0 0.0
  %64 = vmatpush1.msra.mxu0 0.0
  %65 = vmatprep.subr.mxu0 0.0
  %66 = vmatpush1.msra.mxu0 0.0
  %67 = vmatprep.subr.mxu0 0.0
  %68 = vmatpush1.msra.mxu0 0.0
  %69 = vmatprep.subr.mxu0 0.0
  %70 = vmatpush1.msra.mxu0 0.0
  %71 = vmatprep.subr.mxu0 0.0
  %72 = vmatpush1.msra.mxu0 0.0
  %73 = vmatprep.subr.mxu0 0.0
  %74 = vmatpush1.msra.mxu0 0.0
  %75 = vmatprep.subr.mxu0 0.0
  %76 = vmatpush1.msra.mxu0 0.0
  %77 = vmatprep.subr.mxu0 0.0
  %78 = vmatpush1.msra.mxu0 0.0
  %79 = vmatprep.subr.mxu0 0.0
  %80 = vmatpush1.msra.mxu0 0.0
  %81 = vmatprep.subr.mxu0 0.0
  %82 = vmatpush1.msra.mxu0 0.0
  %83 = vmatprep.subr.mxu0 0.0
  %84 = vmatpush1.msra.mxu0 0.0
  %85 = vmatprep.subr.mxu0 0.0
  %86 = vmatpush1.msra.mxu0 0.0
  %87 = vmatprep.subr.mxu0 0.0
  %88 = vmatpush1.msra.mxu0 0.0
  %89 = vmatprep.subr.mxu0 0.0
  %90 = vmatpush1.msra.mxu0 0.0
  %91 = vmatprep.subr.mxu0 0.0
  %92 = vmatpush1.msra.mxu0 0.0
  %93 = vmatprep.subr.mxu0 0.0
  %94 = vmatpush1.msra.mxu0 0.0
  %95 = vmatprep.subr.mxu0 0.0
  %96 = vmatpush1.msra.mxu0 0.0
  %97 = vmatprep.subr.mxu0 0.0
  %98 = vmatpush1.msra.mxu0 0.0
  %99 = vmatprep.subr.mxu0 0.0
  %100 = vmatpush1.msra.mxu0 0.0
  %101 = vmatprep.subr.mxu0 0.0
  %102 = vmatpush1.msra.mxu0 0.0
  %103 = vmatprep.subr.mxu0 0.0
  %104 = vmatpush1.msra.mxu0 0.0
  %105 = vmatprep.subr.mxu0 0.0
  %106 = vmatpush1.msra.mxu0 0.0
  %107 = vmatprep.subr.mxu0 0.0
  %108 = vmatpush1.msra.mxu0 0.0
  %109 = vmatprep.subr.mxu0 0.0
  %110 = vmatpush1.msra.mxu0 0.0
  %111 = vmatprep.subr.mxu0 0.0
  %112 = vmatpush1.msra.mxu0 0.0
  %113 = vmatprep.mubr.f32.mxu0 0.0
  %114 = vmatmul.mubr.f32.gmra.mrb[0].mxu0 %v47
  %v115 = vpop.f32.mrb[0].mxu0
  %v116 = vadd.f32 %v43, %v115
  %v117 = vpop.f32.mrb[0].mxu0
  %118 = vdwg.mxu0
  %120 = vrot.lane.b32.xlu0 %v116, 96
  %v121 = vpop.permute.xlu0 %120
  %vm122 = vcmask 64512
  %v123 = vsel %vm122, %v116, 0
  %v125 = vsel %vm122, %v121, 0
  %127 = vmatprep.subr.mxu0 0.0
  %128 = vmatpush1.xpose.msra.mxu0 %v125
  %129 = vmatprep.subr.mxu0 0.0
  %130 = vmatpush1.xpose.msra.mxu0 0.0
  %131 = vmatprep.subr.mxu0 0.0
  %132 = vmatpush1.xpose.msra.mxu0 0.0
  %133 = vmatprep.subr.mxu0 0.0
  %134 = vmatpush1.xpose.msra.mxu0 0.0
  %135 = vmatprep.subr.mxu0 0.0
  %136 = vmatpush1.xpose.msra.mxu0 0.0
  %137 = vmatprep.subr.mxu0 0.0
  %138 = vmatpush1.xpose.msra.mxu0 0.0
  %139 = vmatprep.subr.mxu0 0.0
  %140 = vmatpush1.xpose.msra.mxu0 0.0
  %141 = vmatprep.subr.mxu0 0.0
  %142 = vmatpush1.xpose.msra.mxu0 0.0
  %143 = vmatprep.subr.mxu0 0.0
  %144 = vmatpush1.xpose.msra.mxu0 0.0
  %145 = vmatprep.subr.mxu0 0.0
  %146 = vmatpush1.xpose.msra.mxu0 0.0
  %147 = vmatprep.subr.mxu0 0.0
  %148 = vmatpush1.xpose.msra.mxu0 0.0
  %149 = vmatprep.subr.mxu0 0.0
  %150 = vmatpush1.xpose.msra.mxu0 0.0
  %151 = vmatprep.subr.mxu0 0.0
  %152 = vmatpush1.xpose.msra.mxu0 0.0
  %153 = vmatprep.subr.mxu0 0.0
  %154 = vmatpush1.xpose.msra.mxu0 0.0
  %155 = vmatprep.subr.mxu0 0.0
  %156 = vmatpush1.xpose.msra.mxu0 0.0
  %157 = vmatprep.subr.mxu0 0.0
  %158 = vmatpush1.xpose.msra.mxu0 0.0
  %159 = vmatprep.subr.mxu0 0.0
  %160 = vmatpush1.xpose.msra.mxu0 0.0
  %161 = vmatprep.subr.mxu0 0.0
  %162 = vmatpush1.xpose.msra.mxu0 0.0
  %163 = vmatprep.subr.mxu0 0.0
  %164 = vmatpush1.xpose.msra.mxu0 0.0
  %165 = vmatprep.subr.mxu0 0.0
  %166 = vmatpush1.xpose.msra.mxu0 0.0
  %167 = vmatprep.subr.mxu0 0.0
  %168 = vmatpush1.xpose.msra.mxu0 0.0
  %169 = vmatprep.subr.mxu0 0.0
  %170 = vmatpush1.xpose.msra.mxu0 0.0
  %171 = vmatprep.subr.mxu0 0.0
  %172 = vmatpush1.xpose.msra.mxu0 0.0
  %173 = vmatprep.subr.mxu0 0.0
  %174 = vmatpush1.xpose.msra.mxu0 0.0
  %175 = vmatprep.subr.mxu0 0.0
  %176 = vmatpush1.xpose.msra.mxu0 0.0
  %177 = vmatprep.subr.mxu0 0.0
  %178 = vmatpush1.xpose.msra.mxu0 0.0
  %179 = vmatprep.subr.mxu0 0.0
  %180 = vmatpush1.xpose.msra.mxu0 0.0
  %181 = vmatprep.subr.mxu0 0.0
  %182 = vmatpush1.xpose.msra.mxu0 0.0
  %183 = vmatprep.subr.mxu0 0.0
  %184 = vmatpush1.xpose.msra.mxu0 0.0
  %185 = vmatprep.subr.mxu0 0.0
  %186 = vmatpush1.xpose.msra.mxu0 0.0
  %187 = vmatprep.subr.mxu0 0.0
  %188 = vmatpush1.xpose.msra.mxu0 0.0
  %189 = vmatprep.subr.mxu0 0.0
  %190 = vmatpush1.xpose.msra.mxu0 0.0
  %191 = vmatprep.mubr.f32.mxu0 0.0
  %192 = vmatmul.mubr.f32.gmra.mrb[0].mxu0 %v123
  %v193 = vpop.f32.mrb[0].mxu0
  %v194 = vadd.f32 0.0, %v193
  %v195 = vpop.f32.mrb[0].mxu0
  %196 = vdwg.mxu0
  %v197 = vmul.f32 %v194, 0.35355338
  %v198 = vsel %vm122, %v197, -inf
  %199 = vmax.xlane.f32.xlu0 %v198
  %v200 = vpop.xlane.xlu0 %199
  %v201 = vsub.f32 %v197, %v200
  %v202 = vmul.f32 %v201, 1.442695
  %v203 = vpow.pop %v202
  %v204 = vsel %vm122, %v203, 0.0
  %205 = vadd.xlane.f32.xlu0 %v204
  %v206 = vpop.xlane.xlu0 %205
  %v207 = vrcp.pop %v206
  %v208 = vmul.f32 %v203, %v207
  %209 = vrot.lane.b32.xlu0 %v116, 64
  %v210 = vpop.permute.xlu0 %209
  %v213 = vsel %vm122, %v208, 0
  %215 = vmatprep.subr.mxu0 0.0
  %216 = vmatpush1.msra.mxu0 %v210
  %217 = vmatprep.subr.mxu0 0.0
  %218 = vmatpush1.msra.mxu0 0.0
  %219 = vmatprep.subr.mxu0 0.0
  %220 = vmatpush1.msra.mxu0 0.0
  %221 = vmatprep.subr.mxu0 0.0
  %222 = vmatpush1.msra.mxu0 0.0
  %223 = vmatprep.subr.mxu0 0.0
  %224 = vmatpush1.msra.mxu0 0.0
  %225 = vmatprep.subr.mxu0 0.0
  %226 = vmatpush1.msra.mxu0 0.0
  %227 = vmatprep.subr.mxu0 0.0
  %228 = vmatpush1.msra.mxu0 0.0
  %229 = vmatprep.subr.mxu0 0.0
  %230 = vmatpush1.msra.mxu0 0.0
  %231 = vmatprep.subr.mxu0 0.0
  %232 = vmatpush1.msra.mxu0 0.0
  %233 = vmatprep.subr.mxu0 0.0
  %234 = vmatpush1.msra.mxu0 0.0
  %235 = vmatprep.subr.mxu0 0.0
  %236 = vmatpush1.msra.mxu0 0.0
  %237 = vmatprep.subr.mxu0 0.0
  %238 = vmatpush1.msra.mxu0 0.0
  %239 = vmatprep.subr.mxu0 0.0
  %240 = vmatpush1.msra.mxu0 0.0
  %241 = vmatprep.subr.mxu0 0.0
  %242 = vmatpush1.msra.mxu0 0.0
  %243 = vmatprep.subr.mxu0 0.0
  %244 = vmatpush1.msra.mxu0 0.0
  %245 = vmatprep.subr.mxu0 0.0
  %246 = vmatpush1.msra.mxu0 0.0
  %247 = vmatprep.subr.mxu0 0.0
  %248 = vmatpush1.msra.mxu0 0.0
  %249 = vmatprep.subr.mxu0 0.0
  %250 = vmatpush1.msra.mxu0 0.0
  %251 = vmatprep.subr.mxu0 0.0
  %252 = vmatpush1.msra.mxu0 0.0
  %253 = vmatprep.subr.mxu0 0.0
  %254 = vmatpush1.msra.mxu0 0.0
  %255 = vmatprep.subr.mxu0 0.0
  %256 = vmatpush1.msra.mxu0 0.0
  %257 = vmatprep.subr.mxu0 0.0
  %258 = vmatpush1.msra.mxu0 0.0
  %259 = vmatprep.subr.mxu0 0.0
  %260 = vmatpush1.msra.mxu0 0.0
  %261 = vmatprep.subr.mxu0 0.0
  %262 = vmatpush1.msra.mxu0 0.0
  %263 = vmatprep.subr.mxu0 0.0
  %264 = vmatpush1.msra.mxu0 0.0
  %265 = vmatprep.subr.mxu0 0.0
  %266 = vmatpush1.msra.mxu0 0.0
  %267 = vmatprep.subr.mxu0 0.0
  %268 = vmatpush1.msra.mxu0 0.0
  %269 = vmatprep.subr.mxu0 0.0
  %270 = vmatpush1.msra.mxu0 0.0
  %271 = vmatprep.subr.mxu0 0.0
  %272 = vmatpush1.msra.mxu0 0.0
  %273 = vmatprep.subr.mxu0 0.0
  %274 = vmatpush1.msra.mxu0 0.0
  %275 = vmatprep.subr.mxu0 0.0
  %276 = vmatpush1.msra.mxu0 0.0
  %277 = vmatprep.subr.mxu0 0.0
  %278 = vmatpush1.msra.mxu0 0.0
  %279 = vmatprep.mubr.f32.mxu0 0.0
  %280 = vmatmul.mubr.f32.gmra.mrb[0].mxu0 %v213
  %v281 = vpop.f32.mrb[0].mxu0
  %v282 = vadd.f32 0.0, %v281
  %v283 = vpop.f32.mrb[0].mxu0
  %284 = vdwg.mxu0
  %v286 = vsel %vm122, %v282, 0
  %288 = vmatprep.subr.mxu0 0.0
  %289 = vmatpush1.msra.mxu0 %v31
  %290 = vmatprep.subr.mxu0 0.0
  %291 = vmatpush1.msra.mxu0 0.0
  %292 = vmatprep.subr.mxu0 0.0
  %293 = vmatpush1.msra.mxu0 0.0
  %294 = vmatprep.subr.mxu0 0.0
  %295 = vmatpush1.msra.mxu0 0.0
  %296 = vmatprep.subr.mxu0 0.0
  %297 = vmatpush1.msra.mxu0 0.0
  %298 = vmatprep.subr.mxu0 0.0
  %299 = vmatpush1.msra.mxu0 0.0
  %300 = vmatprep.subr.mxu0 0.0
  %301 = vmatpush1.msra.mxu0 0.0
  %302 = vmatprep.subr.mxu0 0.0
  %303 = vmatpush1.msra.mxu0 0.0
  %304 = vmatprep.subr.mxu0 0.0
  %305 = vmatpush1.msra.mxu0 0.0
  %306 = vmatprep.subr.mxu0 0.0
  %307 = vmatpush1.msra.mxu0 0.0
  %308 = vmatprep.subr.mxu0 0.0
  %309 = vmatpush1.msra.mxu0 0.0
  %310 = vmatprep.subr.mxu0 0.0
  %311 = vmatpush1.msra.mxu0 0.0
  %312 = vmatprep.subr.mxu0 0.0
  %313 = vmatpush1.msra.mxu0 0.0
  %314 = vmatprep.subr.mxu0 0.0
  %315 = vmatpush1.msra.mxu0 0.0
  %316 = vmatprep.subr.mxu0 0.0
  %317 = vmatpush1.msra.mxu0 0.0
  %318 = vmatprep.subr.mxu0 0.0
  %319 = vmatpush1.msra.mxu0 0.0
  %320 = vmatprep.subr.mxu0 0.0
  %321 = vmatpush1.msra.mxu0 0.0
  %322 = vmatprep.subr.mxu0 0.0
  %323 = vmatpush1.msra.mxu0 0.0
  %324 = vmatprep.subr.mxu0 0.0
  %325 = vmatpush1.msra.mxu0 0.0
  %326 = vmatprep.subr.mxu0 0.0
  %327 = vmatpush1.msra.mxu0 0.0
  %328 = vmatprep.subr.mxu0 0.0
  %329 = vmatpush1.msra.mxu0 0.0
  %330 = vmatprep.subr.mxu0 0.0
  %331 = vmatpush1.msra.mxu0 0.0
  %332 = vmatprep.subr.mxu0 0.0
  %333 = vmatpush1.msra.mxu0 0.0
  %334 = vmatprep.subr.mxu0 0.0
  %335 = vmatpush1.msra.mxu0 0.0
  %336 = vmatprep.subr.mxu0 0.0
  %337 = vmatpush1.msra.mxu0 0.0
  %338 = vmatprep.subr.mxu0 0.0
  %339 = vmatpush1.msra.mxu0 0.0
  %340 = vmatprep.subr.mxu0 0.0
  %341 = vmatpush1.msra.mxu0 0.0
  %342 = vmatprep.subr.mxu0 0.0
  %343 = vmatpush1.msra.mxu0 0.0
  %344 = vmatprep.subr.mxu0 0.0
  %345 = vmatpush1.msra.mxu0 0.0
  %346 = vmatprep.subr.mxu0 0.0
  %347 = vmatpush1.msra.mxu0 0.0
  %348 = vmatprep.subr.mxu0 0.0
  %349 = vmatpush1.msra.mxu0 0.0
  %350 = vmatprep.subr.mxu0 0.0
  %351 = vmatpush1.msra.mxu0 0.0
  %352 = vmatprep.mubr.f32.mxu0 0.0
  %353 = vmatmul.mubr.f32.gmra.mrb[0].mxu0 %v286
  %v354 = vpop.f32.mrb[0].mxu0
  %v355 = vadd.f32 0.0, %v354
  %v356 = vpop.f32.mrb[0].mxu0
  %357 = vdwg.mxu0
  %v359 = vlaneseq
  %v360 = vshrl.u32 %v359, 7
  %v361 = vsub.s32 0, %v360
  %v362 = vrot.slane %v35, %v361
  %v364 = vadd.f32 %v362, %v355
  %365 = vrot.lane.b32.xlu0 %v116, 120
  %v366 = vpop.permute.xlu0 %365
  %367 = vrot.lane.b32.xlu0 %v116, 88
  %v368 = vpop.permute.xlu0 %367
  %v369 = vsel %vm122, %v366, 0
  %v371 = vsel %vm122, %v368, 0
  %373 = vmatprep.subr.mxu0 0.0
  %374 = vmatpush1.xpose.msra.mxu0 %v371
  %375 = vmatprep.subr.mxu0 0.0
  %376 = vmatpush1.xpose.msra.mxu0 0.0
  %377 = vmatprep.subr.mxu0 0.0
  %378 = vmatpush1.xpose.msra.mxu0 0.0
  %379 = vmatprep.subr.mxu0 0.0
  %380 = vmatpush1.xpose.msra.mxu0 0.0
  %381 = vmatprep.subr.mxu0 0.0
  %382 = vmatpush1.xpose.msra.mxu0 0.0
  %383 = vmatprep.subr.mxu0 0.0
  %384 = vmatpush1.xpose.msra.mxu0 0.0
  %385 = vmatprep.subr.mxu0 0.0
  %386 = vmatpush1.xpose.msra.mxu0 0.0
  %387 = vmatprep.subr.mxu0 0.0
  %388 = vmatpush1.xpose.msra.mxu0 0.0
  %389 = vmatprep.subr.mxu0 0.0
  %390 = vmatpush1.xpose.msra.mxu0 0.0
  %391 = vmatprep.subr.mxu0 0.0
  %392 = vmatpush1.xpose.msra.mxu0 0.0
  %393 = vmatprep.subr.mxu0 0.0
  %394 = vmatpush1.xpose.msra.mxu0 0.0
  %395 = vmatprep.subr.mxu0 0.0
  %396 = vmatpush1.xpose.msra.mxu0 0.0
  %397 = vmatprep.subr.mxu0 0.0
  %398 = vmatpush1.xpose.msra.mxu0 0.0
  %399 = vmatprep.subr.mxu0 0.0
  %400 = vmatpush1.xpose.msra.mxu0 0.0
  %401 = vmatprep.subr.mxu0 0.0
  %402 = vmatpush1.xpose.msra.mxu0 0.0
  %403 = vmatprep.subr.mxu0 0.0
  %404 = vmatpush1.xpose.msra.mxu0 0.0
  %405 = vmatprep.subr.mxu0 0.0
  %406 = vmatpush1.xpose.msra.mxu0 0.0
  %407 = vmatprep.subr.mxu0 0.0
  %408 = vmatpush1.xpose.msra.mxu0 0.0
  %409 = vmatprep.subr.mxu0 0.0
  %410 = vmatpush1.xpose.msra.mxu0 0.0
  %411 = vmatprep.subr.mxu0 0.0
  %412 = vmatpush1.xpose.msra.mxu0 0.0
  %413 = vmatprep.subr.mxu0 0.0
  %414 = vmatpush1.xpose.msra.mxu0 0.0
  %415 = vmatprep.subr.mxu0 0.0
  %416 = vmatpush1.xpose.msra.mxu0 0.0
  %417 = vmatprep.subr.mxu0 0.0
  %418 = vmatpush1.xpose.msra.mxu0 0.0
  %419 = vmatprep.subr.mxu0 0.0
  %420 = vmatpush1.xpose.msra.mxu0 0.0
  %421 = vmatprep.subr.mxu0 0.0
  %422 = vmatpush1.xpose.msra.mxu0 0.0
  %423 = vmatprep.subr.mxu0 0.0
  %424 = vmatpush1.xpose.msra.mxu0 0.0
  %425 = vmatprep.subr.mxu0 0.0
  %426 = vmatpush1.xpose.msra.mxu0 0.0
  %427 = vmatprep.subr.mxu0 0.0
  %428 = vmatpush1.xpose.msra.mxu0 0.0
  %429 = vmatprep.subr.mxu0 0.0
  %430 = vmatpush1.xpose.msra.mxu0 0.0
  %431 = vmatprep.subr.mxu0 0.0
  %432 = vmatpush1.xpose.msra.mxu0 0.0
  %433 = vmatprep.subr.mxu0 0.0
  %434 = vmatpush1.xpose.msra.mxu0 0.0
  %435 = vmatprep.subr.mxu0 0.0
  %436 = vmatpush1.xpose.msra.mxu0 0.0
  %437 = vmatprep.mubr.f32.mxu0 0.0
  %438 = vmatmul.mubr.f32.gmra.mrb[0].mxu0 %v369
  %v439 = vpop.f32.mrb[0].mxu0
  %v440 = vadd.f32 0.0, %v439
  %v441 = vpop.f32.mrb[0].mxu0
  %442 = vdwg.mxu0
  %v443 = vmul.f32 %v440, 0.35355338
  %v444 = vsel %vm122, %v443, -inf
  %445 = vmax.xlane.f32.xlu0 %v444
  %v446 = vpop.xlane.xlu0 %445
  %v447 = vsub.f32 %v443, %v446
  %v448 = vmul.f32 %v447, 1.442695
  %v449 = vpow.pop %v448
  %v450 = vsel %vm122, %v449, 0.0
  %451 = vadd.xlane.f32.xlu0 %v450
  %v452 = vpop.xlane.xlu0 %451
  %v453 = vrcp.pop %v452
  %v454 = vmul.f32 %v449, %v453
  %455 = vrot.lane.b32.xlu0 %v116, 56
  %v456 = vpop.permute.xlu0 %455
  %v459 = vsel %vm122, %v454, 0
  %461 = vmatprep.subr.mxu0 0.0
  %462 = vmatpush1.msra.mxu0 %v456
  %463 = vmatprep.subr.mxu0 0.0
  %464 = vmatpush1.msra.mxu0 0.0
  %465 = vmatprep.subr.mxu0 0.0
  %466 = vmatpush1.msra.mxu0 0.0
  %467 = vmatprep.subr.mxu0 0.0
  %468 = vmatpush1.msra.mxu0 0.0
  %469 = vmatprep.subr.mxu0 0.0
  %470 = vmatpush1.msra.mxu0 0.0
  %471 = vmatprep.subr.mxu0 0.0
  %472 = vmatpush1.msra.mxu0 0.0
  %473 = vmatprep.subr.mxu0 0.0
  %474 = vmatpush1.msra.mxu0 0.0
  %475 = vmatprep.subr.mxu0 0.0
  %476 = vmatpush1.msra.mxu0 0.0
  %477 = vmatprep.subr.mxu0 0.0
  %478 = vmatpush1.msra.mxu0 0.0
  %479 = vmatprep.subr.mxu0 0.0
  %480 = vmatpush1.msra.mxu0 0.0
  %481 = vmatprep.subr.mxu0 0.0
  %482 = vmatpush1.msra.mxu0 0.0
  %483 = vmatprep.subr.mxu0 0.0
  %484 = vmatpush1.msra.mxu0 0.0
  %485 = vmatprep.subr.mxu0 0.0
  %486 = vmatpush1.msra.mxu0 0.0
  %487 = vmatprep.subr.mxu0 0.0
  %488 = vmatpush1.msra.mxu0 0.0
  %489 = vmatprep.subr.mxu0 0.0
  %490 = vmatpush1.msra.mxu0 0.0
  %491 = vmatprep.subr.mxu0 0.0
  %492 = vmatpush1.msra.mxu0 0.0
  %493 = vmatprep.subr.mxu0 0.0
  %494 = vmatpush1.msra.mxu0 0.0
  %495 = vmatprep.subr.mxu0 0.0
  %496 = vmatpush1.msra.mxu0 0.0
  %497 = vmatprep.subr.mxu0 0.0
  %498 = vmatpush1.msra.mxu0 0.0
  %499 = vmatprep.subr.mxu0 0.0
  %500 = vmatpush1.msra.mxu0 0.0
  %501 = vmatprep.subr.mxu0 0.0
  %502 = vmatpush1.msra.mxu0 0.0
  %503 = vmatprep.subr.mxu0 0.0
  %504 = vmatpush1.msra.mxu0 0.0
  %505 = vmatprep.subr.mxu0 0.0
  %506 = vmatpush1.msra.mxu0 0.0
  %507 = vmatprep.subr.mxu0 0.0
  %508 = vmatpush1.msra.mxu0 0.0
  %509 = vmatprep.subr.mxu0 0.0
  %510 = vmatpush1.msra.mxu0 0.0
  %511 = vmatprep.subr.mxu0 0.0
  %512 = vmatpush1.msra.mxu0 0.0
  %513 = vmatprep.subr.mxu0 0.0
  %514 = vmatpush1.msra.mxu0 0.0
  %515 = vmatprep.subr.mxu0 0.0
  %516 = vmatpush1.msra.mxu0 0.0
  %517 = vmatprep.subr.mxu0 0.0
  %518 = vmatpush1.msra.mxu0 0.0
  %519 = vmatprep.subr.mxu0 0.0
  %520 = vmatpush1.msra.mxu0 0.0
  %521 = vmatprep.subr.mxu0 0.0
  %522 = vmatpush1.msra.mxu0 0.0
  %523 = vmatprep.subr.mxu0 0.0
  %524 = vmatpush1.msra.mxu0 0.0
  %525 = vmatprep.mubr.f32.mxu0 0.0
  %526 = vmatmul.mubr.f32.gmra.mrb[0].mxu0 %v459
  %v527 = vpop.f32.mrb[0].mxu0
  %v528 = vadd.f32 0.0, %v527
  %v529 = vpop.f32.mrb[0].mxu0
  %530 = vdwg.mxu0
  %v532 = vsel %vm122, %v528, 0
  %534 = vmatprep.subr.mxu0 0.0
  %535 = vmatpush1.msra.mxu0 %v32
  %536 = vmatprep.subr.mxu0 0.0
  %537 = vmatpush1.msra.mxu0 0.0
  %538 = vmatprep.subr.mxu0 0.0
  %539 = vmatpush1.msra.mxu0 0.0
  %540 = vmatprep.subr.mxu0 0.0
  %541 = vmatpush1.msra.mxu0 0.0
  %542 = vmatprep.subr.mxu0 0.0
  %543 = vmatpush1.msra.mxu0 0.0
  %544 = vmatprep.subr.mxu0 0.0
  %545 = vmatpush1.msra.mxu0 0.0
  %546 = vmatprep.subr.mxu0 0.0
  %547 = vmatpush1.msra.mxu0 0.0
  %548 = vmatprep.subr.mxu0 0.0
  %549 = vmatpush1.msra.mxu0 0.0
  %550 = vmatprep.subr.mxu0 0.0
  %551 = vmatpush1.msra.mxu0 0.0
  %552 = vmatprep.subr.mxu0 0.0
  %553 = vmatpush1.msra.mxu0 0.0
  %554 = vmatprep.subr.mxu0 0.0
  %555 = vmatpush1.msra.mxu0 0.0
  %556 = vmatprep.subr.mxu0 0.0
  %557 = vmatpush1.msra.mxu0 0.0
  %558 = vmatprep.subr.mxu0 0.0
  %559 = vmatpush1.msra.mxu0 0.0
  %560 = vmatprep.subr.mxu0 0.0
  %561 = vmatpush1.msra.mxu0 0.0
  %562 = vmatprep.subr.mxu0 0.0
  %563 = vmatpush1.msra.mxu0 0.0
  %564 = vmatprep.subr.mxu0 0.0
  %565 = vmatpush1.msra.mxu0 0.0
  %566 = vmatprep.subr.mxu0 0.0
  %567 = vmatpush1.msra.mxu0 0.0
  %568 = vmatprep.subr.mxu0 0.0
  %569 = vmatpush1.msra.mxu0 0.0
  %570 = vmatprep.subr.mxu0 0.0
  %571 = vmatpush1.msra.mxu0 0.0
  %572 = vmatprep.subr.mxu0 0.0
  %573 = vmatpush1.msra.mxu0 0.0
  %574 = vmatprep.subr.mxu0 0.0
  %575 = vmatpush1.msra.mxu0 0.0
  %576 = vmatprep.subr.mxu0 0.0
  %577 = vmatpush1.msra.mxu0 0.0
  %578 = vmatprep.subr.mxu0 0.0
  %579 = vmatpush1.msra.mxu0 0.0
  %580 = vmatprep.subr.mxu0 0.0
  %581 = vmatpush1.msra.mxu0 0.0
  %582 = vmatprep.subr.mxu0 0.0
  %583 = vmatpush1.msra.mxu0 0.0
  %584 = vmatprep.subr.mxu0 0.0
  %585 = vmatpush1.msra.mxu0 0.0
  %586 = vmatprep.subr.mxu0 0.0
  %587 = vmatpush1.msra.mxu0 0.0
  %588 = vmatprep.subr.mxu0 0.0
  %589 = vmatpush1.msra.mxu0 0.0
  %590 = vmatprep.subr.mxu0 0.0
  %591 = vmatpush1.msra.mxu0 0.0
  %592 = vmatprep.subr.mxu0 0.0
  %593 = vmatpush1.msra.mxu0 0.0
  %594 = vmatprep.subr.mxu0 0.0
  %595 = vmatpush1.msra.mxu0 0.0
  %596 = vmatprep.subr.mxu0 0.0
  %597 = vmatpush1.msra.mxu0 0.0
  %598 = vmatprep.mubr.f32.mxu0 0.0
  %599 = vmatmul.mubr.f32.gmra.mrb[0].mxu0 %v532
  %v600 = vpop.f32.mrb[0].mxu0
  %v601 = vadd.f32 0.0, %v600
  %v602 = vpop.f32.mrb[0].mxu0
  %603 = vdwg.mxu0
  %v604 = vadd.f32 %v364, %v601
  %605 = vrot.lane.b32.xlu0 %v116, 112
  %v606 = vpop.permute.xlu0 %605
  %607 = vrot.lane.b32.xlu0 %v116, 80
  %v608 = vpop.permute.xlu0 %607
  %v609 = vsel %vm122, %v606, 0
  %v611 = vsel %vm122, %v608, 0
  %613 = vmatprep.subr.mxu0 0.0
  %614 = vmatpush1.xpose.msra.mxu0 %v611
  %615 = vmatprep.subr.mxu0 0.0
  %616 = vmatpush1.xpose.msra.mxu0 0.0
  %617 = vmatprep.subr.mxu0 0.0
  %618 = vmatpush1.xpose.msra.mxu0 0.0
  %619 = vmatprep.subr.mxu0 0.0
  %620 = vmatpush1.xpose.msra.mxu0 0.0
  %621 = vmatprep.subr.mxu0 0.0
  %622 = vmatpush1.xpose.msra.mxu0 0.0
  %623 = vmatprep.subr.mxu0 0.0
  %624 = vmatpush1.xpose.msra.mxu0 0.0
  %625 = vmatprep.subr.mxu0 0.0
  %626 = vmatpush1.xpose.msra.mxu0 0.0
  %627 = vmatprep.subr.mxu0 0.0
  %628 = vmatpush1.xpose.msra.mxu0 0.0
  %629 = vmatprep.subr.mxu0 0.0
  %630 = vmatpush1.xpose.msra.mxu0 0.0
  %631 = vmatprep.subr.mxu0 0.0
  %632 = vmatpush1.xpose.msra.mxu0 0.0
  %633 = vmatprep.subr.mxu0 0.0
  %634 = vmatpush1.xpose.msra.mxu0 0.0
  %635 = vmatprep.subr.mxu0 0.0
  %636 = vmatpush1.xpose.msra.mxu0 0.0
  %637 = vmatprep.subr.mxu0 0.0
  %638 = vmatpush1.xpose.msra.mxu0 0.0
  %639 = vmatprep.subr.mxu0 0.0
  %640 = vmatpush1.xpose.msra.mxu0 0.0
  %641 = vmatprep.subr.mxu0 0.0
  %642 = vmatpush1.xpose.msra.mxu0 0.0
  %643 = vmatprep.subr.mxu0 0.0
  %644 = vmatpush1.xpose.msra.mxu0 0.0
  %645 = vmatprep.subr.mxu0 0.0
  %646 = vmatpush1.xpose.msra.mxu0 0.0
  %647 = vmatprep.subr.mxu0 0.0
  %648 = vmatpush1.xpose.msra.mxu0 0.0
  %649 = vmatprep.subr.mxu0 0.0
  %650 = vmatpush1.xpose.msra.mxu0 0.0
  %651 = vmatprep.subr.mxu0 0.0
  %652 = vmatpush1.xpose.msra.mxu0 0.0
  %653 = vmatprep.subr.mxu0 0.0
  %654 = vmatpush1.xpose.msra.mxu0 0.0
  %655 = vmatprep.subr.mxu0 0.0
  %656 = vmatpush1.xpose.msra.mxu0 0.0
  %657 = vmatprep.subr.mxu0 0.0
  %658 = vmatpush1.xpose.msra.mxu0 0.0
  %659 = vmatprep.subr.mxu0 0.0
  %660 = vmatpush1.xpose.msra.mxu0 0.0
  %661 = vmatprep.subr.mxu0 0.0
  %662 = vmatpush1.xpose.msra.mxu0 0.0
  %663 = vmatprep.subr.mxu0 0.0
  %664 = vmatpush1.xpose.msra.mxu0 0.0
  %665 = vmatprep.subr.mxu0 0.0
  %666 = vmatpush1.xpose.msra.mxu0 0.0
  %667 = vmatprep.subr.mxu0 0.0
  %668 = vmatpush1.xpose.msra.mxu0 0.0
  %669 = vmatprep.subr.mxu0 0.0
  %670 = vmatpush1.xpose.msra.mxu0 0.0
  %671 = vmatprep.subr.mxu0 0.0
  %672 = vmatpush1.xpose.msra.mxu0 0.0
  %673 = vmatprep.subr.mxu0 0.0
  %674 = vmatpush1.xpose.msra.mxu0 0.0
  %675 = vmatprep.subr.mxu0 0.0
  %676 = vmatpush1.xpose.msra.mxu0 0.0
  %677 = vmatprep.mubr.f32.mxu0 0.0
  %678 = vmatmul.mubr.f32.gmra.mrb[0].mxu0 %v609
  %v679 = vpop.f32.mrb[0].mxu0
  %v680 = vadd.f32 0.0, %v679
  %v681 = vpop.f32.mrb[0].mxu0
  %682 = vdwg.mxu0
  %v683 = vmul.f32 %v680, 0.35355338
  %v684 = vsel %vm122, %v683, -inf
  %685 = vmax.xlane.f32.xlu0 %v684
  %v686 = vpop.xlane.xlu0 %685
  %v687 = vsub.f32 %v683, %v686
  %v688 = vmul.f32 %v687, 1.442695
  %v689 = vpow.pop %v688
  %v690 = vsel %vm122, %v689, 0.0
  %691 = vadd.xlane.f32.xlu0 %v690
  %v692 = vpop.xlane.xlu0 %691
  %v693 = vrcp.pop %v692
  %v694 = vmul.f32 %v689, %v693
  %695 = vrot.lane.b32.xlu0 %v116, 48
  %v696 = vpop.permute.xlu0 %695
  %v699 = vsel %vm122, %v694, 0
  %701 = vmatprep.subr.mxu0 0.0
  %702 = vmatpush1.msra.mxu0 %v696
  %703 = vmatprep.subr.mxu0 0.0
  %704 = vmatpush1.msra.mxu0 0.0
  %705 = vmatprep.subr.mxu0 0.0
  %706 = vmatpush1.msra.mxu0 0.0
  %707 = vmatprep.subr.mxu0 0.0
  %708 = vmatpush1.msra.mxu0 0.0
  %709 = vmatprep.subr.mxu0 0.0
  %710 = vmatpush1.msra.mxu0 0.0
  %711 = vmatprep.subr.mxu0 0.0
  %712 = vmatpush1.msra.mxu0 0.0
  %713 = vmatprep.subr.mxu0 0.0
  %714 = vmatpush1.msra.mxu0 0.0
  %715 = vmatprep.subr.mxu0 0.0
  %716 = vmatpush1.msra.mxu0 0.0
  %717 = vmatprep.subr.mxu0 0.0
  %718 = vmatpush1.msra.mxu0 0.0
  %719 = vmatprep.subr.mxu0 0.0
  %720 = vmatpush1.msra.mxu0 0.0
  %721 = vmatprep.subr.mxu0 0.0
  %722 = vmatpush1.msra.mxu0 0.0
  %723 = vmatprep.subr.mxu0 0.0
  %724 = vmatpush1.msra.mxu0 0.0
  %725 = vmatprep.subr.mxu0 0.0
  %726 = vmatpush1.msra.mxu0 0.0
  %727 = vmatprep.subr.mxu0 0.0
  %728 = vmatpush1.msra.mxu0 0.0
  %729 = vmatprep.subr.mxu0 0.0
  %730 = vmatpush1.msra.mxu0 0.0
  %731 = vmatprep.subr.mxu0 0.0
  %732 = vmatpush1.msra.mxu0 0.0
  %733 = vmatprep.subr.mxu0 0.0
  %734 = vmatpush1.msra.mxu0 0.0
  %735 = vmatprep.subr.mxu0 0.0
  %736 = vmatpush1.msra.mxu0 0.0
  %737 = vmatprep.subr.mxu0 0.0
  %738 = vmatpush1.msra.mxu0 0.0
  %739 = vmatprep.subr.mxu0 0.0
  %740 = vmatpush1.msra.mxu0 0.0
  %741 = vmatprep.subr.mxu0 0.0
  %742 = vmatpush1.msra.mxu0 0.0
  %743 = vmatprep.subr.mxu0 0.0
  %744 = vmatpush1.msra.mxu0 0.0
  %745 = vmatprep.subr.mxu0 0.0
  %746 = vmatpush1.msra.mxu0 0.0
  %747 = vmatprep.subr.mxu0 0.0
  %748 = vmatpush1.msra.mxu0 0.0
  %749 = vmatprep.subr.mxu0 0.0
  %750 = vmatpush1.msra.mxu0 0.0
  %751 = vmatprep.subr.mxu0 0.0
  %752 = vmatpush1.msra.mxu0 0.0
  %753 = vmatprep.subr.mxu0 0.0
  %754 = vmatpush1.msra.mxu0 0.0
  %755 = vmatprep.subr.mxu0 0.0
  %756 = vmatpush1.msra.mxu0 0.0
  %757 = vmatprep.subr.mxu0 0.0
  %758 = vmatpush1.msra.mxu0 0.0
  %759 = vmatprep.subr.mxu0 0.0
  %760 = vmatpush1.msra.mxu0 0.0
  %761 = vmatprep.subr.mxu0 0.0
  %762 = vmatpush1.msra.mxu0 0.0
  %763 = vmatprep.subr.mxu0 0.0
  %764 = vmatpush1.msra.mxu0 0.0
  %765 = vmatprep.mubr.f32.mxu0 0.0
  %766 = vmatmul.mubr.f32.gmra.mrb[0].mxu0 %v699
  %v767 = vpop.f32.mrb[0].mxu0
  %v768 = vadd.f32 0.0, %v767
  %v769 = vpop.f32.mrb[0].mxu0
  %770 = vdwg.mxu0
  %v772 = vsel %vm122, %v768, 0
  %774 = vmatprep.subr.mxu0 0.0
  %775 = vmatpush1.msra.mxu0 %v33
  %776 = vmatprep.subr.mxu0 0.0
  %777 = vmatpush1.msra.mxu0 0.0
  %778 = vmatprep.subr.mxu0 0.0
  %779 = vmatpush1.msra.mxu0 0.0
  %780 = vmatprep.subr.mxu0 0.0
  %781 = vmatpush1.msra.mxu0 0.0
  %782 = vmatprep.subr.mxu0 0.0
  %783 = vmatpush1.msra.mxu0 0.0
  %784 = vmatprep.subr.mxu0 0.0
  %785 = vmatpush1.msra.mxu0 0.0
  %786 = vmatprep.subr.mxu0 0.0
  %787 = vmatpush1.msra.mxu0 0.0
  %788 = vmatprep.subr.mxu0 0.0
  %789 = vmatpush1.msra.mxu0 0.0
  %790 = vmatprep.subr.mxu0 0.0
  %791 = vmatpush1.msra.mxu0 0.0
  %792 = vmatprep.subr.mxu0 0.0
  %793 = vmatpush1.msra.mxu0 0.0
  %794 = vmatprep.subr.mxu0 0.0
  %795 = vmatpush1.msra.mxu0 0.0
  %796 = vmatprep.subr.mxu0 0.0
  %797 = vmatpush1.msra.mxu0 0.0
  %798 = vmatprep.subr.mxu0 0.0
  %799 = vmatpush1.msra.mxu0 0.0
  %800 = vmatprep.subr.mxu0 0.0
  %801 = vmatpush1.msra.mxu0 0.0
  %802 = vmatprep.subr.mxu0 0.0
  %803 = vmatpush1.msra.mxu0 0.0
  %804 = vmatprep.subr.mxu0 0.0
  %805 = vmatpush1.msra.mxu0 0.0
  %806 = vmatprep.subr.mxu0 0.0
  %807 = vmatpush1.msra.mxu0 0.0
  %808 = vmatprep.subr.mxu0 0.0
  %809 = vmatpush1.msra.mxu0 0.0
  %810 = vmatprep.subr.mxu0 0.0
  %811 = vmatpush1.msra.mxu0 0.0
  %812 = vmatprep.subr.mxu0 0.0
  %813 = vmatpush1.msra.mxu0 0.0
  %814 = vmatprep.subr.mxu0 0.0
  %815 = vmatpush1.msra.mxu0 0.0
  %816 = vmatprep.subr.mxu0 0.0
  %817 = vmatpush1.msra.mxu0 0.0
  %818 = vmatprep.subr.mxu0 0.0
  %819 = vmatpush1.msra.mxu0 0.0
  %820 = vmatprep.subr.mxu0 0.0
  %821 = vmatpush1.msra.mxu0 0.0
  %822 = vmatprep.subr.mxu0 0.0
  %823 = vmatpush1.msra.mxu0 0.0
  %824 = vmatprep.subr.mxu0 0.0
  %825 = vmatpush1.msra.mxu0 0.0
  %826 = vmatprep.subr.mxu0 0.0
  %827 = vmatpush1.msra.mxu0 0.0
  %828 = vmatprep.subr.mxu0 0.0
  %829 = vmatpush1.msra.mxu0 0.0
  %830 = vmatprep.subr.mxu0 0.0
  %831 = vmatpush1.msra.mxu0 0.0
  %832 = vmatprep.subr.mxu0 0.0
  %833 = vmatpush1.msra.mxu0 0.0
  %834 = vmatprep.subr.mxu0 0.0
  %835 = vmatpush1.msra.mxu0 0.0
  %836 = vmatprep.subr.mxu0 0.0
  %837 = vmatpush1.msra.mxu0 0.0
  %838 = vmatprep.mubr.f32.mxu0 0.0
  %839 = vmatmul.mubr.f32.gmra.mrb[0].mxu0 %v772
  %v840 = vpop.f32.mrb[0].mxu0
  %v841 = vadd.f32 0.0, %v840
  %v842 = vpop.f32.mrb[0].mxu0
  %843 = vdwg.mxu0
  %v844 = vadd.f32 %v604, %v841
  %845 = vrot.lane.b32.xlu0 %v116, 104
  %v846 = vpop.permute.xlu0 %845
  %847 = vrot.lane.b32.xlu0 %v116, 72
  %v848 = vpop.permute.xlu0 %847
  %v849 = vsel %vm122, %v846, 0
  %v851 = vsel %vm122, %v848, 0
  %853 = vmatprep.subr.mxu0 0.0
  %854 = vmatpush1.xpose.msra.mxu0 %v851
  %855 = vmatprep.subr.mxu0 0.0
  %856 = vmatpush1.xpose.msra.mxu0 0.0
  %857 = vmatprep.subr.mxu0 0.0
  %858 = vmatpush1.xpose.msra.mxu0 0.0
  %859 = vmatprep.subr.mxu0 0.0
  %860 = vmatpush1.xpose.msra.mxu0 0.0
  %861 = vmatprep.subr.mxu0 0.0
  %862 = vmatpush1.xpose.msra.mxu0 0.0
  %863 = vmatprep.subr.mxu0 0.0
  %864 = vmatpush1.xpose.msra.mxu0 0.0
  %865 = vmatprep.subr.mxu0 0.0
  %866 = vmatpush1.xpose.msra.mxu0 0.0
  %867 = vmatprep.subr.mxu0 0.0
  %868 = vmatpush1.xpose.msra.mxu0 0.0
  %869 = vmatprep.subr.mxu0 0.0
  %870 = vmatpush1.xpose.msra.mxu0 0.0
  %871 = vmatprep.subr.mxu0 0.0
  %872 = vmatpush1.xpose.msra.mxu0 0.0
  %873 = vmatprep.subr.mxu0 0.0
  %874 = vmatpush1.xpose.msra.mxu0 0.0
  %875 = vmatprep.subr.mxu0 0.0
  %876 = vmatpush1.xpose.msra.mxu0 0.0
  %877 = vmatprep.subr.mxu0 0.0
  %878 = vmatpush1.xpose.msra.mxu0 0.0
  %879 = vmatprep.subr.mxu0 0.0
  %880 = vmatpush1.xpose.msra.mxu0 0.0
  %881 = vmatprep.subr.mxu0 0.0
  %882 = vmatpush1.xpose.msra.mxu0 0.0
  %883 = vmatprep.subr.mxu0 0.0
  %884 = vmatpush1.xpose.msra.mxu0 0.0
  %885 = vmatprep.subr.mxu0 0.0
  %886 = vmatpush1.xpose.msra.mxu0 0.0
  %887 = vmatprep.subr.mxu0 0.0
  %888 = vmatpush1.xpose.msra.mxu0 0.0
  %889 = vmatprep.subr.mxu0 0.0
  %890 = vmatpush1.xpose.msra.mxu0 0.0
  %891 = vmatprep.subr.mxu0 0.0
  %892 = vmatpush1.xpose.msra.mxu0 0.0
  %893 = vmatprep.subr.mxu0 0.0
  %894 = vmatpush1.xpose.msra.mxu0 0.0
  %895 = vmatprep.subr.mxu0 0.0
  %896 = vmatpush1.xpose.msra.mxu0 0.0
  %897 = vmatprep.subr.mxu0 0.0
  %898 = vmatpush1.xpose.msra.mxu0 0.0
  %899 = vmatprep.subr.mxu0 0.0
  %900 = vmatpush1.xpose.msra.mxu0 0.0
  %901 = vmatprep.subr.mxu0 0.0
  %902 = vmatpush1.xpose.msra.mxu0 0.0
  %903 = vmatprep.subr.mxu0 0.0
  %904 = vmatpush1.xpose.msra.mxu0 0.0
  %905 = vmatprep.subr.mxu0 0.0
  %906 = vmatpush1.xpose.msra.mxu0 0.0
  %907 = vmatprep.subr.mxu0 0.0
  %908 = vmatpush1.xpose.msra.mxu0 0.0
  %909 = vmatprep.subr.mxu0 0.0
  %910 = vmatpush1.xpose.msra.mxu0 0.0
  %911 = vmatprep.subr.mxu0 0.0
  %912 = vmatpush1.xpose.msra.mxu0 0.0
  %913 = vmatprep.subr.mxu0 0.0
  %914 = vmatpush1.xpose.msra.mxu0 0.0
  %915 = vmatprep.subr.mxu0 0.0
  %916 = vmatpush1.xpose.msra.mxu0 0.0
  %917 = vmatprep.mubr.f32.mxu0 0.0
  %918 = vmatmul.mubr.f32.gmra.mrb[0].mxu0 %v849
  %v919 = vpop.f32.mrb[0].mxu0
  %v920 = vadd.f32 0.0, %v919
  %v921 = vpop.f32.mrb[0].mxu0
  %922 = vdwg.mxu0
  %v923 = vmul.f32 %v920, 0.35355338
  %v924 = vsel %vm122, %v923, -inf
  %925 = vmax.xlane.f32.xlu0 %v924
  %v926 = vpop.xlane.xlu0 %925
  %v927 = vsub.f32 %v923, %v926
  %v928 = vmul.f32 %v927, 1.442695
  %v929 = vpow.pop %v928
  %v930 = vsel %vm122, %v929, 0.0
  %931 = vadd.xlane.f32.xlu0 %v930
  %v932 = vpop.xlane.xlu0 %931
  %v933 = vrcp.pop %v932
  %v934 = vmul.f32 %v929, %v933
  %935 = vrot.lane.b32.xlu0 %v116, 40
  %v936 = vpop.permute.xlu0 %935
  %v939 = vsel %vm122, %v934, 0
  %941 = vmatprep.subr.mxu0 0.0
  %942 = vmatpush1.msra.mxu0 %v936
  %943 = vmatprep.subr.mxu0 0.0
  %944 = vmatpush1.msra.mxu0 0.0
  %945 = vmatprep.subr.mxu0 0.0
  %946 = vmatpush1.msra.mxu0 0.0
  %947 = vmatprep.subr.mxu0 0.0
  %948 = vmatpush1.msra.mxu0 0.0
  %949 = vmatprep.subr.mxu0 0.0
  %950 = vmatpush1.msra.mxu0 0.0
  %951 = vmatprep.subr.mxu0 0.0
  %952 = vmatpush1.msra.mxu0 0.0
  %953 = vmatprep.subr.mxu0 0.0
  %954 = vmatpush1.msra.mxu0 0.0
  %955 = vmatprep.subr.mxu0 0.0
  %956 = vmatpush1.msra.mxu0 0.0
  %957 = vmatprep.subr.mxu0 0.0
  %958 = vmatpush1.msra.mxu0 0.0
  %959 = vmatprep.subr.mxu0 0.0
  %960 = vmatpush1.msra.mxu0 0.0
  %961 = vmatprep.subr.mxu0 0.0
  %962 = vmatpush1.msra.mxu0 0.0
  %963 = vmatprep.subr.mxu0 0.0
  %964 = vmatpush1.msra.mxu0 0.0
  %965 = vmatprep.subr.mxu0 0.0
  %966 = vmatpush1.msra.mxu0 0.0
  %967 = vmatprep.subr.mxu0 0.0
  %968 = vmatpush1.msra.mxu0 0.0
  %969 = vmatprep.subr.mxu0 0.0
  %970 = vmatpush1.msra.mxu0 0.0
  %971 = vmatprep.subr.mxu0 0.0
  %972 = vmatpush1.msra.mxu0 0.0
  %973 = vmatprep.subr.mxu0 0.0
  %974 = vmatpush1.msra.mxu0 0.0
  %975 = vmatprep.subr.mxu0 0.0
  %976 = vmatpush1.msra.mxu0 0.0
  %977 = vmatprep.subr.mxu0 0.0
  %978 = vmatpush1.msra.mxu0 0.0
  %979 = vmatprep.subr.mxu0 0.0
  %980 = vmatpush1.msra.mxu0 0.0
  %981 = vmatprep.subr.mxu0 0.0
  %982 = vmatpush1.msra.mxu0 0.0
  %983 = vmatprep.subr.mxu0 0.0
  %984 = vmatpush1.msra.mxu0 0.0
  %985 = vmatprep.subr.mxu0 0.0
  %986 = vmatpush1.msra.mxu0 0.0
  %987 = vmatprep.subr.mxu0 0.0
  %988 = vmatpush1.msra.mxu0 0.0
  %989 = vmatprep.subr.mxu0 0.0
  %990 = vmatpush1.msra.mxu0 0.0
  %991 = vmatprep.subr.mxu0 0.0
  %992 = vmatpush1.msra.mxu0 0.0
  %993 = vmatprep.subr.mxu0 0.0
  %994 = vmatpush1.msra.mxu0 0.0
  %995 = vmatprep.subr.mxu0 0.0
  %996 = vmatpush1.msra.mxu0 0.0
  %997 = vmatprep.subr.mxu0 0.0
  %998 = vmatpush1.msra.mxu0 0.0
  %999 = vmatprep.subr.mxu0 0.0
  %1000 = vmatpush1.msra.mxu0 0.0
  %1001 = vmatprep.subr.mxu0 0.0
  %1002 = vmatpush1.msra.mxu0 0.0
  %1003 = vmatprep.subr.mxu0 0.0
  %1004 = vmatpush1.msra.mxu0 0.0
  %1005 = vmatprep.mubr.f32.mxu0 0.0
  %1006 = vmatmul.mubr.f32.gmra.mrb[0].mxu0 %v939
  %v1007 = vpop.f32.mrb[0].mxu0
  %v1008 = vadd.f32 0.0, %v1007
  %v1009 = vpop.f32.mrb[0].mxu0
  %1010 = vdwg.mxu0
  %v1012 = vsel %vm122, %v1008, 0
  %1014 = vmatprep.subr.mxu0 0.0
  %1015 = vmatpush1.msra.mxu0 %v34
  %1016 = vmatprep.subr.mxu0 0.0
  %1017 = vmatpush1.msra.mxu0 0.0
  %1018 = vmatprep.subr.mxu0 0.0
  %1019 = vmatpush1.msra.mxu0 0.0
  %1020 = vmatprep.subr.mxu0 0.0
  %1021 = vmatpush1.msra.mxu0 0.0
  %1022 = vmatprep.subr.mxu0 0.0
  %1023 = vmatpush1.msra.mxu0 0.0
  %1024 = vmatprep.subr.mxu0 0.0
  %1025 = vmatpush1.msra.mxu0 0.0
  %1026 = vmatprep.subr.mxu0 0.0
  %1027 = vmatpush1.msra.mxu0 0.0
  %1028 = vmatprep.subr.mxu0 0.0
  %1029 = vmatpush1.msra.mxu0 0.0
  %1030 = vmatprep.subr.mxu0 0.0
  %1031 = vmatpush1.msra.mxu0 0.0
  %1032 = vmatprep.subr.mxu0 0.0
  %1033 = vmatpush1.msra.mxu0 0.0
  %1034 = vmatprep.subr.mxu0 0.0
  %1035 = vmatpush1.msra.mxu0 0.0
  %1036 = vmatprep.subr.mxu0 0.0
  %1037 = vmatpush1.msra.mxu0 0.0
  %1038 = vmatprep.subr.mxu0 0.0
  %1039 = vmatpush1.msra.mxu0 0.0
  %1040 = vmatprep.subr.mxu0 0.0
  %1041 = vmatpush1.msra.mxu0 0.0
  %1042 = vmatprep.subr.mxu0 0.0
  %1043 = vmatpush1.msra.mxu0 0.0
  %1044 = vmatprep.subr.mxu0 0.0
  %1045 = vmatpush1.msra.mxu0 0.0
  %1046 = vmatprep.subr.mxu0 0.0
  %1047 = vmatpush1.msra.mxu0 0.0
  %1048 = vmatprep.subr.mxu0 0.0
  %1049 = vmatpush1.msra.mxu0 0.0
  %1050 = vmatprep.subr.mxu0 0.0
  %1051 = vmatpush1.msra.mxu0 0.0
  %1052 = vmatprep.subr.mxu0 0.0
  %1053 = vmatpush1.msra.mxu0 0.0
  %1054 = vmatprep.subr.mxu0 0.0
  %1055 = vmatpush1.msra.mxu0 0.0
  %1056 = vmatprep.subr.mxu0 0.0
  %1057 = vmatpush1.msra.mxu0 0.0
  %1058 = vmatprep.subr.mxu0 0.0
  %1059 = vmatpush1.msra.mxu0 0.0
  %1060 = vmatprep.subr.mxu0 0.0
  %1061 = vmatpush1.msra.mxu0 0.0
  %1062 = vmatprep.subr.mxu0 0.0
  %1063 = vmatpush1.msra.mxu0 0.0
  %1064 = vmatprep.subr.mxu0 0.0
  %1065 = vmatpush1.msra.mxu0 0.0
  %1066 = vmatprep.subr.mxu0 0.0
  %1067 = vmatpush1.msra.mxu0 0.0
  %1068 = vmatprep.subr.mxu0 0.0
  %1069 = vmatpush1.msra.mxu0 0.0
  %1070 = vmatprep.subr.mxu0 0.0
  %1071 = vmatpush1.msra.mxu0 0.0
  %1072 = vmatprep.subr.mxu0 0.0
  %1073 = vmatpush1.msra.mxu0 0.0
  %1074 = vmatprep.subr.mxu0 0.0
  %1075 = vmatpush1.msra.mxu0 0.0
  %1076 = vmatprep.subr.mxu0 0.0
  %1077 = vmatpush1.msra.mxu0 0.0
  %1078 = vmatprep.mubr.f32.mxu0 0.0
  %1079 = vmatmul.mubr.f32.gmra.mrb[0].mxu0 %v1012
  %v1080 = vpop.f32.mrb[0].mxu0
  %v1081 = vadd.f32 0.0, %v1080
  %v1082 = vpop.f32.mrb[0].mxu0
  %1083 = vdwg.mxu0
  %v1084 = vadd.f32 %v844, %v1081
  %v1085 = vadd.f32 %v38, %v1084
  %v1086 = vsel %vm45, %v1085, 0.0
  %1087 = vadd.xlane.f32.xlu0 %v1086
  %v1088 = vpop.xlane.xlu0 %1087
  %v1089 = vrcp.pop 32.0
  %v1090 = vmul.f32 %v1088, %v1089
  %v1091 = vsub.f32 %v1085, %v1090
  %v1092 = vmul.f32 %v1091, %v1091
  %v1093 = vsel %vm45, %v1092, 0.0
  %1094 = vadd.xlane.f32.xlu0 %v1093
  %v1095 = vpop.xlane.xlu0 %1094
  %v1096 = vmul.f32 %v1095, %v1089
  %v1097 = vadd.f32 %v1096, 1e-05
  %v1098 = vrsqrt.pop %v1097
  %v1099 = vmul.f32 %v1091, %v1098
  %v1101 = vlaneseq
  %v1102 = vshrl.u32 %v1101, 7
  %v1103 = vsub.s32 0, %v1102
  %v1104 = vrot.slane %v36, %v1103
  %v1106 = vmul.f32 %v1099, %v1104
  %v1108 = vlaneseq
  %v1109 = vshrl.u32 %v1108, 7
  %v1110 = vsub.s32 0, %v1109
  %v1111 = vrot.slane %v37, %v1110
  %v1113 = vadd.f32 %v1106, %v1111
  %1114 = vst.msk [vmem:[%s7] sm:$0xff] %vm45, %v1113
  %s1115 = scalar_lea.vmem %s0, 8
  %v1116 = vld [vmem:[%s1115] sm:$0xff]
  %v1118 = vsel %vm45, %v1116, 0
  %1120 = vmatprep.subr.mxu0 0.0
  %1121 = vmatpush1.msra.mxu0 %v26
  %1122 = vmatprep.subr.mxu0 0.0
  %1123 = vmatpush1.msra.mxu0 %v27
  %1124 = vmatprep.subr.mxu0 0.0
  %1125 = vmatpush1.msra.mxu0 %v28
  %1126 = vmatprep.subr.mxu0 0.0
  %1127 = vmatpush1.msra.mxu0 %v29
  %1128 = vmatprep.subr.mxu0 0.0
  %1129 = vmatpush1.msra.mxu0 0.0
  %1130 = vmatprep.subr.mxu0 0.0
  %1131 = vmatpush1.msra.mxu0 0.0
  %1132 = vmatprep.subr.mxu0 0.0
  %1133 = vmatpush1.msra.mxu0 0.0
  %1134 = vmatprep.subr.mxu0 0.0
  %1135 = vmatpush1.msra.mxu0 0.0
  %1136 = vmatprep.subr.mxu0 0.0
  %1137 = vmatpush1.msra.mxu0 0.0
  %1138 = vmatprep.subr.mxu0 0.0
  %1139 = vmatpush1.msra.mxu0 0.0
  %1140 = vmatprep.subr.mxu0 0.0
  %1141 = vmatpush1.msra.mxu0 0.0
  %1142 = vmatprep.subr.mxu0 0.0
  %1143 = vmatpush1.msra.mxu0 0.0
  %1144 = vmatprep.subr.mxu0 0.0
  %1145 = vmatpush1.msra.mxu0 0.0
  %1146 = vmatprep.subr.mxu0 0.0
  %1147 = vmatpush1.msra.mxu0 0.0
  %1148 = vmatprep.subr.mxu0 0.0
  %1149 = vmatpush1.msra.mxu0 0.0
  %1150 = vmatprep.subr.mxu0 0.0
  %1151 = vmatpush1.msra.mxu0 0.0
  %1152 = vmatprep.subr.mxu0 0.0
  %1153 = vmatpush1.msra.mxu0 0.0
  %1154 = vmatprep.subr.mxu0 0.0
  %1155 = vmatpush1.msra.mxu0 0.0
  %1156 = vmatprep.subr.mxu0 0.0
  %1157 = vmatpush1.msra.mxu0 0.0
  %1158 = vmatprep.subr.mxu0 0.0
  %1159 = vmatpush1.msra.mxu0 0.0
  %1160 = vmatprep.subr.mxu0 0.0
  %1161 = vmatpush1.msra.mxu0 0.0
  %1162 = vmatprep.subr.mxu0 0.0
  %1163 = vmatpush1.msra.mxu0 0.0
  %1164 = vmatprep.subr.mxu0 0.0
  %1165 = vmatpush1.msra.mxu0 0.0
  %1166 = vmatprep.subr.mxu0 0.0
  %1167 = vmatpush1.msra.mxu0 0.0
  %1168 = vmatprep.subr.mxu0 0.0
  %1169 = vmatpush1.msra.mxu0 0.0
  %1170 = vmatprep.subr.mxu0 0.0
  %1171 = vmatpush1.msra.mxu0 0.0
  %1172 = vmatprep.subr.mxu0 0.0
  %1173 = vmatpush1.msra.mxu0 0.0
  %1174 = vmatprep.subr.mxu0 0.0
  %1175 = vmatpush1.msra.mxu0 0.0
  %1176 = vmatprep.subr.mxu0 0.0
  %1177 = vmatpush1.msra.mxu0 0.0
  %1178 = vmatprep.subr.mxu0 0.0
  %1179 = vmatpush1.msra.mxu0 0.0
  %1180 = vmatprep.subr.mxu0 0.0
  %1181 = vmatpush1.msra.mxu0 0.0
  %1182 = vmatprep.subr.mxu0 0.0
  %1183 = vmatpush1.msra.mxu0 0.0
  %1184 = vmatprep.mubr.f32.mxu0 0.0
  %1185 = vmatmul.mubr.f32.gmra.mrb[0].mxu0 %v1118
  %v1186 = vpop.f32.mrb[0].mxu0
  %v1187 = vadd.f32 %v43, %v1186
  %v1188 = vpop.f32.mrb[0].mxu0
  %1189 = vdwg.mxu0
  %1191 = vrot.lane.b32.xlu0 %v1187, 96
  %v1192 = vpop.permute.xlu0 %1191
  %v1193 = vsel %vm122, %v1187, 0
  %v1195 = vsel %vm122, %v1192, 0
  %1197 = vmatprep.subr.mxu0 0.0
  %1198 = vmatpush1.xpose.msra.mxu0 %v1195
  %1199 = vmatprep.subr.mxu0 0.0
  %1200 = vmatpush1.xpose.msra.mxu0 0.0
  %1201 = vmatprep.subr.mxu0 0.0
  %1202 = vmatpush1.xpose.msra.mxu0 0.0
  %1203 = vmatprep.subr.mxu0 0.0
  %1204 = vmatpush1.xpose.msra.mxu0 0.0
  %1205 = vmatprep.subr.mxu0 0.0
  %1206 = vmatpush1.xpose.msra.mxu0 0.0
  %1207 = vmatprep.subr.mxu0 0.0
  %1208 = vmatpush1.xpose.msra.mxu0 0.0
  %1209 = vmatprep.subr.mxu0 0.0
  %1210 = vmatpush1.xpose.msra.mxu0 0.0
  %1211 = vmatprep.subr.mxu0 0.0
  %1212 = vmatpush1.xpose.msra.mxu0 0.0
  %1213 = vmatprep.subr.mxu0 0.0
  %1214 = vmatpush1.xpose.msra.mxu0 0.0
  %1215 = vmatprep.subr.mxu0 0.0
  %1216 = vmatpush1.xpose.msra.mxu0 0.0
  %1217 = vmatprep.subr.mxu0 0.0
  %1218 = vmatpush1.xpose.msra.mxu0 0.0
  %1219 = vmatprep.subr.mxu0 0.0
  %1220 = vmatpush1.xpose.msra.mxu0 0.0
  %1221 = vmatprep.subr.mxu0 0.0
  %1222 = vmatpush1.xpose.msra.mxu0 0.0
  %1223 = vmatprep.subr.mxu0 0.0
  %1224 = vmatpush1.xpose.msra.mxu0 0.0
  %1225 = vmatprep.subr.mxu0 0.0
  %1226 = vmatpush1.xpose.msra.mxu0 0.0
  %1227 = vmatprep.subr.mxu0 0.0
  %1228 = vmatpush1.xpose.msra.mxu0 0.0
  %1229 = vmatprep.subr.mxu0 0.0
  %1230 = vmatpush1.xpose.msra.mxu0 0.0
  %1231 = vmatprep.subr.mxu0 0.0
  %1232 = vmatpush1.xpose.msra.mxu0 0.0
  %1233 = vmatprep.subr.mxu0 0.0
  %1234 = vmatpush1.xpose.msra.mxu0 0.0
  %1235 = vmatprep.subr.mxu0 0.0
  %1236 = vmatpush1.xpose.msra.mxu0 0.0
  %1237 = vmatprep.subr.mxu0 0.0
  %1238 = vmatpush1.xpose.msra.mxu0 0.0
  %1239 = vmatprep.subr.mxu0 0.0
  %1240 = vmatpush1.xpose.msra.mxu0 0.0
  %1241 = vmatprep.subr.mxu0 0.0
  %1242 = vmatpush1.xpose.msra.mxu0 0.0
  %1243 = vmatprep.subr.mxu0 0.0
  %1244 = vmatpush1.xpose.msra.mxu0 0.0
  %1245 = vmatprep.subr.mxu0 0.0
  %1246 = vmatpush1.xpose.msra.mxu0 0.0
  %1247 = vmatprep.subr.mxu0 0.0
  %1248 = vmatpush1.xpose.msra.mxu0 0.0
  %1249 = vmatprep.subr.mxu0 0.0
  %1250 = vmatpush1.xpose.msra.mxu0 0.0
  %1251 = vmatprep.subr.mxu0 0.0
  %1252 = vmatpush1.xpose.msra.mxu0 0.0
  %1253 = vmatprep.subr.mxu0 0.0
  %1254 = vmatpush1.xpose.msra.mxu0 0.0
  %1255 = vmatprep.subr.mxu0 0.0
  %1256 = vmatpush1.xpose.msra.mxu0 0.0
  %1257 = vmatprep.subr.mxu0 0.0
  %1258 = vmatpush1.xpose.msra.mxu0 0.0
  %1259 = vmatprep.subr.mxu0 0.0
  %1260 = vmatpush1.xpose.msra.mxu0 0.0
  %1261 = vmatprep.mubr.f32.mxu0 0.0
  %1262 = vmatmul.mubr.f32.gmra.mrb[0].mxu0 %v1193
  %v1263 = vpop.f32.mrb[0].mxu0
  %v1264 = vadd.f32 0.0, %v1263
  %v1265 = vpop.f32.mrb[0].mxu0
  %1266 = vdwg.mxu0
  %v1267 = vmul.f32 %v1264, 0.35355338
  %v1268 = vsel %vm122, %v1267, -inf
  %1269 = vmax.xlane.f32.xlu0 %v1268
  %v1270 = vpop.xlane.xlu0 %1269
  %v1271 = vsub.f32 %v1267, %v1270
  %v1272 = vmul.f32 %v1271, 1.442695
  %v1273 = vpow.pop %v1272
  %v1274 = vsel %vm122, %v1273, 0.0
  %1275 = vadd.xlane.f32.xlu0 %v1274
  %v1276 = vpop.xlane.xlu0 %1275
  %v1277 = vrcp.pop %v1276
  %v1278 = vmul.f32 %v1273, %v1277
  %1279 = vrot.lane.b32.xlu0 %v1187, 64
  %v1280 = vpop.permute.xlu0 %1279
  %v1283 = vsel %vm122, %v1278, 0
  %1285 = vmatprep.subr.mxu0 0.0
  %1286 = vmatpush1.msra.mxu0 %v1280
  %1287 = vmatprep.subr.mxu0 0.0
  %1288 = vmatpush1.msra.mxu0 0.0
  %1289 = vmatprep.subr.mxu0 0.0
  %1290 = vmatpush1.msra.mxu0 0.0
  %1291 = vmatprep.subr.mxu0 0.0
  %1292 = vmatpush1.msra.mxu0 0.0
  %1293 = vmatprep.subr.mxu0 0.0
  %1294 = vmatpush1.msra.mxu0 0.0
  %1295 = vmatprep.subr.mxu0 0.0
  %1296 = vmatpush1.msra.mxu0 0.0
  %1297 = vmatprep.subr.mxu0 0.0
  %1298 = vmatpush1.msra.mxu0 0.0
  %1299 = vmatprep.subr.mxu0 0.0
  %1300 = vmatpush1.msra.mxu0 0.0
  %1301 = vmatprep.subr.mxu0 0.0
  %1302 = vmatpush1.msra.mxu0 0.0
  %1303 = vmatprep.subr.mxu0 0.0
  %1304 = vmatpush1.msra.mxu0 0.0
  %1305 = vmatprep.subr.mxu0 0.0
  %1306 = vmatpush1.msra.mxu0 0.0
  %1307 = vmatprep.subr.mxu0 0.0
  %1308 = vmatpush1.msra.mxu0 0.0
  %1309 = vmatprep.subr.mxu0 0.0
  %1310 = vmatpush1.msra.mxu0 0.0
  %1311 = vmatprep.subr.mxu0 0.0
  %1312 = vmatpush1.msra.mxu0 0.0
  %1313 = vmatprep.subr.mxu0 0.0
  %1314 = vmatpush1.msra.mxu0 0.0
  %1315 = vmatprep.subr.mxu0 0.0
  %1316 = vmatpush1.msra.mxu0 0.0
  %1317 = vmatprep.subr.mxu0 0.0
  %1318 = vmatpush1.msra.mxu0 0.0
  %1319 = vmatprep.subr.mxu0 0.0
  %1320 = vmatpush1.msra.mxu0 0.0
  %1321 = vmatprep.subr.mxu0 0.0
  %1322 = vmatpush1.msra.mxu0 0.0
  %1323 = vmatprep.subr.mxu0 0.0
  %1324 = vmatpush1.msra.mxu0 0.0
  %1325 = vmatprep.subr.mxu0 0.0
  %1326 = vmatpush1.msra.mxu0 0.0
  %1327 = vmatprep.subr.mxu0 0.0
  %1328 = vmatpush1.msra.mxu0 0.0
  %1329 = vmatprep.subr.mxu0 0.0
  %1330 = vmatpush1.msra.mxu0 0.0
  %1331 = vmatprep.subr.mxu0 0.0
  %1332 = vmatpush1.msra.mxu0 0.0
  %1333 = vmatprep.subr.mxu0 0.0
  %1334 = vmatpush1.msra.mxu0 0.0
  %1335 = vmatprep.subr.mxu0 0.0
  %1336 = vmatpush1.msra.mxu0 0.0
  %1337 = vmatprep.subr.mxu0 0.0
  %1338 = vmatpush1.msra.mxu0 0.0
  %1339 = vmatprep.subr.mxu0 0.0
  %1340 = vmatpush1.msra.mxu0 0.0
  %1341 = vmatprep.subr.mxu0 0.0
  %1342 = vmatpush1.msra.mxu0 0.0
  %1343 = vmatprep.subr.mxu0 0.0
  %1344 = vmatpush1.msra.mxu0 0.0
  %1345 = vmatprep.subr.mxu0 0.0
  %1346 = vmatpush1.msra.mxu0 0.0
  %1347 = vmatprep.subr.mxu0 0.0
  %1348 = vmatpush1.msra.mxu0 0.0
  %1349 = vmatprep.mubr.f32.mxu0 0.0
  %1350 = vmatmul.mubr.f32.gmra.mrb[0].mxu0 %v1283
  %v1351 = vpop.f32.mrb[0].mxu0
  %v1352 = vadd.f32 0.0, %v1351
  %v1353 = vpop.f32.mrb[0].mxu0
  %1354 = vdwg.mxu0
  %v1356 = vsel %vm122, %v1352, 0
  %1358 = vmatprep.subr.mxu0 0.0
  %1359 = vmatpush1.msra.mxu0 %v31
  %1360 = vmatprep.subr.mxu0 0.0
  %1361 = vmatpush1.msra.mxu0 0.0
  %1362 = vmatprep.subr.mxu0 0.0
  %1363 = vmatpush1.msra.mxu0 0.0
  %1364 = vmatprep.subr.mxu0 0.0
  %1365 = vmatpush1.msra.mxu0 0.0
  %1366 = vmatprep.subr.mxu0 0.0
  %1367 = vmatpush1.msra.mxu0 0.0
  %1368 = vmatprep.subr.mxu0 0.0
  %1369 = vmatpush1.msra.mxu0 0.0
  %1370 = vmatprep.subr.mxu0 0.0
  %1371 = vmatpush1.msra.mxu0 0.0
  %1372 = vmatprep.subr.mxu0 0.0
  %1373 = vmatpush1.msra.mxu0 0.0
  %1374 = vmatprep.subr.mxu0 0.0
  %1375 = vmatpush1.msra.mxu0 0.0
  %1376 = vmatprep.subr.mxu0 0.0
  %1377 = vmatpush1.msra.mxu0 0.0
  %1378 = vmatprep.subr.mxu0 0.0
  %1379 = vmatpush1.msra.mxu0 0.0
  %1380 = vmatprep.subr.mxu0 0.0
  %1381 = vmatpush1.msra.mxu0 0.0
  %1382 = vmatprep.subr.mxu0 0.0
  %1383 = vmatpush1.msra.mxu0 0.0
  %1384 = vmatprep.subr.mxu0 0.0
  %1385 = vmatpush1.msra.mxu0 0.0
  %1386 = vmatprep.subr.mxu0 0.0
  %1387 = vmatpush1.msra.mxu0 0.0
  %1388 = vmatprep.subr.mxu0 0.0
  %1389 = vmatpush1.msra.mxu0 0.0
  %1390 = vmatprep.subr.mxu0 0.0
  %1391 = vmatpush1.msra.mxu0 0.0
  %1392 = vmatprep.subr.mxu0 0.0
  %1393 = vmatpush1.msra.mxu0 0.0
  %1394 = vmatprep.subr.mxu0 0.0
  %1395 = vmatpush1.msra.mxu0 0.0
  %1396 = vmatprep.subr.mxu0 0.0
  %1397 = vmatpush1.msra.mxu0 0.0
  %1398 = vmatprep.subr.mxu0 0.0
  %1399 = vmatpush1.msra.mxu0 0.0
  %1400 = vmatprep.subr.mxu0 0.0
  %1401 = vmatpush1.msra.mxu0 0.0
  %1402 = vmatprep.subr.mxu0 0.0
  %1403 = vmatpush1.msra.mxu0 0.0
  %1404 = vmatprep.subr.mxu0 0.0
  %1405 = vmatpush1.msra.mxu0 0.0
  %1406 = vmatprep.subr.mxu0 0.0
  %1407 = vmatpush1.msra.mxu0 0.0
  %1408 = vmatprep.subr.mxu0 0.0
  %1409 = vmatpush1.msra.mxu0 0.0
  %1410 = vmatprep.subr.mxu0 0.0
  %1411 = vmatpush1.msra.mxu0 0.0
  %1412 = vmatprep.subr.mxu0 0.0
  %1413 = vmatpush1.msra.mxu0 0.0
  %1414 = vmatprep.subr.mxu0 0.0
  %1415 = vmatpush1.msra.mxu0 0.0
  %1416 = vmatprep.subr.mxu0 0.0
  %1417 = vmatpush1.msra.mxu0 0.0
  %1418 = vmatprep.subr.mxu0 0.0
  %1419 = vmatpush1.msra.mxu0 0.0
  %1420 = vmatprep.subr.mxu0 0.0
  %1421 = vmatpush1.msra.mxu0 0.0
  %1422 = vmatprep.mubr.f32.mxu0 0.0
  %1423 = vmatmul.mubr.f32.gmra.mrb[0].mxu0 %v1356
  %v1424 = vpop.f32.mrb[0].mxu0
  %v1425 = vadd.f32 0.0, %v1424
  %v1426 = vpop.f32.mrb[0].mxu0
  %1427 = vdwg.mxu0
  %v1428 = vadd.f32 %v362, %v1425
  %1429 = vrot.lane.b32.xlu0 %v1187, 120
  %v1430 = vpop.permute.xlu0 %1429
  %1431 = vrot.lane.b32.xlu0 %v1187, 88
  %v1432 = vpop.permute.xlu0 %1431
  %v1433 = vsel %vm122, %v1430, 0
  %v1435 = vsel %vm122, %v1432, 0
  %1437 = vmatprep.subr.mxu0 0.0
  %1438 = vmatpush1.xpose.msra.mxu0 %v1435
  %1439 = vmatprep.subr.mxu0 0.0
  %1440 = vmatpush1.xpose.msra.mxu0 0.0
  %1441 = vmatprep.subr.mxu0 0.0
  %1442 = vmatpush1.xpose.msra.mxu0 0.0
  %1443 = vmatprep.subr.mxu0 0.0
  %1444 = vmatpush1.xpose.msra.mxu0 0.0
  %1445 = vmatprep.subr.mxu0 0.0
  %1446 = vmatpush1.xpose.msra.mxu0 0.0
  %1447 = vmatprep.subr.mxu0 0.0
  %1448 = vmatpush1.xpose.msra.mxu0 0.0
  %1449 = vmatprep.subr.mxu0 0.0
  %1450 = vmatpush1.xpose.msra.mxu0 0.0
  %1451 = vmatprep.subr.mxu0 0.0
  %1452 = vmatpush1.xpose.msra.mxu0 0.0
  %1453 = vmatprep.subr.mxu0 0.0
  %1454 = vmatpush1.xpose.msra.mxu0 0.0
  %1455 = vmatprep.subr.mxu0 0.0
  %1456 = vmatpush1.xpose.msra.mxu0 0.0
  %1457 = vmatprep.subr.mxu0 0.0
  %1458 = vmatpush1.xpose.msra.mxu0 0.0
  %1459 = vmatprep.subr.mxu0 0.0
  %1460 = vmatpush1.xpose.msra.mxu0 0.0
  %1461 = vmatprep.subr.mxu0 0.0
  %1462 = vmatpush1.xpose.msra.mxu0 0.0
  %1463 = vmatprep.subr.mxu0 0.0
  %1464 = vmatpush1.xpose.msra.mxu0 0.0
  %1465 = vmatprep.subr.mxu0 0.0
  %1466 = vmatpush1.xpose.msra.mxu0 0.0
  %1467 = vmatprep.subr.mxu0 0.0
  %1468 = vmatpush1.xpose.msra.mxu0 0.0
  %1469 = vmatprep.subr.mxu0 0.0
  %1470 = vmatpush1.xpose.msra.mxu0 0.0
  %1471 = vmatprep.subr.mxu0 0.0
  %1472 = vmatpush1.xpose.msra.mxu0 0.0
  %1473 = vmatprep.subr.mxu0 0.0
  %1474 = vmatpush1.xpose.msra.mxu0 0.0
  %1475 = vmatprep.subr.mxu0 0.0
  %1476 = vmatpush1.xpose.msra.mxu0 0.0
  %1477 = vmatprep.subr.mxu0 0.0
  %1478 = vmatpush1.xpose.msra.mxu0 0.0
  %1479 = vmatprep.subr.mxu0 0.0
  %1480 = vmatpush1.xpose.msra.mxu0 0.0
  %1481 = vmatprep.subr.mxu0 0.0
  %1482 = vmatpush1.xpose.msra.mxu0 0.0
  %1483 = vmatprep.subr.mxu0 0.0
  %1484 = vmatpush1.xpose.msra.mxu0 0.0
  %1485 = vmatprep.subr.mxu0 0.0
  %1486 = vmatpush1.xpose.msra.mxu0 0.0
  %1487 = vmatprep.subr.mxu0 0.0
  %1488 = vmatpush1.xpose.msra.mxu0 0.0
  %1489 = vmatprep.subr.mxu0 0.0
  %1490 = vmatpush1.xpose.msra.mxu0 0.0
  %1491 = vmatprep.subr.mxu0 0.0
  %1492 = vmatpush1.xpose.msra.mxu0 0.0
  %1493 = vmatprep.subr.mxu0 0.0
  %1494 = vmatpush1.xpose.msra.mxu0 0.0
  %1495 = vmatprep.subr.mxu0 0.0
  %1496 = vmatpush1.xpose.msra.mxu0 0.0
  %1497 = vmatprep.subr.mxu0 0.0
  %1498 = vmatpush1.xpose.msra.mxu0 0.0
  %1499 = vmatprep.subr.mxu0 0.0
  %1500 = vmatpush1.xpose.msra.mxu0 0.0
  %1501 = vmatprep.mubr.f32.mxu0 0.0
  %1502 = vmatmul.mubr.f32.gmra.mrb[0].mxu0 %v1433
  %v1503 = vpop.f32.mrb[0].mxu0
  %v1504 = vadd.f32 0.0, %v1503
  %v1505 = vpop.f32.mrb[0].mxu0
  %1506 = vdwg.mxu0
  %v1507 = vmul.f32 %v1504, 0.35355338
  %v1508 = vsel %vm122, %v1507, -inf
  %1509 = vmax.xlane.f32.xlu0 %v1508
  %v1510 = vpop.xlane.xlu0 %1509
  %v1511 = vsub.f32 %v1507, %v1510
  %v1512 = vmul.f32 %v1511, 1.442695
  %v1513 = vpow.pop %v1512
  %v1514 = vsel %vm122, %v1513, 0.0
  %1515 = vadd.xlane.f32.xlu0 %v1514
  %v1516 = vpop.xlane.xlu0 %1515
  %v1517 = vrcp.pop %v1516
  %v1518 = vmul.f32 %v1513, %v1517
  %1519 = vrot.lane.b32.xlu0 %v1187, 56
  %v1520 = vpop.permute.xlu0 %1519
  %v1523 = vsel %vm122, %v1518, 0
  %1525 = vmatprep.subr.mxu0 0.0
  %1526 = vmatpush1.msra.mxu0 %v1520
  %1527 = vmatprep.subr.mxu0 0.0
  %1528 = vmatpush1.msra.mxu0 0.0
  %1529 = vmatprep.subr.mxu0 0.0
  %1530 = vmatpush1.msra.mxu0 0.0
  %1531 = vmatprep.subr.mxu0 0.0
  %1532 = vmatpush1.msra.mxu0 0.0
  %1533 = vmatprep.subr.mxu0 0.0
  %1534 = vmatpush1.msra.mxu0 0.0
  %1535 = vmatprep.subr.mxu0 0.0
  %1536 = vmatpush1.msra.mxu0 0.0
  %1537 = vmatprep.subr.mxu0 0.0
  %1538 = vmatpush1.msra.mxu0 0.0
  %1539 = vmatprep.subr.mxu0 0.0
  %1540 = vmatpush1.msra.mxu0 0.0
  %1541 = vmatprep.subr.mxu0 0.0
  %1542 = vmatpush1.msra.mxu0 0.0
  %1543 = vmatprep.subr.mxu0 0.0
  %1544 = vmatpush1.msra.mxu0 0.0
  %1545 = vmatprep.subr.mxu0 0.0
  %1546 = vmatpush1.msra.mxu0 0.0
  %1547 = vmatprep.subr.mxu0 0.0
  %1548 = vmatpush1.msra.mxu0 0.0
  %1549 = vmatprep.subr.mxu0 0.0
  %1550 = vmatpush1.msra.mxu0 0.0
  %1551 = vmatprep.subr.mxu0 0.0
  %1552 = vmatpush1.msra.mxu0 0.0
  %1553 = vmatprep.subr.mxu0 0.0
  %1554 = vmatpush1.msra.mxu0 0.0
  %1555 = vmatprep.subr.mxu0 0.0
  %1556 = vmatpush1.msra.mxu0 0.0
  %1557 = vmatprep.subr.mxu0 0.0
  %1558 = vmatpush1.msra.mxu0 0.0
  %1559 = vmatprep.subr.mxu0 0.0
  %1560 = vmatpush1.msra.mxu0 0.0
  %1561 = vmatprep.subr.mxu0 0.0
  %1562 = vmatpush1.msra.mxu0 0.0
  %1563 = vmatprep.subr.mxu0 0.0
  %1564 = vmatpush1.msra.mxu0 0.0
  %1565 = vmatprep.subr.mxu0 0.0
  %1566 = vmatpush1.msra.mxu0 0.0
  %1567 = vmatprep.subr.mxu0 0.0
  %1568 = vmatpush1.msra.mxu0 0.0
  %1569 = vmatprep.subr.mxu0 0.0
  %1570 = vmatpush1.msra.mxu0 0.0
  %1571 = vmatprep.subr.mxu0 0.0
  %1572 = vmatpush1.msra.mxu0 0.0
  %1573 = vmatprep.subr.mxu0 0.0
  %1574 = vmatpush1.msra.mxu0 0.0
  %1575 = vmatprep.subr.mxu0 0.0
  %1576 = vmatpush1.msra.mxu0 0.0
  %1577 = vmatprep.subr.mxu0 0.0
  %1578 = vmatpush1.msra.mxu0 0.0
  %1579 = vmatprep.subr.mxu0 0.0
  %1580 = vmatpush1.msra.mxu0 0.0
  %1581 = vmatprep.subr.mxu0 0.0
  %1582 = vmatpush1.msra.mxu0 0.0
  %1583 = vmatprep.subr.mxu0 0.0
  %1584 = vmatpush1.msra.mxu0 0.0
  %1585 = vmatprep.subr.mxu0 0.0
  %1586 = vmatpush1.msra.mxu0 0.0
  %1587 = vmatprep.subr.mxu0 0.0
  %1588 = vmatpush1.msra.mxu0 0.0
  %1589 = vmatprep.mubr.f32.mxu0 0.0
  %1590 = vmatmul.mubr.f32.gmra.mrb[0].mxu0 %v1523
  %v1591 = vpop.f32.mrb[0].mxu0
  %v1592 = vadd.f32 0.0, %v1591
  %v1593 = vpop.f32.mrb[0].mxu0
  %1594 = vdwg.mxu0
  %v1596 = vsel %vm122, %v1592, 0
  %1598 = vmatprep.subr.mxu0 0.0
  %1599 = vmatpush1.msra.mxu0 %v32
  %1600 = vmatprep.subr.mxu0 0.0
  %1601 = vmatpush1.msra.mxu0 0.0
  %1602 = vmatprep.subr.mxu0 0.0
  %1603 = vmatpush1.msra.mxu0 0.0
  %1604 = vmatprep.subr.mxu0 0.0
  %1605 = vmatpush1.msra.mxu0 0.0
  %1606 = vmatprep.subr.mxu0 0.0
  %1607 = vmatpush1.msra.mxu0 0.0
  %1608 = vmatprep.subr.mxu0 0.0
  %1609 = vmatpush1.msra.mxu0 0.0
  %1610 = vmatprep.subr.mxu0 0.0
  %1611 = vmatpush1.msra.mxu0 0.0
  %1612 = vmatprep.subr.mxu0 0.0
  %1613 = vmatpush1.msra.mxu0 0.0
  %1614 = vmatprep.subr.mxu0 0.0
  %1615 = vmatpush1.msra.mxu0 0.0
  %1616 = vmatprep.subr.mxu0 0.0
  %1617 = vmatpush1.msra.mxu0 0.0
  %1618 = vmatprep.subr.mxu0 0.0
  %1619 = vmatpush1.msra.mxu0 0.0
  %1620 = vmatprep.subr.mxu0 0.0
  %1621 = vmatpush1.msra.mxu0 0.0
  %1622 = vmatprep.subr.mxu0 0.0
  %1623 = vmatpush1.msra.mxu0 0.0
  %1624 = vmatprep.subr.mxu0 0.0
  %1625 = vmatpush1.msra.mxu0 0.0
  %1626 = vmatprep.subr.mxu0 0.0
  %1627 = vmatpush1.msra.mxu0 0.0
  %1628 = vmatprep.subr.mxu0 0.0
  %1629 = vmatpush1.msra.mxu0 0.0
  %1630 = vmatprep.subr.mxu0 0.0
  %1631 = vmatpush1.msra.mxu0 0.0
  %1632 = vmatprep.subr.mxu0 0.0
  %1633 = vmatpush1.msra.mxu0 0.0
  %1634 = vmatprep.subr.mxu0 0.0
  %1635 = vmatpush1.msra.mxu0 0.0
  %1636 = vmatprep.subr.mxu0 0.0
  %1637 = vmatpush1.msra.mxu0 0.0
  %1638 = vmatprep.subr.mxu0 0.0
  %1639 = vmatpush1.msra.mxu0 0.0
  %1640 = vmatprep.subr.mxu0 0.0
  %1641 = vmatpush1.msra.mxu0 0.0
  %1642 = vmatprep.subr.mxu0 0.0
  %1643 = vmatpush1.msra.mxu0 0.0
  %1644 = vmatprep.subr.mxu0 0.0
  %1645 = vmatpush1.msra.mxu0 0.0
  %1646 = vmatprep.subr.mxu0 0.0
  %1647 = vmatpush1.msra.mxu0 0.0
  %1648 = vmatprep.subr.mxu0 0.0
  %1649 = vmatpush1.msra.mxu0 0.0
  %1650 = vmatprep.subr.mxu0 0.0
  %1651 = vmatpush1.msra.mxu0 0.0
  %1652 = vmatprep.subr.mxu0 0.0
  %1653 = vmatpush1.msra.mxu0 0.0
  %1654 = vmatprep.subr.mxu0 0.0
  %1655 = vmatpush1.msra.mxu0 0.0
  %1656 = vmatprep.subr.mxu0 0.0
  %1657 = vmatpush1.msra.mxu0 0.0
  %1658 = vmatprep.subr.mxu0 0.0
  %1659 = vmatpush1.msra.mxu0 0.0
  %1660 = vmatprep.subr.mxu0 0.0
  %1661 = vmatpush1.msra.mxu0 0.0
  %1662 = vmatprep.mubr.f32.mxu0 0.0
  %1663 = vmatmul.mubr.f32.gmra.mrb[0].mxu0 %v1596
  %v1664 = vpop.f32.mrb[0].mxu0
  %v1665 = vadd.f32 0.0, %v1664
  %v1666 = vpop.f32.mrb[0].mxu0
  %1667 = vdwg.mxu0
  %v1668 = vadd.f32 %v1428, %v1665
  %1669 = vrot.lane.b32.xlu0 %v1187, 112
  %v1670 = vpop.permute.xlu0 %1669
  %1671 = vrot.lane.b32.xlu0 %v1187, 80
  %v1672 = vpop.permute.xlu0 %1671
  %v1673 = vsel %vm122, %v1670, 0
  %v1675 = vsel %vm122, %v1672, 0
  %1677 = vmatprep.subr.mxu0 0.0
  %1678 = vmatpush1.xpose.msra.mxu0 %v1675
  %1679 = vmatprep.subr.mxu0 0.0
  %1680 = vmatpush1.xpose.msra.mxu0 0.0
  %1681 = vmatprep.subr.mxu0 0.0
  %1682 = vmatpush1.xpose.msra.mxu0 0.0
  %1683 = vmatprep.subr.mxu0 0.0
  %1684 = vmatpush1.xpose.msra.mxu0 0.0
  %1685 = vmatprep.subr.mxu0 0.0
  %1686 = vmatpush1.xpose.msra.mxu0 0.0
  %1687 = vmatprep.subr.mxu0 0.0
  %1688 = vmatpush1.xpose.msra.mxu0 0.0
  %1689 = vmatprep.subr.mxu0 0.0
  %1690 = vmatpush1.xpose.msra.mxu0 0.0
  %1691 = vmatprep.subr.mxu0 0.0
  %1692 = vmatpush1.xpose.msra.mxu0 0.0
  %1693 = vmatprep.subr.mxu0 0.0
  %1694 = vmatpush1.xpose.msra.mxu0 0.0
  %1695 = vmatprep.subr.mxu0 0.0
  %1696 = vmatpush1.xpose.msra.mxu0 0.0
  %1697 = vmatprep.subr.mxu0 0.0
  %1698 = vmatpush1.xpose.msra.mxu0 0.0
  %1699 = vmatprep.subr.mxu0 0.0
  %1700 = vmatpush1.xpose.msra.mxu0 0.0
  %1701 = vmatprep.subr.mxu0 0.0
  %1702 = vmatpush1.xpose.msra.mxu0 0.0
  %1703 = vmatprep.subr.mxu0 0.0
  %1704 = vmatpush1.xpose.msra.mxu0 0.0
  %1705 = vmatprep.subr.mxu0 0.0
  %1706 = vmatpush1.xpose.msra.mxu0 0.0
  %1707 = vmatprep.subr.mxu0 0.0
  %1708 = vmatpush1.xpose.msra.mxu0 0.0
  %1709 = vmatprep.subr.mxu0 0.0
  %1710 = vmatpush1.xpose.msra.mxu0 0.0
  %1711 = vmatprep.subr.mxu0 0.0
  %1712 = vmatpush1.xpose.msra.mxu0 0.0
  %1713 = vmatprep.subr.mxu0 0.0
  %1714 = vmatpush1.xpose.msra.mxu0 0.0
  %1715 = vmatprep.subr.mxu0 0.0
  %1716 = vmatpush1.xpose.msra.mxu0 0.0
  %1717 = vmatprep.subr.mxu0 0.0
  %1718 = vmatpush1.xpose.msra.mxu0 0.0
  %1719 = vmatprep.subr.mxu0 0.0
  %1720 = vmatpush1.xpose.msra.mxu0 0.0
  %1721 = vmatprep.subr.mxu0 0.0
  %1722 = vmatpush1.xpose.msra.mxu0 0.0
  %1723 = vmatprep.subr.mxu0 0.0
  %1724 = vmatpush1.xpose.msra.mxu0 0.0
  %1725 = vmatprep.subr.mxu0 0.0
  %1726 = vmatpush1.xpose.msra.mxu0 0.0
  %1727 = vmatprep.subr.mxu0 0.0
  %1728 = vmatpush1.xpose.msra.mxu0 0.0
  %1729 = vmatprep.subr.mxu0 0.0
  %1730 = vmatpush1.xpose.msra.mxu0 0.0
  %1731 = vmatprep.subr.mxu0 0.0
  %1732 = vmatpush1.xpose.msra.mxu0 0.0
  %1733 = vmatprep.subr.mxu0 0.0
  %1734 = vmatpush1.xpose.msra.mxu0 0.0
  %1735 = vmatprep.subr.mxu0 0.0
  %1736 = vmatpush1.xpose.msra.mxu0 0.0
  %1737 = vmatprep.subr.mxu0 0.0
  %1738 = vmatpush1.xpose.msra.mxu0 0.0
  %1739 = vmatprep.subr.mxu0 0.0
  %1740 = vmatpush1.xpose.msra.mxu0 0.0
  %1741 = vmatprep.mubr.f32.mxu0 0.0
  %1742 = vmatmul.mubr.f32.gmra.mrb[0].mxu0 %v1673
  %v1743 = vpop.f32.mrb[0].mxu0
  %v1744 = vadd.f32 0.0, %v1743
  %v1745 = vpop.f32.mrb[0].mxu0
  %1746 = vdwg.mxu0
  %v1747 = vmul.f32 %v1744, 0.35355338
  %v1748 = vsel %vm122, %v1747, -inf
  %1749 = vmax.xlane.f32.xlu0 %v1748
  %v1750 = vpop.xlane.xlu0 %1749
  %v1751 = vsub.f32 %v1747, %v1750
  %v1752 = vmul.f32 %v1751, 1.442695
  %v1753 = vpow.pop %v1752
  %v1754 = vsel %vm122, %v1753, 0.0
  %1755 = vadd.xlane.f32.xlu0 %v1754
  %v1756 = vpop.xlane.xlu0 %1755
  %v1757 = vrcp.pop %v1756
  %v1758 = vmul.f32 %v1753, %v1757
  %1759 = vrot.lane.b32.xlu0 %v1187, 48
  %v1760 = vpop.permute.xlu0 %1759
  %v1763 = vsel %vm122, %v1758, 0
  %1765 = vmatprep.subr.mxu0 0.0
  %1766 = vmatpush1.msra.mxu0 %v1760
  %1767 = vmatprep.subr.mxu0 0.0
  %1768 = vmatpush1.msra.mxu0 0.0
  %1769 = vmatprep.subr.mxu0 0.0
  %1770 = vmatpush1.msra.mxu0 0.0
  %1771 = vmatprep.subr.mxu0 0.0
  %1772 = vmatpush1.msra.mxu0 0.0
  %1773 = vmatprep.subr.mxu0 0.0
  %1774 = vmatpush1.msra.mxu0 0.0
  %1775 = vmatprep.subr.mxu0 0.0
  %1776 = vmatpush1.msra.mxu0 0.0
  %1777 = vmatprep.subr.mxu0 0.0
  %1778 = vmatpush1.msra.mxu0 0.0
  %1779 = vmatprep.subr.mxu0 0.0
  %1780 = vmatpush1.msra.mxu0 0.0
  %1781 = vmatprep.subr.mxu0 0.0
  %1782 = vmatpush1.msra.mxu0 0.0
  %1783 = vmatprep.subr.mxu0 0.0
  %1784 = vmatpush1.msra.mxu0 0.0
  %1785 = vmatprep.subr.mxu0 0.0
  %1786 = vmatpush1.msra.mxu0 0.0
  %1787 = vmatprep.subr.mxu0 0.0
  %1788 = vmatpush1.msra.mxu0 0.0
  %1789 = vmatprep.subr.mxu0 0.0
  %1790 = vmatpush1.msra.mxu0 0.0
  %1791 = vmatprep.subr.mxu0 0.0
  %1792 = vmatpush1.msra.mxu0 0.0
  %1793 = vmatprep.subr.mxu0 0.0
  %1794 = vmatpush1.msra.mxu0 0.0
  %1795 = vmatprep.subr.mxu0 0.0
  %1796 = vmatpush1.msra.mxu0 0.0
  %1797 = vmatprep.subr.mxu0 0.0
  %1798 = vmatpush1.msra.mxu0 0.0
  %1799 = vmatprep.subr.mxu0 0.0
  %1800 = vmatpush1.msra.mxu0 0.0
  %1801 = vmatprep.subr.mxu0 0.0
  %1802 = vmatpush1.msra.mxu0 0.0
  %1803 = vmatprep.subr.mxu0 0.0
  %1804 = vmatpush1.msra.mxu0 0.0
  %1805 = vmatprep.subr.mxu0 0.0
  %1806 = vmatpush1.msra.mxu0 0.0
  %1807 = vmatprep.subr.mxu0 0.0
  %1808 = vmatpush1.msra.mxu0 0.0
  %1809 = vmatprep.subr.mxu0 0.0
  %1810 = vmatpush1.msra.mxu0 0.0
  %1811 = vmatprep.subr.mxu0 0.0
  %1812 = vmatpush1.msra.mxu0 0.0
  %1813 = vmatprep.subr.mxu0 0.0
  %1814 = vmatpush1.msra.mxu0 0.0
  %1815 = vmatprep.subr.mxu0 0.0
  %1816 = vmatpush1.msra.mxu0 0.0
  %1817 = vmatprep.subr.mxu0 0.0
  %1818 = vmatpush1.msra.mxu0 0.0
  %1819 = vmatprep.subr.mxu0 0.0
  %1820 = vmatpush1.msra.mxu0 0.0
  %1821 = vmatprep.subr.mxu0 0.0
  %1822 = vmatpush1.msra.mxu0 0.0
  %1823 = vmatprep.subr.mxu0 0.0
  %1824 = vmatpush1.msra.mxu0 0.0
  %1825 = vmatprep.subr.mxu0 0.0
  %1826 = vmatpush1.msra.mxu0 0.0
  %1827 = vmatprep.subr.mxu0 0.0
  %1828 = vmatpush1.msra.mxu0 0.0
  %1829 = vmatprep.mubr.f32.mxu0 0.0
  %1830 = vmatmul.mubr.f32.gmra.mrb[0].mxu0 %v1763
  %v1831 = vpop.f32.mrb[0].mxu0
  %v1832 = vadd.f32 0.0, %v1831
  %v1833 = vpop.f32.mrb[0].mxu0
  %1834 = vdwg.mxu0
  %v1836 = vsel %vm122, %v1832, 0
  %1838 = vmatprep.subr.mxu0 0.0
  %1839 = vmatpush1.msra.mxu0 %v33
  %1840 = vmatprep.subr.mxu0 0.0
  %1841 = vmatpush1.msra.mxu0 0.0
  %1842 = vmatprep.subr.mxu0 0.0
  %1843 = vmatpush1.msra.mxu0 0.0
  %1844 = vmatprep.subr.mxu0 0.0
  %1845 = vmatpush1.msra.mxu0 0.0
  %1846 = vmatprep.subr.mxu0 0.0
  %1847 = vmatpush1.msra.mxu0 0.0
  %1848 = vmatprep.subr.mxu0 0.0
  %1849 = vmatpush1.msra.mxu0 0.0
  %1850 = vmatprep.subr.mxu0 0.0
  %1851 = vmatpush1.msra.mxu0 0.0
  %1852 = vmatprep.subr.mxu0 0.0
  %1853 = vmatpush1.msra.mxu0 0.0
  %1854 = vmatprep.subr.mxu0 0.0
  %1855 = vmatpush1.msra.mxu0 0.0
  %1856 = vmatprep.subr.mxu0 0.0
  %1857 = vmatpush1.msra.mxu0 0.0
  %1858 = vmatprep.subr.mxu0 0.0
  %1859 = vmatpush1.msra.mxu0 0.0
  %1860 = vmatprep.subr.mxu0 0.0
  %1861 = vmatpush1.msra.mxu0 0.0
  %1862 = vmatprep.subr.mxu0 0.0
  %1863 = vmatpush1.msra.mxu0 0.0
  %1864 = vmatprep.subr.mxu0 0.0
  %1865 = vmatpush1.msra.mxu0 0.0
  %1866 = vmatprep.subr.mxu0 0.0
  %1867 = vmatpush1.msra.mxu0 0.0
  %1868 = vmatprep.subr.mxu0 0.0
  %1869 = vmatpush1.msra.mxu0 0.0
  %1870 = vmatprep.subr.mxu0 0.0
  %1871 = vmatpush1.msra.mxu0 0.0
  %1872 = vmatprep.subr.mxu0 0.0
  %1873 = vmatpush1.msra.mxu0 0.0
  %1874 = vmatprep.subr.mxu0 0.0
  %1875 = vmatpush1.msra.mxu0 0.0
  %1876 = vmatprep.subr.mxu0 0.0
  %1877 = vmatpush1.msra.mxu0 0.0
  %1878 = vmatprep.subr.mxu0 0.0
  %1879 = vmatpush1.msra.mxu0 0.0
  %1880 = vmatprep.subr.mxu0 0.0
  %1881 = vmatpush1.msra.mxu0 0.0
  %1882 = vmatprep.subr.mxu0 0.0
  %1883 = vmatpush1.msra.mxu0 0.0
  %1884 = vmatprep.subr.mxu0 0.0
  %1885 = vmatpush1.msra.mxu0 0.0
  %1886 = vmatprep.subr.mxu0 0.0
  %1887 = vmatpush1.msra.mxu0 0.0
  %1888 = vmatprep.subr.mxu0 0.0
  %1889 = vmatpush1.msra.mxu0 0.0
  %1890 = vmatprep.subr.mxu0 0.0
  %1891 = vmatpush1.msra.mxu0 0.0
  %1892 = vmatprep.subr.mxu0 0.0
  %1893 = vmatpush1.msra.mxu0 0.0
  %1894 = vmatprep.subr.mxu0 0.0
  %1895 = vmatpush1.msra.mxu0 0.0
  %1896 = vmatprep.subr.mxu0 0.0
  %1897 = vmatpush1.msra.mxu0 0.0
  %1898 = vmatprep.subr.mxu0 0.0
  %1899 = vmatpush1.msra.mxu0 0.0
  %1900 = vmatprep.subr.mxu0 0.0
  %1901 = vmatpush1.msra.mxu0 0.0
  %1902 = vmatprep.mubr.f32.mxu0 0.0
  %1903 = vmatmul.mubr.f32.gmra.mrb[0].mxu0 %v1836
  %v1904 = vpop.f32.mrb[0].mxu0
  %v1905 = vadd.f32 0.0, %v1904
  %v1906 = vpop.f32.mrb[0].mxu0
  %1907 = vdwg.mxu0
  %v1908 = vadd.f32 %v1668, %v1905
  %1909 = vrot.lane.b32.xlu0 %v1187, 104
  %v1910 = vpop.permute.xlu0 %1909
  %1911 = vrot.lane.b32.xlu0 %v1187, 72
  %v1912 = vpop.permute.xlu0 %1911
  %v1913 = vsel %vm122, %v1910, 0
  %v1915 = vsel %vm122, %v1912, 0
  %1917 = vmatprep.subr.mxu0 0.0
  %1918 = vmatpush1.xpose.msra.mxu0 %v1915
  %1919 = vmatprep.subr.mxu0 0.0
  %1920 = vmatpush1.xpose.msra.mxu0 0.0
  %1921 = vmatprep.subr.mxu0 0.0
  %1922 = vmatpush1.xpose.msra.mxu0 0.0
  %1923 = vmatprep.subr.mxu0 0.0
  %1924 = vmatpush1.xpose.msra.mxu0 0.0
  %1925 = vmatprep.subr.mxu0 0.0
  %1926 = vmatpush1.xpose.msra.mxu0 0.0
  %1927 = vmatprep.subr.mxu0 0.0
  %1928 = vmatpush1.xpose.msra.mxu0 0.0
  %1929 = vmatprep.subr.mxu0 0.0
  %1930 = vmatpush1.xpose.msra.mxu0 0.0
  %1931 = vmatprep.subr.mxu0 0.0
  %1932 = vmatpush1.xpose.msra.mxu0 0.0
  %1933 = vmatprep.subr.mxu0 0.0
  %1934 = vmatpush1.xpose.msra.mxu0 0.0
  %1935 = vmatprep.subr.mxu0 0.0
  %1936 = vmatpush1.xpose.msra.mxu0 0.0
  %1937 = vmatprep.subr.mxu0 0.0
  %1938 = vmatpush1.xpose.msra.mxu0 0.0
  %1939 = vmatprep.subr.mxu0 0.0
  %1940 = vmatpush1.xpose.msra.mxu0 0.0
  %1941 = vmatprep.subr.mxu0 0.0
  %1942 = vmatpush1.xpose.msra.mxu0 0.0
  %1943 = vmatprep.subr.mxu0 0.0
  %1944 = vmatpush1.xpose.msra.mxu0 0.0
  %1945 = vmatprep.subr.mxu0 0.0
  %1946 = vmatpush1.xpose.msra.mxu0 0.0
  %1947 = vmatprep.subr.mxu0 0.0
  %1948 = vmatpush1.xpose.msra.mxu0 0.0
  %1949 = vmatprep.subr.mxu0 0.0
  %1950 = vmatpush1.xpose.msra.mxu0 0.0
  %1951 = vmatprep.subr.mxu0 0.0
  %1952 = vmatpush1.xpose.msra.mxu0 0.0
  %1953 = vmatprep.subr.mxu0 0.0
  %1954 = vmatpush1.xpose.msra.mxu0 0.0
  %1955 = vmatprep.subr.mxu0 0.0
  %1956 = vmatpush1.xpose.msra.mxu0 0.0
  %1957 = vmatprep.subr.mxu0 0.0
  %1958 = vmatpush1.xpose.msra.mxu0 0.0
  %1959 = vmatprep.subr.mxu0 0.0
  %1960 = vmatpush1.xpose.msra.mxu0 0.0
  %1961 = vmatprep.subr.mxu0 0.0
  %1962 = vmatpush1.xpose.msra.mxu0 0.0
  %1963 = vmatprep.subr.mxu0 0.0
  %1964 = vmatpush1.xpose.msra.mxu0 0.0
  %1965 = vmatprep.subr.mxu0 0.0
  %1966 = vmatpush1.xpose.msra.mxu0 0.0
  %1967 = vmatprep.subr.mxu0 0.0
  %1968 = vmatpush1.xpose.msra.mxu0 0.0
  %1969 = vmatprep.subr.mxu0 0.0
  %1970 = vmatpush1.xpose.msra.mxu0 0.0
  %1971 = vmatprep.subr.mxu0 0.0
  %1972 = vmatpush1.xpose.msra.mxu0 0.0
  %1973 = vmatprep.subr.mxu0 0.0
  %1974 = vmatpush1.xpose.msra.mxu0 0.0
  %1975 = vmatprep.subr.mxu0 0.0
  %1976 = vmatpush1.xpose.msra.mxu0 0.0
  %1977 = vmatprep.subr.mxu0 0.0
  %1978 = vmatpush1.xpose.msra.mxu0 0.0
  %1979 = vmatprep.subr.mxu0 0.0
  %1980 = vmatpush1.xpose.msra.mxu0 0.0
  %1981 = vmatprep.mubr.f32.mxu0 0.0
  %1982 = vmatmul.mubr.f32.gmra.mrb[0].mxu0 %v1913
  %v1983 = vpop.f32.mrb[0].mxu0
  %v1984 = vadd.f32 0.0, %v1983
  %v1985 = vpop.f32.mrb[0].mxu0
  %1986 = vdwg.mxu0
  %v1987 = vmul.f32 %v1984, 0.35355338
  %v1988 = vsel %vm122, %v1987, -inf
  %1989 = vmax.xlane.f32.xlu0 %v1988
  %v1990 = vpop.xlane.xlu0 %1989
  %v1991 = vsub.f32 %v1987, %v1990
  %v1992 = vmul.f32 %v1991, 1.442695
  %v1993 = vpow.pop %v1992
  %v1994 = vsel %vm122, %v1993, 0.0
  %1995 = vadd.xlane.f32.xlu0 %v1994
  %v1996 = vpop.xlane.xlu0 %1995
  %v1997 = vrcp.pop %v1996
  %v1998 = vmul.f32 %v1993, %v1997
  %1999 = vrot.lane.b32.xlu0 %v1187, 40
  %v2000 = vpop.permute.xlu0 %1999
  %v2003 = vsel %vm122, %v1998, 0
  %2005 = vmatprep.subr.mxu0 0.0
  %2006 = vmatpush1.msra.mxu0 %v2000
  %2007 = vmatprep.subr.mxu0 0.0
  %2008 = vmatpush1.msra.mxu0 0.0
  %2009 = vmatprep.subr.mxu0 0.0
  %2010 = vmatpush1.msra.mxu0 0.0
  %2011 = vmatprep.subr.mxu0 0.0
  %2012 = vmatpush1.msra.mxu0 0.0
  %2013 = vmatprep.subr.mxu0 0.0
  %2014 = vmatpush1.msra.mxu0 0.0
  %2015 = vmatprep.subr.mxu0 0.0
  %2016 = vmatpush1.msra.mxu0 0.0
  %2017 = vmatprep.subr.mxu0 0.0
  %2018 = vmatpush1.msra.mxu0 0.0
  %2019 = vmatprep.subr.mxu0 0.0
  %2020 = vmatpush1.msra.mxu0 0.0
  %2021 = vmatprep.subr.mxu0 0.0
  %2022 = vmatpush1.msra.mxu0 0.0
  %2023 = vmatprep.subr.mxu0 0.0
  %2024 = vmatpush1.msra.mxu0 0.0
  %2025 = vmatprep.subr.mxu0 0.0
  %2026 = vmatpush1.msra.mxu0 0.0
  %2027 = vmatprep.subr.mxu0 0.0
  %2028 = vmatpush1.msra.mxu0 0.0
  %2029 = vmatprep.subr.mxu0 0.0
  %2030 = vmatpush1.msra.mxu0 0.0
  %2031 = vmatprep.subr.mxu0 0.0
  %2032 = vmatpush1.msra.mxu0 0.0
  %2033 = vmatprep.subr.mxu0 0.0
  %2034 = vmatpush1.msra.mxu0 0.0
  %2035 = vmatprep.subr.mxu0 0.0
  %2036 = vmatpush1.msra.mxu0 0.0
  %2037 = vmatprep.subr.mxu0 0.0
  %2038 = vmatpush1.msra.mxu0 0.0
  %2039 = vmatprep.subr.mxu0 0.0
  %2040 = vmatpush1.msra.mxu0 0.0
  %2041 = vmatprep.subr.mxu0 0.0
  %2042 = vmatpush1.msra.mxu0 0.0
  %2043 = vmatprep.subr.mxu0 0.0
  %2044 = vmatpush1.msra.mxu0 0.0
  %2045 = vmatprep.subr.mxu0 0.0
  %2046 = vmatpush1.msra.mxu0 0.0
  %2047 = vmatprep.subr.mxu0 0.0
  %2048 = vmatpush1.msra.mxu0 0.0
  %2049 = vmatprep.subr.mxu0 0.0
  %2050 = vmatpush1.msra.mxu0 0.0
  %2051 = vmatprep.subr.mxu0 0.0
  %2052 = vmatpush1.msra.mxu0 0.0
  %2053 = vmatprep.subr.mxu0 0.0
  %2054 = vmatpush1.msra.mxu0 0.0
  %2055 = vmatprep.subr.mxu0 0.0
  %2056 = vmatpush1.msra.mxu0 0.0
  %2057 = vmatprep.subr.mxu0 0.0
  %2058 = vmatpush1.msra.mxu0 0.0
  %2059 = vmatprep.subr.mxu0 0.0
  %2060 = vmatpush1.msra.mxu0 0.0
  %2061 = vmatprep.subr.mxu0 0.0
  %2062 = vmatpush1.msra.mxu0 0.0
  %2063 = vmatprep.subr.mxu0 0.0
  %2064 = vmatpush1.msra.mxu0 0.0
  %2065 = vmatprep.subr.mxu0 0.0
  %2066 = vmatpush1.msra.mxu0 0.0
  %2067 = vmatprep.subr.mxu0 0.0
  %2068 = vmatpush1.msra.mxu0 0.0
  %2069 = vmatprep.mubr.f32.mxu0 0.0
  %2070 = vmatmul.mubr.f32.gmra.mrb[0].mxu0 %v2003
  %v2071 = vpop.f32.mrb[0].mxu0
  %v2072 = vadd.f32 0.0, %v2071
  %v2073 = vpop.f32.mrb[0].mxu0
  %2074 = vdwg.mxu0
  %v2076 = vsel %vm122, %v2072, 0
  %2078 = vmatprep.subr.mxu0 0.0
  %2079 = vmatpush1.msra.mxu0 %v34
  %2080 = vmatprep.subr.mxu0 0.0
  %2081 = vmatpush1.msra.mxu0 0.0
  %2082 = vmatprep.subr.mxu0 0.0
  %2083 = vmatpush1.msra.mxu0 0.0
  %2084 = vmatprep.subr.mxu0 0.0
  %2085 = vmatpush1.msra.mxu0 0.0
  %2086 = vmatprep.subr.mxu0 0.0
  %2087 = vmatpush1.msra.mxu0 0.0
  %2088 = vmatprep.subr.mxu0 0.0
  %2089 = vmatpush1.msra.mxu0 0.0
  %2090 = vmatprep.subr.mxu0 0.0
  %2091 = vmatpush1.msra.mxu0 0.0
  %2092 = vmatprep.subr.mxu0 0.0
  %2093 = vmatpush1.msra.mxu0 0.0
  %2094 = vmatprep.subr.mxu0 0.0
  %2095 = vmatpush1.msra.mxu0 0.0
  %2096 = vmatprep.subr.mxu0 0.0
  %2097 = vmatpush1.msra.mxu0 0.0
  %2098 = vmatprep.subr.mxu0 0.0
  %2099 = vmatpush1.msra.mxu0 0.0
  %2100 = vmatprep.subr.mxu0 0.0
  %2101 = vmatpush1.msra.mxu0 0.0
  %2102 = vmatprep.subr.mxu0 0.0
  %2103 = vmatpush1.msra.mxu0 0.0
  %2104 = vmatprep.subr.mxu0 0.0
  %2105 = vmatpush1.msra.mxu0 0.0
  %2106 = vmatprep.subr.mxu0 0.0
  %2107 = vmatpush1.msra.mxu0 0.0
  %2108 = vmatprep.subr.mxu0 0.0
  %2109 = vmatpush1.msra.mxu0 0.0
  %2110 = vmatprep.subr.mxu0 0.0
  %2111 = vmatpush1.msra.mxu0 0.0
  %2112 = vmatprep.subr.mxu0 0.0
  %2113 = vmatpush1.msra.mxu0 0.0
  %2114 = vmatprep.subr.mxu0 0.0
  %2115 = vmatpush1.msra.mxu0 0.0
  %2116 = vmatprep.subr.mxu0 0.0
  %2117 = vmatpush1.msra.mxu0 0.0
  %2118 = vmatprep.subr.mxu0 0.0
  %2119 = vmatpush1.msra.mxu0 0.0
  %2120 = vmatprep.subr.mxu0 0.0
  %2121 = vmatpush1.msra.mxu0 0.0
  %2122 = vmatprep.subr.mxu0 0.0
  %2123 = vmatpush1.msra.mxu0 0.0
  %2124 = vmatprep.subr.mxu0 0.0
  %2125 = vmatpush1.msra.mxu0 0.0
  %2126 = vmatprep.subr.mxu0 0.0
  %2127 = vmatpush1.msra.mxu0 0.0
  %2128 = vmatprep.subr.mxu0 0.0
  %2129 = vmatpush1.msra.mxu0 0.0
  %2130 = vmatprep.subr.mxu0 0.0
  %2131 = vmatpush1.msra.mxu0 0.0
  %2132 = vmatprep.subr.mxu0 0.0
  %2133 = vmatpush1.msra.mxu0 0.0
  %2134 = vmatprep.subr.mxu0 0.0
  %2135 = vmatpush1.msra.mxu0 0.0
  %2136 = vmatprep.subr.mxu0 0.0
  %2137 = vmatpush1.msra.mxu0 0.0
  %2138 = vmatprep.subr.mxu0 0.0
  %2139 = vmatpush1.msra.mxu0 0.0
  %2140 = vmatprep.subr.mxu0 0.0
  %2141 = vmatpush1.msra.mxu0 0.0
  %2142 = vmatprep.mubr.f32.mxu0 0.0
  %2143 = vmatmul.mubr.f32.gmra.mrb[0].mxu0 %v2076
  %v2144 = vpop.f32.mrb[0].mxu0
  %v2145 = vadd.f32 0.0, %v2144
  %v2146 = vpop.f32.mrb[0].mxu0
  %2147 = vdwg.mxu0
  %v2148 = vadd.f32 %v1908, %v2145
  %v2149 = vadd.f32 %v1116, %v2148
  %v2150 = vsel %vm45, %v2149, 0.0
  %2151 = vadd.xlane.f32.xlu0 %v2150
  %v2152 = vpop.xlane.xlu0 %2151
  %v2153 = vmul.f32 %v2152, %v1089
  %v2154 = vsub.f32 %v2149, %v2153
  %v2155 = vmul.f32 %v2154, %v2154
  %v2156 = vsel %vm45, %v2155, 0.0
  %2157 = vadd.xlane.f32.xlu0 %v2156
  %v2158 = vpop.xlane.xlu0 %2157
  %v2159 = vmul.f32 %v2158, %v1089
  %v2160 = vadd.f32 %v2159, 1e-05
  %v2161 = vrsqrt.pop %v2160
  %v2162 = vmul.f32 %v2154, %v2161
  %v2163 = vmul.f32 %v2162, %v1104
  %v2164 = vadd.f32 %v2163, %v1111
  %s2165 = scalar_lea.vmem %s7, 8
  %2166 = vst.msk [vmem:[%s2165] sm:$0xff] %vm45, %v2164
  // Predicated region
  $region30: #{transformer_mkii_forward.12} parent=0 // pred_check
    _
  $region31: #{transformer_mkii_forward.12} parent=0 // pred_check_branch
    %2168 = sbr.rel (0) target = $region33
  $region32: #{transformer_mkii_forward.12} parent=0 // pred_region
    _
  $region33: #{transformer_mkii_forward.12} parent=0 // pred_fallthru
    _
  // Predicated region
  $region34: #{transformer_mkii_forward.12} parent=0 // pred_check
    _
  $region35: #{transformer_mkii_forward.12} parent=0 // pred_check_branch
    %2170 = sbr.rel (0) target = $region37
  $region36: #{transformer_mkii_forward.12} parent=0 // pred_region
    _
  $region37: #{transformer_mkii_forward.12} parent=0 // pred_fallthru
    _

// kernel: transformer_mkii_forward.17
$region0: #{transformer_mkii_forward.17}
  #allocation0 [shape = 'u32[]', space=smem, size = 0x4, offset = 0x4, fixed_abs, tag = 'smem constant byte address 0x4 - core index']
  #allocation1 [shape = 'u32[144,128]{1,0:T(1,128)}', space=vmem, size = 0x12000, scoped, tag = 'internal scratch']
  %s0 = inlined_call_operand.vmem [shape: f32[2,8,32], index: 0, kind: input, shape index: {}]
  %s1 = inlined_call_operand.vmem [shape: f32[32,96], index: 1, kind: input, shape index: {}]
  %s2 = inlined_call_operand.vmem [shape: f32[1,96], index: 2, kind: input, shape index: {}]
  %s3 = inlined_call_operand.vmem [shape: f32[32,32], index: 3, kind: input, shape index: {}]
  %s4 = inlined_call_operand.vmem [shape: f32[1,32], index: 4, kind: input, shape index: {}]
  %s5 = inlined_call_operand.vmem [shape: f32[1,32], index: 5, kind: input, shape index: {}]
  %s6 = inlined_call_operand.vmem [shape: f32[1,32], index: 6, kind: input, shape index: {}]
  %s7 = inlined_call_operand.vmem [shape: f32[8,8], index: 7, kind: input, shape index: {}]
  %s8 = inlined_call_operand.vmem [shape: f32[2,8,32], index: 8, kind: output, shape index: {}]
  %s9 = sld [smem:[#allocation0]]
  $region42: #{transformer_mkii_forward.17} parent=0
    _
  %s11 = ssub.s32 1, %s9
  %s12 = scalar_select 0, %s11, %s9
  // Predicated region
  $region2: #{transformer_mkii_forward.17} parent=0 // pred_check
    _
  $region3: #{transformer_mkii_forward.17} parent=0 // pred_check_branch
    %14 = sbr.rel (0) target = $region5
  $region4: #{transformer_mkii_forward.17} parent=0 // pred_region
    _
  $region5: #{transformer_mkii_forward.17} parent=0 // pred_fallthru
    _
  // Predicated region
  $region6: #{transformer_mkii_forward.17} parent=0 // pred_check
    _
  $region7: #{transformer_mkii_forward.17} parent=0 // pred_check_branch
    %16 = sbr.rel (0) target = $region9
  $region8: #{transformer_mkii_forward.17} parent=0 // pred_region
    _
  $region9: #{transformer_mkii_forward.17} parent=0 // pred_fallthru
    _
  // Predicated region
  $region10: #{transformer_mkii_forward.17} parent=0 // pred_check
    _
  $region11: #{transformer_mkii_forward.17} parent=0 // pred_check_branch
    %18 = sbr.rel (0) target = $region13
  $region12: #{transformer_mkii_forward.17} parent=0 // pred_region
    _
  $region13: #{transformer_mkii_forward.17} parent=0 // pred_fallthru
    _
  // Predicated region
  $region14: #{transformer_mkii_forward.17} parent=0 // pred_check
    _
  $region15: #{transformer_mkii_forward.17} parent=0 // pred_check_branch
    %20 = sbr.rel (0) target = $region17
  $region16: #{transformer_mkii_forward.17} parent=0 // pred_region
    _
  $region17: #{transformer_mkii_forward.17} parent=0 // pred_fallthru
    _
  // Predicated region
  $region18: #{transformer_mkii_forward.17} parent=0 // pred_check
    _
  $region19: #{transformer_mkii_forward.17} parent=0 // pred_check_branch
    %22 = sbr.rel (0) target = $region21
  $region20: #{transformer_mkii_forward.17} parent=0 // pred_region
    _
  $region21: #{transformer_mkii_forward.17} parent=0 // pred_fallthru
    _
  // Predicated region
  $region22: #{transformer_mkii_forward.17} parent=0 // pred_check
    _
  $region23: #{transformer_mkii_forward.17} parent=0 // pred_check_branch
    %24 = sbr.rel (0) target = $region25
  $region24: #{transformer_mkii_forward.17} parent=0 // pred_region
    _
  $region25: #{transformer_mkii_forward.17} parent=0 // pred_fallthru
    _
  // Predicated region
  $region26: #{transformer_mkii_forward.17} parent=0 // pred_check
    _
  $region27: #{transformer_mkii_forward.17} parent=0 // pred_check_branch
    %26 = sbr.rel (0) target = $region29
  $region28: #{transformer_mkii_forward.17} parent=0 // pred_region
    _
  $region29: #{transformer_mkii_forward.17} parent=0 // pred_fallthru
    _
  // Predicated region
  $region30: #{transformer_mkii_forward.17} parent=0 // pred_check
    _
  $region31: #{transformer_mkii_forward.17} parent=0 // pred_check_branch
    %28 = sbr.rel (0) target = $region33
  $region32: #{transformer_mkii_forward.17} parent=0 // pred_region
    _
  $region33: #{transformer_mkii_forward.17} parent=0 // pred_fallthru
    _
  %v29 = vld [vmem:[%s1] sm:$0xff]
  %v30 = vld [vmem:[%s1 + $0x8] sm:$0xff]
  %v31 = vld [vmem:[%s1 + $0x10] sm:$0xff]
  %v32 = vld [vmem:[%s1 + $0x18] sm:$0xff]
  %v33 = vld [vmem:[%s2] sm:$0x1]
  %v34 = vld [vmem:[%s3] sm:$0xff]
  %v35 = vld [vmem:[%s3 + $0x8] sm:$0xff]
  %v36 = vld [vmem:[%s3 + $0x10] sm:$0xff]
  %v37 = vld [vmem:[%s3 + $0x18] sm:$0xff]
  %v38 = vld [vmem:[%s4] sm:$0x1]
  %v39 = vld [vmem:[%s5] sm:$0x1]
  %v40 = vld [vmem:[%s6] sm:$0x1]
  %v41 = vld [vmem:[%s7] sm:$0xff]
  %v42 = vld [vmem:[%s0] sm:$0xff]
  %v44 = vlaneseq
  %v45 = vshrl.u32 %v44, 7
  %v46 = vsub.s32 0, %v45
  %v47 = vrot.slane %v33, %v46
  %vm49 = vcmask 261120
  %v51 = vsel %vm49, %v42, 0
  %53 = vmatprep.subr.mxu0 0.0
  %54 = vmatpush1.msra.mxu0 %v29
  %55 = vmatprep.subr.mxu0 0.0
  %56 = vmatpush1.msra.mxu0 %v30
  %57 = vmatprep.subr.mxu0 0.0
  %58 = vmatpush1.msra.mxu0 %v31
  %59 = vmatprep.subr.mxu0 0.0
  %60 = vmatpush1.msra.mxu0 %v32
  %61 = vmatprep.subr.mxu0 0.0
  %62 = vmatpush1.msra.mxu0 0.0
  %63 = vmatprep.subr.mxu0 0.0
  %64 = vmatpush1.msra.mxu0 0.0
  %65 = vmatprep.subr.mxu0 0.0
  %66 = vmatpush1.msra.mxu0 0.0
  %67 = vmatprep.subr.mxu0 0.0
  %68 = vmatpush1.msra.mxu0 0.0
  %69 = vmatprep.subr.mxu0 0.0
  %70 = vmatpush1.msra.mxu0 0.0
  %71 = vmatprep.subr.mxu0 0.0
  %72 = vmatpush1.msra.mxu0 0.0
  %73 = vmatprep.subr.mxu0 0.0
  %74 = vmatpush1.msra.mxu0 0.0
  %75 = vmatprep.subr.mxu0 0.0
  %76 = vmatpush1.msra.mxu0 0.0
  %77 = vmatprep.subr.mxu0 0.0
  %78 = vmatpush1.msra.mxu0 0.0
  %79 = vmatprep.subr.mxu0 0.0
  %80 = vmatpush1.msra.mxu0 0.0
  %81 = vmatprep.subr.mxu0 0.0
  %82 = vmatpush1.msra.mxu0 0.0
  %83 = vmatprep.subr.mxu0 0.0
  %84 = vmatpush1.msra.mxu0 0.0
  %85 = vmatprep.subr.mxu0 0.0
  %86 = vmatpush1.msra.mxu0 0.0
  %87 = vmatprep.subr.mxu0 0.0
  %88 = vmatpush1.msra.mxu0 0.0
  %89 = vmatprep.subr.mxu0 0.0
  %90 = vmatpush1.msra.mxu0 0.0
  %91 = vmatprep.subr.mxu0 0.0
  %92 = vmatpush1.msra.mxu0 0.0
  %93 = vmatprep.subr.mxu0 0.0
  %94 = vmatpush1.msra.mxu0 0.0
  %95 = vmatprep.subr.mxu0 0.0
  %96 = vmatpush1.msra.mxu0 0.0
  %97 = vmatprep.subr.mxu0 0.0
  %98 = vmatpush1.msra.mxu0 0.0
  %99 = vmatprep.subr.mxu0 0.0
  %100 = vmatpush1.msra.mxu0 0.0
  %101 = vmatprep.subr.mxu0 0.0
  %102 = vmatpush1.msra.mxu0 0.0
  %103 = vmatprep.subr.mxu0 0.0
  %104 = vmatpush1.msra.mxu0 0.0
  %105 = vmatprep.subr.mxu0 0.0
  %106 = vmatpush1.msra.mxu0 0.0
  %107 = vmatprep.subr.mxu0 0.0
  %108 = vmatpush1.msra.mxu0 0.0
  %109 = vmatprep.subr.mxu0 0.0
  %110 = vmatpush1.msra.mxu0 0.0
  %111 = vmatprep.subr.mxu0 0.0
  %112 = vmatpush1.msra.mxu0 0.0
  %113 = vmatprep.subr.mxu0 0.0
  %114 = vmatpush1.msra.mxu0 0.0
  %115 = vmatprep.subr.mxu0 0.0
  %116 = vmatpush1.msra.mxu0 0.0
  %117 = vmatprep.mubr.f32.mxu0 0.0
  %118 = vmatmul.mubr.f32.gmra.mrb[0].mxu0 %v51
  %v119 = vpop.f32.mrb[0].mxu0
  %v120 = vadd.f32 %v47, %v119
  %v121 = vpop.f32.mrb[0].mxu0
  %122 = vdwg.mxu0
  %124 = vrot.lane.b32.xlu0 %v120, 96
  %v125 = vpop.permute.xlu0 %124
  %vm126 = vcmask 64512
  %v127 = vsel %vm126, %v120, 0
  %v129 = vsel %vm126, %v125, 0
  %131 = vmatprep.subr.mxu0 0.0
  %132 = vmatpush1.xpose.msra.mxu0 %v129
  %133 = vmatprep.subr.mxu0 0.0
  %134 = vmatpush1.xpose.msra.mxu0 0.0
  %135 = vmatprep.subr.mxu0 0.0
  %136 = vmatpush1.xpose.msra.mxu0 0.0
  %137 = vmatprep.subr.mxu0 0.0
  %138 = vmatpush1.xpose.msra.mxu0 0.0
  %139 = vmatprep.subr.mxu0 0.0
  %140 = vmatpush1.xpose.msra.mxu0 0.0
  %141 = vmatprep.subr.mxu0 0.0
  %142 = vmatpush1.xpose.msra.mxu0 0.0
  %143 = vmatprep.subr.mxu0 0.0
  %144 = vmatpush1.xpose.msra.mxu0 0.0
  %145 = vmatprep.subr.mxu0 0.0
  %146 = vmatpush1.xpose.msra.mxu0 0.0
  %147 = vmatprep.subr.mxu0 0.0
  %148 = vmatpush1.xpose.msra.mxu0 0.0
  %149 = vmatprep.subr.mxu0 0.0
  %150 = vmatpush1.xpose.msra.mxu0 0.0
  %151 = vmatprep.subr.mxu0 0.0
  %152 = vmatpush1.xpose.msra.mxu0 0.0
  %153 = vmatprep.subr.mxu0 0.0
  %154 = vmatpush1.xpose.msra.mxu0 0.0
  %155 = vmatprep.subr.mxu0 0.0
  %156 = vmatpush1.xpose.msra.mxu0 0.0
  %157 = vmatprep.subr.mxu0 0.0
  %158 = vmatpush1.xpose.msra.mxu0 0.0
  %159 = vmatprep.subr.mxu0 0.0
  %160 = vmatpush1.xpose.msra.mxu0 0.0
  %161 = vmatprep.subr.mxu0 0.0
  %162 = vmatpush1.xpose.msra.mxu0 0.0
  %163 = vmatprep.subr.mxu0 0.0
  %164 = vmatpush1.xpose.msra.mxu0 0.0
  %165 = vmatprep.subr.mxu0 0.0
  %166 = vmatpush1.xpose.msra.mxu0 0.0
  %167 = vmatprep.subr.mxu0 0.0
  %168 = vmatpush1.xpose.msra.mxu0 0.0
  %169 = vmatprep.subr.mxu0 0.0
  %170 = vmatpush1.xpose.msra.mxu0 0.0
  %171 = vmatprep.subr.mxu0 0.0
  %172 = vmatpush1.xpose.msra.mxu0 0.0
  %173 = vmatprep.subr.mxu0 0.0
  %174 = vmatpush1.xpose.msra.mxu0 0.0
  %175 = vmatprep.subr.mxu0 0.0
  %176 = vmatpush1.xpose.msra.mxu0 0.0
  %177 = vmatprep.subr.mxu0 0.0
  %178 = vmatpush1.xpose.msra.mxu0 0.0
  %179 = vmatprep.subr.mxu0 0.0
  %180 = vmatpush1.xpose.msra.mxu0 0.0
  %181 = vmatprep.subr.mxu0 0.0
  %182 = vmatpush1.xpose.msra.mxu0 0.0
  %183 = vmatprep.subr.mxu0 0.0
  %184 = vmatpush1.xpose.msra.mxu0 0.0
  %185 = vmatprep.subr.mxu0 0.0
  %186 = vmatpush1.xpose.msra.mxu0 0.0
  %187 = vmatprep.subr.mxu0 0.0
  %188 = vmatpush1.xpose.msra.mxu0 0.0
  %189 = vmatprep.subr.mxu0 0.0
  %190 = vmatpush1.xpose.msra.mxu0 0.0
  %191 = vmatprep.subr.mxu0 0.0
  %192 = vmatpush1.xpose.msra.mxu0 0.0
  %193 = vmatprep.subr.mxu0 0.0
  %194 = vmatpush1.xpose.msra.mxu0 0.0
  %195 = vmatprep.mubr.f32.mxu0 0.0
  %196 = vmatmul.mubr.f32.gmra.mrb[0].mxu0 %v127
  %v197 = vpop.f32.mrb[0].mxu0
  %v198 = vadd.f32 0.0, %v197
  %v199 = vpop.f32.mrb[0].mxu0
  %200 = vdwg.mxu0
  %v201 = vmul.f32 %v198, 0.35355338
  %v202 = vadd.f32 %v201, %v41
  %v203 = vsel %vm126, %v202, -inf
  %204 = vmax.xlane.f32.xlu0 %v203
  %v205 = vpop.xlane.xlu0 %204
  %v206 = vsub.f32 %v202, %v205
  %v207 = vmul.f32 %v206, 1.442695
  %v208 = vpow.pop %v207
  %v209 = vsel %vm126, %v208, 0.0
  %210 = vadd.xlane.f32.xlu0 %v209
  %v211 = vpop.xlane.xlu0 %210
  %v212 = vrcp.pop %v211
  %v213 = vmul.f32 %v208, %v212
  %214 = vrot.lane.b32.xlu0 %v120, 64
  %v215 = vpop.permute.xlu0 %214
  %v218 = vsel %vm126, %v213, 0
  %220 = vmatprep.subr.mxu0 0.0
  %221 = vmatpush1.msra.mxu0 %v215
  %222 = vmatprep.subr.mxu0 0.0
  %223 = vmatpush1.msra.mxu0 0.0
  %224 = vmatprep.subr.mxu0 0.0
  %225 = vmatpush1.msra.mxu0 0.0
  %226 = vmatprep.subr.mxu0 0.0
  %227 = vmatpush1.msra.mxu0 0.0
  %228 = vmatprep.subr.mxu0 0.0
  %229 = vmatpush1.msra.mxu0 0.0
  %230 = vmatprep.subr.mxu0 0.0
  %231 = vmatpush1.msra.mxu0 0.0
  %232 = vmatprep.subr.mxu0 0.0
  %233 = vmatpush1.msra.mxu0 0.0
  %234 = vmatprep.subr.mxu0 0.0
  %235 = vmatpush1.msra.mxu0 0.0
  %236 = vmatprep.subr.mxu0 0.0
  %237 = vmatpush1.msra.mxu0 0.0
  %238 = vmatprep.subr.mxu0 0.0
  %239 = vmatpush1.msra.mxu0 0.0
  %240 = vmatprep.subr.mxu0 0.0
  %241 = vmatpush1.msra.mxu0 0.0
  %242 = vmatprep.subr.mxu0 0.0
  %243 = vmatpush1.msra.mxu0 0.0
  %244 = vmatprep.subr.mxu0 0.0
  %245 = vmatpush1.msra.mxu0 0.0
  %246 = vmatprep.subr.mxu0 0.0
  %247 = vmatpush1.msra.mxu0 0.0
  %248 = vmatprep.subr.mxu0 0.0
  %249 = vmatpush1.msra.mxu0 0.0
  %250 = vmatprep.subr.mxu0 0.0
  %251 = vmatpush1.msra.mxu0 0.0
  %252 = vmatprep.subr.mxu0 0.0
  %253 = vmatpush1.msra.mxu0 0.0
  %254 = vmatprep.subr.mxu0 0.0
  %255 = vmatpush1.msra.mxu0 0.0
  %256 = vmatprep.subr.mxu0 0.0
  %257 = vmatpush1.msra.mxu0 0.0
  %258 = vmatprep.subr.mxu0 0.0
  %259 = vmatpush1.msra.mxu0 0.0
  %260 = vmatprep.subr.mxu0 0.0
  %261 = vmatpush1.msra.mxu0 0.0
  %262 = vmatprep.subr.mxu0 0.0
  %263 = vmatpush1.msra.mxu0 0.0
  %264 = vmatprep.subr.mxu0 0.0
  %265 = vmatpush1.msra.mxu0 0.0
  %266 = vmatprep.subr.mxu0 0.0
  %267 = vmatpush1.msra.mxu0 0.0
  %268 = vmatprep.subr.mxu0 0.0
  %269 = vmatpush1.msra.mxu0 0.0
  %270 = vmatprep.subr.mxu0 0.0
  %271 = vmatpush1.msra.mxu0 0.0
  %272 = vmatprep.subr.mxu0 0.0
  %273 = vmatpush1.msra.mxu0 0.0
  %274 = vmatprep.subr.mxu0 0.0
  %275 = vmatpush1.msra.mxu0 0.0
  %276 = vmatprep.subr.mxu0 0.0
  %277 = vmatpush1.msra.mxu0 0.0
  %278 = vmatprep.subr.mxu0 0.0
  %279 = vmatpush1.msra.mxu0 0.0
  %280 = vmatprep.subr.mxu0 0.0
  %281 = vmatpush1.msra.mxu0 0.0
  %282 = vmatprep.subr.mxu0 0.0
  %283 = vmatpush1.msra.mxu0 0.0
  %284 = vmatprep.mubr.f32.mxu0 0.0
  %285 = vmatmul.mubr.f32.gmra.mrb[0].mxu0 %v218
  %v286 = vpop.f32.mrb[0].mxu0
  %v287 = vadd.f32 0.0, %v286
  %v288 = vpop.f32.mrb[0].mxu0
  %289 = vdwg.mxu0
  %v291 = vsel %vm126, %v287, 0
  %293 = vmatprep.subr.mxu0 0.0
  %294 = vmatpush1.msra.mxu0 %v34
  %295 = vmatprep.subr.mxu0 0.0
  %296 = vmatpush1.msra.mxu0 0.0
  %297 = vmatprep.subr.mxu0 0.0
  %298 = vmatpush1.msra.mxu0 0.0
  %299 = vmatprep.subr.mxu0 0.0
  %300 = vmatpush1.msra.mxu0 0.0
  %301 = vmatprep.subr.mxu0 0.0
  %302 = vmatpush1.msra.mxu0 0.0
  %303 = vmatprep.subr.mxu0 0.0
  %304 = vmatpush1.msra.mxu0 0.0
  %305 = vmatprep.subr.mxu0 0.0
  %306 = vmatpush1.msra.mxu0 0.0
  %307 = vmatprep.subr.mxu0 0.0
  %308 = vmatpush1.msra.mxu0 0.0
  %309 = vmatprep.subr.mxu0 0.0
  %310 = vmatpush1.msra.mxu0 0.0
  %311 = vmatprep.subr.mxu0 0.0
  %312 = vmatpush1.msra.mxu0 0.0
  %313 = vmatprep.subr.mxu0 0.0
  %314 = vmatpush1.msra.mxu0 0.0
  %315 = vmatprep.subr.mxu0 0.0
  %316 = vmatpush1.msra.mxu0 0.0
  %317 = vmatprep.subr.mxu0 0.0
  %318 = vmatpush1.msra.mxu0 0.0
  %319 = vmatprep.subr.mxu0 0.0
  %320 = vmatpush1.msra.mxu0 0.0
  %321 = vmatprep.subr.mxu0 0.0
  %322 = vmatpush1.msra.mxu0 0.0
  %323 = vmatprep.subr.mxu0 0.0
  %324 = vmatpush1.msra.mxu0 0.0
  %325 = vmatprep.subr.mxu0 0.0
  %326 = vmatpush1.msra.mxu0 0.0
  %327 = vmatprep.subr.mxu0 0.0
  %328 = vmatpush1.msra.mxu0 0.0
  %329 = vmatprep.subr.mxu0 0.0
  %330 = vmatpush1.msra.mxu0 0.0
  %331 = vmatprep.subr.mxu0 0.0
  %332 = vmatpush1.msra.mxu0 0.0
  %333 = vmatprep.subr.mxu0 0.0
  %334 = vmatpush1.msra.mxu0 0.0
  %335 = vmatprep.subr.mxu0 0.0
  %336 = vmatpush1.msra.mxu0 0.0
  %337 = vmatprep.subr.mxu0 0.0
  %338 = vmatpush1.msra.mxu0 0.0
  %339 = vmatprep.subr.mxu0 0.0
  %340 = vmatpush1.msra.mxu0 0.0
  %341 = vmatprep.subr.mxu0 0.0
  %342 = vmatpush1.msra.mxu0 0.0
  %343 = vmatprep.subr.mxu0 0.0
  %344 = vmatpush1.msra.mxu0 0.0
  %345 = vmatprep.subr.mxu0 0.0
  %346 = vmatpush1.msra.mxu0 0.0
  %347 = vmatprep.subr.mxu0 0.0
  %348 = vmatpush1.msra.mxu0 0.0
  %349 = vmatprep.subr.mxu0 0.0
  %350 = vmatpush1.msra.mxu0 0.0
  %351 = vmatprep.subr.mxu0 0.0
  %352 = vmatpush1.msra.mxu0 0.0
  %353 = vmatprep.subr.mxu0 0.0
  %354 = vmatpush1.msra.mxu0 0.0
  %355 = vmatprep.subr.mxu0 0.0
  %356 = vmatpush1.msra.mxu0 0.0
  %357 = vmatprep.mubr.f32.mxu0 0.0
  %358 = vmatmul.mubr.f32.gmra.mrb[0].mxu0 %v291
  %v359 = vpop.f32.mrb[0].mxu0
  %v360 = vadd.f32 0.0, %v359
  %v361 = vpop.f32.mrb[0].mxu0
  %362 = vdwg.mxu0
  %v364 = vlaneseq
  %v365 = vshrl.u32 %v364, 7
  %v366 = vsub.s32 0, %v365
  %v367 = vrot.slane %v38, %v366
  %v369 = vadd.f32 %v367, %v360
  %370 = vrot.lane.b32.xlu0 %v120, 120
  %v371 = vpop.permute.xlu0 %370
  %372 = vrot.lane.b32.xlu0 %v120, 88
  %v373 = vpop.permute.xlu0 %372
  %v374 = vsel %vm126, %v371, 0
  %v376 = vsel %vm126, %v373, 0
  %378 = vmatprep.subr.mxu0 0.0
  %379 = vmatpush1.xpose.msra.mxu0 %v376
  %380 = vmatprep.subr.mxu0 0.0
  %381 = vmatpush1.xpose.msra.mxu0 0.0
  %382 = vmatprep.subr.mxu0 0.0
  %383 = vmatpush1.xpose.msra.mxu0 0.0
  %384 = vmatprep.subr.mxu0 0.0
  %385 = vmatpush1.xpose.msra.mxu0 0.0
  %386 = vmatprep.subr.mxu0 0.0
  %387 = vmatpush1.xpose.msra.mxu0 0.0
  %388 = vmatprep.subr.mxu0 0.0
  %389 = vmatpush1.xpose.msra.mxu0 0.0
  %390 = vmatprep.subr.mxu0 0.0
  %391 = vmatpush1.xpose.msra.mxu0 0.0
  %392 = vmatprep.subr.mxu0 0.0
  %393 = vmatpush1.xpose.msra.mxu0 0.0
  %394 = vmatprep.subr.mxu0 0.0
  %395 = vmatpush1.xpose.msra.mxu0 0.0
  %396 = vmatprep.subr.mxu0 0.0
  %397 = vmatpush1.xpose.msra.mxu0 0.0
  %398 = vmatprep.subr.mxu0 0.0
  %399 = vmatpush1.xpose.msra.mxu0 0.0
  %400 = vmatprep.subr.mxu0 0.0
  %401 = vmatpush1.xpose.msra.mxu0 0.0
  %402 = vmatprep.subr.mxu0 0.0
  %403 = vmatpush1.xpose.msra.mxu0 0.0
  %404 = vmatprep.subr.mxu0 0.0
  %405 = vmatpush1.xpose.msra.mxu0 0.0
  %406 = vmatprep.subr.mxu0 0.0
  %407 = vmatpush1.xpose.msra.mxu0 0.0
  %408 = vmatprep.subr.mxu0 0.0
  %409 = vmatpush1.xpose.msra.mxu0 0.0
  %410 = vmatprep.subr.mxu0 0.0
  %411 = vmatpush1.xpose.msra.mxu0 0.0
  %412 = vmatprep.subr.mxu0 0.0
  %413 = vmatpush1.xpose.msra.mxu0 0.0
  %414 = vmatprep.subr.mxu0 0.0
  %415 = vmatpush1.xpose.msra.mxu0 0.0
  %416 = vmatprep.subr.mxu0 0.0
  %417 = vmatpush1.xpose.msra.mxu0 0.0
  %418 = vmatprep.subr.mxu0 0.0
  %419 = vmatpush1.xpose.msra.mxu0 0.0
  %420 = vmatprep.subr.mxu0 0.0
  %421 = vmatpush1.xpose.msra.mxu0 0.0
  %422 = vmatprep.subr.mxu0 0.0
  %423 = vmatpush1.xpose.msra.mxu0 0.0
  %424 = vmatprep.subr.mxu0 0.0
  %425 = vmatpush1.xpose.msra.mxu0 0.0
  %426 = vmatprep.subr.mxu0 0.0
  %427 = vmatpush1.xpose.msra.mxu0 0.0
  %428 = vmatprep.subr.mxu0 0.0
  %429 = vmatpush1.xpose.msra.mxu0 0.0
  %430 = vmatprep.subr.mxu0 0.0
  %431 = vmatpush1.xpose.msra.mxu0 0.0
  %432 = vmatprep.subr.mxu0 0.0
  %433 = vmatpush1.xpose.msra.mxu0 0.0
  %434 = vmatprep.subr.mxu0 0.0
  %435 = vmatpush1.xpose.msra.mxu0 0.0
  %436 = vmatprep.subr.mxu0 0.0
  %437 = vmatpush1.xpose.msra.mxu0 0.0
  %438 = vmatprep.subr.mxu0 0.0
  %439 = vmatpush1.xpose.msra.mxu0 0.0
  %440 = vmatprep.subr.mxu0 0.0
  %441 = vmatpush1.xpose.msra.mxu0 0.0
  %442 = vmatprep.mubr.f32.mxu0 0.0
  %443 = vmatmul.mubr.f32.gmra.mrb[0].mxu0 %v374
  %v444 = vpop.f32.mrb[0].mxu0
  %v445 = vadd.f32 0.0, %v444
  %v446 = vpop.f32.mrb[0].mxu0
  %447 = vdwg.mxu0
  %v448 = vmul.f32 %v445, 0.35355338
  %v449 = vadd.f32 %v448, %v41
  %v450 = vsel %vm126, %v449, -inf
  %451 = vmax.xlane.f32.xlu0 %v450
  %v452 = vpop.xlane.xlu0 %451
  %v453 = vsub.f32 %v449, %v452
  %v454 = vmul.f32 %v453, 1.442695
  %v455 = vpow.pop %v454
  %v456 = vsel %vm126, %v455, 0.0
  %457 = vadd.xlane.f32.xlu0 %v456
  %v458 = vpop.xlane.xlu0 %457
  %v459 = vrcp.pop %v458
  %v460 = vmul.f32 %v455, %v459
  %461 = vrot.lane.b32.xlu0 %v120, 56
  %v462 = vpop.permute.xlu0 %461
  %v465 = vsel %vm126, %v460, 0
  %467 = vmatprep.subr.mxu0 0.0
  %468 = vmatpush1.msra.mxu0 %v462
  %469 = vmatprep.subr.mxu0 0.0
  %470 = vmatpush1.msra.mxu0 0.0
  %471 = vmatprep.subr.mxu0 0.0
  %472 = vmatpush1.msra.mxu0 0.0
  %473 = vmatprep.subr.mxu0 0.0
  %474 = vmatpush1.msra.mxu0 0.0
  %475 = vmatprep.subr.mxu0 0.0
  %476 = vmatpush1.msra.mxu0 0.0
  %477 = vmatprep.subr.mxu0 0.0
  %478 = vmatpush1.msra.mxu0 0.0
  %479 = vmatprep.subr.mxu0 0.0
  %480 = vmatpush1.msra.mxu0 0.0
  %481 = vmatprep.subr.mxu0 0.0
  %482 = vmatpush1.msra.mxu0 0.0
  %483 = vmatprep.subr.mxu0 0.0
  %484 = vmatpush1.msra.mxu0 0.0
  %485 = vmatprep.subr.mxu0 0.0
  %486 = vmatpush1.msra.mxu0 0.0
  %487 = vmatprep.subr.mxu0 0.0
  %488 = vmatpush1.msra.mxu0 0.0
  %489 = vmatprep.subr.mxu0 0.0
  %490 = vmatpush1.msra.mxu0 0.0
  %491 = vmatprep.subr.mxu0 0.0
  %492 = vmatpush1.msra.mxu0 0.0
  %493 = vmatprep.subr.mxu0 0.0
  %494 = vmatpush1.msra.mxu0 0.0
  %495 = vmatprep.subr.mxu0 0.0
  %496 = vmatpush1.msra.mxu0 0.0
  %497 = vmatprep.subr.mxu0 0.0
  %498 = vmatpush1.msra.mxu0 0.0
  %499 = vmatprep.subr.mxu0 0.0
  %500 = vmatpush1.msra.mxu0 0.0
  %501 = vmatprep.subr.mxu0 0.0
  %502 = vmatpush1.msra.mxu0 0.0
  %503 = vmatprep.subr.mxu0 0.0
  %504 = vmatpush1.msra.mxu0 0.0
  %505 = vmatprep.subr.mxu0 0.0
  %506 = vmatpush1.msra.mxu0 0.0
  %507 = vmatprep.subr.mxu0 0.0
  %508 = vmatpush1.msra.mxu0 0.0
  %509 = vmatprep.subr.mxu0 0.0
  %510 = vmatpush1.msra.mxu0 0.0
  %511 = vmatprep.subr.mxu0 0.0
  %512 = vmatpush1.msra.mxu0 0.0
  %513 = vmatprep.subr.mxu0 0.0
  %514 = vmatpush1.msra.mxu0 0.0
  %515 = vmatprep.subr.mxu0 0.0
  %516 = vmatpush1.msra.mxu0 0.0
  %517 = vmatprep.subr.mxu0 0.0
  %518 = vmatpush1.msra.mxu0 0.0
  %519 = vmatprep.subr.mxu0 0.0
  %520 = vmatpush1.msra.mxu0 0.0
  %521 = vmatprep.subr.mxu0 0.0
  %522 = vmatpush1.msra.mxu0 0.0
  %523 = vmatprep.subr.mxu0 0.0
  %524 = vmatpush1.msra.mxu0 0.0
  %525 = vmatprep.subr.mxu0 0.0
  %526 = vmatpush1.msra.mxu0 0.0
  %527 = vmatprep.subr.mxu0 0.0
  %528 = vmatpush1.msra.mxu0 0.0
  %529 = vmatprep.subr.mxu0 0.0
  %530 = vmatpush1.msra.mxu0 0.0
  %531 = vmatprep.mubr.f32.mxu0 0.0
  %532 = vmatmul.mubr.f32.gmra.mrb[0].mxu0 %v465
  %v533 = vpop.f32.mrb[0].mxu0
  %v534 = vadd.f32 0.0, %v533
  %v535 = vpop.f32.mrb[0].mxu0
  %536 = vdwg.mxu0
  %v538 = vsel %vm126, %v534, 0
  %540 = vmatprep.subr.mxu0 0.0
  %541 = vmatpush1.msra.mxu0 %v35
  %542 = vmatprep.subr.mxu0 0.0
  %543 = vmatpush1.msra.mxu0 0.0
  %544 = vmatprep.subr.mxu0 0.0
  %545 = vmatpush1.msra.mxu0 0.0
  %546 = vmatprep.subr.mxu0 0.0
  %547 = vmatpush1.msra.mxu0 0.0
  %548 = vmatprep.subr.mxu0 0.0
  %549 = vmatpush1.msra.mxu0 0.0
  %550 = vmatprep.subr.mxu0 0.0
  %551 = vmatpush1.msra.mxu0 0.0
  %552 = vmatprep.subr.mxu0 0.0
  %553 = vmatpush1.msra.mxu0 0.0
  %554 = vmatprep.subr.mxu0 0.0
  %555 = vmatpush1.msra.mxu0 0.0
  %556 = vmatprep.subr.mxu0 0.0
  %557 = vmatpush1.msra.mxu0 0.0
  %558 = vmatprep.subr.mxu0 0.0
  %559 = vmatpush1.msra.mxu0 0.0
  %560 = vmatprep.subr.mxu0 0.0
  %561 = vmatpush1.msra.mxu0 0.0
  %562 = vmatprep.subr.mxu0 0.0
  %563 = vmatpush1.msra.mxu0 0.0
  %564 = vmatprep.subr.mxu0 0.0
  %565 = vmatpush1.msra.mxu0 0.0
  %566 = vmatprep.subr.mxu0 0.0
  %567 = vmatpush1.msra.mxu0 0.0
  %568 = vmatprep.subr.mxu0 0.0
  %569 = vmatpush1.msra.mxu0 0.0
  %570 = vmatprep.subr.mxu0 0.0
  %571 = vmatpush1.msra.mxu0 0.0
  %572 = vmatprep.subr.mxu0 0.0
  %573 = vmatpush1.msra.mxu0 0.0
  %574 = vmatprep.subr.mxu0 0.0
  %575 = vmatpush1.msra.mxu0 0.0
  %576 = vmatprep.subr.mxu0 0.0
  %577 = vmatpush1.msra.mxu0 0.0
  %578 = vmatprep.subr.mxu0 0.0
  %579 = vmatpush1.msra.mxu0 0.0
  %580 = vmatprep.subr.mxu0 0.0
  %581 = vmatpush1.msra.mxu0 0.0
  %582 = vmatprep.subr.mxu0 0.0
  %583 = vmatpush1.msra.mxu0 0.0
  %584 = vmatprep.subr.mxu0 0.0
  %585 = vmatpush1.msra.mxu0 0.0
  %586 = vmatprep.subr.mxu0 0.0
  %587 = vmatpush1.msra.mxu0 0.0
  %588 = vmatprep.subr.mxu0 0.0
  %589 = vmatpush1.msra.mxu0 0.0
  %590 = vmatprep.subr.mxu0 0.0
  %591 = vmatpush1.msra.mxu0 0.0
  %592 = vmatprep.subr.mxu0 0.0
  %593 = vmatpush1.msra.mxu0 0.0
  %594 = vmatprep.subr.mxu0 0.0
  %595 = vmatpush1.msra.mxu0 0.0
  %596 = vmatprep.subr.mxu0 0.0
  %597 = vmatpush1.msra.mxu0 0.0
  %598 = vmatprep.subr.mxu0 0.0
  %599 = vmatpush1.msra.mxu0 0.0
  %600 = vmatprep.subr.mxu0 0.0
  %601 = vmatpush1.msra.mxu0 0.0
  %602 = vmatprep.subr.mxu0 0.0
  %603 = vmatpush1.msra.mxu0 0.0
  %604 = vmatprep.mubr.f32.mxu0 0.0
  %605 = vmatmul.mubr.f32.gmra.mrb[0].mxu0 %v538
  %v606 = vpop.f32.mrb[0].mxu0
  %v607 = vadd.f32 0.0, %v606
  %v608 = vpop.f32.mrb[0].mxu0
  %609 = vdwg.mxu0
  %v610 = vadd.f32 %v369, %v607
  %611 = vrot.lane.b32.xlu0 %v120, 112
  %v612 = vpop.permute.xlu0 %611
  %613 = vrot.lane.b32.xlu0 %v120, 80
  %v614 = vpop.permute.xlu0 %613
  %v615 = vsel %vm126, %v612, 0
  %v617 = vsel %vm126, %v614, 0
  %619 = vmatprep.subr.mxu0 0.0
  %620 = vmatpush1.xpose.msra.mxu0 %v617
  %621 = vmatprep.subr.mxu0 0.0
  %622 = vmatpush1.xpose.msra.mxu0 0.0
  %623 = vmatprep.subr.mxu0 0.0
  %624 = vmatpush1.xpose.msra.mxu0 0.0
  %625 = vmatprep.subr.mxu0 0.0
  %626 = vmatpush1.xpose.msra.mxu0 0.0
  %627 = vmatprep.subr.mxu0 0.0
  %628 = vmatpush1.xpose.msra.mxu0 0.0
  %629 = vmatprep.subr.mxu0 0.0
  %630 = vmatpush1.xpose.msra.mxu0 0.0
  %631 = vmatprep.subr.mxu0 0.0
  %632 = vmatpush1.xpose.msra.mxu0 0.0
  %633 = vmatprep.subr.mxu0 0.0
  %634 = vmatpush1.xpose.msra.mxu0 0.0
  %635 = vmatprep.subr.mxu0 0.0
  %636 = vmatpush1.xpose.msra.mxu0 0.0
  %637 = vmatprep.subr.mxu0 0.0
  %638 = vmatpush1.xpose.msra.mxu0 0.0
  %639 = vmatprep.subr.mxu0 0.0
  %640 = vmatpush1.xpose.msra.mxu0 0.0
  %641 = vmatprep.subr.mxu0 0.0
  %642 = vmatpush1.xpose.msra.mxu0 0.0
  %643 = vmatprep.subr.mxu0 0.0
  %644 = vmatpush1.xpose.msra.mxu0 0.0
  %645 = vmatprep.subr.mxu0 0.0
  %646 = vmatpush1.xpose.msra.mxu0 0.0
  %647 = vmatprep.subr.mxu0 0.0
  %648 = vmatpush1.xpose.msra.mxu0 0.0
  %649 = vmatprep.subr.mxu0 0.0
  %650 = vmatpush1.xpose.msra.mxu0 0.0
  %651 = vmatprep.subr.mxu0 0.0
  %652 = vmatpush1.xpose.msra.mxu0 0.0
  %653 = vmatprep.subr.mxu0 0.0
  %654 = vmatpush1.xpose.msra.mxu0 0.0
  %655 = vmatprep.subr.mxu0 0.0
  %656 = vmatpush1.xpose.msra.mxu0 0.0
  %657 = vmatprep.subr.mxu0 0.0
  %658 = vmatpush1.xpose.msra.mxu0 0.0
  %659 = vmatprep.subr.mxu0 0.0
  %660 = vmatpush1.xpose.msra.mxu0 0.0
  %661 = vmatprep.subr.mxu0 0.0
  %662 = vmatpush1.xpose.msra.mxu0 0.0
  %663 = vmatprep.subr.mxu0 0.0
  %664 = vmatpush1.xpose.msra.mxu0 0.0
  %665 = vmatprep.subr.mxu0 0.0
  %666 = vmatpush1.xpose.msra.mxu0 0.0
  %667 = vmatprep.subr.mxu0 0.0
  %668 = vmatpush1.xpose.msra.mxu0 0.0
  %669 = vmatprep.subr.mxu0 0.0
  %670 = vmatpush1.xpose.msra.mxu0 0.0
  %671 = vmatprep.subr.mxu0 0.0
  %672 = vmatpush1.xpose.msra.mxu0 0.0
  %673 = vmatprep.subr.mxu0 0.0
  %674 = vmatpush1.xpose.msra.mxu0 0.0
  %675 = vmatprep.subr.mxu0 0.0
  %676 = vmatpush1.xpose.msra.mxu0 0.0
  %677 = vmatprep.subr.mxu0 0.0
  %678 = vmatpush1.xpose.msra.mxu0 0.0
  %679 = vmatprep.subr.mxu0 0.0
  %680 = vmatpush1.xpose.msra.mxu0 0.0
  %681 = vmatprep.subr.mxu0 0.0
  %682 = vmatpush1.xpose.msra.mxu0 0.0
  %683 = vmatprep.mubr.f32.mxu0 0.0
  %684 = vmatmul.mubr.f32.gmra.mrb[0].mxu0 %v615
  %v685 = vpop.f32.mrb[0].mxu0
  %v686 = vadd.f32 0.0, %v685
  %v687 = vpop.f32.mrb[0].mxu0
  %688 = vdwg.mxu0
  %v689 = vmul.f32 %v686, 0.35355338
  %v690 = vadd.f32 %v689, %v41
  %v691 = vsel %vm126, %v690, -inf
  %692 = vmax.xlane.f32.xlu0 %v691
  %v693 = vpop.xlane.xlu0 %692
  %v694 = vsub.f32 %v690, %v693
  %v695 = vmul.f32 %v694, 1.442695
  %v696 = vpow.pop %v695
  %v697 = vsel %vm126, %v696, 0.0
  %698 = vadd.xlane.f32.xlu0 %v697
  %v699 = vpop.xlane.xlu0 %698
  %v700 = vrcp.pop %v699
  %v701 = vmul.f32 %v696, %v700
  %702 = vrot.lane.b32.xlu0 %v120, 48
  %v703 = vpop.permute.xlu0 %702
  %v706 = vsel %vm126, %v701, 0
  %708 = vmatprep.subr.mxu0 0.0
  %709 = vmatpush1.msra.mxu0 %v703
  %710 = vmatprep.subr.mxu0 0.0
  %711 = vmatpush1.msra.mxu0 0.0
  %712 = vmatprep.subr.mxu0 0.0
  %713 = vmatpush1.msra.mxu0 0.0
  %714 = vmatprep.subr.mxu0 0.0
  %715 = vmatpush1.msra.mxu0 0.0
  %716 = vmatprep.subr.mxu0 0.0
  %717 = vmatpush1.msra.mxu0 0.0
  %718 = vmatprep.subr.mxu0 0.0
  %719 = vmatpush1.msra.mxu0 0.0
  %720 = vmatprep.subr.mxu0 0.0
  %721 = vmatpush1.msra.mxu0 0.0
  %722 = vmatprep.subr.mxu0 0.0
  %723 = vmatpush1.msra.mxu0 0.0
  %724 = vmatprep.subr.mxu0 0.0
  %725 = vmatpush1.msra.mxu0 0.0
  %726 = vmatprep.subr.mxu0 0.0
  %727 = vmatpush1.msra.mxu0 0.0
  %728 = vmatprep.subr.mxu0 0.0
  %729 = vmatpush1.msra.mxu0 0.0
  %730 = vmatprep.subr.mxu0 0.0
  %731 = vmatpush1.msra.mxu0 0.0
  %732 = vmatprep.subr.mxu0 0.0
  %733 = vmatpush1.msra.mxu0 0.0
  %734 = vmatprep.subr.mxu0 0.0
  %735 = vmatpush1.msra.mxu0 0.0
  %736 = vmatprep.subr.mxu0 0.0
  %737 = vmatpush1.msra.mxu0 0.0
  %738 = vmatprep.subr.mxu0 0.0
  %739 = vmatpush1.msra.mxu0 0.0
  %740 = vmatprep.subr.mxu0 0.0
  %741 = vmatpush1.msra.mxu0 0.0
  %742 = vmatprep.subr.mxu0 0.0
  %743 = vmatpush1.msra.mxu0 0.0
  %744 = vmatprep.subr.mxu0 0.0
  %745 = vmatpush1.msra.mxu0 0.0
  %746 = vmatprep.subr.mxu0 0.0
  %747 = vmatpush1.msra.mxu0 0.0
  %748 = vmatprep.subr.mxu0 0.0
  %749 = vmatpush1.msra.mxu0 0.0
  %750 = vmatprep.subr.mxu0 0.0
  %751 = vmatpush1.msra.mxu0 0.0
  %752 = vmatprep.subr.mxu0 0.0
  %753 = vmatpush1.msra.mxu0 0.0
  %754 = vmatprep.subr.mxu0 0.0
  %755 = vmatpush1.msra.mxu0 0.0
  %756 = vmatprep.subr.mxu0 0.0
  %757 = vmatpush1.msra.mxu0 0.0
  %758 = vmatprep.subr.mxu0 0.0
  %759 = vmatpush1.msra.mxu0 0.0
  %760 = vmatprep.subr.mxu0 0.0
  %761 = vmatpush1.msra.mxu0 0.0
  %762 = vmatprep.subr.mxu0 0.0
  %763 = vmatpush1.msra.mxu0 0.0
  %764 = vmatprep.subr.mxu0 0.0
  %765 = vmatpush1.msra.mxu0 0.0
  %766 = vmatprep.subr.mxu0 0.0
  %767 = vmatpush1.msra.mxu0 0.0
  %768 = vmatprep.subr.mxu0 0.0
  %769 = vmatpush1.msra.mxu0 0.0
  %770 = vmatprep.subr.mxu0 0.0
  %771 = vmatpush1.msra.mxu0 0.0
  %772 = vmatprep.mubr.f32.mxu0 0.0
  %773 = vmatmul.mubr.f32.gmra.mrb[0].mxu0 %v706
  %v774 = vpop.f32.mrb[0].mxu0
  %v775 = vadd.f32 0.0, %v774
  %v776 = vpop.f32.mrb[0].mxu0
  %777 = vdwg.mxu0
  %v779 = vsel %vm126, %v775, 0
  %781 = vmatprep.subr.mxu0 0.0
  %782 = vmatpush1.msra.mxu0 %v36
  %783 = vmatprep.subr.mxu0 0.0
  %784 = vmatpush1.msra.mxu0 0.0
  %785 = vmatprep.subr.mxu0 0.0
  %786 = vmatpush1.msra.mxu0 0.0
  %787 = vmatprep.subr.mxu0 0.0
  %788 = vmatpush1.msra.mxu0 0.0
  %789 = vmatprep.subr.mxu0 0.0
  %790 = vmatpush1.msra.mxu0 0.0
  %791 = vmatprep.subr.mxu0 0.0
  %792 = vmatpush1.msra.mxu0 0.0
  %793 = vmatprep.subr.mxu0 0.0
  %794 = vmatpush1.msra.mxu0 0.0
  %795 = vmatprep.subr.mxu0 0.0
  %796 = vmatpush1.msra.mxu0 0.0
  %797 = vmatprep.subr.mxu0 0.0
  %798 = vmatpush1.msra.mxu0 0.0
  %799 = vmatprep.subr.mxu0 0.0
  %800 = vmatpush1.msra.mxu0 0.0
  %801 = vmatprep.subr.mxu0 0.0
  %802 = vmatpush1.msra.mxu0 0.0
  %803 = vmatprep.subr.mxu0 0.0
  %804 = vmatpush1.msra.mxu0 0.0
  %805 = vmatprep.subr.mxu0 0.0
  %806 = vmatpush1.msra.mxu0 0.0
  %807 = vmatprep.subr.mxu0 0.0
  %808 = vmatpush1.msra.mxu0 0.0
  %809 = vmatprep.subr.mxu0 0.0
  %810 = vmatpush1.msra.mxu0 0.0
  %811 = vmatprep.subr.mxu0 0.0
  %812 = vmatpush1.msra.mxu0 0.0
  %813 = vmatprep.subr.mxu0 0.0
  %814 = vmatpush1.msra.mxu0 0.0
  %815 = vmatprep.subr.mxu0 0.0
  %816 = vmatpush1.msra.mxu0 0.0
  %817 = vmatprep.subr.mxu0 0.0
  %818 = vmatpush1.msra.mxu0 0.0
  %819 = vmatprep.subr.mxu0 0.0
  %820 = vmatpush1.msra.mxu0 0.0
  %821 = vmatprep.subr.mxu0 0.0
  %822 = vmatpush1.msra.mxu0 0.0
  %823 = vmatprep.subr.mxu0 0.0
  %824 = vmatpush1.msra.mxu0 0.0
  %825 = vmatprep.subr.mxu0 0.0
  %826 = vmatpush1.msra.mxu0 0.0
  %827 = vmatprep.subr.mxu0 0.0
  %828 = vmatpush1.msra.mxu0 0.0
  %829 = vmatprep.subr.mxu0 0.0
  %830 = vmatpush1.msra.mxu0 0.0
  %831 = vmatprep.subr.mxu0 0.0
  %832 = vmatpush1.msra.mxu0 0.0
  %833 = vmatprep.subr.mxu0 0.0
  %834 = vmatpush1.msra.mxu0 0.0
  %835 = vmatprep.subr.mxu0 0.0
  %836 = vmatpush1.msra.mxu0 0.0
  %837 = vmatprep.subr.mxu0 0.0
  %838 = vmatpush1.msra.mxu0 0.0
  %839 = vmatprep.subr.mxu0 0.0
  %840 = vmatpush1.msra.mxu0 0.0
  %841 = vmatprep.subr.mxu0 0.0
  %842 = vmatpush1.msra.mxu0 0.0
  %843 = vmatprep.subr.mxu0 0.0
  %844 = vmatpush1.msra.mxu0 0.0
  %845 = vmatprep.mubr.f32.mxu0 0.0
  %846 = vmatmul.mubr.f32.gmra.mrb[0].mxu0 %v779
  %v847 = vpop.f32.mrb[0].mxu0
  %v848 = vadd.f32 0.0, %v847
  %v849 = vpop.f32.mrb[0].mxu0
  %850 = vdwg.mxu0
  %v851 = vadd.f32 %v610, %v848
  %852 = vrot.lane.b32.xlu0 %v120, 104
  %v853 = vpop.permute.xlu0 %852
  %854 = vrot.lane.b32.xlu0 %v120, 72
  %v855 = vpop.permute.xlu0 %854
  %v856 = vsel %vm126, %v853, 0
  %v858 = vsel %vm126, %v855, 0
  %860 = vmatprep.subr.mxu0 0.0
  %861 = vmatpush1.xpose.msra.mxu0 %v858
  %862 = vmatprep.subr.mxu0 0.0
  %863 = vmatpush1.xpose.msra.mxu0 0.0
  %864 = vmatprep.subr.mxu0 0.0
  %865 = vmatpush1.xpose.msra.mxu0 0.0
  %866 = vmatprep.subr.mxu0 0.0
  %867 = vmatpush1.xpose.msra.mxu0 0.0
  %868 = vmatprep.subr.mxu0 0.0
  %869 = vmatpush1.xpose.msra.mxu0 0.0
  %870 = vmatprep.subr.mxu0 0.0
  %871 = vmatpush1.xpose.msra.mxu0 0.0
  %872 = vmatprep.subr.mxu0 0.0
  %873 = vmatpush1.xpose.msra.mxu0 0.0
  %874 = vmatprep.subr.mxu0 0.0
  %875 = vmatpush1.xpose.msra.mxu0 0.0
  %876 = vmatprep.subr.mxu0 0.0
  %877 = vmatpush1.xpose.msra.mxu0 0.0
  %878 = vmatprep.subr.mxu0 0.0
  %879 = vmatpush1.xpose.msra.mxu0 0.0
  %880 = vmatprep.subr.mxu0 0.0
  %881 = vmatpush1.xpose.msra.mxu0 0.0
  %882 = vmatprep.subr.mxu0 0.0
  %883 = vmatpush1.xpose.msra.mxu0 0.0
  %884 = vmatprep.subr.mxu0 0.0
  %885 = vmatpush1.xpose.msra.mxu0 0.0
  %886 = vmatprep.subr.mxu0 0.0
  %887 = vmatpush1.xpose.msra.mxu0 0.0
  %888 = vmatprep.subr.mxu0 0.0
  %889 = vmatpush1.xpose.msra.mxu0 0.0
  %890 = vmatprep.subr.mxu0 0.0
  %891 = vmatpush1.xpose.msra.mxu0 0.0
  %892 = vmatprep.subr.mxu0 0.0
  %893 = vmatpush1.xpose.msra.mxu0 0.0
  %894 = vmatprep.subr.mxu0 0.0
  %895 = vmatpush1.xpose.msra.mxu0 0.0
  %896 = vmatprep.subr.mxu0 0.0
  %897 = vmatpush1.xpose.msra.mxu0 0.0
  %898 = vmatprep.subr.mxu0 0.0
  %899 = vmatpush1.xpose.msra.mxu0 0.0
  %900 = vmatprep.subr.mxu0 0.0
  %901 = vmatpush1.xpose.msra.mxu0 0.0
  %902 = vmatprep.subr.mxu0 0.0
  %903 = vmatpush1.xpose.msra.mxu0 0.0
  %904 = vmatprep.subr.mxu0 0.0
  %905 = vmatpush1.xpose.msra.mxu0 0.0
  %906 = vmatprep.subr.mxu0 0.0
  %907 = vmatpush1.xpose.msra.mxu0 0.0
  %908 = vmatprep.subr.mxu0 0.0
  %909 = vmatpush1.xpose.msra.mxu0 0.0
  %910 = vmatprep.subr.mxu0 0.0
  %911 = vmatpush1.xpose.msra.mxu0 0.0
  %912 = vmatprep.subr.mxu0 0.0
  %913 = vmatpush1.xpose.msra.mxu0 0.0
  %914 = vmatprep.subr.mxu0 0.0
  %915 = vmatpush1.xpose.msra.mxu0 0.0
  %916 = vmatprep.subr.mxu0 0.0
  %917 = vmatpush1.xpose.msra.mxu0 0.0
  %918 = vmatprep.subr.mxu0 0.0
  %919 = vmatpush1.xpose.msra.mxu0 0.0
  %920 = vmatprep.subr.mxu0 0.0
  %921 = vmatpush1.xpose.msra.mxu0 0.0
  %922 = vmatprep.subr.mxu0 0.0
  %923 = vmatpush1.xpose.msra.mxu0 0.0
  %924 = vmatprep.mubr.f32.mxu0 0.0
  %925 = vmatmul.mubr.f32.gmra.mrb[0].mxu0 %v856
  %v926 = vpop.f32.mrb[0].mxu0
  %v927 = vadd.f32 0.0, %v926
  %v928 = vpop.f32.mrb[0].mxu0
  %929 = vdwg.mxu0
  %v930 = vmul.f32 %v927, 0.35355338
  %v931 = vadd.f32 %v930, %v41
  %v932 = vsel %vm126, %v931, -inf
  %933 = vmax.xlane.f32.xlu0 %v932
  %v934 = vpop.xlane.xlu0 %933
  %v935 = vsub.f32 %v931, %v934
  %v936 = vmul.f32 %v935, 1.442695
  %v937 = vpow.pop %v936
  %v938 = vsel %vm126, %v937, 0.0
  %939 = vadd.xlane.f32.xlu0 %v938
  %v940 = vpop.xlane.xlu0 %939
  %v941 = vrcp.pop %v940
  %v942 = vmul.f32 %v937, %v941
  %943 = vrot.lane.b32.xlu0 %v120, 40
  %v944 = vpop.permute.xlu0 %943
  %v947 = vsel %vm126, %v942, 0
  %949 = vmatprep.subr.mxu0 0.0
  %950 = vmatpush1.msra.mxu0 %v944
  %951 = vmatprep.subr.mxu0 0.0
  %952 = vmatpush1.msra.mxu0 0.0
  %953 = vmatprep.subr.mxu0 0.0
  %954 = vmatpush1.msra.mxu0 0.0
  %955 = vmatprep.subr.mxu0 0.0
  %956 = vmatpush1.msra.mxu0 0.0
  %957 = vmatprep.subr.mxu0 0.0
  %958 = vmatpush1.msra.mxu0 0.0
  %959 = vmatprep.subr.mxu0 0.0
  %960 = vmatpush1.msra.mxu0 0.0
  %961 = vmatprep.subr.mxu0 0.0
  %962 = vmatpush1.msra.mxu0 0.0
  %963 = vmatprep.subr.mxu0 0.0
  %964 = vmatpush1.msra.mxu0 0.0
  %965 = vmatprep.subr.mxu0 0.0
  %966 = vmatpush1.msra.mxu0 0.0
  %967 = vmatprep.subr.mxu0 0.0
  %968 = vmatpush1.msra.mxu0 0.0
  %969 = vmatprep.subr.mxu0 0.0
  %970 = vmatpush1.msra.mxu0 0.0
  %971 = vmatprep.subr.mxu0 0.0
  %972 = vmatpush1.msra.mxu0 0.0
  %973 = vmatprep.subr.mxu0 0.0
  %974 = vmatpush1.msra.mxu0 0.0
  %975 = vmatprep.subr.mxu0 0.0
  %976 = vmatpush1.msra.mxu0 0.0
  %977 = vmatprep.subr.mxu0 0.0
  %978 = vmatpush1.msra.mxu0 0.0
  %979 = vmatprep.subr.mxu0 0.0
  %980 = vmatpush1.msra.mxu0 0.0
  %981 = vmatprep.subr.mxu0 0.0
  %982 = vmatpush1.msra.mxu0 0.0
  %983 = vmatprep.subr.mxu0 0.0
  %984 = vmatpush1.msra.mxu0 0.0
  %985 = vmatprep.subr.mxu0 0.0
  %986 = vmatpush1.msra.mxu0 0.0
  %987 = vmatprep.subr.mxu0 0.0
  %988 = vmatpush1.msra.mxu0 0.0
  %989 = vmatprep.subr.mxu0 0.0
  %990 = vmatpush1.msra.mxu0 0.0
  %991 = vmatprep.subr.mxu0 0.0
  %992 = vmatpush1.msra.mxu0 0.0
  %993 = vmatprep.subr.mxu0 0.0
  %994 = vmatpush1.msra.mxu0 0.0
  %995 = vmatprep.subr.mxu0 0.0
  %996 = vmatpush1.msra.mxu0 0.0
  %997 = vmatprep.subr.mxu0 0.0
  %998 = vmatpush1.msra.mxu0 0.0
  %999 = vmatprep.subr.mxu0 0.0
  %1000 = vmatpush1.msra.mxu0 0.0
  %1001 = vmatprep.subr.mxu0 0.0
  %1002 = vmatpush1.msra.mxu0 0.0
  %1003 = vmatprep.subr.mxu0 0.0
  %1004 = vmatpush1.msra.mxu0 0.0
  %1005 = vmatprep.subr.mxu0 0.0
  %1006 = vmatpush1.msra.mxu0 0.0
  %1007 = vmatprep.subr.mxu0 0.0
  %1008 = vmatpush1.msra.mxu0 0.0
  %1009 = vmatprep.subr.mxu0 0.0
  %1010 = vmatpush1.msra.mxu0 0.0
  %1011 = vmatprep.subr.mxu0 0.0
  %1012 = vmatpush1.msra.mxu0 0.0
  %1013 = vmatprep.mubr.f32.mxu0 0.0
  %1014 = vmatmul.mubr.f32.gmra.mrb[0].mxu0 %v947
  %v1015 = vpop.f32.mrb[0].mxu0
  %v1016 = vadd.f32 0.0, %v1015
  %v1017 = vpop.f32.mrb[0].mxu0
  %1018 = vdwg.mxu0
  %v1020 = vsel %vm126, %v1016, 0
  %1022 = vmatprep.subr.mxu0 0.0
  %1023 = vmatpush1.msra.mxu0 %v37
  %1024 = vmatprep.subr.mxu0 0.0
  %1025 = vmatpush1.msra.mxu0 0.0
  %1026 = vmatprep.subr.mxu0 0.0
  %1027 = vmatpush1.msra.mxu0 0.0
  %1028 = vmatprep.subr.mxu0 0.0
  %1029 = vmatpush1.msra.mxu0 0.0
  %1030 = vmatprep.subr.mxu0 0.0
  %1031 = vmatpush1.msra.mxu0 0.0
  %1032 = vmatprep.subr.mxu0 0.0
  %1033 = vmatpush1.msra.mxu0 0.0
  %1034 = vmatprep.subr.mxu0 0.0
  %1035 = vmatpush1.msra.mxu0 0.0
  %1036 = vmatprep.subr.mxu0 0.0
  %1037 = vmatpush1.msra.mxu0 0.0
  %1038 = vmatprep.subr.mxu0 0.0
  %1039 = vmatpush1.msra.mxu0 0.0
  %1040 = vmatprep.subr.mxu0 0.0
  %1041 = vmatpush1.msra.mxu0 0.0
  %1042 = vmatprep.subr.mxu0 0.0
  %1043 = vmatpush1.msra.mxu0 0.0
  %1044 = vmatprep.subr.mxu0 0.0
  %1045 = vmatpush1.msra.mxu0 0.0
  %1046 = vmatprep.subr.mxu0 0.0
  %1047 = vmatpush1.msra.mxu0 0.0
  %1048 = vmatprep.subr.mxu0 0.0
  %1049 = vmatpush1.msra.mxu0 0.0
  %1050 = vmatprep.subr.mxu0 0.0
  %1051 = vmatpush1.msra.mxu0 0.0
  %1052 = vmatprep.subr.mxu0 0.0
  %1053 = vmatpush1.msra.mxu0 0.0
  %1054 = vmatprep.subr.mxu0 0.0
  %1055 = vmatpush1.msra.mxu0 0.0
  %1056 = vmatprep.subr.mxu0 0.0
  %1057 = vmatpush1.msra.mxu0 0.0
  %1058 = vmatprep.subr.mxu0 0.0
  %1059 = vmatpush1.msra.mxu0 0.0
  %1060 = vmatprep.subr.mxu0 0.0
  %1061 = vmatpush1.msra.mxu0 0.0
  %1062 = vmatprep.subr.mxu0 0.0
  %1063 = vmatpush1.msra.mxu0 0.0
  %1064 = vmatprep.subr.mxu0 0.0
  %1065 = vmatpush1.msra.mxu0 0.0
  %1066 = vmatprep.subr.mxu0 0.0
  %1067 = vmatpush1.msra.mxu0 0.0
  %1068 = vmatprep.subr.mxu0 0.0
  %1069 = vmatpush1.msra.mxu0 0.0
  %1070 = vmatprep.subr.mxu0 0.0
  %1071 = vmatpush1.msra.mxu0 0.0
  %1072 = vmatprep.subr.mxu0 0.0
  %1073 = vmatpush1.msra.mxu0 0.0
  %1074 = vmatprep.subr.mxu0 0.0
  %1075 = vmatpush1.msra.mxu0 0.0
  %1076 = vmatprep.subr.mxu0 0.0
  %1077 = vmatpush1.msra.mxu0 0.0
  %1078 = vmatprep.subr.mxu0 0.0
  %1079 = vmatpush1.msra.mxu0 0.0
  %1080 = vmatprep.subr.mxu0 0.0
  %1081 = vmatpush1.msra.mxu0 0.0
  %1082 = vmatprep.subr.mxu0 0.0
  %1083 = vmatpush1.msra.mxu0 0.0
  %1084 = vmatprep.subr.mxu0 0.0
  %1085 = vmatpush1.msra.mxu0 0.0
  %1086 = vmatprep.mubr.f32.mxu0 0.0
  %1087 = vmatmul.mubr.f32.gmra.mrb[0].mxu0 %v1020
  %v1088 = vpop.f32.mrb[0].mxu0
  %v1089 = vadd.f32 0.0, %v1088
  %v1090 = vpop.f32.mrb[0].mxu0
  %1091 = vdwg.mxu0
  %v1092 = vadd.f32 %v851, %v1089
  %v1093 = vadd.f32 %v42, %v1092
  %v1094 = vsel %vm49, %v1093, 0.0
  %1095 = vadd.xlane.f32.xlu0 %v1094
  %v1096 = vpop.xlane.xlu0 %1095
  %v1097 = vrcp.pop 32.0
  %v1098 = vmul.f32 %v1096, %v1097
  %v1099 = vsub.f32 %v1093, %v1098
  %v1100 = vmul.f32 %v1099, %v1099
  %v1101 = vsel %vm49, %v1100, 0.0
  %1102 = vadd.xlane.f32.xlu0 %v1101
  %v1103 = vpop.xlane.xlu0 %1102
  %v1104 = vmul.f32 %v1103, %v1097
  %v1105 = vadd.f32 %v1104, 1e-05
  %v1106 = vrsqrt.pop %v1105
  %v1107 = vmul.f32 %v1099, %v1106
  %v1109 = vlaneseq
  %v1110 = vshrl.u32 %v1109, 7
  %v1111 = vsub.s32 0, %v1110
  %v1112 = vrot.slane %v39, %v1111
  %v1114 = vmul.f32 %v1107, %v1112
  %v1116 = vlaneseq
  %v1117 = vshrl.u32 %v1116, 7
  %v1118 = vsub.s32 0, %v1117
  %v1119 = vrot.slane %v40, %v1118
  %v1121 = vadd.f32 %v1114, %v1119
  %1122 = vst.msk [vmem:[%s8] sm:$0xff] %vm49, %v1121
  %s1123 = scalar_lea.vmem %s0, 8
  %v1124 = vld [vmem:[%s1123] sm:$0xff]
  %v1126 = vsel %vm49, %v1124, 0
  %1128 = vmatprep.subr.mxu0 0.0
  %1129 = vmatpush1.msra.mxu0 %v29
  %1130 = vmatprep.subr.mxu0 0.0
  %1131 = vmatpush1.msra.mxu0 %v30
  %1132 = vmatprep.subr.mxu0 0.0
  %1133 = vmatpush1.msra.mxu0 %v31
  %1134 = vmatprep.subr.mxu0 0.0
  %1135 = vmatpush1.msra.mxu0 %v32
  %1136 = vmatprep.subr.mxu0 0.0
  %1137 = vmatpush1.msra.mxu0 0.0
  %1138 = vmatprep.subr.mxu0 0.0
  %1139 = vmatpush1.msra.mxu0 0.0
  %1140 = vmatprep.subr.mxu0 0.0
  %1141 = vmatpush1.msra.mxu0 0.0
  %1142 = vmatprep.subr.mxu0 0.0
  %1143 = vmatpush1.msra.mxu0 0.0
  %1144 = vmatprep.subr.mxu0 0.0
  %1145 = vmatpush1.msra.mxu0 0.0
  %1146 = vmatprep.subr.mxu0 0.0
  %1147 = vmatpush1.msra.mxu0 0.0
  %1148 = vmatprep.subr.mxu0 0.0
  %1149 = vmatpush1.msra.mxu0 0.0
  %1150 = vmatprep.subr.mxu0 0.0
  %1151 = vmatpush1.msra.mxu0 0.0
  %1152 = vmatprep.subr.mxu0 0.0
  %1153 = vmatpush1.msra.mxu0 0.0
  %1154 = vmatprep.subr.mxu0 0.0
  %1155 = vmatpush1.msra.mxu0 0.0
  %1156 = vmatprep.subr.mxu0 0.0
  %1157 = vmatpush1.msra.mxu0 0.0
  %1158 = vmatprep.subr.mxu0 0.0
  %1159 = vmatpush1.msra.mxu0 0.0
  %1160 = vmatprep.subr.mxu0 0.0
  %1161 = vmatpush1.msra.mxu0 0.0
  %1162 = vmatprep.subr.mxu0 0.0
  %1163 = vmatpush1.msra.mxu0 0.0
  %1164 = vmatprep.subr.mxu0 0.0
  %1165 = vmatpush1.msra.mxu0 0.0
  %1166 = vmatprep.subr.mxu0 0.0
  %1167 = vmatpush1.msra.mxu0 0.0
  %1168 = vmatprep.subr.mxu0 0.0
  %1169 = vmatpush1.msra.mxu0 0.0
  %1170 = vmatprep.subr.mxu0 0.0
  %1171 = vmatpush1.msra.mxu0 0.0
  %1172 = vmatprep.subr.mxu0 0.0
  %1173 = vmatpush1.msra.mxu0 0.0
  %1174 = vmatprep.subr.mxu0 0.0
  %1175 = vmatpush1.msra.mxu0 0.0
  %1176 = vmatprep.subr.mxu0 0.0
  %1177 = vmatpush1.msra.mxu0 0.0
  %1178 = vmatprep.subr.mxu0 0.0
  %1179 = vmatpush1.msra.mxu0 0.0
  %1180 = vmatprep.subr.mxu0 0.0
  %1181 = vmatpush1.msra.mxu0 0.0
  %1182 = vmatprep.subr.mxu0 0.0
  %1183 = vmatpush1.msra.mxu0 0.0
  %1184 = vmatprep.subr.mxu0 0.0
  %1185 = vmatpush1.msra.mxu0 0.0
  %1186 = vmatprep.subr.mxu0 0.0
  %1187 = vmatpush1.msra.mxu0 0.0
  %1188 = vmatprep.subr.mxu0 0.0
  %1189 = vmatpush1.msra.mxu0 0.0
  %1190 = vmatprep.subr.mxu0 0.0
  %1191 = vmatpush1.msra.mxu0 0.0
  %1192 = vmatprep.mubr.f32.mxu0 0.0
  %1193 = vmatmul.mubr.f32.gmra.mrb[0].mxu0 %v1126
  %v1194 = vpop.f32.mrb[0].mxu0
  %v1195 = vadd.f32 %v47, %v1194
  %v1196 = vpop.f32.mrb[0].mxu0
  %1197 = vdwg.mxu0
  %1199 = vrot.lane.b32.xlu0 %v1195, 96
  %v1200 = vpop.permute.xlu0 %1199
  %v1201 = vsel %vm126, %v1195, 0
  %v1203 = vsel %vm126, %v1200, 0
  %1205 = vmatprep.subr.mxu0 0.0
  %1206 = vmatpush1.xpose.msra.mxu0 %v1203
  %1207 = vmatprep.subr.mxu0 0.0
  %1208 = vmatpush1.xpose.msra.mxu0 0.0
  %1209 = vmatprep.subr.mxu0 0.0
  %1210 = vmatpush1.xpose.msra.mxu0 0.0
  %1211 = vmatprep.subr.mxu0 0.0
  %1212 = vmatpush1.xpose.msra.mxu0 0.0
  %1213 = vmatprep.subr.mxu0 0.0
  %1214 = vmatpush1.xpose.msra.mxu0 0.0
  %1215 = vmatprep.subr.mxu0 0.0
  %1216 = vmatpush1.xpose.msra.mxu0 0.0
  %1217 = vmatprep.subr.mxu0 0.0
  %1218 = vmatpush1.xpose.msra.mxu0 0.0
  %1219 = vmatprep.subr.mxu0 0.0
  %1220 = vmatpush1.xpose.msra.mxu0 0.0
  %1221 = vmatprep.subr.mxu0 0.0
  %1222 = vmatpush1.xpose.msra.mxu0 0.0
  %1223 = vmatprep.subr.mxu0 0.0
  %1224 = vmatpush1.xpose.msra.mxu0 0.0
  %1225 = vmatprep.subr.mxu0 0.0
  %1226 = vmatpush1.xpose.msra.mxu0 0.0
  %1227 = vmatprep.subr.mxu0 0.0
  %1228 = vmatpush1.xpose.msra.mxu0 0.0
  %1229 = vmatprep.subr.mxu0 0.0
  %1230 = vmatpush1.xpose.msra.mxu0 0.0
  %1231 = vmatprep.subr.mxu0 0.0
  %1232 = vmatpush1.xpose.msra.mxu0 0.0
  %1233 = vmatprep.subr.mxu0 0.0
  %1234 = vmatpush1.xpose.msra.mxu0 0.0
  %1235 = vmatprep.subr.mxu0 0.0
  %1236 = vmatpush1.xpose.msra.mxu0 0.0
  %1237 = vmatprep.subr.mxu0 0.0
  %1238 = vmatpush1.xpose.msra.mxu0 0.0
  %1239 = vmatprep.subr.mxu0 0.0
  %1240 = vmatpush1.xpose.msra.mxu0 0.0
  %1241 = vmatprep.subr.mxu0 0.0
  %1242 = vmatpush1.xpose.msra.mxu0 0.0
  %1243 = vmatprep.subr.mxu0 0.0
  %1244 = vmatpush1.xpose.msra.mxu0 0.0
  %1245 = vmatprep.subr.mxu0 0.0
  %1246 = vmatpush1.xpose.msra.mxu0 0.0
  %1247 = vmatprep.subr.mxu0 0.0
  %1248 = vmatpush1.xpose.msra.mxu0 0.0
  %1249 = vmatprep.subr.mxu0 0.0
  %1250 = vmatpush1.xpose.msra.mxu0 0.0
  %1251 = vmatprep.subr.mxu0 0.0
  %1252 = vmatpush1.xpose.msra.mxu0 0.0
  %1253 = vmatprep.subr.mxu0 0.0
  %1254 = vmatpush1.xpose.msra.mxu0 0.0
  %1255 = vmatprep.subr.mxu0 0.0
  %1256 = vmatpush1.xpose.msra.mxu0 0.0
  %1257 = vmatprep.subr.mxu0 0.0
  %1258 = vmatpush1.xpose.msra.mxu0 0.0
  %1259 = vmatprep.subr.mxu0 0.0
  %1260 = vmatpush1.xpose.msra.mxu0 0.0
  %1261 = vmatprep.subr.mxu0 0.0
  %1262 = vmatpush1.xpose.msra.mxu0 0.0
  %1263 = vmatprep.subr.mxu0 0.0
  %1264 = vmatpush1.xpose.msra.mxu0 0.0
  %1265 = vmatprep.subr.mxu0 0.0
  %1266 = vmatpush1.xpose.msra.mxu0 0.0
  %1267 = vmatprep.subr.mxu0 0.0
  %1268 = vmatpush1.xpose.msra.mxu0 0.0
  %1269 = vmatprep.mubr.f32.mxu0 0.0
  %1270 = vmatmul.mubr.f32.gmra.mrb[0].mxu0 %v1201
  %v1271 = vpop.f32.mrb[0].mxu0
  %v1272 = vadd.f32 0.0, %v1271
  %v1273 = vpop.f32.mrb[0].mxu0
  %1274 = vdwg.mxu0
  %v1275 = vmul.f32 %v1272, 0.35355338
  %v1276 = vadd.f32 %v1275, %v41
  %v1277 = vsel %vm126, %v1276, -inf
  %1278 = vmax.xlane.f32.xlu0 %v1277
  %v1279 = vpop.xlane.xlu0 %1278
  %v1280 = vsub.f32 %v1276, %v1279
  %v1281 = vmul.f32 %v1280, 1.442695
  %v1282 = vpow.pop %v1281
  %v1283 = vsel %vm126, %v1282, 0.0
  %1284 = vadd.xlane.f32.xlu0 %v1283
  %v1285 = vpop.xlane.xlu0 %1284
  %v1286 = vrcp.pop %v1285
  %v1287 = vmul.f32 %v1282, %v1286
  %1288 = vrot.lane.b32.xlu0 %v1195, 64
  %v1289 = vpop.permute.xlu0 %1288
  %v1292 = vsel %vm126, %v1287, 0
  %1294 = vmatprep.subr.mxu0 0.0
  %1295 = vmatpush1.msra.mxu0 %v1289
  %1296 = vmatprep.subr.mxu0 0.0
  %1297 = vmatpush1.msra.mxu0 0.0
  %1298 = vmatprep.subr.mxu0 0.0
  %1299 = vmatpush1.msra.mxu0 0.0
  %1300 = vmatprep.subr.mxu0 0.0
  %1301 = vmatpush1.msra.mxu0 0.0
  %1302 = vmatprep.subr.mxu0 0.0
  %1303 = vmatpush1.msra.mxu0 0.0
  %1304 = vmatprep.subr.mxu0 0.0
  %1305 = vmatpush1.msra.mxu0 0.0
  %1306 = vmatprep.subr.mxu0 0.0
  %1307 = vmatpush1.msra.mxu0 0.0
  %1308 = vmatprep.subr.mxu0 0.0
  %1309 = vmatpush1.msra.mxu0 0.0
  %1310 = vmatprep.subr.mxu0 0.0
  %1311 = vmatpush1.msra.mxu0 0.0
  %1312 = vmatprep.subr.mxu0 0.0
  %1313 = vmatpush1.msra.mxu0 0.0
  %1314 = vmatprep.subr.mxu0 0.0
  %1315 = vmatpush1.msra.mxu0 0.0
  %1316 = vmatprep.subr.mxu0 0.0
  %1317 = vmatpush1.msra.mxu0 0.0
  %1318 = vmatprep.subr.mxu0 0.0
  %1319 = vmatpush1.msra.mxu0 0.0
  %1320 = vmatprep.subr.mxu0 0.0
  %1321 = vmatpush1.msra.mxu0 0.0
  %1322 = vmatprep.subr.mxu0 0.0
  %1323 = vmatpush1.msra.mxu0 0.0
  %1324 = vmatprep.subr.mxu0 0.0
  %1325 = vmatpush1.msra.mxu0 0.0
  %1326 = vmatprep.subr.mxu0 0.0
  %1327 = vmatpush1.msra.mxu0 0.0
  %1328 = vmatprep.subr.mxu0 0.0
  %1329 = vmatpush1.msra.mxu0 0.0
  %1330 = vmatprep.subr.mxu0 0.0
  %1331 = vmatpush1.msra.mxu0 0.0
  %1332 = vmatprep.subr.mxu0 0.0
  %1333 = vmatpush1.msra.mxu0 0.0
  %1334 = vmatprep.subr.mxu0 0.0
  %1335 = vmatpush1.msra.mxu0 0.0
  %1336 = vmatprep.subr.mxu0 0.0
  %1337 = vmatpush1.msra.mxu0 0.0
  %1338 = vmatprep.subr.mxu0 0.0
  %1339 = vmatpush1.msra.mxu0 0.0
  %1340 = vmatprep.subr.mxu0 0.0
  %1341 = vmatpush1.msra.mxu0 0.0
  %1342 = vmatprep.subr.mxu0 0.0
  %1343 = vmatpush1.msra.mxu0 0.0
  %1344 = vmatprep.subr.mxu0 0.0
  %1345 = vmatpush1.msra.mxu0 0.0
  %1346 = vmatprep.subr.mxu0 0.0
  %1347 = vmatpush1.msra.mxu0 0.0
  %1348 = vmatprep.subr.mxu0 0.0
  %1349 = vmatpush1.msra.mxu0 0.0
  %1350 = vmatprep.subr.mxu0 0.0
  %1351 = vmatpush1.msra.mxu0 0.0
  %1352 = vmatprep.subr.mxu0 0.0
  %1353 = vmatpush1.msra.mxu0 0.0
  %1354 = vmatprep.subr.mxu0 0.0
  %1355 = vmatpush1.msra.mxu0 0.0
  %1356 = vmatprep.subr.mxu0 0.0
  %1357 = vmatpush1.msra.mxu0 0.0
  %1358 = vmatprep.mubr.f32.mxu0 0.0
  %1359 = vmatmul.mubr.f32.gmra.mrb[0].mxu0 %v1292
  %v1360 = vpop.f32.mrb[0].mxu0
  %v1361 = vadd.f32 0.0, %v1360
  %v1362 = vpop.f32.mrb[0].mxu0
  %1363 = vdwg.mxu0
  %v1365 = vsel %vm126, %v1361, 0
  %1367 = vmatprep.subr.mxu0 0.0
  %1368 = vmatpush1.msra.mxu0 %v34
  %1369 = vmatprep.subr.mxu0 0.0
  %1370 = vmatpush1.msra.mxu0 0.0
  %1371 = vmatprep.subr.mxu0 0.0
  %1372 = vmatpush1.msra.mxu0 0.0
  %1373 = vmatprep.subr.mxu0 0.0
  %1374 = vmatpush1.msra.mxu0 0.0
  %1375 = vmatprep.subr.mxu0 0.0
  %1376 = vmatpush1.msra.mxu0 0.0
  %1377 = vmatprep.subr.mxu0 0.0
  %1378 = vmatpush1.msra.mxu0 0.0
  %1379 = vmatprep.subr.mxu0 0.0
  %1380 = vmatpush1.msra.mxu0 0.0
  %1381 = vmatprep.subr.mxu0 0.0
  %1382 = vmatpush1.msra.mxu0 0.0
  %1383 = vmatprep.subr.mxu0 0.0
  %1384 = vmatpush1.msra.mxu0 0.0
  %1385 = vmatprep.subr.mxu0 0.0
  %1386 = vmatpush1.msra.mxu0 0.0
  %1387 = vmatprep.subr.mxu0 0.0
  %1388 = vmatpush1.msra.mxu0 0.0
  %1389 = vmatprep.subr.mxu0 0.0
  %1390 = vmatpush1.msra.mxu0 0.0
  %1391 = vmatprep.subr.mxu0 0.0
  %1392 = vmatpush1.msra.mxu0 0.0
  %1393 = vmatprep.subr.mxu0 0.0
  %1394 = vmatpush1.msra.mxu0 0.0
  %1395 = vmatprep.subr.mxu0 0.0
  %1396 = vmatpush1.msra.mxu0 0.0
  %1397 = vmatprep.subr.mxu0 0.0
  %1398 = vmatpush1.msra.mxu0 0.0
  %1399 = vmatprep.subr.mxu0 0.0
  %1400 = vmatpush1.msra.mxu0 0.0
  %1401 = vmatprep.subr.mxu0 0.0
  %1402 = vmatpush1.msra.mxu0 0.0
  %1403 = vmatprep.subr.mxu0 0.0
  %1404 = vmatpush1.msra.mxu0 0.0
  %1405 = vmatprep.subr.mxu0 0.0
  %1406 = vmatpush1.msra.mxu0 0.0
  %1407 = vmatprep.subr.mxu0 0.0
  %1408 = vmatpush1.msra.mxu0 0.0
  %1409 = vmatprep.subr.mxu0 0.0
  %1410 = vmatpush1.msra.mxu0 0.0
  %1411 = vmatprep.subr.mxu0 0.0
  %1412 = vmatpush1.msra.mxu0 0.0
  %1413 = vmatprep.subr.mxu0 0.0
  %1414 = vmatpush1.msra.mxu0 0.0
  %1415 = vmatprep.subr.mxu0 0.0
  %1416 = vmatpush1.msra.mxu0 0.0
  %1417 = vmatprep.subr.mxu0 0.0
  %1418 = vmatpush1.msra.mxu0 0.0
  %1419 = vmatprep.subr.mxu0 0.0
  %1420 = vmatpush1.msra.mxu0 0.0
  %1421 = vmatprep.subr.mxu0 0.0
  %1422 = vmatpush1.msra.mxu0 0.0
  %1423 = vmatprep.subr.mxu0 0.0
  %1424 = vmatpush1.msra.mxu0 0.0
  %1425 = vmatprep.subr.mxu0 0.0
  %1426 = vmatpush1.msra.mxu0 0.0
  %1427 = vmatprep.subr.mxu0 0.0
  %1428 = vmatpush1.msra.mxu0 0.0
  %1429 = vmatprep.subr.mxu0 0.0
  %1430 = vmatpush1.msra.mxu0 0.0
  %1431 = vmatprep.mubr.f32.mxu0 0.0
  %1432 = vmatmul.mubr.f32.gmra.mrb[0].mxu0 %v1365
  %v1433 = vpop.f32.mrb[0].mxu0
  %v1434 = vadd.f32 0.0, %v1433
  %v1435 = vpop.f32.mrb[0].mxu0
  %1436 = vdwg.mxu0
  %v1437 = vadd.f32 %v367, %v1434
  %1438 = vrot.lane.b32.xlu0 %v1195, 120
  %v1439 = vpop.permute.xlu0 %1438
  %1440 = vrot.lane.b32.xlu0 %v1195, 88
  %v1441 = vpop.permute.xlu0 %1440
  %v1442 = vsel %vm126, %v1439, 0
  %v1444 = vsel %vm126, %v1441, 0
  %1446 = vmatprep.subr.mxu0 0.0
  %1447 = vmatpush1.xpose.msra.mxu0 %v1444
  %1448 = vmatprep.subr.mxu0 0.0
  %1449 = vmatpush1.xpose.msra.mxu0 0.0
  %1450 = vmatprep.subr.mxu0 0.0
  %1451 = vmatpush1.xpose.msra.mxu0 0.0
  %1452 = vmatprep.subr.mxu0 0.0
  %1453 = vmatpush1.xpose.msra.mxu0 0.0
  %1454 = vmatprep.subr.mxu0 0.0
  %1455 = vmatpush1.xpose.msra.mxu0 0.0
  %1456 = vmatprep.subr.mxu0 0.0
  %1457 = vmatpush1.xpose.msra.mxu0 0.0
  %1458 = vmatprep.subr.mxu0 0.0
  %1459 = vmatpush1.xpose.msra.mxu0 0.0
  %1460 = vmatprep.subr.mxu0 0.0
  %1461 = vmatpush1.xpose.msra.mxu0 0.0
  %1462 = vmatprep.subr.mxu0 0.0
  %1463 = vmatpush1.xpose.msra.mxu0 0.0
  %1464 = vmatprep.subr.mxu0 0.0
  %1465 = vmatpush1.xpose.msra.mxu0 0.0
  %1466 = vmatprep.subr.mxu0 0.0
  %1467 = vmatpush1.xpose.msra.mxu0 0.0
  %1468 = vmatprep.subr.mxu0 0.0
  %1469 = vmatpush1.xpose.msra.mxu0 0.0
  %1470 = vmatprep.subr.mxu0 0.0
  %1471 = vmatpush1.xpose.msra.mxu0 0.0
  %1472 = vmatprep.subr.mxu0 0.0
  %1473 = vmatpush1.xpose.msra.mxu0 0.0
  %1474 = vmatprep.subr.mxu0 0.0
  %1475 = vmatpush1.xpose.msra.mxu0 0.0
  %1476 = vmatprep.subr.mxu0 0.0
  %1477 = vmatpush1.xpose.msra.mxu0 0.0
  %1478 = vmatprep.subr.mxu0 0.0
  %1479 = vmatpush1.xpose.msra.mxu0 0.0
  %1480 = vmatprep.subr.mxu0 0.0
  %1481 = vmatpush1.xpose.msra.mxu0 0.0
  %1482 = vmatprep.subr.mxu0 0.0
  %1483 = vmatpush1.xpose.msra.mxu0 0.0
  %1484 = vmatprep.subr.mxu0 0.0
  %1485 = vmatpush1.xpose.msra.mxu0 0.0
  %1486 = vmatprep.subr.mxu0 0.0
  %1487 = vmatpush1.xpose.msra.mxu0 0.0
  %1488 = vmatprep.subr.mxu0 0.0
  %1489 = vmatpush1.xpose.msra.mxu0 0.0
  %1490 = vmatprep.subr.mxu0 0.0
  %1491 = vmatpush1.xpose.msra.mxu0 0.0
  %1492 = vmatprep.subr.mxu0 0.0
  %1493 = vmatpush1.xpose.msra.mxu0 0.0
  %1494 = vmatprep.subr.mxu0 0.0
  %1495 = vmatpush1.xpose.msra.mxu0 0.0
  %1496 = vmatprep.subr.mxu0 0.0
  %1497 = vmatpush1.xpose.msra.mxu0 0.0
  %1498 = vmatprep.subr.mxu0 0.0
  %1499 = vmatpush1.xpose.msra.mxu0 0.0
  %1500 = vmatprep.subr.mxu0 0.0
  %1501 = vmatpush1.xpose.msra.mxu0 0.0
  %1502 = vmatprep.subr.mxu0 0.0
  %1503 = vmatpush1.xpose.msra.mxu0 0.0
  %1504 = vmatprep.subr.mxu0 0.0
  %1505 = vmatpush1.xpose.msra.mxu0 0.0
  %1506 = vmatprep.subr.mxu0 0.0
  %1507 = vmatpush1.xpose.msra.mxu0 0.0
  %1508 = vmatprep.subr.mxu0 0.0
  %1509 = vmatpush1.xpose.msra.mxu0 0.0
  %1510 = vmatprep.mubr.f32.mxu0 0.0
  %1511 = vmatmul.mubr.f32.gmra.mrb[0].mxu0 %v1442
  %v1512 = vpop.f32.mrb[0].mxu0
  %v1513 = vadd.f32 0.0, %v1512
  %v1514 = vpop.f32.mrb[0].mxu0
  %1515 = vdwg.mxu0
  %v1516 = vmul.f32 %v1513, 0.35355338
  %v1517 = vadd.f32 %v1516, %v41
  %v1518 = vsel %vm126, %v1517, -inf
  %1519 = vmax.xlane.f32.xlu0 %v1518
  %v1520 = vpop.xlane.xlu0 %1519
  %v1521 = vsub.f32 %v1517, %v1520
  %v1522 = vmul.f32 %v1521, 1.442695
  %v1523 = vpow.pop %v1522
  %v1524 = vsel %vm126, %v1523, 0.0
  %1525 = vadd.xlane.f32.xlu0 %v1524
  %v1526 = vpop.xlane.xlu0 %1525
  %v1527 = vrcp.pop %v1526
  %v1528 = vmul.f32 %v1523, %v1527
  %1529 = vrot.lane.b32.xlu0 %v1195, 56
  %v1530 = vpop.permute.xlu0 %1529
  %v1533 = vsel %vm126, %v1528, 0
  %1535 = vmatprep.subr.mxu0 0.0
  %1536 = vmatpush1.msra.mxu0 %v1530
  %1537 = vmatprep.subr.mxu0 0.0
  %1538 = vmatpush1.msra.mxu0 0.0
  %1539 = vmatprep.subr.mxu0 0.0
  %1540 = vmatpush1.msra.mxu0 0.0
  %1541 = vmatprep.subr.mxu0 0.0
  %1542 = vmatpush1.msra.mxu0 0.0
  %1543 = vmatprep.subr.mxu0 0.0
  %1544 = vmatpush1.msra.mxu0 0.0
  %1545 = vmatprep.subr.mxu0 0.0
  %1546 = vmatpush1.msra.mxu0 0.0
  %1547 = vmatprep.subr.mxu0 0.0
  %1548 = vmatpush1.msra.mxu0 0.0
  %1549 = vmatprep.subr.mxu0 0.0
  %1550 = vmatpush1.msra.mxu0 0.0
  %1551 = vmatprep.subr.mxu0 0.0
  %1552 = vmatpush1.msra.mxu0 0.0
  %1553 = vmatprep.subr.mxu0 0.0
  %1554 = vmatpush1.msra.mxu0 0.0
  %1555 = vmatprep.subr.mxu0 0.0
  %1556 = vmatpush1.msra.mxu0 0.0
  %1557 = vmatprep.subr.mxu0 0.0
  %1558 = vmatpush1.msra.mxu0 0.0
  %1559 = vmatprep.subr.mxu0 0.0
  %1560 = vmatpush1.msra.mxu0 0.0
  %1561 = vmatprep.subr.mxu0 0.0
  %1562 = vmatpush1.msra.mxu0 0.0
  %1563 = vmatprep.subr.mxu0 0.0
  %1564 = vmatpush1.msra.mxu0 0.0
  %1565 = vmatprep.subr.mxu0 0.0
  %1566 = vmatpush1.msra.mxu0 0.0
  %1567 = vmatprep.subr.mxu0 0.0
  %1568 = vmatpush1.msra.mxu0 0.0
  %1569 = vmatprep.subr.mxu0 0.0
  %1570 = vmatpush1.msra.mxu0 0.0
  %1571 = vmatprep.subr.mxu0 0.0
  %1572 = vmatpush1.msra.mxu0 0.0
  %1573 = vmatprep.subr.mxu0 0.0
  %1574 = vmatpush1.msra.mxu0 0.0
  %1575 = vmatprep.subr.mxu0 0.0
  %1576 = vmatpush1.msra.mxu0 0.0
  %1577 = vmatprep.subr.mxu0 0.0
  %1578 = vmatpush1.msra.mxu0 0.0
  %1579 = vmatprep.subr.mxu0 0.0
  %1580 = vmatpush1.msra.mxu0 0.0
  %1581 = vmatprep.subr.mxu0 0.0
  %1582 = vmatpush1.msra.mxu0 0.0
  %1583 = vmatprep.subr.mxu0 0.0
  %1584 = vmatpush1.msra.mxu0 0.0
  %1585 = vmatprep.subr.mxu0 0.0
  %1586 = vmatpush1.msra.mxu0 0.0
  %1587 = vmatprep.subr.mxu0 0.0
  %1588 = vmatpush1.msra.mxu0 0.0
  %1589 = vmatprep.subr.mxu0 0.0
  %1590 = vmatpush1.msra.mxu0 0.0
  %1591 = vmatprep.subr.mxu0 0.0
  %1592 = vmatpush1.msra.mxu0 0.0
  %1593 = vmatprep.subr.mxu0 0.0
  %1594 = vmatpush1.msra.mxu0 0.0
  %1595 = vmatprep.subr.mxu0 0.0
  %1596 = vmatpush1.msra.mxu0 0.0
  %1597 = vmatprep.subr.mxu0 0.0
  %1598 = vmatpush1.msra.mxu0 0.0
  %1599 = vmatprep.mubr.f32.mxu0 0.0
  %1600 = vmatmul.mubr.f32.gmra.mrb[0].mxu0 %v1533
  %v1601 = vpop.f32.mrb[0].mxu0
  %v1602 = vadd.f32 0.0, %v1601
  %v1603 = vpop.f32.mrb[0].mxu0
  %1604 = vdwg.mxu0
  %v1606 = vsel %vm126, %v1602, 0
  %1608 = vmatprep.subr.mxu0 0.0
  %1609 = vmatpush1.msra.mxu0 %v35
  %1610 = vmatprep.subr.mxu0 0.0
  %1611 = vmatpush1.msra.mxu0 0.0
  %1612 = vmatprep.subr.mxu0 0.0
  %1613 = vmatpush1.msra.mxu0 0.0
  %1614 = vmatprep.subr.mxu0 0.0
  %1615 = vmatpush1.msra.mxu0 0.0
  %1616 = vmatprep.subr.mxu0 0.0
  %1617 = vmatpush1.msra.mxu0 0.0
  %1618 = vmatprep.subr.mxu0 0.0
  %1619 = vmatpush1.msra.mxu0 0.0
  %1620 = vmatprep.subr.mxu0 0.0
  %1621 = vmatpush1.msra.mxu0 0.0
  %1622 = vmatprep.subr.mxu0 0.0
  %1623 = vmatpush1.msra.mxu0 0.0
  %1624 = vmatprep.subr.mxu0 0.0
  %1625 = vmatpush1.msra.mxu0 0.0
  %1626 = vmatprep.subr.mxu0 0.0
  %1627 = vmatpush1.msra.mxu0 0.0
  %1628 = vmatprep.subr.mxu0 0.0
  %1629 = vmatpush1.msra.mxu0 0.0
  %1630 = vmatprep.subr.mxu0 0.0
  %1631 = vmatpush1.msra.mxu0 0.0
  %1632 = vmatprep.subr.mxu0 0.0
  %1633 = vmatpush1.msra.mxu0 0.0
  %1634 = vmatprep.subr.mxu0 0.0
  %1635 = vmatpush1.msra.mxu0 0.0
  %1636 = vmatprep.subr.mxu0 0.0
  %1637 = vmatpush1.msra.mxu0 0.0
  %1638 = vmatprep.subr.mxu0 0.0
  %1639 = vmatpush1.msra.mxu0 0.0
  %1640 = vmatprep.subr.mxu0 0.0
  %1641 = vmatpush1.msra.mxu0 0.0
  %1642 = vmatprep.subr.mxu0 0.0
  %1643 = vmatpush1.msra.mxu0 0.0
  %1644 = vmatprep.subr.mxu0 0.0
  %1645 = vmatpush1.msra.mxu0 0.0
  %1646 = vmatprep.subr.mxu0 0.0
  %1647 = vmatpush1.msra.mxu0 0.0
  %1648 = vmatprep.subr.mxu0 0.0
  %1649 = vmatpush1.msra.mxu0 0.0
  %1650 = vmatprep.subr.mxu0 0.0
  %1651 = vmatpush1.msra.mxu0 0.0
  %1652 = vmatprep.subr.mxu0 0.0
  %1653 = vmatpush1.msra.mxu0 0.0
  %1654 = vmatprep.subr.mxu0 0.0
  %1655 = vmatpush1.msra.mxu0 0.0
  %1656 = vmatprep.subr.mxu0 0.0
  %1657 = vmatpush1.msra.mxu0 0.0
  %1658 = vmatprep.subr.mxu0 0.0
  %1659 = vmatpush1.msra.mxu0 0.0
  %1660 = vmatprep.subr.mxu0 0.0
  %1661 = vmatpush1.msra.mxu0 0.0
  %1662 = vmatprep.subr.mxu0 0.0
  %1663 = vmatpush1.msra.mxu0 0.0
  %1664 = vmatprep.subr.mxu0 0.0
  %1665 = vmatpush1.msra.mxu0 0.0
  %1666 = vmatprep.subr.mxu0 0.0
  %1667 = vmatpush1.msra.mxu0 0.0
  %1668 = vmatprep.subr.mxu0 0.0
  %1669 = vmatpush1.msra.mxu0 0.0
  %1670 = vmatprep.subr.mxu0 0.0
  %1671 = vmatpush1.msra.mxu0 0.0
  %1672 = vmatprep.mubr.f32.mxu0 0.0
  %1673 = vmatmul.mubr.f32.gmra.mrb[0].mxu0 %v1606
  %v1674 = vpop.f32.mrb[0].mxu0
  %v1675 = vadd.f32 0.0, %v1674
  %v1676 = vpop.f32.mrb[0].mxu0
  %1677 = vdwg.mxu0
  %v1678 = vadd.f32 %v1437, %v1675
  %1679 = vrot.lane.b32.xlu0 %v1195, 112
  %v1680 = vpop.permute.xlu0 %1679
  %1681 = vrot.lane.b32.xlu0 %v1195, 80
  %v1682 = vpop.permute.xlu0 %1681
  %v1683 = vsel %vm126, %v1680, 0
  %v1685 = vsel %vm126, %v1682, 0
  %1687 = vmatprep.subr.mxu0 0.0
  %1688 = vmatpush1.xpose.msra.mxu0 %v1685
  %1689 = vmatprep.subr.mxu0 0.0
  %1690 = vmatpush1.xpose.msra.mxu0 0.0
  %1691 = vmatprep.subr.mxu0 0.0
  %1692 = vmatpush1.xpose.msra.mxu0 0.0
  %1693 = vmatprep.subr.mxu0 0.0
  %1694 = vmatpush1.xpose.msra.mxu0 0.0
  %1695 = vmatprep.subr.mxu0 0.0
  %1696 = vmatpush1.xpose.msra.mxu0 0.0
  %1697 = vmatprep.subr.mxu0 0.0
  %1698 = vmatpush1.xpose.msra.mxu0 0.0
  %1699 = vmatprep.subr.mxu0 0.0
  %1700 = vmatpush1.xpose.msra.mxu0 0.0
  %1701 = vmatprep.subr.mxu0 0.0
  %1702 = vmatpush1.xpose.msra.mxu0 0.0
  %1703 = vmatprep.subr.mxu0 0.0
  %1704 = vmatpush1.xpose.msra.mxu0 0.0
  %1705 = vmatprep.subr.mxu0 0.0
  %1706 = vmatpush1.xpose.msra.mxu0 0.0
  %1707 = vmatprep.subr.mxu0 0.0
  %1708 = vmatpush1.xpose.msra.mxu0 0.0
  %1709 = vmatprep.subr.mxu0 0.0
  %1710 = vmatpush1.xpose.msra.mxu0 0.0
  %1711 = vmatprep.subr.mxu0 0.0
  %1712 = vmatpush1.xpose.msra.mxu0 0.0
  %1713 = vmatprep.subr.mxu0 0.0
  %1714 = vmatpush1.xpose.msra.mxu0 0.0
  %1715 = vmatprep.subr.mxu0 0.0
  %1716 = vmatpush1.xpose.msra.mxu0 0.0
  %1717 = vmatprep.subr.mxu0 0.0
  %1718 = vmatpush1.xpose.msra.mxu0 0.0
  %1719 = vmatprep.subr.mxu0 0.0
  %1720 = vmatpush1.xpose.msra.mxu0 0.0
  %1721 = vmatprep.subr.mxu0 0.0
  %1722 = vmatpush1.xpose.msra.mxu0 0.0
  %1723 = vmatprep.subr.mxu0 0.0
  %1724 = vmatpush1.xpose.msra.mxu0 0.0
  %1725 = vmatprep.subr.mxu0 0.0
  %1726 = vmatpush1.xpose.msra.mxu0 0.0
  %1727 = vmatprep.subr.mxu0 0.0
  %1728 = vmatpush1.xpose.msra.mxu0 0.0
  %1729 = vmatprep.subr.mxu0 0.0
  %1730 = vmatpush1.xpose.msra.mxu0 0.0
  %1731 = vmatprep.subr.mxu0 0.0
  %1732 = vmatpush1.xpose.msra.mxu0 0.0
  %1733 = vmatprep.subr.mxu0 0.0
  %1734 = vmatpush1.xpose.msra.mxu0 0.0
  %1735 = vmatprep.subr.mxu0 0.0
  %1736 = vmatpush1.xpose.msra.mxu0 0.0
  %1737 = vmatprep.subr.mxu0 0.0
  %1738 = vmatpush1.xpose.msra.mxu0 0.0
  %1739 = vmatprep.subr.mxu0 0.0
  %1740 = vmatpush1.xpose.msra.mxu0 0.0
  %1741 = vmatprep.subr.mxu0 0.0
  %1742 = vmatpush1.xpose.msra.mxu0 0.0
  %1743 = vmatprep.subr.mxu0 0.0
  %1744 = vmatpush1.xpose.msra.mxu0 0.0
  %1745 = vmatprep.subr.mxu0 0.0
  %1746 = vmatpush1.xpose.msra.mxu0 0.0
  %1747 = vmatprep.subr.mxu0 0.0
  %1748 = vmatpush1.xpose.msra.mxu0 0.0
  %1749 = vmatprep.subr.mxu0 0.0
  %1750 = vmatpush1.xpose.msra.mxu0 0.0
  %1751 = vmatprep.mubr.f32.mxu0 0.0
  %1752 = vmatmul.mubr.f32.gmra.mrb[0].mxu0 %v1683
  %v1753 = vpop.f32.mrb[0].mxu0
  %v1754 = vadd.f32 0.0, %v1753
  %v1755 = vpop.f32.mrb[0].mxu0
  %1756 = vdwg.mxu0
  %v1757 = vmul.f32 %v1754, 0.35355338
  %v1758 = vadd.f32 %v1757, %v41
  %v1759 = vsel %vm126, %v1758, -inf
  %1760 = vmax.xlane.f32.xlu0 %v1759
  %v1761 = vpop.xlane.xlu0 %1760
  %v1762 = vsub.f32 %v1758, %v1761
  %v1763 = vmul.f32 %v1762, 1.442695
  %v1764 = vpow.pop %v1763
  %v1765 = vsel %vm126, %v1764, 0.0
  %1766 = vadd.xlane.f32.xlu0 %v1765
  %v1767 = vpop.xlane.xlu0 %1766
  %v1768 = vrcp.pop %v1767
  %v1769 = vmul.f32 %v1764, %v1768
  %1770 = vrot.lane.b32.xlu0 %v1195, 48
  %v1771 = vpop.permute.xlu0 %1770
  %v1774 = vsel %vm126, %v1769, 0
  %1776 = vmatprep.subr.mxu0 0.0
  %1777 = vmatpush1.msra.mxu0 %v1771
  %1778 = vmatprep.subr.mxu0 0.0
  %1779 = vmatpush1.msra.mxu0 0.0
  %1780 = vmatprep.subr.mxu0 0.0
  %1781 = vmatpush1.msra.mxu0 0.0
  %1782 = vmatprep.subr.mxu0 0.0
  %1783 = vmatpush1.msra.mxu0 0.0
  %1784 = vmatprep.subr.mxu0 0.0
  %1785 = vmatpush1.msra.mxu0 0.0
  %1786 = vmatprep.subr.mxu0 0.0
  %1787 = vmatpush1.msra.mxu0 0.0
  %1788 = vmatprep.subr.mxu0 0.0
  %1789 = vmatpush1.msra.mxu0 0.0
  %1790 = vmatprep.subr.mxu0 0.0
  %1791 = vmatpush1.msra.mxu0 0.0
  %1792 = vmatprep.subr.mxu0 0.0
  %1793 = vmatpush1.msra.mxu0 0.0
  %1794 = vmatprep.subr.mxu0 0.0
  %1795 = vmatpush1.msra.mxu0 0.0
  %1796 = vmatprep.subr.mxu0 0.0
  %1797 = vmatpush1.msra.mxu0 0.0
  %1798 = vmatprep.subr.mxu0 0.0
  %1799 = vmatpush1.msra.mxu0 0.0
  %1800 = vmatprep.subr.mxu0 0.0
  %1801 = vmatpush1.msra.mxu0 0.0
  %1802 = vmatprep.subr.mxu0 0.0
  %1803 = vmatpush1.msra.mxu0 0.0
  %1804 = vmatprep.subr.mxu0 0.0
  %1805 = vmatpush1.msra.mxu0 0.0
  %1806 = vmatprep.subr.mxu0 0.0
  %1807 = vmatpush1.msra.mxu0 0.0
  %1808 = vmatprep.subr.mxu0 0.0
  %1809 = vmatpush1.msra.mxu0 0.0
  %1810 = vmatprep.subr.mxu0 0.0
  %1811 = vmatpush1.msra.mxu0 0.0
  %1812 = vmatprep.subr.mxu0 0.0
  %1813 = vmatpush1.msra.mxu0 0.0
  %1814 = vmatprep.subr.mxu0 0.0
  %1815 = vmatpush1.msra.mxu0 0.0
  %1816 = vmatprep.subr.mxu0 0.0
  %1817 = vmatpush1.msra.mxu0 0.0
  %1818 = vmatprep.subr.mxu0 0.0
  %1819 = vmatpush1.msra.mxu0 0.0
  %1820 = vmatprep.subr.mxu0 0.0
  %1821 = vmatpush1.msra.mxu0 0.0
  %1822 = vmatprep.subr.mxu0 0.0
  %1823 = vmatpush1.msra.mxu0 0.0
  %1824 = vmatprep.subr.mxu0 0.0
  %1825 = vmatpush1.msra.mxu0 0.0
  %1826 = vmatprep.subr.mxu0 0.0
  %1827 = vmatpush1.msra.mxu0 0.0
  %1828 = vmatprep.subr.mxu0 0.0
  %1829 = vmatpush1.msra.mxu0 0.0
  %1830 = vmatprep.subr.mxu0 0.0
  %1831 = vmatpush1.msra.mxu0 0.0
  %1832 = vmatprep.subr.mxu0 0.0
  %1833 = vmatpush1.msra.mxu0 0.0
  %1834 = vmatprep.subr.mxu0 0.0
  %1835 = vmatpush1.msra.mxu0 0.0
  %1836 = vmatprep.subr.mxu0 0.0
  %1837 = vmatpush1.msra.mxu0 0.0
  %1838 = vmatprep.subr.mxu0 0.0
  %1839 = vmatpush1.msra.mxu0 0.0
  %1840 = vmatprep.mubr.f32.mxu0 0.0
  %1841 = vmatmul.mubr.f32.gmra.mrb[0].mxu0 %v1774
  %v1842 = vpop.f32.mrb[0].mxu0
  %v1843 = vadd.f32 0.0, %v1842
  %v1844 = vpop.f32.mrb[0].mxu0
  %1845 = vdwg.mxu0
  %v1847 = vsel %vm126, %v1843, 0
  %1849 = vmatprep.subr.mxu0 0.0
  %1850 = vmatpush1.msra.mxu0 %v36
  %1851 = vmatprep.subr.mxu0 0.0
  %1852 = vmatpush1.msra.mxu0 0.0
  %1853 = vmatprep.subr.mxu0 0.0
  %1854 = vmatpush1.msra.mxu0 0.0
  %1855 = vmatprep.subr.mxu0 0.0
  %1856 = vmatpush1.msra.mxu0 0.0
  %1857 = vmatprep.subr.mxu0 0.0
  %1858 = vmatpush1.msra.mxu0 0.0
  %1859 = vmatprep.subr.mxu0 0.0
  %1860 = vmatpush1.msra.mxu0 0.0
  %1861 = vmatprep.subr.mxu0 0.0
  %1862 = vmatpush1.msra.mxu0 0.0
  %1863 = vmatprep.subr.mxu0 0.0
  %1864 = vmatpush1.msra.mxu0 0.0
  %1865 = vmatprep.subr.mxu0 0.0
  %1866 = vmatpush1.msra.mxu0 0.0
  %1867 = vmatprep.subr.mxu0 0.0
  %1868 = vmatpush1.msra.mxu0 0.0
  %1869 = vmatprep.subr.mxu0 0.0
  %1870 = vmatpush1.msra.mxu0 0.0
  %1871 = vmatprep.subr.mxu0 0.0
  %1872 = vmatpush1.msra.mxu0 0.0
  %1873 = vmatprep.subr.mxu0 0.0
  %1874 = vmatpush1.msra.mxu0 0.0
  %1875 = vmatprep.subr.mxu0 0.0
  %1876 = vmatpush1.msra.mxu0 0.0
  %1877 = vmatprep.subr.mxu0 0.0
  %1878 = vmatpush1.msra.mxu0 0.0
  %1879 = vmatprep.subr.mxu0 0.0
  %1880 = vmatpush1.msra.mxu0 0.0
  %1881 = vmatprep.subr.mxu0 0.0
  %1882 = vmatpush1.msra.mxu0 0.0
  %1883 = vmatprep.subr.mxu0 0.0
  %1884 = vmatpush1.msra.mxu0 0.0
  %1885 = vmatprep.subr.mxu0 0.0
  %1886 = vmatpush1.msra.mxu0 0.0
  %1887 = vmatprep.subr.mxu0 0.0
  %1888 = vmatpush1.msra.mxu0 0.0
  %1889 = vmatprep.subr.mxu0 0.0
  %1890 = vmatpush1.msra.mxu0 0.0
  %1891 = vmatprep.subr.mxu0 0.0
  %1892 = vmatpush1.msra.mxu0 0.0
  %1893 = vmatprep.subr.mxu0 0.0
  %1894 = vmatpush1.msra.mxu0 0.0
  %1895 = vmatprep.subr.mxu0 0.0
  %1896 = vmatpush1.msra.mxu0 0.0
  %1897 = vmatprep.subr.mxu0 0.0
  %1898 = vmatpush1.msra.mxu0 0.0
  %1899 = vmatprep.subr.mxu0 0.0
  %1900 = vmatpush1.msra.mxu0 0.0
  %1901 = vmatprep.subr.mxu0 0.0
  %1902 = vmatpush1.msra.mxu0 0.0
  %1903 = vmatprep.subr.mxu0 0.0
  %1904 = vmatpush1.msra.mxu0 0.0
  %1905 = vmatprep.subr.mxu0 0.0
  %1906 = vmatpush1.msra.mxu0 0.0
  %1907 = vmatprep.subr.mxu0 0.0
  %1908 = vmatpush1.msra.mxu0 0.0
  %1909 = vmatprep.subr.mxu0 0.0
  %1910 = vmatpush1.msra.mxu0 0.0
  %1911 = vmatprep.subr.mxu0 0.0
  %1912 = vmatpush1.msra.mxu0 0.0
  %1913 = vmatprep.mubr.f32.mxu0 0.0
  %1914 = vmatmul.mubr.f32.gmra.mrb[0].mxu0 %v1847
  %v1915 = vpop.f32.mrb[0].mxu0
  %v1916 = vadd.f32 0.0, %v1915
  %v1917 = vpop.f32.mrb[0].mxu0
  %1918 = vdwg.mxu0
  %v1919 = vadd.f32 %v1678, %v1916
  %1920 = vrot.lane.b32.xlu0 %v1195, 104
  %v1921 = vpop.permute.xlu0 %1920
  %1922 = vrot.lane.b32.xlu0 %v1195, 72
  %v1923 = vpop.permute.xlu0 %1922
  %v1924 = vsel %vm126, %v1921, 0
  %v1926 = vsel %vm126, %v1923, 0
  %1928 = vmatprep.subr.mxu0 0.0
  %1929 = vmatpush1.xpose.msra.mxu0 %v1926
  %1930 = vmatprep.subr.mxu0 0.0
  %1931 = vmatpush1.xpose.msra.mxu0 0.0
  %1932 = vmatprep.subr.mxu0 0.0
  %1933 = vmatpush1.xpose.msra.mxu0 0.0
  %1934 = vmatprep.subr.mxu0 0.0
  %1935 = vmatpush1.xpose.msra.mxu0 0.0
  %1936 = vmatprep.subr.mxu0 0.0
  %1937 = vmatpush1.xpose.msra.mxu0 0.0
  %1938 = vmatprep.subr.mxu0 0.0
  %1939 = vmatpush1.xpose.msra.mxu0 0.0
  %1940 = vmatprep.subr.mxu0 0.0
  %1941 = vmatpush1.xpose.msra.mxu0 0.0
  %1942 = vmatprep.subr.mxu0 0.0
  %1943 = vmatpush1.xpose.msra.mxu0 0.0
  %1944 = vmatprep.subr.mxu0 0.0
  %1945 = vmatpush1.xpose.msra.mxu0 0.0
  %1946 = vmatprep.subr.mxu0 0.0
  %1947 = vmatpush1.xpose.msra.mxu0 0.0
  %1948 = vmatprep.subr.mxu0 0.0
  %1949 = vmatpush1.xpose.msra.mxu0 0.0
  %1950 = vmatprep.subr.mxu0 0.0
  %1951 = vmatpush1.xpose.msra.mxu0 0.0
  %1952 = vmatprep.subr.mxu0 0.0
  %1953 = vmatpush1.xpose.msra.mxu0 0.0
  %1954 = vmatprep.subr.mxu0 0.0
  %1955 = vmatpush1.xpose.msra.mxu0 0.0
  %1956 = vmatprep.subr.mxu0 0.0
  %1957 = vmatpush1.xpose.msra.mxu0 0.0
  %1958 = vmatprep.subr.mxu0 0.0
  %1959 = vmatpush1.xpose.msra.mxu0 0.0
  %1960 = vmatprep.subr.mxu0 0.0
  %1961 = vmatpush1.xpose.msra.mxu0 0.0
  %1962 = vmatprep.subr.mxu0 0.0
  %1963 = vmatpush1.xpose.msra.mxu0 0.0
  %1964 = vmatprep.subr.mxu0 0.0
  %1965 = vmatpush1.xpose.msra.mxu0 0.0
  %1966 = vmatprep.subr.mxu0 0.0
  %1967 = vmatpush1.xpose.msra.mxu0 0.0
  %1968 = vmatprep.subr.mxu0 0.0
  %1969 = vmatpush1.xpose.msra.mxu0 0.0
  %1970 = vmatprep.subr.mxu0 0.0
  %1971 = vmatpush1.xpose.msra.mxu0 0.0
  %1972 = vmatprep.subr.mxu0 0.0
  %1973 = vmatpush1.xpose.msra.mxu0 0.0
  %1974 = vmatprep.subr.mxu0 0.0
  %1975 = vmatpush1.xpose.msra.mxu0 0.0
  %1976 = vmatprep.subr.mxu0 0.0
  %1977 = vmatpush1.xpose.msra.mxu0 0.0
  %1978 = vmatprep.subr.mxu0 0.0
  %1979 = vmatpush1.xpose.msra.mxu0 0.0
  %1980 = vmatprep.subr.mxu0 0.0
  %1981 = vmatpush1.xpose.msra.mxu0 0.0
  %1982 = vmatprep.subr.mxu0 0.0
  %1983 = vmatpush1.xpose.msra.mxu0 0.0
  %1984 = vmatprep.subr.mxu0 0.0
  %1985 = vmatpush1.xpose.msra.mxu0 0.0
  %1986 = vmatprep.subr.mxu0 0.0
  %1987 = vmatpush1.xpose.msra.mxu0 0.0
  %1988 = vmatprep.subr.mxu0 0.0
  %1989 = vmatpush1.xpose.msra.mxu0 0.0
  %1990 = vmatprep.subr.mxu0 0.0
  %1991 = vmatpush1.xpose.msra.mxu0 0.0
  %1992 = vmatprep.mubr.f32.mxu0 0.0
  %1993 = vmatmul.mubr.f32.gmra.mrb[0].mxu0 %v1924
  %v1994 = vpop.f32.mrb[0].mxu0
  %v1995 = vadd.f32 0.0, %v1994
  %v1996 = vpop.f32.mrb[0].mxu0
  %1997 = vdwg.mxu0
  %v1998 = vmul.f32 %v1995, 0.35355338
  %v1999 = vadd.f32 %v1998, %v41
  %v2000 = vsel %vm126, %v1999, -inf
  %2001 = vmax.xlane.f32.xlu0 %v2000
  %v2002 = vpop.xlane.xlu0 %2001
  %v2003 = vsub.f32 %v1999, %v2002
  %v2004 = vmul.f32 %v2003, 1.442695
  %v2005 = vpow.pop %v2004
  %v2006 = vsel %vm126, %v2005, 0.0
  %2007 = vadd.xlane.f32.xlu0 %v2006
  %v2008 = vpop.xlane.xlu0 %2007
  %v2009 = vrcp.pop %v2008
  %v2010 = vmul.f32 %v2005, %v2009
  %2011 = vrot.lane.b32.xlu0 %v1195, 40
  %v2012 = vpop.permute.xlu0 %2011
  %v2015 = vsel %vm126, %v2010, 0
  %2017 = vmatprep.subr.mxu0 0.0
  %2018 = vmatpush1.msra.mxu0 %v2012
  %2019 = vmatprep.subr.mxu0 0.0
  %2020 = vmatpush1.msra.mxu0 0.0
  %2021 = vmatprep.subr.mxu0 0.0
  %2022 = vmatpush1.msra.mxu0 0.0
  %2023 = vmatprep.subr.mxu0 0.0
  %2024 = vmatpush1.msra.mxu0 0.0
  %2025 = vmatprep.subr.mxu0 0.0
  %2026 = vmatpush1.msra.mxu0 0.0
  %2027 = vmatprep.subr.mxu0 0.0
  %2028 = vmatpush1.msra.mxu0 0.0
  %2029 = vmatprep.subr.mxu0 0.0
  %2030 = vmatpush1.msra.mxu0 0.0
  %2031 = vmatprep.subr.mxu0 0.0
  %2032 = vmatpush1.msra.mxu0 0.0
  %2033 = vmatprep.subr.mxu0 0.0
  %2034 = vmatpush1.msra.mxu0 0.0
  %2035 = vmatprep.subr.mxu0 0.0
  %2036 = vmatpush1.msra.mxu0 0.0
  %2037 = vmatprep.subr.mxu0 0.0
  %2038 = vmatpush1.msra.mxu0 0.0
  %2039 = vmatprep.subr.mxu0 0.0
  %2040 = vmatpush1.msra.mxu0 0.0
  %2041 = vmatprep.subr.mxu0 0.0
  %2042 = vmatpush1.msra.mxu0 0.0
  %2043 = vmatprep.subr.mxu0 0.0
  %2044 = vmatpush1.msra.mxu0 0.0
  %2045 = vmatprep.subr.mxu0 0.0
  %2046 = vmatpush1.msra.mxu0 0.0
  %2047 = vmatprep.subr.mxu0 0.0
  %2048 = vmatpush1.msra.mxu0 0.0
  %2049 = vmatprep.subr.mxu0 0.0
  %2050 = vmatpush1.msra.mxu0 0.0
  %2051 = vmatprep.subr.mxu0 0.0
  %2052 = vmatpush1.msra.mxu0 0.0
  %2053 = vmatprep.subr.mxu0 0.0
  %2054 = vmatpush1.msra.mxu0 0.0
  %2055 = vmatprep.subr.mxu0 0.0
  %2056 = vmatpush1.msra.mxu0 0.0
  %2057 = vmatprep.subr.mxu0 0.0
  %2058 = vmatpush1.msra.mxu0 0.0
  %2059 = vmatprep.subr.mxu0 0.0
  %2060 = vmatpush1.msra.mxu0 0.0
  %2061 = vmatprep.subr.mxu0 0.0
  %2062 = vmatpush1.msra.mxu0 0.0
  %2063 = vmatprep.subr.mxu0 0.0
  %2064 = vmatpush1.msra.mxu0 0.0
  %2065 = vmatprep.subr.mxu0 0.0
  %2066 = vmatpush1.msra.mxu0 0.0
  %2067 = vmatprep.subr.mxu0 0.0
  %2068 = vmatpush1.msra.mxu0 0.0
  %2069 = vmatprep.subr.mxu0 0.0
  %2070 = vmatpush1.msra.mxu0 0.0
  %2071 = vmatprep.subr.mxu0 0.0
  %2072 = vmatpush1.msra.mxu0 0.0
  %2073 = vmatprep.subr.mxu0 0.0
  %2074 = vmatpush1.msra.mxu0 0.0
  %2075 = vmatprep.subr.mxu0 0.0
  %2076 = vmatpush1.msra.mxu0 0.0
  %2077 = vmatprep.subr.mxu0 0.0
  %2078 = vmatpush1.msra.mxu0 0.0
  %2079 = vmatprep.subr.mxu0 0.0
  %2080 = vmatpush1.msra.mxu0 0.0
  %2081 = vmatprep.mubr.f32.mxu0 0.0
  %2082 = vmatmul.mubr.f32.gmra.mrb[0].mxu0 %v2015
  %v2083 = vpop.f32.mrb[0].mxu0
  %v2084 = vadd.f32 0.0, %v2083
  %v2085 = vpop.f32.mrb[0].mxu0
  %2086 = vdwg.mxu0
  %v2088 = vsel %vm126, %v2084, 0
  %2090 = vmatprep.subr.mxu0 0.0
  %2091 = vmatpush1.msra.mxu0 %v37
  %2092 = vmatprep.subr.mxu0 0.0
  %2093 = vmatpush1.msra.mxu0 0.0
  %2094 = vmatprep.subr.mxu0 0.0
  %2095 = vmatpush1.msra.mxu0 0.0
  %2096 = vmatprep.subr.mxu0 0.0
  %2097 = vmatpush1.msra.mxu0 0.0
  %2098 = vmatprep.subr.mxu0 0.0
  %2099 = vmatpush1.msra.mxu0 0.0
  %2100 = vmatprep.subr.mxu0 0.0
  %2101 = vmatpush1.msra.mxu0 0.0
  %2102 = vmatprep.subr.mxu0 0.0
  %2103 = vmatpush1.msra.mxu0 0.0
  %2104 = vmatprep.subr.mxu0 0.0
  %2105 = vmatpush1.msra.mxu0 0.0
  %2106 = vmatprep.subr.mxu0 0.0
  %2107 = vmatpush1.msra.mxu0 0.0
  %2108 = vmatprep.subr.mxu0 0.0
  %2109 = vmatpush1.msra.mxu0 0.0
  %2110 = vmatprep.subr.mxu0 0.0
  %2111 = vmatpush1.msra.mxu0 0.0
  %2112 = vmatprep.subr.mxu0 0.0
  %2113 = vmatpush1.msra.mxu0 0.0
  %2114 = vmatprep.subr.mxu0 0.0
  %2115 = vmatpush1.msra.mxu0 0.0
  %2116 = vmatprep.subr.mxu0 0.0
  %2117 = vmatpush1.msra.mxu0 0.0
  %2118 = vmatprep.subr.mxu0 0.0
  %2119 = vmatpush1.msra.mxu0 0.0
  %2120 = vmatprep.subr.mxu0 0.0
  %2121 = vmatpush1.msra.mxu0 0.0
  %2122 = vmatprep.subr.mxu0 0.0
  %2123 = vmatpush1.msra.mxu0 0.0
  %2124 = vmatprep.subr.mxu0 0.0
  %2125 = vmatpush1.msra.mxu0 0.0
  %2126 = vmatprep.subr.mxu0 0.0
  %2127 = vmatpush1.msra.mxu0 0.0
  %2128 = vmatprep.subr.mxu0 0.0
  %2129 = vmatpush1.msra.mxu0 0.0
  %2130 = vmatprep.subr.mxu0 0.0
  %2131 = vmatpush1.msra.mxu0 0.0
  %2132 = vmatprep.subr.mxu0 0.0
  %2133 = vmatpush1.msra.mxu0 0.0
  %2134 = vmatprep.subr.mxu0 0.0
  %2135 = vmatpush1.msra.mxu0 0.0
  %2136 = vmatprep.subr.mxu0 0.0
  %2137 = vmatpush1.msra.mxu0 0.0
  %2138 = vmatprep.subr.mxu0 0.0
  %2139 = vmatpush1.msra.mxu0 0.0
  %2140 = vmatprep.subr.mxu0 0.0
  %2141 = vmatpush1.msra.mxu0 0.0
  %2142 = vmatprep.subr.mxu0 0.0
  %2143 = vmatpush1.msra.mxu0 0.0
  %2144 = vmatprep.subr.mxu0 0.0
  %2145 = vmatpush1.msra.mxu0 0.0
  %2146 = vmatprep.subr.mxu0 0.0
  %2147 = vmatpush1.msra.mxu0 0.0
  %2148 = vmatprep.subr.mxu0 0.0
  %2149 = vmatpush1.msra.mxu0 0.0
  %2150 = vmatprep.subr.mxu0 0.0
  %2151 = vmatpush1.msra.mxu0 0.0
  %2152 = vmatprep.subr.mxu0 0.0
  %2153 = vmatpush1.msra.mxu0 0.0
  %2154 = vmatprep.mubr.f32.mxu0 0.0
  %2155 = vmatmul.mubr.f32.gmra.mrb[0].mxu0 %v2088
  %v2156 = vpop.f32.mrb[0].mxu0
  %v2157 = vadd.f32 0.0, %v2156
  %v2158 = vpop.f32.mrb[0].mxu0
  %2159 = vdwg.mxu0
  %v2160 = vadd.f32 %v1919, %v2157
  %v2161 = vadd.f32 %v1124, %v2160
  %v2162 = vsel %vm49, %v2161, 0.0
  %2163 = vadd.xlane.f32.xlu0 %v2162
  %v2164 = vpop.xlane.xlu0 %2163
  %v2165 = vmul.f32 %v2164, %v1097
  %v2166 = vsub.f32 %v2161, %v2165
  %v2167 = vmul.f32 %v2166, %v2166
  %v2168 = vsel %vm49, %v2167, 0.0
  %2169 = vadd.xlane.f32.xlu0 %v2168
  %v2170 = vpop.xlane.xlu0 %2169
  %v2171 = vmul.f32 %v2170, %v1097
  %v2172 = vadd.f32 %v2171, 1e-05
  %v2173 = vrsqrt.pop %v2172
  %v2174 = vmul.f32 %v2166, %v2173
  %v2175 = vmul.f32 %v2174, %v1112
  %v2176 = vadd.f32 %v2175, %v1119
  %s2177 = scalar_lea.vmem %s8, 8
  %2178 = vst.msk [vmem:[%s2177] sm:$0xff] %vm49, %v2176
  // Predicated region
  $region34: #{transformer_mkii_forward.17} parent=0 // pred_check
    _
  $region35: #{transformer_mkii_forward.17} parent=0 // pred_check_branch
    %2180 = sbr.rel (0) target = $region37
  $region36: #{transformer_mkii_forward.17} parent=0 // pred_region
    _
  $region37: #{transformer_mkii_forward.17} parent=0 // pred_fallthru
    _
  // Predicated region
  $region38: #{transformer_mkii_forward.17} parent=0 // pred_check
    _
  $region39: #{transformer_mkii_forward.17} parent=0 // pred_check_branch
    %2182 = sbr.rel (0) target = $region41
  $region40: #{transformer_mkii_forward.17} parent=0 // pred_region
    _
  $region41: #{transformer_mkii_forward.17} parent=0 // pred_fallthru
    _

// kernel: transformer_mkii_forward.18
$region0: #{transformer_mkii_forward.18}
  #allocation0 [shape = 'u32[]', space=smem, size = 0x4, offset = 0x4, fixed_abs, tag = 'smem constant byte address 0x4 - core index']
  #allocation1 [shape = 'u32[144,128]{1,0:T(1,128)}', space=vmem, size = 0x12000, scoped, tag = 'internal scratch']
  %s0 = inlined_call_operand.vmem [shape: f32[2,8,32], index: 0, kind: input, shape index: {}]
  %s1 = inlined_call_operand.vmem [shape: f32[2,8,32], index: 1, kind: input, shape index: {}]
  %s2 = inlined_call_operand.vmem [shape: f32[32,96], index: 2, kind: input, shape index: {}]
  %s3 = inlined_call_operand.vmem [shape: f32[1,96], index: 3, kind: input, shape index: {}]
  %s4 = inlined_call_operand.vmem [shape: f32[32,32], index: 4, kind: input, shape index: {}]
  %s5 = inlined_call_operand.vmem [shape: f32[1,32], index: 5, kind: input, shape index: {}]
  %s6 = inlined_call_operand.vmem [shape: f32[1,32], index: 6, kind: input, shape index: {}]
  %s7 = inlined_call_operand.vmem [shape: f32[1,32], index: 7, kind: input, shape index: {}]
  %s8 = inlined_call_operand.vmem [shape: f32[2,8,32], index: 8, kind: output, shape index: {}]
  %s9 = sld [smem:[#allocation0]]
  $region42: #{transformer_mkii_forward.18} parent=0
    _
  %s11 = ssub.s32 1, %s9
  %s12 = scalar_select 0, %s11, %s9
  // Predicated region
  $region2: #{transformer_mkii_forward.18} parent=0 // pred_check
    _
  $region3: #{transformer_mkii_forward.18} parent=0 // pred_check_branch
    %14 = sbr.rel (0) target = $region5
  $region4: #{transformer_mkii_forward.18} parent=0 // pred_region
    _
  $region5: #{transformer_mkii_forward.18} parent=0 // pred_fallthru
    _
  // Predicated region
  $region6: #{transformer_mkii_forward.18} parent=0 // pred_check
    _
  $region7: #{transformer_mkii_forward.18} parent=0 // pred_check_branch
    %16 = sbr.rel (0) target = $region9
  $region8: #{transformer_mkii_forward.18} parent=0 // pred_region
    _
  $region9: #{transformer_mkii_forward.18} parent=0 // pred_fallthru
    _
  // Predicated region
  $region10: #{transformer_mkii_forward.18} parent=0 // pred_check
    _
  $region11: #{transformer_mkii_forward.18} parent=0 // pred_check_branch
    %18 = sbr.rel (0) target = $region13
  $region12: #{transformer_mkii_forward.18} parent=0 // pred_region
    _
  $region13: #{transformer_mkii_forward.18} parent=0 // pred_fallthru
    _
  // Predicated region
  $region14: #{transformer_mkii_forward.18} parent=0 // pred_check
    _
  $region15: #{transformer_mkii_forward.18} parent=0 // pred_check_branch
    %20 = sbr.rel (0) target = $region17
  $region16: #{transformer_mkii_forward.18} parent=0 // pred_region
    _
  $region17: #{transformer_mkii_forward.18} parent=0 // pred_fallthru
    _
  // Predicated region
  $region18: #{transformer_mkii_forward.18} parent=0 // pred_check
    _
  $region19: #{transformer_mkii_forward.18} parent=0 // pred_check_branch
    %22 = sbr.rel (0) target = $region21
  $region20: #{transformer_mkii_forward.18} parent=0 // pred_region
    _
  $region21: #{transformer_mkii_forward.18} parent=0 // pred_fallthru
    _
  // Predicated region
  $region22: #{transformer_mkii_forward.18} parent=0 // pred_check
    _
  $region23: #{transformer_mkii_forward.18} parent=0 // pred_check_branch
    %24 = sbr.rel (0) target = $region25
  $region24: #{transformer_mkii_forward.18} parent=0 // pred_region
    _
  $region25: #{transformer_mkii_forward.18} parent=0 // pred_fallthru
    _
  // Predicated region
  $region26: #{transformer_mkii_forward.18} parent=0 // pred_check
    _
  $region27: #{transformer_mkii_forward.18} parent=0 // pred_check_branch
    %26 = sbr.rel (0) target = $region29
  $region28: #{transformer_mkii_forward.18} parent=0 // pred_region
    _
  $region29: #{transformer_mkii_forward.18} parent=0 // pred_fallthru
    _
  // Predicated region
  $region30: #{transformer_mkii_forward.18} parent=0 // pred_check
    _
  $region31: #{transformer_mkii_forward.18} parent=0 // pred_check_branch
    %28 = sbr.rel (0) target = $region33
  $region32: #{transformer_mkii_forward.18} parent=0 // pred_region
    _
  $region33: #{transformer_mkii_forward.18} parent=0 // pred_fallthru
    _
  %v29 = vld [vmem:[%s2] sm:$0xff]
  %v30 = vld [vmem:[%s2 + $0x8] sm:$0xff]
  %v31 = vld [vmem:[%s2 + $0x10] sm:$0xff]
  %v32 = vld [vmem:[%s2 + $0x18] sm:$0xff]
  %v33 = vld [vmem:[%s3] sm:$0x1]
  %v34 = vld [vmem:[%s4] sm:$0xff]
  %v35 = vld [vmem:[%s4 + $0x8] sm:$0xff]
  %v36 = vld [vmem:[%s4 + $0x10] sm:$0xff]
  %v37 = vld [vmem:[%s4 + $0x18] sm:$0xff]
  %v38 = vld [vmem:[%s5] sm:$0x1]
  %v39 = vld [vmem:[%s6] sm:$0x1]
  %v40 = vld [vmem:[%s7] sm:$0x1]
  %v41 = vld [vmem:[%s0] sm:$0xff]
  %v42 = vld [vmem:[%s1] sm:$0xff]
  %v44 = vlaneseq
  %v45 = vshrl.u32 %v44, 7
  %v46 = vsub.s32 0, %v45
  %v47 = vrot.slane %v33, %v46
  %vm49 = vcmask 261120
  %v51 = vsel %vm49, %v41, 0
  %53 = vmatprep.subr.mxu0 0.0
  %54 = vmatpush1.msra.mxu0 %v29
  %55 = vmatprep.subr.mxu0 0.0
  %56 = vmatpush1.msra.mxu0 %v30
  %57 = vmatprep.subr.mxu0 0.0
  %58 = vmatpush1.msra.mxu0 %v31
  %59 = vmatprep.subr.mxu0 0.0
  %60 = vmatpush1.msra.mxu0 %v32
  %61 = vmatprep.subr.mxu0 0.0
  %62 = vmatpush1.msra.mxu0 0.0
  %63 = vmatprep.subr.mxu0 0.0
  %64 = vmatpush1.msra.mxu0 0.0
  %65 = vmatprep.subr.mxu0 0.0
  %66 = vmatpush1.msra.mxu0 0.0
  %67 = vmatprep.subr.mxu0 0.0
  %68 = vmatpush1.msra.mxu0 0.0
  %69 = vmatprep.subr.mxu0 0.0
  %70 = vmatpush1.msra.mxu0 0.0
  %71 = vmatprep.subr.mxu0 0.0
  %72 = vmatpush1.msra.mxu0 0.0
  %73 = vmatprep.subr.mxu0 0.0
  %74 = vmatpush1.msra.mxu0 0.0
  %75 = vmatprep.subr.mxu0 0.0
  %76 = vmatpush1.msra.mxu0 0.0
  %77 = vmatprep.subr.mxu0 0.0
  %78 = vmatpush1.msra.mxu0 0.0
  %79 = vmatprep.subr.mxu0 0.0
  %80 = vmatpush1.msra.mxu0 0.0
  %81 = vmatprep.subr.mxu0 0.0
  %82 = vmatpush1.msra.mxu0 0.0
  %83 = vmatprep.subr.mxu0 0.0
  %84 = vmatpush1.msra.mxu0 0.0
  %85 = vmatprep.subr.mxu0 0.0
  %86 = vmatpush1.msra.mxu0 0.0
  %87 = vmatprep.subr.mxu0 0.0
  %88 = vmatpush1.msra.mxu0 0.0
  %89 = vmatprep.subr.mxu0 0.0
  %90 = vmatpush1.msra.mxu0 0.0
  %91 = vmatprep.subr.mxu0 0.0
  %92 = vmatpush1.msra.mxu0 0.0
  %93 = vmatprep.subr.mxu0 0.0
  %94 = vmatpush1.msra.mxu0 0.0
  %95 = vmatprep.subr.mxu0 0.0
  %96 = vmatpush1.msra.mxu0 0.0
  %97 = vmatprep.subr.mxu0 0.0
  %98 = vmatpush1.msra.mxu0 0.0
  %99 = vmatprep.subr.mxu0 0.0
  %100 = vmatpush1.msra.mxu0 0.0
  %101 = vmatprep.subr.mxu0 0.0
  %102 = vmatpush1.msra.mxu0 0.0
  %103 = vmatprep.subr.mxu0 0.0
  %104 = vmatpush1.msra.mxu0 0.0
  %105 = vmatprep.subr.mxu0 0.0
  %106 = vmatpush1.msra.mxu0 0.0
  %107 = vmatprep.subr.mxu0 0.0
  %108 = vmatpush1.msra.mxu0 0.0
  %109 = vmatprep.subr.mxu0 0.0
  %110 = vmatpush1.msra.mxu0 0.0
  %111 = vmatprep.subr.mxu0 0.0
  %112 = vmatpush1.msra.mxu0 0.0
  %113 = vmatprep.subr.mxu0 0.0
  %114 = vmatpush1.msra.mxu0 0.0
  %115 = vmatprep.subr.mxu0 0.0
  %116 = vmatpush1.msra.mxu0 0.0
  %117 = vmatprep.mubr.f32.mxu0 0.0
  %118 = vmatmul.mubr.f32.gmra.mrb[0].mxu0 %v51
  %v119 = vpop.f32.mrb[0].mxu0
  %v120 = vadd.f32 %v47, %v119
  %v121 = vpop.f32.mrb[0].mxu0
  %122 = vdwg.mxu0
  %127 = vrot.lane.b32.xlu0 %v29, 96
  %v128 = vpop.permute.xlu0 %127
  %129 = vrot.lane.b32.xlu0 %v30, 96
  %v130 = vpop.permute.xlu0 %129
  %131 = vrot.lane.b32.xlu0 %v31, 96
  %v132 = vpop.permute.xlu0 %131
  %133 = vrot.lane.b32.xlu0 %v32, 96
  %v134 = vpop.permute.xlu0 %133
  %139 = vrot.lane.b32.xlu0 %v47, 96
  %v140 = vpop.permute.xlu0 %139
  %v143 = vsel %vm49, %v42, 0
  %145 = vmatprep.subr.mxu0 0.0
  %146 = vmatpush1.msra.mxu0 %v128
  %147 = vmatprep.subr.mxu0 0.0
  %148 = vmatpush1.msra.mxu0 %v130
  %149 = vmatprep.subr.mxu0 0.0
  %150 = vmatpush1.msra.mxu0 %v132
  %151 = vmatprep.subr.mxu0 0.0
  %152 = vmatpush1.msra.mxu0 %v134
  %153 = vmatprep.subr.mxu0 0.0
  %154 = vmatpush1.msra.mxu0 0.0
  %155 = vmatprep.subr.mxu0 0.0
  %156 = vmatpush1.msra.mxu0 0.0
  %157 = vmatprep.subr.mxu0 0.0
  %158 = vmatpush1.msra.mxu0 0.0
  %159 = vmatprep.subr.mxu0 0.0
  %160 = vmatpush1.msra.mxu0 0.0
  %161 = vmatprep.subr.mxu0 0.0
  %162 = vmatpush1.msra.mxu0 0.0
  %163 = vmatprep.subr.mxu0 0.0
  %164 = vmatpush1.msra.mxu0 0.0
  %165 = vmatprep.subr.mxu0 0.0
  %166 = vmatpush1.msra.mxu0 0.0
  %167 = vmatprep.subr.mxu0 0.0
  %168 = vmatpush1.msra.mxu0 0.0
  %169 = vmatprep.subr.mxu0 0.0
  %170 = vmatpush1.msra.mxu0 0.0
  %171 = vmatprep.subr.mxu0 0.0
  %172 = vmatpush1.msra.mxu0 0.0
  %173 = vmatprep.subr.mxu0 0.0
  %174 = vmatpush1.msra.mxu0 0.0
  %175 = vmatprep.subr.mxu0 0.0
  %176 = vmatpush1.msra.mxu0 0.0
  %177 = vmatprep.subr.mxu0 0.0
  %178 = vmatpush1.msra.mxu0 0.0
  %179 = vmatprep.subr.mxu0 0.0
  %180 = vmatpush1.msra.mxu0 0.0
  %181 = vmatprep.subr.mxu0 0.0
  %182 = vmatpush1.msra.mxu0 0.0
  %183 = vmatprep.subr.mxu0 0.0
  %184 = vmatpush1.msra.mxu0 0.0
  %185 = vmatprep.subr.mxu0 0.0
  %186 = vmatpush1.msra.mxu0 0.0
  %187 = vmatprep.subr.mxu0 0.0
  %188 = vmatpush1.msra.mxu0 0.0
  %189 = vmatprep.subr.mxu0 0.0
  %190 = vmatpush1.msra.mxu0 0.0
  %191 = vmatprep.subr.mxu0 0.0
  %192 = vmatpush1.msra.mxu0 0.0
  %193 = vmatprep.subr.mxu0 0.0
  %194 = vmatpush1.msra.mxu0 0.0
  %195 = vmatprep.subr.mxu0 0.0
  %196 = vmatpush1.msra.mxu0 0.0
  %197 = vmatprep.subr.mxu0 0.0
  %198 = vmatpush1.msra.mxu0 0.0
  %199 = vmatprep.subr.mxu0 0.0
  %200 = vmatpush1.msra.mxu0 0.0
  %201 = vmatprep.subr.mxu0 0.0
  %202 = vmatpush1.msra.mxu0 0.0
  %203 = vmatprep.subr.mxu0 0.0
  %204 = vmatpush1.msra.mxu0 0.0
  %205 = vmatprep.subr.mxu0 0.0
  %206 = vmatpush1.msra.mxu0 0.0
  %207 = vmatprep.subr.mxu0 0.0
  %208 = vmatpush1.msra.mxu0 0.0
  %209 = vmatprep.mubr.f32.mxu0 0.0
  %210 = vmatmul.mubr.f32.gmra.mrb[0].mxu0 %v143
  %v211 = vpop.f32.mrb[0].mxu0
  %v212 = vadd.f32 %v140, %v211
  %v213 = vpop.f32.mrb[0].mxu0
  %214 = vdwg.mxu0
  %vm215 = vcmask 64512
  %v217 = vsel %vm215, %v120, 0
  %v220 = vsel %vm215, %v212, 0
  %222 = vmatprep.subr.mxu0 0.0
  %223 = vmatpush1.xpose.msra.mxu0 %v220
  %224 = vmatprep.subr.mxu0 0.0
  %225 = vmatpush1.xpose.msra.mxu0 0.0
  %226 = vmatprep.subr.mxu0 0.0
  %227 = vmatpush1.xpose.msra.mxu0 0.0
  %228 = vmatprep.subr.mxu0 0.0
  %229 = vmatpush1.xpose.msra.mxu0 0.0
  %230 = vmatprep.subr.mxu0 0.0
  %231 = vmatpush1.xpose.msra.mxu0 0.0
  %232 = vmatprep.subr.mxu0 0.0
  %233 = vmatpush1.xpose.msra.mxu0 0.0
  %234 = vmatprep.subr.mxu0 0.0
  %235 = vmatpush1.xpose.msra.mxu0 0.0
  %236 = vmatprep.subr.mxu0 0.0
  %237 = vmatpush1.xpose.msra.mxu0 0.0
  %238 = vmatprep.subr.mxu0 0.0
  %239 = vmatpush1.xpose.msra.mxu0 0.0
  %240 = vmatprep.subr.mxu0 0.0
  %241 = vmatpush1.xpose.msra.mxu0 0.0
  %242 = vmatprep.subr.mxu0 0.0
  %243 = vmatpush1.xpose.msra.mxu0 0.0
  %244 = vmatprep.subr.mxu0 0.0
  %245 = vmatpush1.xpose.msra.mxu0 0.0
  %246 = vmatprep.subr.mxu0 0.0
  %247 = vmatpush1.xpose.msra.mxu0 0.0
  %248 = vmatprep.subr.mxu0 0.0
  %249 = vmatpush1.xpose.msra.mxu0 0.0
  %250 = vmatprep.subr.mxu0 0.0
  %251 = vmatpush1.xpose.msra.mxu0 0.0
  %252 = vmatprep.subr.mxu0 0.0
  %253 = vmatpush1.xpose.msra.mxu0 0.0
  %254 = vmatprep.subr.mxu0 0.0
  %255 = vmatpush1.xpose.msra.mxu0 0.0
  %256 = vmatprep.subr.mxu0 0.0
  %257 = vmatpush1.xpose.msra.mxu0 0.0
  %258 = vmatprep.subr.mxu0 0.0
  %259 = vmatpush1.xpose.msra.mxu0 0.0
  %260 = vmatprep.subr.mxu0 0.0
  %261 = vmatpush1.xpose.msra.mxu0 0.0
  %262 = vmatprep.subr.mxu0 0.0
  %263 = vmatpush1.xpose.msra.mxu0 0.0
  %264 = vmatprep.subr.mxu0 0.0
  %265 = vmatpush1.xpose.msra.mxu0 0.0
  %266 = vmatprep.subr.mxu0 0.0
  %267 = vmatpush1.xpose.msra.mxu0 0.0
  %268 = vmatprep.subr.mxu0 0.0
  %269 = vmatpush1.xpose.msra.mxu0 0.0
  %270 = vmatprep.subr.mxu0 0.0
  %271 = vmatpush1.xpose.msra.mxu0 0.0
  %272 = vmatprep.subr.mxu0 0.0
  %273 = vmatpush1.xpose.msra.mxu0 0.0
  %274 = vmatprep.subr.mxu0 0.0
  %275 = vmatpush1.xpose.msra.mxu0 0.0
  %276 = vmatprep.subr.mxu0 0.0
  %277 = vmatpush1.xpose.msra.mxu0 0.0
  %278 = vmatprep.subr.mxu0 0.0
  %279 = vmatpush1.xpose.msra.mxu0 0.0
  %280 = vmatprep.subr.mxu0 0.0
  %281 = vmatpush1.xpose.msra.mxu0 0.0
  %282 = vmatprep.subr.mxu0 0.0
  %283 = vmatpush1.xpose.msra.mxu0 0.0
  %284 = vmatprep.subr.mxu0 0.0
  %285 = vmatpush1.xpose.msra.mxu0 0.0
  %286 = vmatprep.mubr.f32.mxu0 0.0
  %287 = vmatmul.mubr.f32.gmra.mrb[0].mxu0 %v217
  %v288 = vpop.f32.mrb[0].mxu0
  %v289 = vadd.f32 0.0, %v288
  %v290 = vpop.f32.mrb[0].mxu0
  %291 = vdwg.mxu0
  %v292 = vmul.f32 %v289, 0.35355338
  %v293 = vsel %vm215, %v292, -inf
  %294 = vmax.xlane.f32.xlu0 %v293
  %v295 = vpop.xlane.xlu0 %294
  %v296 = vsub.f32 %v292, %v295
  %v297 = vmul.f32 %v296, 1.442695
  %v298 = vpow.pop %v297
  %v299 = vsel %vm215, %v298, 0.0
  %300 = vadd.xlane.f32.xlu0 %v299
  %v301 = vpop.xlane.xlu0 %300
  %v302 = vrcp.pop %v301
  %v303 = vmul.f32 %v298, %v302
  %304 = vrot.lane.b32.xlu0 %v212, 96
  %v305 = vpop.permute.xlu0 %304
  %v308 = vsel %vm215, %v303, 0
  %310 = vmatprep.subr.mxu0 0.0
  %311 = vmatpush1.msra.mxu0 %v305
  %312 = vmatprep.subr.mxu0 0.0
  %313 = vmatpush1.msra.mxu0 0.0
  %314 = vmatprep.subr.mxu0 0.0
  %315 = vmatpush1.msra.mxu0 0.0
  %316 = vmatprep.subr.mxu0 0.0
  %317 = vmatpush1.msra.mxu0 0.0
  %318 = vmatprep.subr.mxu0 0.0
  %319 = vmatpush1.msra.mxu0 0.0
  %320 = vmatprep.subr.mxu0 0.0
  %321 = vmatpush1.msra.mxu0 0.0
  %322 = vmatprep.subr.mxu0 0.0
  %323 = vmatpush1.msra.mxu0 0.0
  %324 = vmatprep.subr.mxu0 0.0
  %325 = vmatpush1.msra.mxu0 0.0
  %326 = vmatprep.subr.mxu0 0.0
  %327 = vmatpush1.msra.mxu0 0.0
  %328 = vmatprep.subr.mxu0 0.0
  %329 = vmatpush1.msra.mxu0 0.0
  %330 = vmatprep.subr.mxu0 0.0
  %331 = vmatpush1.msra.mxu0 0.0
  %332 = vmatprep.subr.mxu0 0.0
  %333 = vmatpush1.msra.mxu0 0.0
  %334 = vmatprep.subr.mxu0 0.0
  %335 = vmatpush1.msra.mxu0 0.0
  %336 = vmatprep.subr.mxu0 0.0
  %337 = vmatpush1.msra.mxu0 0.0
  %338 = vmatprep.subr.mxu0 0.0
  %339 = vmatpush1.msra.mxu0 0.0
  %340 = vmatprep.subr.mxu0 0.0
  %341 = vmatpush1.msra.mxu0 0.0
  %342 = vmatprep.subr.mxu0 0.0
  %343 = vmatpush1.msra.mxu0 0.0
  %344 = vmatprep.subr.mxu0 0.0
  %345 = vmatpush1.msra.mxu0 0.0
  %346 = vmatprep.subr.mxu0 0.0
  %347 = vmatpush1.msra.mxu0 0.0
  %348 = vmatprep.subr.mxu0 0.0
  %349 = vmatpush1.msra.mxu0 0.0
  %350 = vmatprep.subr.mxu0 0.0
  %351 = vmatpush1.msra.mxu0 0.0
  %352 = vmatprep.subr.mxu0 0.0
  %353 = vmatpush1.msra.mxu0 0.0
  %354 = vmatprep.subr.mxu0 0.0
  %355 = vmatpush1.msra.mxu0 0.0
  %356 = vmatprep.subr.mxu0 0.0
  %357 = vmatpush1.msra.mxu0 0.0
  %358 = vmatprep.subr.mxu0 0.0
  %359 = vmatpush1.msra.mxu0 0.0
  %360 = vmatprep.subr.mxu0 0.0
  %361 = vmatpush1.msra.mxu0 0.0
  %362 = vmatprep.subr.mxu0 0.0
  %363 = vmatpush1.msra.mxu0 0.0
  %364 = vmatprep.subr.mxu0 0.0
  %365 = vmatpush1.msra.mxu0 0.0
  %366 = vmatprep.subr.mxu0 0.0
  %367 = vmatpush1.msra.mxu0 0.0
  %368 = vmatprep.subr.mxu0 0.0
  %369 = vmatpush1.msra.mxu0 0.0
  %370 = vmatprep.subr.mxu0 0.0
  %371 = vmatpush1.msra.mxu0 0.0
  %372 = vmatprep.subr.mxu0 0.0
  %373 = vmatpush1.msra.mxu0 0.0
  %374 = vmatprep.mubr.f32.mxu0 0.0
  %375 = vmatmul.mubr.f32.gmra.mrb[0].mxu0 %v308
  %v376 = vpop.f32.mrb[0].mxu0
  %v377 = vadd.f32 0.0, %v376
  %v378 = vpop.f32.mrb[0].mxu0
  %379 = vdwg.mxu0
  %v381 = vsel %vm215, %v377, 0
  %383 = vmatprep.subr.mxu0 0.0
  %384 = vmatpush1.msra.mxu0 %v34
  %385 = vmatprep.subr.mxu0 0.0
  %386 = vmatpush1.msra.mxu0 0.0
  %387 = vmatprep.subr.mxu0 0.0
  %388 = vmatpush1.msra.mxu0 0.0
  %389 = vmatprep.subr.mxu0 0.0
  %390 = vmatpush1.msra.mxu0 0.0
  %391 = vmatprep.subr.mxu0 0.0
  %392 = vmatpush1.msra.mxu0 0.0
  %393 = vmatprep.subr.mxu0 0.0
  %394 = vmatpush1.msra.mxu0 0.0
  %395 = vmatprep.subr.mxu0 0.0
  %396 = vmatpush1.msra.mxu0 0.0
  %397 = vmatprep.subr.mxu0 0.0
  %398 = vmatpush1.msra.mxu0 0.0
  %399 = vmatprep.subr.mxu0 0.0
  %400 = vmatpush1.msra.mxu0 0.0
  %401 = vmatprep.subr.mxu0 0.0
  %402 = vmatpush1.msra.mxu0 0.0
  %403 = vmatprep.subr.mxu0 0.0
  %404 = vmatpush1.msra.mxu0 0.0
  %405 = vmatprep.subr.mxu0 0.0
  %406 = vmatpush1.msra.mxu0 0.0
  %407 = vmatprep.subr.mxu0 0.0
  %408 = vmatpush1.msra.mxu0 0.0
  %409 = vmatprep.subr.mxu0 0.0
  %410 = vmatpush1.msra.mxu0 0.0
  %411 = vmatprep.subr.mxu0 0.0
  %412 = vmatpush1.msra.mxu0 0.0
  %413 = vmatprep.subr.mxu0 0.0
  %414 = vmatpush1.msra.mxu0 0.0
  %415 = vmatprep.subr.mxu0 0.0
  %416 = vmatpush1.msra.mxu0 0.0
  %417 = vmatprep.subr.mxu0 0.0
  %418 = vmatpush1.msra.mxu0 0.0
  %419 = vmatprep.subr.mxu0 0.0
  %420 = vmatpush1.msra.mxu0 0.0
  %421 = vmatprep.subr.mxu0 0.0
  %422 = vmatpush1.msra.mxu0 0.0
  %423 = vmatprep.subr.mxu0 0.0
  %424 = vmatpush1.msra.mxu0 0.0
  %425 = vmatprep.subr.mxu0 0.0
  %426 = vmatpush1.msra.mxu0 0.0
  %427 = vmatprep.subr.mxu0 0.0
  %428 = vmatpush1.msra.mxu0 0.0
  %429 = vmatprep.subr.mxu0 0.0
  %430 = vmatpush1.msra.mxu0 0.0
  %431 = vmatprep.subr.mxu0 0.0
  %432 = vmatpush1.msra.mxu0 0.0
  %433 = vmatprep.subr.mxu0 0.0
  %434 = vmatpush1.msra.mxu0 0.0
  %435 = vmatprep.subr.mxu0 0.0
  %436 = vmatpush1.msra.mxu0 0.0
  %437 = vmatprep.subr.mxu0 0.0
  %438 = vmatpush1.msra.mxu0 0.0
  %439 = vmatprep.subr.mxu0 0.0
  %440 = vmatpush1.msra.mxu0 0.0
  %441 = vmatprep.subr.mxu0 0.0
  %442 = vmatpush1.msra.mxu0 0.0
  %443 = vmatprep.subr.mxu0 0.0
  %444 = vmatpush1.msra.mxu0 0.0
  %445 = vmatprep.subr.mxu0 0.0
  %446 = vmatpush1.msra.mxu0 0.0
  %447 = vmatprep.mubr.f32.mxu0 0.0
  %448 = vmatmul.mubr.f32.gmra.mrb[0].mxu0 %v381
  %v449 = vpop.f32.mrb[0].mxu0
  %v450 = vadd.f32 0.0, %v449
  %v451 = vpop.f32.mrb[0].mxu0
  %452 = vdwg.mxu0
  %v454 = vlaneseq
  %v455 = vshrl.u32 %v454, 7
  %v456 = vsub.s32 0, %v455
  %v457 = vrot.slane %v38, %v456
  %v459 = vadd.f32 %v457, %v450
  %460 = vrot.lane.b32.xlu0 %v120, 120
  %v461 = vpop.permute.xlu0 %460
  %462 = vrot.lane.b32.xlu0 %v212, 120
  %v463 = vpop.permute.xlu0 %462
  %v464 = vsel %vm215, %v461, 0
  %v466 = vsel %vm215, %v463, 0
  %468 = vmatprep.subr.mxu0 0.0
  %469 = vmatpush1.xpose.msra.mxu0 %v466
  %470 = vmatprep.subr.mxu0 0.0
  %471 = vmatpush1.xpose.msra.mxu0 0.0
  %472 = vmatprep.subr.mxu0 0.0
  %473 = vmatpush1.xpose.msra.mxu0 0.0
  %474 = vmatprep.subr.mxu0 0.0
  %475 = vmatpush1.xpose.msra.mxu0 0.0
  %476 = vmatprep.subr.mxu0 0.0
  %477 = vmatpush1.xpose.msra.mxu0 0.0
  %478 = vmatprep.subr.mxu0 0.0
  %479 = vmatpush1.xpose.msra.mxu0 0.0
  %480 = vmatprep.subr.mxu0 0.0
  %481 = vmatpush1.xpose.msra.mxu0 0.0
  %482 = vmatprep.subr.mxu0 0.0
  %483 = vmatpush1.xpose.msra.mxu0 0.0
  %484 = vmatprep.subr.mxu0 0.0
  %485 = vmatpush1.xpose.msra.mxu0 0.0
  %486 = vmatprep.subr.mxu0 0.0
  %487 = vmatpush1.xpose.msra.mxu0 0.0
  %488 = vmatprep.subr.mxu0 0.0
  %489 = vmatpush1.xpose.msra.mxu0 0.0
  %490 = vmatprep.subr.mxu0 0.0
  %491 = vmatpush1.xpose.msra.mxu0 0.0
  %492 = vmatprep.subr.mxu0 0.0
  %493 = vmatpush1.xpose.msra.mxu0 0.0
  %494 = vmatprep.subr.mxu0 0.0
  %495 = vmatpush1.xpose.msra.mxu0 0.0
  %496 = vmatprep.subr.mxu0 0.0
  %497 = vmatpush1.xpose.msra.mxu0 0.0
  %498 = vmatprep.subr.mxu0 0.0
  %499 = vmatpush1.xpose.msra.mxu0 0.0
  %500 = vmatprep.subr.mxu0 0.0
  %501 = vmatpush1.xpose.msra.mxu0 0.0
  %502 = vmatprep.subr.mxu0 0.0
  %503 = vmatpush1.xpose.msra.mxu0 0.0
  %504 = vmatprep.subr.mxu0 0.0
  %505 = vmatpush1.xpose.msra.mxu0 0.0
  %506 = vmatprep.subr.mxu0 0.0
  %507 = vmatpush1.xpose.msra.mxu0 0.0
  %508 = vmatprep.subr.mxu0 0.0
  %509 = vmatpush1.xpose.msra.mxu0 0.0
  %510 = vmatprep.subr.mxu0 0.0
  %511 = vmatpush1.xpose.msra.mxu0 0.0
  %512 = vmatprep.subr.mxu0 0.0
  %513 = vmatpush1.xpose.msra.mxu0 0.0
  %514 = vmatprep.subr.mxu0 0.0
  %515 = vmatpush1.xpose.msra.mxu0 0.0
  %516 = vmatprep.subr.mxu0 0.0
  %517 = vmatpush1.xpose.msra.mxu0 0.0
  %518 = vmatprep.subr.mxu0 0.0
  %519 = vmatpush1.xpose.msra.mxu0 0.0
  %520 = vmatprep.subr.mxu0 0.0
  %521 = vmatpush1.xpose.msra.mxu0 0.0
  %522 = vmatprep.subr.mxu0 0.0
  %523 = vmatpush1.xpose.msra.mxu0 0.0
  %524 = vmatprep.subr.mxu0 0.0
  %525 = vmatpush1.xpose.msra.mxu0 0.0
  %526 = vmatprep.subr.mxu0 0.0
  %527 = vmatpush1.xpose.msra.mxu0 0.0
  %528 = vmatprep.subr.mxu0 0.0
  %529 = vmatpush1.xpose.msra.mxu0 0.0
  %530 = vmatprep.subr.mxu0 0.0
  %531 = vmatpush1.xpose.msra.mxu0 0.0
  %532 = vmatprep.mubr.f32.mxu0 0.0
  %533 = vmatmul.mubr.f32.gmra.mrb[0].mxu0 %v464
  %v534 = vpop.f32.mrb[0].mxu0
  %v535 = vadd.f32 0.0, %v534
  %v536 = vpop.f32.mrb[0].mxu0
  %537 = vdwg.mxu0
  %v538 = vmul.f32 %v535, 0.35355338
  %v539 = vsel %vm215, %v538, -inf
  %540 = vmax.xlane.f32.xlu0 %v539
  %v541 = vpop.xlane.xlu0 %540
  %v542 = vsub.f32 %v538, %v541
  %v543 = vmul.f32 %v542, 1.442695
  %v544 = vpow.pop %v543
  %v545 = vsel %vm215, %v544, 0.0
  %546 = vadd.xlane.f32.xlu0 %v545
  %v547 = vpop.xlane.xlu0 %546
  %v548 = vrcp.pop %v547
  %v549 = vmul.f32 %v544, %v548
  %550 = vrot.lane.b32.xlu0 %v212, 88
  %v551 = vpop.permute.xlu0 %550
  %v554 = vsel %vm215, %v549, 0
  %556 = vmatprep.subr.mxu0 0.0
  %557 = vmatpush1.msra.mxu0 %v551
  %558 = vmatprep.subr.mxu0 0.0
  %559 = vmatpush1.msra.mxu0 0.0
  %560 = vmatprep.subr.mxu0 0.0
  %561 = vmatpush1.msra.mxu0 0.0
  %562 = vmatprep.subr.mxu0 0.0
  %563 = vmatpush1.msra.mxu0 0.0
  %564 = vmatprep.subr.mxu0 0.0
  %565 = vmatpush1.msra.mxu0 0.0
  %566 = vmatprep.subr.mxu0 0.0
  %567 = vmatpush1.msra.mxu0 0.0
  %568 = vmatprep.subr.mxu0 0.0
  %569 = vmatpush1.msra.mxu0 0.0
  %570 = vmatprep.subr.mxu0 0.0
  %571 = vmatpush1.msra.mxu0 0.0
  %572 = vmatprep.subr.mxu0 0.0
  %573 = vmatpush1.msra.mxu0 0.0
  %574 = vmatprep.subr.mxu0 0.0
  %575 = vmatpush1.msra.mxu0 0.0
  %576 = vmatprep.subr.mxu0 0.0
  %577 = vmatpush1.msra.mxu0 0.0
  %578 = vmatprep.subr.mxu0 0.0
  %579 = vmatpush1.msra.mxu0 0.0
  %580 = vmatprep.subr.mxu0 0.0
  %581 = vmatpush1.msra.mxu0 0.0
  %582 = vmatprep.subr.mxu0 0.0
  %583 = vmatpush1.msra.mxu0 0.0
  %584 = vmatprep.subr.mxu0 0.0
  %585 = vmatpush1.msra.mxu0 0.0
  %586 = vmatprep.subr.mxu0 0.0
  %587 = vmatpush1.msra.mxu0 0.0
  %588 = vmatprep.subr.mxu0 0.0
  %589 = vmatpush1.msra.mxu0 0.0
  %590 = vmatprep.subr.mxu0 0.0
  %591 = vmatpush1.msra.mxu0 0.0
  %592 = vmatprep.subr.mxu0 0.0
  %593 = vmatpush1.msra.mxu0 0.0
  %594 = vmatprep.subr.mxu0 0.0
  %595 = vmatpush1.msra.mxu0 0.0
  %596 = vmatprep.subr.mxu0 0.0
  %597 = vmatpush1.msra.mxu0 0.0
  %598 = vmatprep.subr.mxu0 0.0
  %599 = vmatpush1.msra.mxu0 0.0
  %600 = vmatprep.subr.mxu0 0.0
  %601 = vmatpush1.msra.mxu0 0.0
  %602 = vmatprep.subr.mxu0 0.0
  %603 = vmatpush1.msra.mxu0 0.0
  %604 = vmatprep.subr.mxu0 0.0
  %605 = vmatpush1.msra.mxu0 0.0
  %606 = vmatprep.subr.mxu0 0.0
  %607 = vmatpush1.msra.mxu0 0.0
  %608 = vmatprep.subr.mxu0 0.0
  %609 = vmatpush1.msra.mxu0 0.0
  %610 = vmatprep.subr.mxu0 0.0
  %611 = vmatpush1.msra.mxu0 0.0
  %612 = vmatprep.subr.mxu0 0.0
  %613 = vmatpush1.msra.mxu0 0.0
  %614 = vmatprep.subr.mxu0 0.0
  %615 = vmatpush1.msra.mxu0 0.0
  %616 = vmatprep.subr.mxu0 0.0
  %617 = vmatpush1.msra.mxu0 0.0
  %618 = vmatprep.subr.mxu0 0.0
  %619 = vmatpush1.msra.mxu0 0.0
  %620 = vmatprep.mubr.f32.mxu0 0.0
  %621 = vmatmul.mubr.f32.gmra.mrb[0].mxu0 %v554
  %v622 = vpop.f32.mrb[0].mxu0
  %v623 = vadd.f32 0.0, %v622
  %v624 = vpop.f32.mrb[0].mxu0
  %625 = vdwg.mxu0
  %v627 = vsel %vm215, %v623, 0
  %629 = vmatprep.subr.mxu0 0.0
  %630 = vmatpush1.msra.mxu0 %v35
  %631 = vmatprep.subr.mxu0 0.0
  %632 = vmatpush1.msra.mxu0 0.0
  %633 = vmatprep.subr.mxu0 0.0
  %634 = vmatpush1.msra.mxu0 0.0
  %635 = vmatprep.subr.mxu0 0.0
  %636 = vmatpush1.msra.mxu0 0.0
  %637 = vmatprep.subr.mxu0 0.0
  %638 = vmatpush1.msra.mxu0 0.0
  %639 = vmatprep.subr.mxu0 0.0
  %640 = vmatpush1.msra.mxu0 0.0
  %641 = vmatprep.subr.mxu0 0.0
  %642 = vmatpush1.msra.mxu0 0.0
  %643 = vmatprep.subr.mxu0 0.0
  %644 = vmatpush1.msra.mxu0 0.0
  %645 = vmatprep.subr.mxu0 0.0
  %646 = vmatpush1.msra.mxu0 0.0
  %647 = vmatprep.subr.mxu0 0.0
  %648 = vmatpush1.msra.mxu0 0.0
  %649 = vmatprep.subr.mxu0 0.0
  %650 = vmatpush1.msra.mxu0 0.0
  %651 = vmatprep.subr.mxu0 0.0
  %652 = vmatpush1.msra.mxu0 0.0
  %653 = vmatprep.subr.mxu0 0.0
  %654 = vmatpush1.msra.mxu0 0.0
  %655 = vmatprep.subr.mxu0 0.0
  %656 = vmatpush1.msra.mxu0 0.0
  %657 = vmatprep.subr.mxu0 0.0
  %658 = vmatpush1.msra.mxu0 0.0
  %659 = vmatprep.subr.mxu0 0.0
  %660 = vmatpush1.msra.mxu0 0.0
  %661 = vmatprep.subr.mxu0 0.0
  %662 = vmatpush1.msra.mxu0 0.0
  %663 = vmatprep.subr.mxu0 0.0
  %664 = vmatpush1.msra.mxu0 0.0
  %665 = vmatprep.subr.mxu0 0.0
  %666 = vmatpush1.msra.mxu0 0.0
  %667 = vmatprep.subr.mxu0 0.0
  %668 = vmatpush1.msra.mxu0 0.0
  %669 = vmatprep.subr.mxu0 0.0
  %670 = vmatpush1.msra.mxu0 0.0
  %671 = vmatprep.subr.mxu0 0.0
  %672 = vmatpush1.msra.mxu0 0.0
  %673 = vmatprep.subr.mxu0 0.0
  %674 = vmatpush1.msra.mxu0 0.0
  %675 = vmatprep.subr.mxu0 0.0
  %676 = vmatpush1.msra.mxu0 0.0
  %677 = vmatprep.subr.mxu0 0.0
  %678 = vmatpush1.msra.mxu0 0.0
  %679 = vmatprep.subr.mxu0 0.0
  %680 = vmatpush1.msra.mxu0 0.0
  %681 = vmatprep.subr.mxu0 0.0
  %682 = vmatpush1.msra.mxu0 0.0
  %683 = vmatprep.subr.mxu0 0.0
  %684 = vmatpush1.msra.mxu0 0.0
  %685 = vmatprep.subr.mxu0 0.0
  %686 = vmatpush1.msra.mxu0 0.0
  %687 = vmatprep.subr.mxu0 0.0
  %688 = vmatpush1.msra.mxu0 0.0
  %689 = vmatprep.subr.mxu0 0.0
  %690 = vmatpush1.msra.mxu0 0.0
  %691 = vmatprep.subr.mxu0 0.0
  %692 = vmatpush1.msra.mxu0 0.0
  %693 = vmatprep.mubr.f32.mxu0 0.0
  %694 = vmatmul.mubr.f32.gmra.mrb[0].mxu0 %v627
  %v695 = vpop.f32.mrb[0].mxu0
  %v696 = vadd.f32 0.0, %v695
  %v697 = vpop.f32.mrb[0].mxu0
  %698 = vdwg.mxu0
  %v699 = vadd.f32 %v459, %v696
  %700 = vrot.lane.b32.xlu0 %v120, 112
  %v701 = vpop.permute.xlu0 %700
  %702 = vrot.lane.b32.xlu0 %v212, 112
  %v703 = vpop.permute.xlu0 %702
  %v704 = vsel %vm215, %v701, 0
  %v706 = vsel %vm215, %v703, 0
  %708 = vmatprep.subr.mxu0 0.0
  %709 = vmatpush1.xpose.msra.mxu0 %v706
  %710 = vmatprep.subr.mxu0 0.0
  %711 = vmatpush1.xpose.msra.mxu0 0.0
  %712 = vmatprep.subr.mxu0 0.0
  %713 = vmatpush1.xpose.msra.mxu0 0.0
  %714 = vmatprep.subr.mxu0 0.0
  %715 = vmatpush1.xpose.msra.mxu0 0.0
  %716 = vmatprep.subr.mxu0 0.0
  %717 = vmatpush1.xpose.msra.mxu0 0.0
  %718 = vmatprep.subr.mxu0 0.0
  %719 = vmatpush1.xpose.msra.mxu0 0.0
  %720 = vmatprep.subr.mxu0 0.0
  %721 = vmatpush1.xpose.msra.mxu0 0.0
  %722 = vmatprep.subr.mxu0 0.0
  %723 = vmatpush1.xpose.msra.mxu0 0.0
  %724 = vmatprep.subr.mxu0 0.0
  %725 = vmatpush1.xpose.msra.mxu0 0.0
  %726 = vmatprep.subr.mxu0 0.0
  %727 = vmatpush1.xpose.msra.mxu0 0.0
  %728 = vmatprep.subr.mxu0 0.0
  %729 = vmatpush1.xpose.msra.mxu0 0.0
  %730 = vmatprep.subr.mxu0 0.0
  %731 = vmatpush1.xpose.msra.mxu0 0.0
  %732 = vmatprep.subr.mxu0 0.0
  %733 = vmatpush1.xpose.msra.mxu0 0.0
  %734 = vmatprep.subr.mxu0 0.0
  %735 = vmatpush1.xpose.msra.mxu0 0.0
  %736 = vmatprep.subr.mxu0 0.0
  %737 = vmatpush1.xpose.msra.mxu0 0.0
  %738 = vmatprep.subr.mxu0 0.0
  %739 = vmatpush1.xpose.msra.mxu0 0.0
  %740 = vmatprep.subr.mxu0 0.0
  %741 = vmatpush1.xpose.msra.mxu0 0.0
  %742 = vmatprep.subr.mxu0 0.0
  %743 = vmatpush1.xpose.msra.mxu0 0.0
  %744 = vmatprep.subr.mxu0 0.0
  %745 = vmatpush1.xpose.msra.mxu0 0.0
  %746 = vmatprep.subr.mxu0 0.0
  %747 = vmatpush1.xpose.msra.mxu0 0.0
  %748 = vmatprep.subr.mxu0 0.0
  %749 = vmatpush1.xpose.msra.mxu0 0.0
  %750 = vmatprep.subr.mxu0 0.0
  %751 = vmatpush1.xpose.msra.mxu0 0.0
  %752 = vmatprep.subr.mxu0 0.0
  %753 = vmatpush1.xpose.msra.mxu0 0.0
  %754 = vmatprep.subr.mxu0 0.0
  %755 = vmatpush1.xpose.msra.mxu0 0.0
  %756 = vmatprep.subr.mxu0 0.0
  %757 = vmatpush1.xpose.msra.mxu0 0.0
  %758 = vmatprep.subr.mxu0 0.0
  %759 = vmatpush1.xpose.msra.mxu0 0.0
  %760 = vmatprep.subr.mxu0 0.0
  %761 = vmatpush1.xpose.msra.mxu0 0.0
  %762 = vmatprep.subr.mxu0 0.0
  %763 = vmatpush1.xpose.msra.mxu0 0.0
  %764 = vmatprep.subr.mxu0 0.0
  %765 = vmatpush1.xpose.msra.mxu0 0.0
  %766 = vmatprep.subr.mxu0 0.0
  %767 = vmatpush1.xpose.msra.mxu0 0.0
  %768 = vmatprep.subr.mxu0 0.0
  %769 = vmatpush1.xpose.msra.mxu0 0.0
  %770 = vmatprep.subr.mxu0 0.0
  %771 = vmatpush1.xpose.msra.mxu0 0.0
  %772 = vmatprep.mubr.f32.mxu0 0.0
  %773 = vmatmul.mubr.f32.gmra.mrb[0].mxu0 %v704
  %v774 = vpop.f32.mrb[0].mxu0
  %v775 = vadd.f32 0.0, %v774
  %v776 = vpop.f32.mrb[0].mxu0
  %777 = vdwg.mxu0
  %v778 = vmul.f32 %v775, 0.35355338
  %v779 = vsel %vm215, %v778, -inf
  %780 = vmax.xlane.f32.xlu0 %v779
  %v781 = vpop.xlane.xlu0 %780
  %v782 = vsub.f32 %v778, %v781
  %v783 = vmul.f32 %v782, 1.442695
  %v784 = vpow.pop %v783
  %v785 = vsel %vm215, %v784, 0.0
  %786 = vadd.xlane.f32.xlu0 %v785
  %v787 = vpop.xlane.xlu0 %786
  %v788 = vrcp.pop %v787
  %v789 = vmul.f32 %v784, %v788
  %790 = vrot.lane.b32.xlu0 %v212, 80
  %v791 = vpop.permute.xlu0 %790
  %v794 = vsel %vm215, %v789, 0
  %796 = vmatprep.subr.mxu0 0.0
  %797 = vmatpush1.msra.mxu0 %v791
  %798 = vmatprep.subr.mxu0 0.0
  %799 = vmatpush1.msra.mxu0 0.0
  %800 = vmatprep.subr.mxu0 0.0
  %801 = vmatpush1.msra.mxu0 0.0
  %802 = vmatprep.subr.mxu0 0.0
  %803 = vmatpush1.msra.mxu0 0.0
  %804 = vmatprep.subr.mxu0 0.0
  %805 = vmatpush1.msra.mxu0 0.0
  %806 = vmatprep.subr.mxu0 0.0
  %807 = vmatpush1.msra.mxu0 0.0
  %808 = vmatprep.subr.mxu0 0.0
  %809 = vmatpush1.msra.mxu0 0.0
  %810 = vmatprep.subr.mxu0 0.0
  %811 = vmatpush1.msra.mxu0 0.0
  %812 = vmatprep.subr.mxu0 0.0
  %813 = vmatpush1.msra.mxu0 0.0
  %814 = vmatprep.subr.mxu0 0.0
  %815 = vmatpush1.msra.mxu0 0.0
  %816 = vmatprep.subr.mxu0 0.0
  %817 = vmatpush1.msra.mxu0 0.0
  %818 = vmatprep.subr.mxu0 0.0
  %819 = vmatpush1.msra.mxu0 0.0
  %820 = vmatprep.subr.mxu0 0.0
  %821 = vmatpush1.msra.mxu0 0.0
  %822 = vmatprep.subr.mxu0 0.0
  %823 = vmatpush1.msra.mxu0 0.0
  %824 = vmatprep.subr.mxu0 0.0
  %825 = vmatpush1.msra.mxu0 0.0
  %826 = vmatprep.subr.mxu0 0.0
  %827 = vmatpush1.msra.mxu0 0.0
  %828 = vmatprep.subr.mxu0 0.0
  %829 = vmatpush1.msra.mxu0 0.0
  %830 = vmatprep.subr.mxu0 0.0
  %831 = vmatpush1.msra.mxu0 0.0
  %832 = vmatprep.subr.mxu0 0.0
  %833 = vmatpush1.msra.mxu0 0.0
  %834 = vmatprep.subr.mxu0 0.0
  %835 = vmatpush1.msra.mxu0 0.0
  %836 = vmatprep.subr.mxu0 0.0
  %837 = vmatpush1.msra.mxu0 0.0
  %838 = vmatprep.subr.mxu0 0.0
  %839 = vmatpush1.msra.mxu0 0.0
  %840 = vmatprep.subr.mxu0 0.0
  %841 = vmatpush1.msra.mxu0 0.0
  %842 = vmatprep.subr.mxu0 0.0
  %843 = vmatpush1.msra.mxu0 0.0
  %844 = vmatprep.subr.mxu0 0.0
  %845 = vmatpush1.msra.mxu0 0.0
  %846 = vmatprep.subr.mxu0 0.0
  %847 = vmatpush1.msra.mxu0 0.0
  %848 = vmatprep.subr.mxu0 0.0
  %849 = vmatpush1.msra.mxu0 0.0
  %850 = vmatprep.subr.mxu0 0.0
  %851 = vmatpush1.msra.mxu0 0.0
  %852 = vmatprep.subr.mxu0 0.0
  %853 = vmatpush1.msra.mxu0 0.0
  %854 = vmatprep.subr.mxu0 0.0
  %855 = vmatpush1.msra.mxu0 0.0
  %856 = vmatprep.subr.mxu0 0.0
  %857 = vmatpush1.msra.mxu0 0.0
  %858 = vmatprep.subr.mxu0 0.0
  %859 = vmatpush1.msra.mxu0 0.0
  %860 = vmatprep.mubr.f32.mxu0 0.0
  %861 = vmatmul.mubr.f32.gmra.mrb[0].mxu0 %v794
  %v862 = vpop.f32.mrb[0].mxu0
  %v863 = vadd.f32 0.0, %v862
  %v864 = vpop.f32.mrb[0].mxu0
  %865 = vdwg.mxu0
  %v867 = vsel %vm215, %v863, 0
  %869 = vmatprep.subr.mxu0 0.0
  %870 = vmatpush1.msra.mxu0 %v36
  %871 = vmatprep.subr.mxu0 0.0
  %872 = vmatpush1.msra.mxu0 0.0
  %873 = vmatprep.subr.mxu0 0.0
  %874 = vmatpush1.msra.mxu0 0.0
  %875 = vmatprep.subr.mxu0 0.0
  %876 = vmatpush1.msra.mxu0 0.0
  %877 = vmatprep.subr.mxu0 0.0
  %878 = vmatpush1.msra.mxu0 0.0
  %879 = vmatprep.subr.mxu0 0.0
  %880 = vmatpush1.msra.mxu0 0.0
  %881 = vmatprep.subr.mxu0 0.0
  %882 = vmatpush1.msra.mxu0 0.0
  %883 = vmatprep.subr.mxu0 0.0
  %884 = vmatpush1.msra.mxu0 0.0
  %885 = vmatprep.subr.mxu0 0.0
  %886 = vmatpush1.msra.mxu0 0.0
  %887 = vmatprep.subr.mxu0 0.0
  %888 = vmatpush1.msra.mxu0 0.0
  %889 = vmatprep.subr.mxu0 0.0
  %890 = vmatpush1.msra.mxu0 0.0
  %891 = vmatprep.subr.mxu0 0.0
  %892 = vmatpush1.msra.mxu0 0.0
  %893 = vmatprep.subr.mxu0 0.0
  %894 = vmatpush1.msra.mxu0 0.0
  %895 = vmatprep.subr.mxu0 0.0
  %896 = vmatpush1.msra.mxu0 0.0
  %897 = vmatprep.subr.mxu0 0.0
  %898 = vmatpush1.msra.mxu0 0.0
  %899 = vmatprep.subr.mxu0 0.0
  %900 = vmatpush1.msra.mxu0 0.0
  %901 = vmatprep.subr.mxu0 0.0
  %902 = vmatpush1.msra.mxu0 0.0
  %903 = vmatprep.subr.mxu0 0.0
  %904 = vmatpush1.msra.mxu0 0.0
  %905 = vmatprep.subr.mxu0 0.0
  %906 = vmatpush1.msra.mxu0 0.0
  %907 = vmatprep.subr.mxu0 0.0
  %908 = vmatpush1.msra.mxu0 0.0
  %909 = vmatprep.subr.mxu0 0.0
  %910 = vmatpush1.msra.mxu0 0.0
  %911 = vmatprep.subr.mxu0 0.0
  %912 = vmatpush1.msra.mxu0 0.0
  %913 = vmatprep.subr.mxu0 0.0
  %914 = vmatpush1.msra.mxu0 0.0
  %915 = vmatprep.subr.mxu0 0.0
  %916 = vmatpush1.msra.mxu0 0.0
  %917 = vmatprep.subr.mxu0 0.0
  %918 = vmatpush1.msra.mxu0 0.0
  %919 = vmatprep.subr.mxu0 0.0
  %920 = vmatpush1.msra.mxu0 0.0
  %921 = vmatprep.subr.mxu0 0.0
  %922 = vmatpush1.msra.mxu0 0.0
  %923 = vmatprep.subr.mxu0 0.0
  %924 = vmatpush1.msra.mxu0 0.0
  %925 = vmatprep.subr.mxu0 0.0
  %926 = vmatpush1.msra.mxu0 0.0
  %927 = vmatprep.subr.mxu0 0.0
  %928 = vmatpush1.msra.mxu0 0.0
  %929 = vmatprep.subr.mxu0 0.0
  %930 = vmatpush1.msra.mxu0 0.0
  %931 = vmatprep.subr.mxu0 0.0
  %932 = vmatpush1.msra.mxu0 0.0
  %933 = vmatprep.mubr.f32.mxu0 0.0
  %934 = vmatmul.mubr.f32.gmra.mrb[0].mxu0 %v867
  %v935 = vpop.f32.mrb[0].mxu0
  %v936 = vadd.f32 0.0, %v935
  %v937 = vpop.f32.mrb[0].mxu0
  %938 = vdwg.mxu0
  %v939 = vadd.f32 %v699, %v936
  %940 = vrot.lane.b32.xlu0 %v120, 104
  %v941 = vpop.permute.xlu0 %940
  %942 = vrot.lane.b32.xlu0 %v212, 104
  %v943 = vpop.permute.xlu0 %942
  %v944 = vsel %vm215, %v941, 0
  %v946 = vsel %vm215, %v943, 0
  %948 = vmatprep.subr.mxu0 0.0
  %949 = vmatpush1.xpose.msra.mxu0 %v946
  %950 = vmatprep.subr.mxu0 0.0
  %951 = vmatpush1.xpose.msra.mxu0 0.0
  %952 = vmatprep.subr.mxu0 0.0
  %953 = vmatpush1.xpose.msra.mxu0 0.0
  %954 = vmatprep.subr.mxu0 0.0
  %955 = vmatpush1.xpose.msra.mxu0 0.0
  %956 = vmatprep.subr.mxu0 0.0
  %957 = vmatpush1.xpose.msra.mxu0 0.0
  %958 = vmatprep.subr.mxu0 0.0
  %959 = vmatpush1.xpose.msra.mxu0 0.0
  %960 = vmatprep.subr.mxu0 0.0
  %961 = vmatpush1.xpose.msra.mxu0 0.0
  %962 = vmatprep.subr.mxu0 0.0
  %963 = vmatpush1.xpose.msra.mxu0 0.0
  %964 = vmatprep.subr.mxu0 0.0
  %965 = vmatpush1.xpose.msra.mxu0 0.0
  %966 = vmatprep.subr.mxu0 0.0
  %967 = vmatpush1.xpose.msra.mxu0 0.0
  %968 = vmatprep.subr.mxu0 0.0
  %969 = vmatpush1.xpose.msra.mxu0 0.0
  %970 = vmatprep.subr.mxu0 0.0
  %971 = vmatpush1.xpose.msra.mxu0 0.0
  %972 = vmatprep.subr.mxu0 0.0
  %973 = vmatpush1.xpose.msra.mxu0 0.0
  %974 = vmatprep.subr.mxu0 0.0
  %975 = vmatpush1.xpose.msra.mxu0 0.0
  %976 = vmatprep.subr.mxu0 0.0
  %977 = vmatpush1.xpose.msra.mxu0 0.0
  %978 = vmatprep.subr.mxu0 0.0
  %979 = vmatpush1.xpose.msra.mxu0 0.0
  %980 = vmatprep.subr.mxu0 0.0
  %981 = vmatpush1.xpose.msra.mxu0 0.0
  %982 = vmatprep.subr.mxu0 0.0
  %983 = vmatpush1.xpose.msra.mxu0 0.0
  %984 = vmatprep.subr.mxu0 0.0
  %985 = vmatpush1.xpose.msra.mxu0 0.0
  %986 = vmatprep.subr.mxu0 0.0
  %987 = vmatpush1.xpose.msra.mxu0 0.0
  %988 = vmatprep.subr.mxu0 0.0
  %989 = vmatpush1.xpose.msra.mxu0 0.0
  %990 = vmatprep.subr.mxu0 0.0
  %991 = vmatpush1.xpose.msra.mxu0 0.0
  %992 = vmatprep.subr.mxu0 0.0
  %993 = vmatpush1.xpose.msra.mxu0 0.0
  %994 = vmatprep.subr.mxu0 0.0
  %995 = vmatpush1.xpose.msra.mxu0 0.0
  %996 = vmatprep.subr.mxu0 0.0
  %997 = vmatpush1.xpose.msra.mxu0 0.0
  %998 = vmatprep.subr.mxu0 0.0
  %999 = vmatpush1.xpose.msra.mxu0 0.0
  %1000 = vmatprep.subr.mxu0 0.0
  %1001 = vmatpush1.xpose.msra.mxu0 0.0
  %1002 = vmatprep.subr.mxu0 0.0
  %1003 = vmatpush1.xpose.msra.mxu0 0.0
  %1004 = vmatprep.subr.mxu0 0.0
  %1005 = vmatpush1.xpose.msra.mxu0 0.0
  %1006 = vmatprep.subr.mxu0 0.0
  %1007 = vmatpush1.xpose.msra.mxu0 0.0
  %1008 = vmatprep.subr.mxu0 0.0
  %1009 = vmatpush1.xpose.msra.mxu0 0.0
  %1010 = vmatprep.subr.mxu0 0.0
  %1011 = vmatpush1.xpose.msra.mxu0 0.0
  %1012 = vmatprep.mubr.f32.mxu0 0.0
  %1013 = vmatmul.mubr.f32.gmra.mrb[0].mxu0 %v944
  %v1014 = vpop.f32.mrb[0].mxu0
  %v1015 = vadd.f32 0.0, %v1014
  %v1016 = vpop.f32.mrb[0].mxu0
  %1017 = vdwg.mxu0
  %v1018 = vmul.f32 %v1015, 0.35355338
  %v1019 = vsel %vm215, %v1018, -inf
  %1020 = vmax.xlane.f32.xlu0 %v1019
  %v1021 = vpop.xlane.xlu0 %1020
  %v1022 = vsub.f32 %v1018, %v1021
  %v1023 = vmul.f32 %v1022, 1.442695
  %v1024 = vpow.pop %v1023
  %v1025 = vsel %vm215, %v1024, 0.0
  %1026 = vadd.xlane.f32.xlu0 %v1025
  %v1027 = vpop.xlane.xlu0 %1026
  %v1028 = vrcp.pop %v1027
  %v1029 = vmul.f32 %v1024, %v1028
  %1030 = vrot.lane.b32.xlu0 %v212, 72
  %v1031 = vpop.permute.xlu0 %1030
  %v1034 = vsel %vm215, %v1029, 0
  %1036 = vmatprep.subr.mxu0 0.0
  %1037 = vmatpush1.msra.mxu0 %v1031
  %1038 = vmatprep.subr.mxu0 0.0
  %1039 = vmatpush1.msra.mxu0 0.0
  %1040 = vmatprep.subr.mxu0 0.0
  %1041 = vmatpush1.msra.mxu0 0.0
  %1042 = vmatprep.subr.mxu0 0.0
  %1043 = vmatpush1.msra.mxu0 0.0
  %1044 = vmatprep.subr.mxu0 0.0
  %1045 = vmatpush1.msra.mxu0 0.0
  %1046 = vmatprep.subr.mxu0 0.0
  %1047 = vmatpush1.msra.mxu0 0.0
  %1048 = vmatprep.subr.mxu0 0.0
  %1049 = vmatpush1.msra.mxu0 0.0
  %1050 = vmatprep.subr.mxu0 0.0
  %1051 = vmatpush1.msra.mxu0 0.0
  %1052 = vmatprep.subr.mxu0 0.0
  %1053 = vmatpush1.msra.mxu0 0.0
  %1054 = vmatprep.subr.mxu0 0.0
  %1055 = vmatpush1.msra.mxu0 0.0
  %1056 = vmatprep.subr.mxu0 0.0
  %1057 = vmatpush1.msra.mxu0 0.0
  %1058 = vmatprep.subr.mxu0 0.0
  %1059 = vmatpush1.msra.mxu0 0.0
  %1060 = vmatprep.subr.mxu0 0.0
  %1061 = vmatpush1.msra.mxu0 0.0
  %1062 = vmatprep.subr.mxu0 0.0
  %1063 = vmatpush1.msra.mxu0 0.0
  %1064 = vmatprep.subr.mxu0 0.0
  %1065 = vmatpush1.msra.mxu0 0.0
  %1066 = vmatprep.subr.mxu0 0.0
  %1067 = vmatpush1.msra.mxu0 0.0
  %1068 = vmatprep.subr.mxu0 0.0
  %1069 = vmatpush1.msra.mxu0 0.0
  %1070 = vmatprep.subr.mxu0 0.0
  %1071 = vmatpush1.msra.mxu0 0.0
  %1072 = vmatprep.subr.mxu0 0.0
  %1073 = vmatpush1.msra.mxu0 0.0
  %1074 = vmatprep.subr.mxu0 0.0
  %1075 = vmatpush1.msra.mxu0 0.0
  %1076 = vmatprep.subr.mxu0 0.0
  %1077 = vmatpush1.msra.mxu0 0.0
  %1078 = vmatprep.subr.mxu0 0.0
  %1079 = vmatpush1.msra.mxu0 0.0
  %1080 = vmatprep.subr.mxu0 0.0
  %1081 = vmatpush1.msra.mxu0 0.0
  %1082 = vmatprep.subr.mxu0 0.0
  %1083 = vmatpush1.msra.mxu0 0.0
  %1084 = vmatprep.subr.mxu0 0.0
  %1085 = vmatpush1.msra.mxu0 0.0
  %1086 = vmatprep.subr.mxu0 0.0
  %1087 = vmatpush1.msra.mxu0 0.0
  %1088 = vmatprep.subr.mxu0 0.0
  %1089 = vmatpush1.msra.mxu0 0.0
  %1090 = vmatprep.subr.mxu0 0.0
  %1091 = vmatpush1.msra.mxu0 0.0
  %1092 = vmatprep.subr.mxu0 0.0
  %1093 = vmatpush1.msra.mxu0 0.0
  %1094 = vmatprep.subr.mxu0 0.0
  %1095 = vmatpush1.msra.mxu0 0.0
  %1096 = vmatprep.subr.mxu0 0.0
  %1097 = vmatpush1.msra.mxu0 0.0
  %1098 = vmatprep.subr.mxu0 0.0
  %1099 = vmatpush1.msra.mxu0 0.0
  %1100 = vmatprep.mubr.f32.mxu0 0.0
  %1101 = vmatmul.mubr.f32.gmra.mrb[0].mxu0 %v1034
  %v1102 = vpop.f32.mrb[0].mxu0
  %v1103 = vadd.f32 0.0, %v1102
  %v1104 = vpop.f32.mrb[0].mxu0
  %1105 = vdwg.mxu0
  %v1107 = vsel %vm215, %v1103, 0
  %1109 = vmatprep.subr.mxu0 0.0
  %1110 = vmatpush1.msra.mxu0 %v37
  %1111 = vmatprep.subr.mxu0 0.0
  %1112 = vmatpush1.msra.mxu0 0.0
  %1113 = vmatprep.subr.mxu0 0.0
  %1114 = vmatpush1.msra.mxu0 0.0
  %1115 = vmatprep.subr.mxu0 0.0
  %1116 = vmatpush1.msra.mxu0 0.0
  %1117 = vmatprep.subr.mxu0 0.0
  %1118 = vmatpush1.msra.mxu0 0.0
  %1119 = vmatprep.subr.mxu0 0.0
  %1120 = vmatpush1.msra.mxu0 0.0
  %1121 = vmatprep.subr.mxu0 0.0
  %1122 = vmatpush1.msra.mxu0 0.0
  %1123 = vmatprep.subr.mxu0 0.0
  %1124 = vmatpush1.msra.mxu0 0.0
  %1125 = vmatprep.subr.mxu0 0.0
  %1126 = vmatpush1.msra.mxu0 0.0
  %1127 = vmatprep.subr.mxu0 0.0
  %1128 = vmatpush1.msra.mxu0 0.0
  %1129 = vmatprep.subr.mxu0 0.0
  %1130 = vmatpush1.msra.mxu0 0.0
  %1131 = vmatprep.subr.mxu0 0.0
  %1132 = vmatpush1.msra.mxu0 0.0
  %1133 = vmatprep.subr.mxu0 0.0
  %1134 = vmatpush1.msra.mxu0 0.0
  %1135 = vmatprep.subr.mxu0 0.0
  %1136 = vmatpush1.msra.mxu0 0.0
  %1137 = vmatprep.subr.mxu0 0.0
  %1138 = vmatpush1.msra.mxu0 0.0
  %1139 = vmatprep.subr.mxu0 0.0
  %1140 = vmatpush1.msra.mxu0 0.0
  %1141 = vmatprep.subr.mxu0 0.0
  %1142 = vmatpush1.msra.mxu0 0.0
  %1143 = vmatprep.subr.mxu0 0.0
  %1144 = vmatpush1.msra.mxu0 0.0
  %1145 = vmatprep.subr.mxu0 0.0
  %1146 = vmatpush1.msra.mxu0 0.0
  %1147 = vmatprep.subr.mxu0 0.0
  %1148 = vmatpush1.msra.mxu0 0.0
  %1149 = vmatprep.subr.mxu0 0.0
  %1150 = vmatpush1.msra.mxu0 0.0
  %1151 = vmatprep.subr.mxu0 0.0
  %1152 = vmatpush1.msra.mxu0 0.0
  %1153 = vmatprep.subr.mxu0 0.0
  %1154 = vmatpush1.msra.mxu0 0.0
  %1155 = vmatprep.subr.mxu0 0.0
  %1156 = vmatpush1.msra.mxu0 0.0
  %1157 = vmatprep.subr.mxu0 0.0
  %1158 = vmatpush1.msra.mxu0 0.0
  %1159 = vmatprep.subr.mxu0 0.0
  %1160 = vmatpush1.msra.mxu0 0.0
  %1161 = vmatprep.subr.mxu0 0.0
  %1162 = vmatpush1.msra.mxu0 0.0
  %1163 = vmatprep.subr.mxu0 0.0
  %1164 = vmatpush1.msra.mxu0 0.0
  %1165 = vmatprep.subr.mxu0 0.0
  %1166 = vmatpush1.msra.mxu0 0.0
  %1167 = vmatprep.subr.mxu0 0.0
  %1168 = vmatpush1.msra.mxu0 0.0
  %1169 = vmatprep.subr.mxu0 0.0
  %1170 = vmatpush1.msra.mxu0 0.0
  %1171 = vmatprep.subr.mxu0 0.0
  %1172 = vmatpush1.msra.mxu0 0.0
  %1173 = vmatprep.mubr.f32.mxu0 0.0
  %1174 = vmatmul.mubr.f32.gmra.mrb[0].mxu0 %v1107
  %v1175 = vpop.f32.mrb[0].mxu0
  %v1176 = vadd.f32 0.0, %v1175
  %v1177 = vpop.f32.mrb[0].mxu0
  %1178 = vdwg.mxu0
  %v1179 = vadd.f32 %v939, %v1176
  %v1180 = vadd.f32 %v41, %v1179
  %v1181 = vsel %vm49, %v1180, 0.0
  %1182 = vadd.xlane.f32.xlu0 %v1181
  %v1183 = vpop.xlane.xlu0 %1182
  %v1184 = vrcp.pop 32.0
  %v1185 = vmul.f32 %v1183, %v1184
  %v1186 = vsub.f32 %v1180, %v1185
  %v1187 = vmul.f32 %v1186, %v1186
  %v1188 = vsel %vm49, %v1187, 0.0
  %1189 = vadd.xlane.f32.xlu0 %v1188
  %v1190 = vpop.xlane.xlu0 %1189
  %v1191 = vmul.f32 %v1190, %v1184
  %v1192 = vadd.f32 %v1191, 1e-05
  %v1193 = vrsqrt.pop %v1192
  %v1194 = vmul.f32 %v1186, %v1193
  %v1196 = vlaneseq
  %v1197 = vshrl.u32 %v1196, 7
  %v1198 = vsub.s32 0, %v1197
  %v1199 = vrot.slane %v39, %v1198
  %v1201 = vmul.f32 %v1194, %v1199
  %v1203 = vlaneseq
  %v1204 = vshrl.u32 %v1203, 7
  %v1205 = vsub.s32 0, %v1204
  %v1206 = vrot.slane %v40, %v1205
  %v1208 = vadd.f32 %v1201, %v1206
  %1209 = vst.msk [vmem:[%s8] sm:$0xff] %vm49, %v1208
  %s1210 = scalar_lea.vmem %s0, 8
  %v1211 = vld [vmem:[%s1210] sm:$0xff]
  %s1212 = scalar_lea.vmem %s1, 8
  %v1213 = vld [vmem:[%s1212] sm:$0xff]
  %v1215 = vsel %vm49, %v1211, 0
  %1217 = vmatprep.subr.mxu0 0.0
  %1218 = vmatpush1.msra.mxu0 %v29
  %1219 = vmatprep.subr.mxu0 0.0
  %1220 = vmatpush1.msra.mxu0 %v30
  %1221 = vmatprep.subr.mxu0 0.0
  %1222 = vmatpush1.msra.mxu0 %v31
  %1223 = vmatprep.subr.mxu0 0.0
  %1224 = vmatpush1.msra.mxu0 %v32
  %1225 = vmatprep.subr.mxu0 0.0
  %1226 = vmatpush1.msra.mxu0 0.0
  %1227 = vmatprep.subr.mxu0 0.0
  %1228 = vmatpush1.msra.mxu0 0.0
  %1229 = vmatprep.subr.mxu0 0.0
  %1230 = vmatpush1.msra.mxu0 0.0
  %1231 = vmatprep.subr.mxu0 0.0
  %1232 = vmatpush1.msra.mxu0 0.0
  %1233 = vmatprep.subr.mxu0 0.0
  %1234 = vmatpush1.msra.mxu0 0.0
  %1235 = vmatprep.subr.mxu0 0.0
  %1236 = vmatpush1.msra.mxu0 0.0
  %1237 = vmatprep.subr.mxu0 0.0
  %1238 = vmatpush1.msra.mxu0 0.0
  %1239 = vmatprep.subr.mxu0 0.0
  %1240 = vmatpush1.msra.mxu0 0.0
  %1241 = vmatprep.subr.mxu0 0.0
  %1242 = vmatpush1.msra.mxu0 0.0
  %1243 = vmatprep.subr.mxu0 0.0
  %1244 = vmatpush1.msra.mxu0 0.0
  %1245 = vmatprep.subr.mxu0 0.0
  %1246 = vmatpush1.msra.mxu0 0.0
  %1247 = vmatprep.subr.mxu0 0.0
  %1248 = vmatpush1.msra.mxu0 0.0
  %1249 = vmatprep.subr.mxu0 0.0
  %1250 = vmatpush1.msra.mxu0 0.0
  %1251 = vmatprep.subr.mxu0 0.0
  %1252 = vmatpush1.msra.mxu0 0.0
  %1253 = vmatprep.subr.mxu0 0.0
  %1254 = vmatpush1.msra.mxu0 0.0
  %1255 = vmatprep.subr.mxu0 0.0
  %1256 = vmatpush1.msra.mxu0 0.0
  %1257 = vmatprep.subr.mxu0 0.0
  %1258 = vmatpush1.msra.mxu0 0.0
  %1259 = vmatprep.subr.mxu0 0.0
  %1260 = vmatpush1.msra.mxu0 0.0
  %1261 = vmatprep.subr.mxu0 0.0
  %1262 = vmatpush1.msra.mxu0 0.0
  %1263 = vmatprep.subr.mxu0 0.0
  %1264 = vmatpush1.msra.mxu0 0.0
  %1265 = vmatprep.subr.mxu0 0.0
  %1266 = vmatpush1.msra.mxu0 0.0
  %1267 = vmatprep.subr.mxu0 0.0
  %1268 = vmatpush1.msra.mxu0 0.0
  %1269 = vmatprep.subr.mxu0 0.0
  %1270 = vmatpush1.msra.mxu0 0.0
  %1271 = vmatprep.subr.mxu0 0.0
  %1272 = vmatpush1.msra.mxu0 0.0
  %1273 = vmatprep.subr.mxu0 0.0
  %1274 = vmatpush1.msra.mxu0 0.0
  %1275 = vmatprep.subr.mxu0 0.0
  %1276 = vmatpush1.msra.mxu0 0.0
  %1277 = vmatprep.subr.mxu0 0.0
  %1278 = vmatpush1.msra.mxu0 0.0
  %1279 = vmatprep.subr.mxu0 0.0
  %1280 = vmatpush1.msra.mxu0 0.0
  %1281 = vmatprep.mubr.f32.mxu0 0.0
  %1282 = vmatmul.mubr.f32.gmra.mrb[0].mxu0 %v1215
  %v1283 = vpop.f32.mrb[0].mxu0
  %v1284 = vadd.f32 %v47, %v1283
  %v1285 = vpop.f32.mrb[0].mxu0
  %1286 = vdwg.mxu0
  %v1288 = vsel %vm49, %v1213, 0
  %1290 = vmatprep.subr.mxu0 0.0
  %1291 = vmatpush1.msra.mxu0 %v128
  %1292 = vmatprep.subr.mxu0 0.0
  %1293 = vmatpush1.msra.mxu0 %v130
  %1294 = vmatprep.subr.mxu0 0.0
  %1295 = vmatpush1.msra.mxu0 %v132
  %1296 = vmatprep.subr.mxu0 0.0
  %1297 = vmatpush1.msra.mxu0 %v134
  %1298 = vmatprep.subr.mxu0 0.0
  %1299 = vmatpush1.msra.mxu0 0.0
  %1300 = vmatprep.subr.mxu0 0.0
  %1301 = vmatpush1.msra.mxu0 0.0
  %1302 = vmatprep.subr.mxu0 0.0
  %1303 = vmatpush1.msra.mxu0 0.0
  %1304 = vmatprep.subr.mxu0 0.0
  %1305 = vmatpush1.msra.mxu0 0.0
  %1306 = vmatprep.subr.mxu0 0.0
  %1307 = vmatpush1.msra.mxu0 0.0
  %1308 = vmatprep.subr.mxu0 0.0
  %1309 = vmatpush1.msra.mxu0 0.0
  %1310 = vmatprep.subr.mxu0 0.0
  %1311 = vmatpush1.msra.mxu0 0.0
  %1312 = vmatprep.subr.mxu0 0.0
  %1313 = vmatpush1.msra.mxu0 0.0
  %1314 = vmatprep.subr.mxu0 0.0
  %1315 = vmatpush1.msra.mxu0 0.0
  %1316 = vmatprep.subr.mxu0 0.0
  %1317 = vmatpush1.msra.mxu0 0.0
  %1318 = vmatprep.subr.mxu0 0.0
  %1319 = vmatpush1.msra.mxu0 0.0
  %1320 = vmatprep.subr.mxu0 0.0
  %1321 = vmatpush1.msra.mxu0 0.0
  %1322 = vmatprep.subr.mxu0 0.0
  %1323 = vmatpush1.msra.mxu0 0.0
  %1324 = vmatprep.subr.mxu0 0.0
  %1325 = vmatpush1.msra.mxu0 0.0
  %1326 = vmatprep.subr.mxu0 0.0
  %1327 = vmatpush1.msra.mxu0 0.0
  %1328 = vmatprep.subr.mxu0 0.0
  %1329 = vmatpush1.msra.mxu0 0.0
  %1330 = vmatprep.subr.mxu0 0.0
  %1331 = vmatpush1.msra.mxu0 0.0
  %1332 = vmatprep.subr.mxu0 0.0
  %1333 = vmatpush1.msra.mxu0 0.0
  %1334 = vmatprep.subr.mxu0 0.0
  %1335 = vmatpush1.msra.mxu0 0.0
  %1336 = vmatprep.subr.mxu0 0.0
  %1337 = vmatpush1.msra.mxu0 0.0
  %1338 = vmatprep.subr.mxu0 0.0
  %1339 = vmatpush1.msra.mxu0 0.0
  %1340 = vmatprep.subr.mxu0 0.0
  %1341 = vmatpush1.msra.mxu0 0.0
  %1342 = vmatprep.subr.mxu0 0.0
  %1343 = vmatpush1.msra.mxu0 0.0
  %1344 = vmatprep.subr.mxu0 0.0
  %1345 = vmatpush1.msra.mxu0 0.0
  %1346 = vmatprep.subr.mxu0 0.0
  %1347 = vmatpush1.msra.mxu0 0.0
  %1348 = vmatprep.subr.mxu0 0.0
  %1349 = vmatpush1.msra.mxu0 0.0
  %1350 = vmatprep.subr.mxu0 0.0
  %1351 = vmatpush1.msra.mxu0 0.0
  %1352 = vmatprep.subr.mxu0 0.0
  %1353 = vmatpush1.msra.mxu0 0.0
  %1354 = vmatprep.mubr.f32.mxu0 0.0
  %1355 = vmatmul.mubr.f32.gmra.mrb[0].mxu0 %v1288
  %v1356 = vpop.f32.mrb[0].mxu0
  %v1357 = vadd.f32 %v140, %v1356
  %v1358 = vpop.f32.mrb[0].mxu0
  %1359 = vdwg.mxu0
  %v1361 = vsel %vm215, %v1284, 0
  %v1364 = vsel %vm215, %v1357, 0
  %1366 = vmatprep.subr.mxu0 0.0
  %1367 = vmatpush1.xpose.msra.mxu0 %v1364
  %1368 = vmatprep.subr.mxu0 0.0
  %1369 = vmatpush1.xpose.msra.mxu0 0.0
  %1370 = vmatprep.subr.mxu0 0.0
  %1371 = vmatpush1.xpose.msra.mxu0 0.0
  %1372 = vmatprep.subr.mxu0 0.0
  %1373 = vmatpush1.xpose.msra.mxu0 0.0
  %1374 = vmatprep.subr.mxu0 0.0
  %1375 = vmatpush1.xpose.msra.mxu0 0.0
  %1376 = vmatprep.subr.mxu0 0.0
  %1377 = vmatpush1.xpose.msra.mxu0 0.0
  %1378 = vmatprep.subr.mxu0 0.0
  %1379 = vmatpush1.xpose.msra.mxu0 0.0
  %1380 = vmatprep.subr.mxu0 0.0
  %1381 = vmatpush1.xpose.msra.mxu0 0.0
  %1382 = vmatprep.subr.mxu0 0.0
  %1383 = vmatpush1.xpose.msra.mxu0 0.0
  %1384 = vmatprep.subr.mxu0 0.0
  %1385 = vmatpush1.xpose.msra.mxu0 0.0
  %1386 = vmatprep.subr.mxu0 0.0
  %1387 = vmatpush1.xpose.msra.mxu0 0.0
  %1388 = vmatprep.subr.mxu0 0.0
  %1389 = vmatpush1.xpose.msra.mxu0 0.0
  %1390 = vmatprep.subr.mxu0 0.0
  %1391 = vmatpush1.xpose.msra.mxu0 0.0
  %1392 = vmatprep.subr.mxu0 0.0
  %1393 = vmatpush1.xpose.msra.mxu0 0.0
  %1394 = vmatprep.subr.mxu0 0.0
  %1395 = vmatpush1.xpose.msra.mxu0 0.0
  %1396 = vmatprep.subr.mxu0 0.0
  %1397 = vmatpush1.xpose.msra.mxu0 0.0
  %1398 = vmatprep.subr.mxu0 0.0
  %1399 = vmatpush1.xpose.msra.mxu0 0.0
  %1400 = vmatprep.subr.mxu0 0.0
  %1401 = vmatpush1.xpose.msra.mxu0 0.0
  %1402 = vmatprep.subr.mxu0 0.0
  %1403 = vmatpush1.xpose.msra.mxu0 0.0
  %1404 = vmatprep.subr.mxu0 0.0
  %1405 = vmatpush1.xpose.msra.mxu0 0.0
  %1406 = vmatprep.subr.mxu0 0.0
  %1407 = vmatpush1.xpose.msra.mxu0 0.0
  %1408 = vmatprep.subr.mxu0 0.0
  %1409 = vmatpush1.xpose.msra.mxu0 0.0
  %1410 = vmatprep.subr.mxu0 0.0
  %1411 = vmatpush1.xpose.msra.mxu0 0.0
  %1412 = vmatprep.subr.mxu0 0.0
  %1413 = vmatpush1.xpose.msra.mxu0 0.0
  %1414 = vmatprep.subr.mxu0 0.0
  %1415 = vmatpush1.xpose.msra.mxu0 0.0
  %1416 = vmatprep.subr.mxu0 0.0
  %1417 = vmatpush1.xpose.msra.mxu0 0.0
  %1418 = vmatprep.subr.mxu0 0.0
  %1419 = vmatpush1.xpose.msra.mxu0 0.0
  %1420 = vmatprep.subr.mxu0 0.0
  %1421 = vmatpush1.xpose.msra.mxu0 0.0
  %1422 = vmatprep.subr.mxu0 0.0
  %1423 = vmatpush1.xpose.msra.mxu0 0.0
  %1424 = vmatprep.subr.mxu0 0.0
  %1425 = vmatpush1.xpose.msra.mxu0 0.0
  %1426 = vmatprep.subr.mxu0 0.0
  %1427 = vmatpush1.xpose.msra.mxu0 0.0
  %1428 = vmatprep.subr.mxu0 0.0
  %1429 = vmatpush1.xpose.msra.mxu0 0.0
  %1430 = vmatprep.mubr.f32.mxu0 0.0
  %1431 = vmatmul.mubr.f32.gmra.mrb[0].mxu0 %v1361
  %v1432 = vpop.f32.mrb[0].mxu0
  %v1433 = vadd.f32 0.0, %v1432
  %v1434 = vpop.f32.mrb[0].mxu0
  %1435 = vdwg.mxu0
  %v1436 = vmul.f32 %v1433, 0.35355338
  %v1437 = vsel %vm215, %v1436, -inf
  %1438 = vmax.xlane.f32.xlu0 %v1437
  %v1439 = vpop.xlane.xlu0 %1438
  %v1440 = vsub.f32 %v1436, %v1439
  %v1441 = vmul.f32 %v1440, 1.442695
  %v1442 = vpow.pop %v1441
  %v1443 = vsel %vm215, %v1442, 0.0
  %1444 = vadd.xlane.f32.xlu0 %v1443
  %v1445 = vpop.xlane.xlu0 %1444
  %v1446 = vrcp.pop %v1445
  %v1447 = vmul.f32 %v1442, %v1446
  %1448 = vrot.lane.b32.xlu0 %v1357, 96
  %v1449 = vpop.permute.xlu0 %1448
  %v1452 = vsel %vm215, %v1447, 0
  %1454 = vmatprep.subr.mxu0 0.0
  %1455 = vmatpush1.msra.mxu0 %v1449
  %1456 = vmatprep.subr.mxu0 0.0
  %1457 = vmatpush1.msra.mxu0 0.0
  %1458 = vmatprep.subr.mxu0 0.0
  %1459 = vmatpush1.msra.mxu0 0.0
  %1460 = vmatprep.subr.mxu0 0.0
  %1461 = vmatpush1.msra.mxu0 0.0
  %1462 = vmatprep.subr.mxu0 0.0
  %1463 = vmatpush1.msra.mxu0 0.0
  %1464 = vmatprep.subr.mxu0 0.0
  %1465 = vmatpush1.msra.mxu0 0.0
  %1466 = vmatprep.subr.mxu0 0.0
  %1467 = vmatpush1.msra.mxu0 0.0
  %1468 = vmatprep.subr.mxu0 0.0
  %1469 = vmatpush1.msra.mxu0 0.0
  %1470 = vmatprep.subr.mxu0 0.0
  %1471 = vmatpush1.msra.mxu0 0.0
  %1472 = vmatprep.subr.mxu0 0.0
  %1473 = vmatpush1.msra.mxu0 0.0
  %1474 = vmatprep.subr.mxu0 0.0
  %1475 = vmatpush1.msra.mxu0 0.0
  %1476 = vmatprep.subr.mxu0 0.0
  %1477 = vmatpush1.msra.mxu0 0.0
  %1478 = vmatprep.subr.mxu0 0.0
  %1479 = vmatpush1.msra.mxu0 0.0
  %1480 = vmatprep.subr.mxu0 0.0
  %1481 = vmatpush1.msra.mxu0 0.0
  %1482 = vmatprep.subr.mxu0 0.0
  %1483 = vmatpush1.msra.mxu0 0.0
  %1484 = vmatprep.subr.mxu0 0.0
  %1485 = vmatpush1.msra.mxu0 0.0
  %1486 = vmatprep.subr.mxu0 0.0
  %1487 = vmatpush1.msra.mxu0 0.0
  %1488 = vmatprep.subr.mxu0 0.0
  %1489 = vmatpush1.msra.mxu0 0.0
  %1490 = vmatprep.subr.mxu0 0.0
  %1491 = vmatpush1.msra.mxu0 0.0
  %1492 = vmatprep.subr.mxu0 0.0
  %1493 = vmatpush1.msra.mxu0 0.0
  %1494 = vmatprep.subr.mxu0 0.0
  %1495 = vmatpush1.msra.mxu0 0.0
  %1496 = vmatprep.subr.mxu0 0.0
  %1497 = vmatpush1.msra.mxu0 0.0
  %1498 = vmatprep.subr.mxu0 0.0
  %1499 = vmatpush1.msra.mxu0 0.0
  %1500 = vmatprep.subr.mxu0 0.0
  %1501 = vmatpush1.msra.mxu0 0.0
  %1502 = vmatprep.subr.mxu0 0.0
  %1503 = vmatpush1.msra.mxu0 0.0
  %1504 = vmatprep.subr.mxu0 0.0
  %1505 = vmatpush1.msra.mxu0 0.0
  %1506 = vmatprep.subr.mxu0 0.0
  %1507 = vmatpush1.msra.mxu0 0.0
  %1508 = vmatprep.subr.mxu0 0.0
  %1509 = vmatpush1.msra.mxu0 0.0
  %1510 = vmatprep.subr.mxu0 0.0
  %1511 = vmatpush1.msra.mxu0 0.0
  %1512 = vmatprep.subr.mxu0 0.0
  %1513 = vmatpush1.msra.mxu0 0.0
  %1514 = vmatprep.subr.mxu0 0.0
  %1515 = vmatpush1.msra.mxu0 0.0
  %1516 = vmatprep.subr.mxu0 0.0
  %1517 = vmatpush1.msra.mxu0 0.0
  %1518 = vmatprep.mubr.f32.mxu0 0.0
  %1519 = vmatmul.mubr.f32.gmra.mrb[0].mxu0 %v1452
  %v1520 = vpop.f32.mrb[0].mxu0
  %v1521 = vadd.f32 0.0, %v1520
  %v1522 = vpop.f32.mrb[0].mxu0
  %1523 = vdwg.mxu0
  %v1525 = vsel %vm215, %v1521, 0
  %1527 = vmatprep.subr.mxu0 0.0
  %1528 = vmatpush1.msra.mxu0 %v34
  %1529 = vmatprep.subr.mxu0 0.0
  %1530 = vmatpush1.msra.mxu0 0.0
  %1531 = vmatprep.subr.mxu0 0.0
  %1532 = vmatpush1.msra.mxu0 0.0
  %1533 = vmatprep.subr.mxu0 0.0
  %1534 = vmatpush1.msra.mxu0 0.0
  %1535 = vmatprep.subr.mxu0 0.0
  %1536 = vmatpush1.msra.mxu0 0.0
  %1537 = vmatprep.subr.mxu0 0.0
  %1538 = vmatpush1.msra.mxu0 0.0
  %1539 = vmatprep.subr.mxu0 0.0
  %1540 = vmatpush1.msra.mxu0 0.0
  %1541 = vmatprep.subr.mxu0 0.0
  %1542 = vmatpush1.msra.mxu0 0.0
  %1543 = vmatprep.subr.mxu0 0.0
  %1544 = vmatpush1.msra.mxu0 0.0
  %1545 = vmatprep.subr.mxu0 0.0
  %1546 = vmatpush1.msra.mxu0 0.0
  %1547 = vmatprep.subr.mxu0 0.0
  %1548 = vmatpush1.msra.mxu0 0.0
  %1549 = vmatprep.subr.mxu0 0.0
  %1550 = vmatpush1.msra.mxu0 0.0
  %1551 = vmatprep.subr.mxu0 0.0
  %1552 = vmatpush1.msra.mxu0 0.0
  %1553 = vmatprep.subr.mxu0 0.0
  %1554 = vmatpush1.msra.mxu0 0.0
  %1555 = vmatprep.subr.mxu0 0.0
  %1556 = vmatpush1.msra.mxu0 0.0
  %1557 = vmatprep.subr.mxu0 0.0
  %1558 = vmatpush1.msra.mxu0 0.0
  %1559 = vmatprep.subr.mxu0 0.0
  %1560 = vmatpush1.msra.mxu0 0.0
  %1561 = vmatprep.subr.mxu0 0.0
  %1562 = vmatpush1.msra.mxu0 0.0
  %1563 = vmatprep.subr.mxu0 0.0
  %1564 = vmatpush1.msra.mxu0 0.0
  %1565 = vmatprep.subr.mxu0 0.0
  %1566 = vmatpush1.msra.mxu0 0.0
  %1567 = vmatprep.subr.mxu0 0.0
  %1568 = vmatpush1.msra.mxu0 0.0
  %1569 = vmatprep.subr.mxu0 0.0
  %1570 = vmatpush1.msra.mxu0 0.0
  %1571 = vmatprep.subr.mxu0 0.0
  %1572 = vmatpush1.msra.mxu0 0.0
  %1573 = vmatprep.subr.mxu0 0.0
  %1574 = vmatpush1.msra.mxu0 0.0
  %1575 = vmatprep.subr.mxu0 0.0
  %1576 = vmatpush1.msra.mxu0 0.0
  %1577 = vmatprep.subr.mxu0 0.0
  %1578 = vmatpush1.msra.mxu0 0.0
  %1579 = vmatprep.subr.mxu0 0.0
  %1580 = vmatpush1.msra.mxu0 0.0
  %1581 = vmatprep.subr.mxu0 0.0
  %1582 = vmatpush1.msra.mxu0 0.0
  %1583 = vmatprep.subr.mxu0 0.0
  %1584 = vmatpush1.msra.mxu0 0.0
  %1585 = vmatprep.subr.mxu0 0.0
  %1586 = vmatpush1.msra.mxu0 0.0
  %1587 = vmatprep.subr.mxu0 0.0
  %1588 = vmatpush1.msra.mxu0 0.0
  %1589 = vmatprep.subr.mxu0 0.0
  %1590 = vmatpush1.msra.mxu0 0.0
  %1591 = vmatprep.mubr.f32.mxu0 0.0
  %1592 = vmatmul.mubr.f32.gmra.mrb[0].mxu0 %v1525
  %v1593 = vpop.f32.mrb[0].mxu0
  %v1594 = vadd.f32 0.0, %v1593
  %v1595 = vpop.f32.mrb[0].mxu0
  %1596 = vdwg.mxu0
  %v1597 = vadd.f32 %v457, %v1594
  %1598 = vrot.lane.b32.xlu0 %v1284, 120
  %v1599 = vpop.permute.xlu0 %1598
  %1600 = vrot.lane.b32.xlu0 %v1357, 120
  %v1601 = vpop.permute.xlu0 %1600
  %v1602 = vsel %vm215, %v1599, 0
  %v1604 = vsel %vm215, %v1601, 0
  %1606 = vmatprep.subr.mxu0 0.0
  %1607 = vmatpush1.xpose.msra.mxu0 %v1604
  %1608 = vmatprep.subr.mxu0 0.0
  %1609 = vmatpush1.xpose.msra.mxu0 0.0
  %1610 = vmatprep.subr.mxu0 0.0
  %1611 = vmatpush1.xpose.msra.mxu0 0.0
  %1612 = vmatprep.subr.mxu0 0.0
  %1613 = vmatpush1.xpose.msra.mxu0 0.0
  %1614 = vmatprep.subr.mxu0 0.0
  %1615 = vmatpush1.xpose.msra.mxu0 0.0
  %1616 = vmatprep.subr.mxu0 0.0
  %1617 = vmatpush1.xpose.msra.mxu0 0.0
  %1618 = vmatprep.subr.mxu0 0.0
  %1619 = vmatpush1.xpose.msra.mxu0 0.0
  %1620 = vmatprep.subr.mxu0 0.0
  %1621 = vmatpush1.xpose.msra.mxu0 0.0
  %1622 = vmatprep.subr.mxu0 0.0
  %1623 = vmatpush1.xpose.msra.mxu0 0.0
  %1624 = vmatprep.subr.mxu0 0.0
  %1625 = vmatpush1.xpose.msra.mxu0 0.0
  %1626 = vmatprep.subr.mxu0 0.0
  %1627 = vmatpush1.xpose.msra.mxu0 0.0
  %1628 = vmatprep.subr.mxu0 0.0
  %1629 = vmatpush1.xpose.msra.mxu0 0.0
  %1630 = vmatprep.subr.mxu0 0.0
  %1631 = vmatpush1.xpose.msra.mxu0 0.0
  %1632 = vmatprep.subr.mxu0 0.0
  %1633 = vmatpush1.xpose.msra.mxu0 0.0
  %1634 = vmatprep.subr.mxu0 0.0
  %1635 = vmatpush1.xpose.msra.mxu0 0.0
  %1636 = vmatprep.subr.mxu0 0.0
  %1637 = vmatpush1.xpose.msra.mxu0 0.0
  %1638 = vmatprep.subr.mxu0 0.0
  %1639 = vmatpush1.xpose.msra.mxu0 0.0
  %1640 = vmatprep.subr.mxu0 0.0
  %1641 = vmatpush1.xpose.msra.mxu0 0.0
  %1642 = vmatprep.subr.mxu0 0.0
  %1643 = vmatpush1.xpose.msra.mxu0 0.0
  %1644 = vmatprep.subr.mxu0 0.0
  %1645 = vmatpush1.xpose.msra.mxu0 0.0
  %1646 = vmatprep.subr.mxu0 0.0
  %1647 = vmatpush1.xpose.msra.mxu0 0.0
  %1648 = vmatprep.subr.mxu0 0.0
  %1649 = vmatpush1.xpose.msra.mxu0 0.0
  %1650 = vmatprep.subr.mxu0 0.0
  %1651 = vmatpush1.xpose.msra.mxu0 0.0
  %1652 = vmatprep.subr.mxu0 0.0
  %1653 = vmatpush1.xpose.msra.mxu0 0.0
  %1654 = vmatprep.subr.mxu0 0.0
  %1655 = vmatpush1.xpose.msra.mxu0 0.0
  %1656 = vmatprep.subr.mxu0 0.0
  %1657 = vmatpush1.xpose.msra.mxu0 0.0
  %1658 = vmatprep.subr.mxu0 0.0
  %1659 = vmatpush1.xpose.msra.mxu0 0.0
  %1660 = vmatprep.subr.mxu0 0.0
  %1661 = vmatpush1.xpose.msra.mxu0 0.0
  %1662 = vmatprep.subr.mxu0 0.0
  %1663 = vmatpush1.xpose.msra.mxu0 0.0
  %1664 = vmatprep.subr.mxu0 0.0
  %1665 = vmatpush1.xpose.msra.mxu0 0.0
  %1666 = vmatprep.subr.mxu0 0.0
  %1667 = vmatpush1.xpose.msra.mxu0 0.0
  %1668 = vmatprep.subr.mxu0 0.0
  %1669 = vmatpush1.xpose.msra.mxu0 0.0
  %1670 = vmatprep.mubr.f32.mxu0 0.0
  %1671 = vmatmul.mubr.f32.gmra.mrb[0].mxu0 %v1602
  %v1672 = vpop.f32.mrb[0].mxu0
  %v1673 = vadd.f32 0.0, %v1672
  %v1674 = vpop.f32.mrb[0].mxu0
  %1675 = vdwg.mxu0
  %v1676 = vmul.f32 %v1673, 0.35355338
  %v1677 = vsel %vm215, %v1676, -inf
  %1678 = vmax.xlane.f32.xlu0 %v1677
  %v1679 = vpop.xlane.xlu0 %1678
  %v1680 = vsub.f32 %v1676, %v1679
  %v1681 = vmul.f32 %v1680, 1.442695
  %v1682 = vpow.pop %v1681
  %v1683 = vsel %vm215, %v1682, 0.0
  %1684 = vadd.xlane.f32.xlu0 %v1683
  %v1685 = vpop.xlane.xlu0 %1684
  %v1686 = vrcp.pop %v1685
  %v1687 = vmul.f32 %v1682, %v1686
  %1688 = vrot.lane.b32.xlu0 %v1357, 88
  %v1689 = vpop.permute.xlu0 %1688
  %v1692 = vsel %vm215, %v1687, 0
  %1694 = vmatprep.subr.mxu0 0.0
  %1695 = vmatpush1.msra.mxu0 %v1689
  %1696 = vmatprep.subr.mxu0 0.0
  %1697 = vmatpush1.msra.mxu0 0.0
  %1698 = vmatprep.subr.mxu0 0.0
  %1699 = vmatpush1.msra.mxu0 0.0
  %1700 = vmatprep.subr.mxu0 0.0
  %1701 = vmatpush1.msra.mxu0 0.0
  %1702 = vmatprep.subr.mxu0 0.0
  %1703 = vmatpush1.msra.mxu0 0.0
  %1704 = vmatprep.subr.mxu0 0.0
  %1705 = vmatpush1.msra.mxu0 0.0
  %1706 = vmatprep.subr.mxu0 0.0
  %1707 = vmatpush1.msra.mxu0 0.0
  %1708 = vmatprep.subr.mxu0 0.0
  %1709 = vmatpush1.msra.mxu0 0.0
  %1710 = vmatprep.subr.mxu0 0.0
  %1711 = vmatpush1.msra.mxu0 0.0
  %1712 = vmatprep.subr.mxu0 0.0
  %1713 = vmatpush1.msra.mxu0 0.0
  %1714 = vmatprep.subr.mxu0 0.0
  %1715 = vmatpush1.msra.mxu0 0.0
  %1716 = vmatprep.subr.mxu0 0.0
  %1717 = vmatpush1.msra.mxu0 0.0
  %1718 = vmatprep.subr.mxu0 0.0
  %1719 = vmatpush1.msra.mxu0 0.0
  %1720 = vmatprep.subr.mxu0 0.0
  %1721 = vmatpush1.msra.mxu0 0.0
  %1722 = vmatprep.subr.mxu0 0.0
  %1723 = vmatpush1.msra.mxu0 0.0
  %1724 = vmatprep.subr.mxu0 0.0
  %1725 = vmatpush1.msra.mxu0 0.0
  %1726 = vmatprep.subr.mxu0 0.0
  %1727 = vmatpush1.msra.mxu0 0.0
  %1728 = vmatprep.subr.mxu0 0.0
  %1729 = vmatpush1.msra.mxu0 0.0
  %1730 = vmatprep.subr.mxu0 0.0
  %1731 = vmatpush1.msra.mxu0 0.0
  %1732 = vmatprep.subr.mxu0 0.0
  %1733 = vmatpush1.msra.mxu0 0.0
  %1734 = vmatprep.subr.mxu0 0.0
  %1735 = vmatpush1.msra.mxu0 0.0
  %1736 = vmatprep.subr.mxu0 0.0
  %1737 = vmatpush1.msra.mxu0 0.0
  %1738 = vmatprep.subr.mxu0 0.0
  %1739 = vmatpush1.msra.mxu0 0.0
  %1740 = vmatprep.subr.mxu0 0.0
  %1741 = vmatpush1.msra.mxu0 0.0
  %1742 = vmatprep.subr.mxu0 0.0
  %1743 = vmatpush1.msra.mxu0 0.0
  %1744 = vmatprep.subr.mxu0 0.0
  %1745 = vmatpush1.msra.mxu0 0.0
  %1746 = vmatprep.subr.mxu0 0.0
  %1747 = vmatpush1.msra.mxu0 0.0
  %1748 = vmatprep.subr.mxu0 0.0
  %1749 = vmatpush1.msra.mxu0 0.0
  %1750 = vmatprep.subr.mxu0 0.0
  %1751 = vmatpush1.msra.mxu0 0.0
  %1752 = vmatprep.subr.mxu0 0.0
  %1753 = vmatpush1.msra.mxu0 0.0
  %1754 = vmatprep.subr.mxu0 0.0
  %1755 = vmatpush1.msra.mxu0 0.0
  %1756 = vmatprep.subr.mxu0 0.0
  %1757 = vmatpush1.msra.mxu0 0.0
  %1758 = vmatprep.mubr.f32.mxu0 0.0
  %1759 = vmatmul.mubr.f32.gmra.mrb[0].mxu0 %v1692
  %v1760 = vpop.f32.mrb[0].mxu0
  %v1761 = vadd.f32 0.0, %v1760
  %v1762 = vpop.f32.mrb[0].mxu0
  %1763 = vdwg.mxu0
  %v1765 = vsel %vm215, %v1761, 0
  %1767 = vmatprep.subr.mxu0 0.0
  %1768 = vmatpush1.msra.mxu0 %v35
  %1769 = vmatprep.subr.mxu0 0.0
  %1770 = vmatpush1.msra.mxu0 0.0
  %1771 = vmatprep.subr.mxu0 0.0
  %1772 = vmatpush1.msra.mxu0 0.0
  %1773 = vmatprep.subr.mxu0 0.0
  %1774 = vmatpush1.msra.mxu0 0.0
  %1775 = vmatprep.subr.mxu0 0.0
  %1776 = vmatpush1.msra.mxu0 0.0
  %1777 = vmatprep.subr.mxu0 0.0
  %1778 = vmatpush1.msra.mxu0 0.0
  %1779 = vmatprep.subr.mxu0 0.0
  %1780 = vmatpush1.msra.mxu0 0.0
  %1781 = vmatprep.subr.mxu0 0.0
  %1782 = vmatpush1.msra.mxu0 0.0
  %1783 = vmatprep.subr.mxu0 0.0
  %1784 = vmatpush1.msra.mxu0 0.0
  %1785 = vmatprep.subr.mxu0 0.0
  %1786 = vmatpush1.msra.mxu0 0.0
  %1787 = vmatprep.subr.mxu0 0.0
  %1788 = vmatpush1.msra.mxu0 0.0
  %1789 = vmatprep.subr.mxu0 0.0
  %1790 = vmatpush1.msra.mxu0 0.0
  %1791 = vmatprep.subr.mxu0 0.0
  %1792 = vmatpush1.msra.mxu0 0.0
  %1793 = vmatprep.subr.mxu0 0.0
  %1794 = vmatpush1.msra.mxu0 0.0
  %1795 = vmatprep.subr.mxu0 0.0
  %1796 = vmatpush1.msra.mxu0 0.0
  %1797 = vmatprep.subr.mxu0 0.0
  %1798 = vmatpush1.msra.mxu0 0.0
  %1799 = vmatprep.subr.mxu0 0.0
  %1800 = vmatpush1.msra.mxu0 0.0
  %1801 = vmatprep.subr.mxu0 0.0
  %1802 = vmatpush1.msra.mxu0 0.0
  %1803 = vmatprep.subr.mxu0 0.0
  %1804 = vmatpush1.msra.mxu0 0.0
  %1805 = vmatprep.subr.mxu0 0.0
  %1806 = vmatpush1.msra.mxu0 0.0
  %1807 = vmatprep.subr.mxu0 0.0
  %1808 = vmatpush1.msra.mxu0 0.0
  %1809 = vmatprep.subr.mxu0 0.0
  %1810 = vmatpush1.msra.mxu0 0.0
  %1811 = vmatprep.subr.mxu0 0.0
  %1812 = vmatpush1.msra.mxu0 0.0
  %1813 = vmatprep.subr.mxu0 0.0
  %1814 = vmatpush1.msra.mxu0 0.0
  %1815 = vmatprep.subr.mxu0 0.0
  %1816 = vmatpush1.msra.mxu0 0.0
  %1817 = vmatprep.subr.mxu0 0.0
  %1818 = vmatpush1.msra.mxu0 0.0
  %1819 = vmatprep.subr.mxu0 0.0
  %1820 = vmatpush1.msra.mxu0 0.0
  %1821 = vmatprep.subr.mxu0 0.0
  %1822 = vmatpush1.msra.mxu0 0.0
  %1823 = vmatprep.subr.mxu0 0.0
  %1824 = vmatpush1.msra.mxu0 0.0
  %1825 = vmatprep.subr.mxu0 0.0
  %1826 = vmatpush1.msra.mxu0 0.0
  %1827 = vmatprep.subr.mxu0 0.0
  %1828 = vmatpush1.msra.mxu0 0.0
  %1829 = vmatprep.subr.mxu0 0.0
  %1830 = vmatpush1.msra.mxu0 0.0
  %1831 = vmatprep.mubr.f32.mxu0 0.0
  %1832 = vmatmul.mubr.f32.gmra.mrb[0].mxu0 %v1765
  %v1833 = vpop.f32.mrb[0].mxu0
  %v1834 = vadd.f32 0.0, %v1833
  %v1835 = vpop.f32.mrb[0].mxu0
  %1836 = vdwg.mxu0
  %v1837 = vadd.f32 %v1597, %v1834
  %1838 = vrot.lane.b32.xlu0 %v1284, 112
  %v1839 = vpop.permute.xlu0 %1838
  %1840 = vrot.lane.b32.xlu0 %v1357, 112
  %v1841 = vpop.permute.xlu0 %1840
  %v1842 = vsel %vm215, %v1839, 0
  %v1844 = vsel %vm215, %v1841, 0
  %1846 = vmatprep.subr.mxu0 0.0
  %1847 = vmatpush1.xpose.msra.mxu0 %v1844
  %1848 = vmatprep.subr.mxu0 0.0
  %1849 = vmatpush1.xpose.msra.mxu0 0.0
  %1850 = vmatprep.subr.mxu0 0.0
  %1851 = vmatpush1.xpose.msra.mxu0 0.0
  %1852 = vmatprep.subr.mxu0 0.0
  %1853 = vmatpush1.xpose.msra.mxu0 0.0
  %1854 = vmatprep.subr.mxu0 0.0
  %1855 = vmatpush1.xpose.msra.mxu0 0.0
  %1856 = vmatprep.subr.mxu0 0.0
  %1857 = vmatpush1.xpose.msra.mxu0 0.0
  %1858 = vmatprep.subr.mxu0 0.0
  %1859 = vmatpush1.xpose.msra.mxu0 0.0
  %1860 = vmatprep.subr.mxu0 0.0
  %1861 = vmatpush1.xpose.msra.mxu0 0.0
  %1862 = vmatprep.subr.mxu0 0.0
  %1863 = vmatpush1.xpose.msra.mxu0 0.0
  %1864 = vmatprep.subr.mxu0 0.0
  %1865 = vmatpush1.xpose.msra.mxu0 0.0
  %1866 = vmatprep.subr.mxu0 0.0
  %1867 = vmatpush1.xpose.msra.mxu0 0.0
  %1868 = vmatprep.subr.mxu0 0.0
  %1869 = vmatpush1.xpose.msra.mxu0 0.0
  %1870 = vmatprep.subr.mxu0 0.0
  %1871 = vmatpush1.xpose.msra.mxu0 0.0
  %1872 = vmatprep.subr.mxu0 0.0
  %1873 = vmatpush1.xpose.msra.mxu0 0.0
  %1874 = vmatprep.subr.mxu0 0.0
  %1875 = vmatpush1.xpose.msra.mxu0 0.0
  %1876 = vmatprep.subr.mxu0 0.0
  %1877 = vmatpush1.xpose.msra.mxu0 0.0
  %1878 = vmatprep.subr.mxu0 0.0
  %1879 = vmatpush1.xpose.msra.mxu0 0.0
  %1880 = vmatprep.subr.mxu0 0.0
  %1881 = vmatpush1.xpose.msra.mxu0 0.0
  %1882 = vmatprep.subr.mxu0 0.0
  %1883 = vmatpush1.xpose.msra.mxu0 0.0
  %1884 = vmatprep.subr.mxu0 0.0
  %1885 = vmatpush1.xpose.msra.mxu0 0.0
  %1886 = vmatprep.subr.mxu0 0.0
  %1887 = vmatpush1.xpose.msra.mxu0 0.0
  %1888 = vmatprep.subr.mxu0 0.0
  %1889 = vmatpush1.xpose.msra.mxu0 0.0
  %1890 = vmatprep.subr.mxu0 0.0
  %1891 = vmatpush1.xpose.msra.mxu0 0.0
  %1892 = vmatprep.subr.mxu0 0.0
  %1893 = vmatpush1.xpose.msra.mxu0 0.0
  %1894 = vmatprep.subr.mxu0 0.0
  %1895 = vmatpush1.xpose.msra.mxu0 0.0
  %1896 = vmatprep.subr.mxu0 0.0
  %1897 = vmatpush1.xpose.msra.mxu0 0.0
  %1898 = vmatprep.subr.mxu0 0.0
  %1899 = vmatpush1.xpose.msra.mxu0 0.0
  %1900 = vmatprep.subr.mxu0 0.0
  %1901 = vmatpush1.xpose.msra.mxu0 0.0
  %1902 = vmatprep.subr.mxu0 0.0
  %1903 = vmatpush1.xpose.msra.mxu0 0.0
  %1904 = vmatprep.subr.mxu0 0.0
  %1905 = vmatpush1.xpose.msra.mxu0 0.0
  %1906 = vmatprep.subr.mxu0 0.0
  %1907 = vmatpush1.xpose.msra.mxu0 0.0
  %1908 = vmatprep.subr.mxu0 0.0
  %1909 = vmatpush1.xpose.msra.mxu0 0.0
  %1910 = vmatprep.mubr.f32.mxu0 0.0
  %1911 = vmatmul.mubr.f32.gmra.mrb[0].mxu0 %v1842
  %v1912 = vpop.f32.mrb[0].mxu0
  %v1913 = vadd.f32 0.0, %v1912
  %v1914 = vpop.f32.mrb[0].mxu0
  %1915 = vdwg.mxu0
  %v1916 = vmul.f32 %v1913, 0.35355338
  %v1917 = vsel %vm215, %v1916, -inf
  %1918 = vmax.xlane.f32.xlu0 %v1917
  %v1919 = vpop.xlane.xlu0 %1918
  %v1920 = vsub.f32 %v1916, %v1919
  %v1921 = vmul.f32 %v1920, 1.442695
  %v1922 = vpow.pop %v1921
  %v1923 = vsel %vm215, %v1922, 0.0
  %1924 = vadd.xlane.f32.xlu0 %v1923
  %v1925 = vpop.xlane.xlu0 %1924
  %v1926 = vrcp.pop %v1925
  %v1927 = vmul.f32 %v1922, %v1926
  %1928 = vrot.lane.b32.xlu0 %v1357, 80
  %v1929 = vpop.permute.xlu0 %1928
  %v1932 = vsel %vm215, %v1927, 0
  %1934 = vmatprep.subr.mxu0 0.0
  %1935 = vmatpush1.msra.mxu0 %v1929
  %1936 = vmatprep.subr.mxu0 0.0
  %1937 = vmatpush1.msra.mxu0 0.0
  %1938 = vmatprep.subr.mxu0 0.0
  %1939 = vmatpush1.msra.mxu0 0.0
  %1940 = vmatprep.subr.mxu0 0.0
  %1941 = vmatpush1.msra.mxu0 0.0
  %1942 = vmatprep.subr.mxu0 0.0
  %1943 = vmatpush1.msra.mxu0 0.0
  %1944 = vmatprep.subr.mxu0 0.0
  %1945 = vmatpush1.msra.mxu0 0.0
  %1946 = vmatprep.subr.mxu0 0.0
  %1947 = vmatpush1.msra.mxu0 0.0
  %1948 = vmatprep.subr.mxu0 0.0
  %1949 = vmatpush1.msra.mxu0 0.0
  %1950 = vmatprep.subr.mxu0 0.0
  %1951 = vmatpush1.msra.mxu0 0.0
  %1952 = vmatprep.subr.mxu0 0.0
  %1953 = vmatpush1.msra.mxu0 0.0
  %1954 = vmatprep.subr.mxu0 0.0
  %1955 = vmatpush1.msra.mxu0 0.0
  %1956 = vmatprep.subr.mxu0 0.0
  %1957 = vmatpush1.msra.mxu0 0.0
  %1958 = vmatprep.subr.mxu0 0.0
  %1959 = vmatpush1.msra.mxu0 0.0
  %1960 = vmatprep.subr.mxu0 0.0
  %1961 = vmatpush1.msra.mxu0 0.0
  %1962 = vmatprep.subr.mxu0 0.0
  %1963 = vmatpush1.msra.mxu0 0.0
  %1964 = vmatprep.subr.mxu0 0.0
  %1965 = vmatpush1.msra.mxu0 0.0
  %1966 = vmatprep.subr.mxu0 0.0
  %1967 = vmatpush1.msra.mxu0 0.0
  %1968 = vmatprep.subr.mxu0 0.0
  %1969 = vmatpush1.msra.mxu0 0.0
  %1970 = vmatprep.subr.mxu0 0.0
  %1971 = vmatpush1.msra.mxu0 0.0
  %1972 = vmatprep.subr.mxu0 0.0
  %1973 = vmatpush1.msra.mxu0 0.0
  %1974 = vmatprep.subr.mxu0 0.0
  %1975 = vmatpush1.msra.mxu0 0.0
  %1976 = vmatprep.subr.mxu0 0.0
  %1977 = vmatpush1.msra.mxu0 0.0
  %1978 = vmatprep.subr.mxu0 0.0
  %1979 = vmatpush1.msra.mxu0 0.0
  %1980 = vmatprep.subr.mxu0 0.0
  %1981 = vmatpush1.msra.mxu0 0.0
  %1982 = vmatprep.subr.mxu0 0.0
  %1983 = vmatpush1.msra.mxu0 0.0
  %1984 = vmatprep.subr.mxu0 0.0
  %1985 = vmatpush1.msra.mxu0 0.0
  %1986 = vmatprep.subr.mxu0 0.0
  %1987 = vmatpush1.msra.mxu0 0.0
  %1988 = vmatprep.subr.mxu0 0.0
  %1989 = vmatpush1.msra.mxu0 0.0
  %1990 = vmatprep.subr.mxu0 0.0
  %1991 = vmatpush1.msra.mxu0 0.0
  %1992 = vmatprep.subr.mxu0 0.0
  %1993 = vmatpush1.msra.mxu0 0.0
  %1994 = vmatprep.subr.mxu0 0.0
  %1995 = vmatpush1.msra.mxu0 0.0
  %1996 = vmatprep.subr.mxu0 0.0
  %1997 = vmatpush1.msra.mxu0 0.0
  %1998 = vmatprep.mubr.f32.mxu0 0.0
  %1999 = vmatmul.mubr.f32.gmra.mrb[0].mxu0 %v1932
  %v2000 = vpop.f32.mrb[0].mxu0
  %v2001 = vadd.f32 0.0, %v2000
  %v2002 = vpop.f32.mrb[0].mxu0
  %2003 = vdwg.mxu0
  %v2005 = vsel %vm215, %v2001, 0
  %2007 = vmatprep.subr.mxu0 0.0
  %2008 = vmatpush1.msra.mxu0 %v36
  %2009 = vmatprep.subr.mxu0 0.0
  %2010 = vmatpush1.msra.mxu0 0.0
  %2011 = vmatprep.subr.mxu0 0.0
  %2012 = vmatpush1.msra.mxu0 0.0
  %2013 = vmatprep.subr.mxu0 0.0
  %2014 = vmatpush1.msra.mxu0 0.0
  %2015 = vmatprep.subr.mxu0 0.0
  %2016 = vmatpush1.msra.mxu0 0.0
  %2017 = vmatprep.subr.mxu0 0.0
  %2018 = vmatpush1.msra.mxu0 0.0
  %2019 = vmatprep.subr.mxu0 0.0
  %2020 = vmatpush1.msra.mxu0 0.0
  %2021 = vmatprep.subr.mxu0 0.0
  %2022 = vmatpush1.msra.mxu0 0.0
  %2023 = vmatprep.subr.mxu0 0.0
  %2024 = vmatpush1.msra.mxu0 0.0
  %2025 = vmatprep.subr.mxu0 0.0
  %2026 = vmatpush1.msra.mxu0 0.0
  %2027 = vmatprep.subr.mxu0 0.0
  %2028 = vmatpush1.msra.mxu0 0.0
  %2029 = vmatprep.subr.mxu0 0.0
  %2030 = vmatpush1.msra.mxu0 0.0
  %2031 = vmatprep.subr.mxu0 0.0
  %2032 = vmatpush1.msra.mxu0 0.0
  %2033 = vmatprep.subr.mxu0 0.0
  %2034 = vmatpush1.msra.mxu0 0.0
  %2035 = vmatprep.subr.mxu0 0.0
  %2036 = vmatpush1.msra.mxu0 0.0
  %2037 = vmatprep.subr.mxu0 0.0
  %2038 = vmatpush1.msra.mxu0 0.0
  %2039 = vmatprep.subr.mxu0 0.0
  %2040 = vmatpush1.msra.mxu0 0.0
  %2041 = vmatprep.subr.mxu0 0.0
  %2042 = vmatpush1.msra.mxu0 0.0
  %2043 = vmatprep.subr.mxu0 0.0
  %2044 = vmatpush1.msra.mxu0 0.0
  %2045 = vmatprep.subr.mxu0 0.0
  %2046 = vmatpush1.msra.mxu0 0.0
  %2047 = vmatprep.subr.mxu0 0.0
  %2048 = vmatpush1.msra.mxu0 0.0
  %2049 = vmatprep.subr.mxu0 0.0
  %2050 = vmatpush1.msra.mxu0 0.0
  %2051 = vmatprep.subr.mxu0 0.0
  %2052 = vmatpush1.msra.mxu0 0.0
  %2053 = vmatprep.subr.mxu0 0.0
  %2054 = vmatpush1.msra.mxu0 0.0
  %2055 = vmatprep.subr.mxu0 0.0
  %2056 = vmatpush1.msra.mxu0 0.0
  %2057 = vmatprep.subr.mxu0 0.0
  %2058 = vmatpush1.msra.mxu0 0.0
  %2059 = vmatprep.subr.mxu0 0.0
  %2060 = vmatpush1.msra.mxu0 0.0
  %2061 = vmatprep.subr.mxu0 0.0
  %2062 = vmatpush1.msra.mxu0 0.0
  %2063 = vmatprep.subr.mxu0 0.0
  %2064 = vmatpush1.msra.mxu0 0.0
  %2065 = vmatprep.subr.mxu0 0.0
  %2066 = vmatpush1.msra.mxu0 0.0
  %2067 = vmatprep.subr.mxu0 0.0
  %2068 = vmatpush1.msra.mxu0 0.0
  %2069 = vmatprep.subr.mxu0 0.0
  %2070 = vmatpush1.msra.mxu0 0.0
  %2071 = vmatprep.mubr.f32.mxu0 0.0
  %2072 = vmatmul.mubr.f32.gmra.mrb[0].mxu0 %v2005
  %v2073 = vpop.f32.mrb[0].mxu0
  %v2074 = vadd.f32 0.0, %v2073
  %v2075 = vpop.f32.mrb[0].mxu0
  %2076 = vdwg.mxu0
  %v2077 = vadd.f32 %v1837, %v2074
  %2078 = vrot.lane.b32.xlu0 %v1284, 104
  %v2079 = vpop.permute.xlu0 %2078
  %2080 = vrot.lane.b32.xlu0 %v1357, 104
  %v2081 = vpop.permute.xlu0 %2080
  %v2082 = vsel %vm215, %v2079, 0
  %v2084 = vsel %vm215, %v2081, 0
  %2086 = vmatprep.subr.mxu0 0.0
  %2087 = vmatpush1.xpose.msra.mxu0 %v2084
  %2088 = vmatprep.subr.mxu0 0.0
  %2089 = vmatpush1.xpose.msra.mxu0 0.0
  %2090 = vmatprep.subr.mxu0 0.0
  %2091 = vmatpush1.xpose.msra.mxu0 0.0
  %2092 = vmatprep.subr.mxu0 0.0
  %2093 = vmatpush1.xpose.msra.mxu0 0.0
  %2094 = vmatprep.subr.mxu0 0.0
  %2095 = vmatpush1.xpose.msra.mxu0 0.0
  %2096 = vmatprep.subr.mxu0 0.0
  %2097 = vmatpush1.xpose.msra.mxu0 0.0
  %2098 = vmatprep.subr.mxu0 0.0
  %2099 = vmatpush1.xpose.msra.mxu0 0.0
  %2100 = vmatprep.subr.mxu0 0.0
  %2101 = vmatpush1.xpose.msra.mxu0 0.0
  %2102 = vmatprep.subr.mxu0 0.0
  %2103 = vmatpush1.xpose.msra.mxu0 0.0
  %2104 = vmatprep.subr.mxu0 0.0
  %2105 = vmatpush1.xpose.msra.mxu0 0.0
  %2106 = vmatprep.subr.mxu0 0.0
  %2107 = vmatpush1.xpose.msra.mxu0 0.0
  %2108 = vmatprep.subr.mxu0 0.0
  %2109 = vmatpush1.xpose.msra.mxu0 0.0
  %2110 = vmatprep.subr.mxu0 0.0
  %2111 = vmatpush1.xpose.msra.mxu0 0.0
  %2112 = vmatprep.subr.mxu0 0.0
  %2113 = vmatpush1.xpose.msra.mxu0 0.0
  %2114 = vmatprep.subr.mxu0 0.0
  %2115 = vmatpush1.xpose.msra.mxu0 0.0
  %2116 = vmatprep.subr.mxu0 0.0
  %2117 = vmatpush1.xpose.msra.mxu0 0.0
  %2118 = vmatprep.subr.mxu0 0.0
  %2119 = vmatpush1.xpose.msra.mxu0 0.0
  %2120 = vmatprep.subr.mxu0 0.0
  %2121 = vmatpush1.xpose.msra.mxu0 0.0
  %2122 = vmatprep.subr.mxu0 0.0
  %2123 = vmatpush1.xpose.msra.mxu0 0.0
  %2124 = vmatprep.subr.mxu0 0.0
  %2125 = vmatpush1.xpose.msra.mxu0 0.0
  %2126 = vmatprep.subr.mxu0 0.0
  %2127 = vmatpush1.xpose.msra.mxu0 0.0
  %2128 = vmatprep.subr.mxu0 0.0
  %2129 = vmatpush1.xpose.msra.mxu0 0.0
  %2130 = vmatprep.subr.mxu0 0.0
  %2131 = vmatpush1.xpose.msra.mxu0 0.0
  %2132 = vmatprep.subr.mxu0 0.0
  %2133 = vmatpush1.xpose.msra.mxu0 0.0
  %2134 = vmatprep.subr.mxu0 0.0
  %2135 = vmatpush1.xpose.msra.mxu0 0.0
  %2136 = vmatprep.subr.mxu0 0.0
  %2137 = vmatpush1.xpose.msra.mxu0 0.0
  %2138 = vmatprep.subr.mxu0 0.0
  %2139 = vmatpush1.xpose.msra.mxu0 0.0
  %2140 = vmatprep.subr.mxu0 0.0
  %2141 = vmatpush1.xpose.msra.mxu0 0.0
  %2142 = vmatprep.subr.mxu0 0.0
  %2143 = vmatpush1.xpose.msra.mxu0 0.0
  %2144 = vmatprep.subr.mxu0 0.0
  %2145 = vmatpush1.xpose.msra.mxu0 0.0
  %2146 = vmatprep.subr.mxu0 0.0
  %2147 = vmatpush1.xpose.msra.mxu0 0.0
  %2148 = vmatprep.subr.mxu0 0.0
  %2149 = vmatpush1.xpose.msra.mxu0 0.0
  %2150 = vmatprep.mubr.f32.mxu0 0.0
  %2151 = vmatmul.mubr.f32.gmra.mrb[0].mxu0 %v2082
  %v2152 = vpop.f32.mrb[0].mxu0
  %v2153 = vadd.f32 0.0, %v2152
  %v2154 = vpop.f32.mrb[0].mxu0
  %2155 = vdwg.mxu0
  %v2156 = vmul.f32 %v2153, 0.35355338
  %v2157 = vsel %vm215, %v2156, -inf
  %2158 = vmax.xlane.f32.xlu0 %v2157
  %v2159 = vpop.xlane.xlu0 %2158
  %v2160 = vsub.f32 %v2156, %v2159
  %v2161 = vmul.f32 %v2160, 1.442695
  %v2162 = vpow.pop %v2161
  %v2163 = vsel %vm215, %v2162, 0.0
  %2164 = vadd.xlane.f32.xlu0 %v2163
  %v2165 = vpop.xlane.xlu0 %2164
  %v2166 = vrcp.pop %v2165
  %v2167 = vmul.f32 %v2162, %v2166
  %2168 = vrot.lane.b32.xlu0 %v1357, 72
  %v2169 = vpop.permute.xlu0 %2168
  %v2172 = vsel %vm215, %v2167, 0
  %2174 = vmatprep.subr.mxu0 0.0
  %2175 = vmatpush1.msra.mxu0 %v2169
  %2176 = vmatprep.subr.mxu0 0.0
  %2177 = vmatpush1.msra.mxu0 0.0
  %2178 = vmatprep.subr.mxu0 0.0
  %2179 = vmatpush1.msra.mxu0 0.0
  %2180 = vmatprep.subr.mxu0 0.0
  %2181 = vmatpush1.msra.mxu0 0.0
  %2182 = vmatprep.subr.mxu0 0.0
  %2183 = vmatpush1.msra.mxu0 0.0
  %2184 = vmatprep.subr.mxu0 0.0
  %2185 = vmatpush1.msra.mxu0 0.0
  %2186 = vmatprep.subr.mxu0 0.0
  %2187 = vmatpush1.msra.mxu0 0.0
  %2188 = vmatprep.subr.mxu0 0.0
  %2189 = vmatpush1.msra.mxu0 0.0
  %2190 = vmatprep.subr.mxu0 0.0
  %2191 = vmatpush1.msra.mxu0 0.0
  %2192 = vmatprep.subr.mxu0 0.0
  %2193 = vmatpush1.msra.mxu0 0.0
  %2194 = vmatprep.subr.mxu0 0.0
  %2195 = vmatpush1.msra.mxu0 0.0
  %2196 = vmatprep.subr.mxu0 0.0
  %2197 = vmatpush1.msra.mxu0 0.0
  %2198 = vmatprep.subr.mxu0 0.0
  %2199 = vmatpush1.msra.mxu0 0.0
  %2200 = vmatprep.subr.mxu0 0.0
  %2201 = vmatpush1.msra.mxu0 0.0
  %2202 = vmatprep.subr.mxu0 0.0
  %2203 = vmatpush1.msra.mxu0 0.0
  %2204 = vmatprep.subr.mxu0 0.0
  %2205 = vmatpush1.msra.mxu0 0.0
  %2206 = vmatprep.subr.mxu0 0.0
  %2207 = vmatpush1.msra.mxu0 0.0
  %2208 = vmatprep.subr.mxu0 0.0
  %2209 = vmatpush1.msra.mxu0 0.0
  %2210 = vmatprep.subr.mxu0 0.0
  %2211 = vmatpush1.msra.mxu0 0.0
  %2212 = vmatprep.subr.mxu0 0.0
  %2213 = vmatpush1.msra.mxu0 0.0
  %2214 = vmatprep.subr.mxu0 0.0
  %2215 = vmatpush1.msra.mxu0 0.0
  %2216 = vmatprep.subr.mxu0 0.0
  %2217 = vmatpush1.msra.mxu0 0.0
  %2218 = vmatprep.subr.mxu0 0.0
  %2219 = vmatpush1.msra.mxu0 0.0
  %2220 = vmatprep.subr.mxu0 0.0
  %2221 = vmatpush1.msra.mxu0 0.0
  %2222 = vmatprep.subr.mxu0 0.0
  %2223 = vmatpush1.msra.mxu0 0.0
  %2224 = vmatprep.subr.mxu0 0.0
  %2225 = vmatpush1.msra.mxu0 0.0
  %2226 = vmatprep.subr.mxu0 0.0
  %2227 = vmatpush1.msra.mxu0 0.0
  %2228 = vmatprep.subr.mxu0 0.0
  %2229 = vmatpush1.msra.mxu0 0.0
  %2230 = vmatprep.subr.mxu0 0.0
  %2231 = vmatpush1.msra.mxu0 0.0
  %2232 = vmatprep.subr.mxu0 0.0
  %2233 = vmatpush1.msra.mxu0 0.0
  %2234 = vmatprep.subr.mxu0 0.0
  %2235 = vmatpush1.msra.mxu0 0.0
  %2236 = vmatprep.subr.mxu0 0.0
  %2237 = vmatpush1.msra.mxu0 0.0
  %2238 = vmatprep.mubr.f32.mxu0 0.0
  %2239 = vmatmul.mubr.f32.gmra.mrb[0].mxu0 %v2172
  %v2240 = vpop.f32.mrb[0].mxu0
  %v2241 = vadd.f32 0.0, %v2240
  %v2242 = vpop.f32.mrb[0].mxu0
  %2243 = vdwg.mxu0
  %v2245 = vsel %vm215, %v2241, 0
  %2247 = vmatprep.subr.mxu0 0.0
  %2248 = vmatpush1.msra.mxu0 %v37
  %2249 = vmatprep.subr.mxu0 0.0
  %2250 = vmatpush1.msra.mxu0 0.0
  %2251 = vmatprep.subr.mxu0 0.0
  %2252 = vmatpush1.msra.mxu0 0.0
  %2253 = vmatprep.subr.mxu0 0.0
  %2254 = vmatpush1.msra.mxu0 0.0
  %2255 = vmatprep.subr.mxu0 0.0
  %2256 = vmatpush1.msra.mxu0 0.0
  %2257 = vmatprep.subr.mxu0 0.0
  %2258 = vmatpush1.msra.mxu0 0.0
  %2259 = vmatprep.subr.mxu0 0.0
  %2260 = vmatpush1.msra.mxu0 0.0
  %2261 = vmatprep.subr.mxu0 0.0
  %2262 = vmatpush1.msra.mxu0 0.0
  %2263 = vmatprep.subr.mxu0 0.0
  %2264 = vmatpush1.msra.mxu0 0.0
  %2265 = vmatprep.subr.mxu0 0.0
  %2266 = vmatpush1.msra.mxu0 0.0
  %2267 = vmatprep.subr.mxu0 0.0
  %2268 = vmatpush1.msra.mxu0 0.0
  %2269 = vmatprep.subr.mxu0 0.0
  %2270 = vmatpush1.msra.mxu0 0.0
  %2271 = vmatprep.subr.mxu0 0.0
  %2272 = vmatpush1.msra.mxu0 0.0
  %2273 = vmatprep.subr.mxu0 0.0
  %2274 = vmatpush1.msra.mxu0 0.0
  %2275 = vmatprep.subr.mxu0 0.0
  %2276 = vmatpush1.msra.mxu0 0.0
  %2277 = vmatprep.subr.mxu0 0.0
  %2278 = vmatpush1.msra.mxu0 0.0
  %2279 = vmatprep.subr.mxu0 0.0
  %2280 = vmatpush1.msra.mxu0 0.0
  %2281 = vmatprep.subr.mxu0 0.0
  %2282 = vmatpush1.msra.mxu0 0.0
  %2283 = vmatprep.subr.mxu0 0.0
  %2284 = vmatpush1.msra.mxu0 0.0
  %2285 = vmatprep.subr.mxu0 0.0
  %2286 = vmatpush1.msra.mxu0 0.0
  %2287 = vmatprep.subr.mxu0 0.0
  %2288 = vmatpush1.msra.mxu0 0.0
  %2289 = vmatprep.subr.mxu0 0.0
  %2290 = vmatpush1.msra.mxu0 0.0
  %2291 = vmatprep.subr.mxu0 0.0
  %2292 = vmatpush1.msra.mxu0 0.0
  %2293 = vmatprep.subr.mxu0 0.0
  %2294 = vmatpush1.msra.mxu0 0.0
  %2295 = vmatprep.subr.mxu0 0.0
  %2296 = vmatpush1.msra.mxu0 0.0
  %2297 = vmatprep.subr.mxu0 0.0
  %2298 = vmatpush1.msra.mxu0 0.0
  %2299 = vmatprep.subr.mxu0 0.0
  %2300 = vmatpush1.msra.mxu0 0.0
  %2301 = vmatprep.subr.mxu0 0.0
  %2302 = vmatpush1.msra.mxu0 0.0
  %2303 = vmatprep.subr.mxu0 0.0
  %2304 = vmatpush1.msra.mxu0 0.0
  %2305 = vmatprep.subr.mxu0 0.0
  %2306 = vmatpush1.msra.mxu0 0.0
  %2307 = vmatprep.subr.mxu0 0.0
  %2308 = vmatpush1.msra.mxu0 0.0
  %2309 = vmatprep.subr.mxu0 0.0
  %2310 = vmatpush1.msra.mxu0 0.0
  %2311 = vmatprep.mubr.f32.mxu0 0.0
  %2312 = vmatmul.mubr.f32.gmra.mrb[0].mxu0 %v2245
  %v2313 = vpop.f32.mrb[0].mxu0
  %v2314 = vadd.f32 0.0, %v2313
  %v2315 = vpop.f32.mrb[0].mxu0
  %2316 = vdwg.mxu0
  %v2317 = vadd.f32 %v2077, %v2314
  %v2318 = vadd.f32 %v1211, %v2317
  %v2319 = vsel %vm49, %v2318, 0.0
  %2320 = vadd.xlane.f32.xlu0 %v2319
  %v2321 = vpop.xlane.xlu0 %2320
  %v2322 = vmul.f32 %v2321, %v1184
  %v2323 = vsub.f32 %v2318, %v2322
  %v2324 = vmul.f32 %v2323, %v2323
  %v2325 = vsel %vm49, %v2324, 0.0
  %2326 = vadd.xlane.f32.xlu0 %v2325
  %v2327 = vpop.xlane.xlu0 %2326
  %v2328 = vmul.f32 %v2327, %v1184
  %v2329 = vadd.f32 %v2328, 1e-05
  %v2330 = vrsqrt.pop %v2329
  %v2331 = vmul.f32 %v2323, %v2330
  %v2332 = vmul.f32 %v2331, %v1199
  %v2333 = vadd.f32 %v2332, %v1206
  %s2334 = scalar_lea.vmem %s8, 8
  %2335 = vst.msk [vmem:[%s2334] sm:$0xff] %vm49, %v2333
  // Predicated region
  $region34: #{transformer_mkii_forward.18} parent=0 // pred_check
    _
  $region35: #{transformer_mkii_forward.18} parent=0 // pred_check_branch
    %2337 = sbr.rel (0) target = $region37
  $region36: #{transformer_mkii_forward.18} parent=0 // pred_region
    _
  $region37: #{transformer_mkii_forward.18} parent=0 // pred_fallthru
    _
  // Predicated region
  $region38: #{transformer_mkii_forward.18} parent=0 // pred_check
    _
  $region39: #{transformer_mkii_forward.18} parent=0 // pred_check_branch
    %2339 = sbr.rel (0) target = $region41
  $region40: #{transformer_mkii_forward.18} parent=0 // pred_region
    _
  $region41: #{transformer_mkii_forward.18} parent=0 // pred_fallthru
    _

// kernel: transformer_mkii_forward.23
$region0: #{transformer_mkii_forward.23}
  #allocation0 [shape = 'u32[]', space=smem, size = 0x4, offset = 0x4, fixed_abs, tag = 'smem constant byte address 0x4 - core index']
  #allocation1 [shape = 'u32[144,128]{1,0:T(1,128)}', space=vmem, size = 0x12000, scoped, tag = 'internal scratch']
  %s0 = inlined_call_operand.vmem [shape: f32[16,32], index: 0, kind: input, shape index: {}]
  %s1 = inlined_call_operand.vmem [shape: f32[1,32], index: 1, kind: input, shape index: {}]
  %s2 = inlined_call_operand.vmem [shape: f32[1,32], index: 2, kind: input, shape index: {}]
  %s3 = inlined_call_operand.vmem [shape: f32[32,32], index: 3, kind: input, shape index: {}]
  %s4 = inlined_call_operand.vmem [shape: f32[1,32], index: 4, kind: input, shape index: {}]
  %s5 = inlined_call_operand.hbm [shape: f32[16,32], index: 5, kind: output, shape index: {}]
  %s6 = sld [smem:[#allocation0]]
  $region30: #{transformer_mkii_forward.23} parent=0
    _
  %s8 = ssub.s32 1, %s6
  %s9 = scalar_select 0, %s8, %s6
  $region1: #{transformer_mkii_forward.23} parent=0
    #allocation2 [shape = 'u8[8192]{0}', space=vmem, size = 0x2000, scoped, tag = 'output window, operand 0, single buffered']
    #allocation3 [shape = 's32[1]{0}', space=sflag, size = 0x4, scoped, tag = 'scoped memory for transformer_mkii_forward.23']
    %10 = vsyncpa [#allocation3], 0
    // Predicated region
    $region2: #{transformer_mkii_forward.23} parent=1 // pred_check
      _
    $region3: #{transformer_mkii_forward.23} parent=1 // pred_check_branch
      %12 = sbr.rel (0) target = $region5
    $region4: #{transformer_mkii_forward.23} parent=1 // pred_region
      _
    $region5: #{transformer_mkii_forward.23} parent=1 // pred_fallthru
      _
    // Predicated region
    $region6: #{transformer_mkii_forward.23} parent=1 // pred_check
      _
    $region7: #{transformer_mkii_forward.23} parent=1 // pred_check_branch
      %14 = sbr.rel (0) target = $region9
    $region8: #{transformer_mkii_forward.23} parent=1 // pred_region
      _
    $region9: #{transformer_mkii_forward.23} parent=1 // pred_fallthru
      _
    // Predicated region
    $region10: #{transformer_mkii_forward.23} parent=1 // pred_check
      _
    $region11: #{transformer_mkii_forward.23} parent=1 // pred_check_branch
      %16 = sbr.rel (0) target = $region13
    $region12: #{transformer_mkii_forward.23} parent=1 // pred_region
      _
    $region13: #{transformer_mkii_forward.23} parent=1 // pred_fallthru
      _
    // Predicated region
    $region14: #{transformer_mkii_forward.23} parent=1 // pred_check
      _
    $region15: #{transformer_mkii_forward.23} parent=1 // pred_check_branch
      %18 = sbr.rel (0) target = $region17
    $region16: #{transformer_mkii_forward.23} parent=1 // pred_region
      _
    $region17: #{transformer_mkii_forward.23} parent=1 // pred_fallthru
      _
    // Predicated region
    $region18: #{transformer_mkii_forward.23} parent=1 // pred_check
      _
    $region19: #{transformer_mkii_forward.23} parent=1 // pred_check_branch
      %20 = sbr.rel (0) target = $region21
    $region20: #{transformer_mkii_forward.23} parent=1 // pred_region
      _
    $region21: #{transformer_mkii_forward.23} parent=1 // pred_fallthru
      _
    %v21 = vld [vmem:[%s0] sm:$0xff]
    %v22 = vld [vmem:[%s0 + $0x8] sm:$0xff]
    %v23 = vld [vmem:[%s1] sm:$0x1]
    %v24 = vld [vmem:[%s2] sm:$0x1]
    %vm25 = vcmask 261120
    %v26 = vsel %vm25, %v21, 0.0
    %27 = vadd.xlane.f32.xlu0 %v26
    %v28 = vpop.xlane.xlu0 %27
    %v29 = vsel %vm25, %v22, 0.0
    %30 = vadd.xlane.f32.xlu0 %v29
    %v31 = vpop.xlane.xlu0 %30
    %v32 = vrcp.pop 32.0
    %v33 = vmul.f32 %v28, %v32
    %v34 = vmul.f32 %v31, %v32
    %v35 = vsub.f32 %v21, %v33
    %v36 = vsub.f32 %v22, %v34
    %v37 = vmul.f32 %v35, %v35
    %v38 = vmul.f32 %v36, %v36
    %v39 = vsel %vm25, %v37, 0.0
    %40 = vadd.xlane.f32.xlu0 %v39
    %v41 = vpop.xlane.xlu0 %40
    %v42 = vsel %vm25, %v38, 0.0
    %43 = vadd.xlane.f32.xlu0 %v42
    %v44 = vpop.xlane.xlu0 %43
    %v45 = vmul.f32 %v41, %v32
    %v46 = vmul.f32 %v44, %v32
    %v47 = vadd.f32 %v45, 1e-05
    %v48 = vadd.f32 %v46, 1e-05
    %v49 = vrsqrt.pop %v47
    %v50 = vrsqrt.pop %v48
    %v51 = vmul.f32 %v35, %v49
    %v52 = vmul.f32 %v36, %v50
    %v54 = vlaneseq
    %v55 = vshrl.u32 %v54, 7
    %v56 = vsub.s32 0, %v55
    %v57 = vrot.slane %v23, %v56
    %v59 = vmul.f32 %v51, %v57
    %v60 = vmul.f32 %v52, %v57
    %v62 = vlaneseq
    %v63 = vshrl.u32 %v62, 7
    %v64 = vsub.s32 0, %v63
    %v65 = vrot.slane %v24, %v64
    %v67 = vadd.f32 %v59, %v65
    %v68 = vadd.f32 %v60, %v65
    %v69 = vld [vmem:[%s3] sm:$0xff]
    %v70 = vld [vmem:[%s3 + $0x8] sm:$0xff]
    %v71 = vld [vmem:[%s3 + $0x10] sm:$0xff]
    %v72 = vld [vmem:[%s3 + $0x18] sm:$0xff]
    %v73 = vld [vmem:[%s4] sm:$0x1]
    %v75 = vlaneseq
    %v76 = vshrl.u32 %v75, 7
    %v77 = vsub.s32 0, %v76
    %v78 = vrot.slane %v73, %v77
    %v81 = vsel %vm25, %v67, 0
    %v84 = vsel %vm25, %v68, 0
    %86 = vmatprep.subr.mxu0 0.0
    %87 = vmatpush1.msra.mxu0 %v69
    %88 = vmatprep.subr.mxu0 0.0
    %89 = vmatpush1.msra.mxu0 %v70
    %90 = vmatprep.subr.mxu0 0.0
    %91 = vmatpush1.msra.mxu0 %v71
    %92 = vmatprep.subr.mxu0 0.0
    %93 = vmatpush1.msra.mxu0 %v72
    %94 = vmatprep.subr.mxu0 0.0
    %95 = vmatpush1.msra.mxu0 0.0
    %96 = vmatprep.subr.mxu0 0.0
    %97 = vmatpush1.msra.mxu0 0.0
    %98 = vmatprep.subr.mxu0 0.0
    %99 = vmatpush1.msra.mxu0 0.0
    %100 = vmatprep.subr.mxu0 0.0
    %101 = vmatpush1.msra.mxu0 0.0
    %102 = vmatprep.subr.mxu0 0.0
    %103 = vmatpush1.msra.mxu0 0.0
    %104 = vmatprep.subr.mxu0 0.0
    %105 = vmatpush1.msra.mxu0 0.0
    %106 = vmatprep.subr.mxu0 0.0
    %107 = vmatpush1.msra.mxu0 0.0
    %108 = vmatprep.subr.mxu0 0.0
    %109 = vmatpush1.msra.mxu0 0.0
    %110 = vmatprep.subr.mxu0 0.0
    %111 = vmatpush1.msra.mxu0 0.0
    %112 = vmatprep.subr.mxu0 0.0
    %113 = vmatpush1.msra.mxu0 0.0
    %114 = vmatprep.subr.mxu0 0.0
    %115 = vmatpush1.msra.mxu0 0.0
    %116 = vmatprep.subr.mxu0 0.0
    %117 = vmatpush1.msra.mxu0 0.0
    %118 = vmatprep.subr.mxu0 0.0
    %119 = vmatpush1.msra.mxu0 0.0
    %120 = vmatprep.subr.mxu0 0.0
    %121 = vmatpush1.msra.mxu0 0.0
    %122 = vmatprep.subr.mxu0 0.0
    %123 = vmatpush1.msra.mxu0 0.0
    %124 = vmatprep.subr.mxu0 0.0
    %125 = vmatpush1.msra.mxu0 0.0
    %126 = vmatprep.subr.mxu0 0.0
    %127 = vmatpush1.msra.mxu0 0.0
    %128 = vmatprep.subr.mxu0 0.0
    %129 = vmatpush1.msra.mxu0 0.0
    %130 = vmatprep.subr.mxu0 0.0
    %131 = vmatpush1.msra.mxu0 0.0
    %132 = vmatprep.subr.mxu0 0.0
    %133 = vmatpush1.msra.mxu0 0.0
    %134 = vmatprep.subr.mxu0 0.0
    %135 = vmatpush1.msra.mxu0 0.0
    %136 = vmatprep.subr.mxu0 0.0
    %137 = vmatpush1.msra.mxu0 0.0
    %138 = vmatprep.subr.mxu0 0.0
    %139 = vmatpush1.msra.mxu0 0.0
    %140 = vmatprep.subr.mxu0 0.0
    %141 = vmatpush1.msra.mxu0 0.0
    %142 = vmatprep.subr.mxu0 0.0
    %143 = vmatpush1.msra.mxu0 0.0
    %144 = vmatprep.subr.mxu0 0.0
    %145 = vmatpush1.msra.mxu0 0.0
    %146 = vmatprep.subr.mxu0 0.0
    %147 = vmatpush1.msra.mxu0 0.0
    %148 = vmatprep.subr.mxu0 0.0
    %149 = vmatpush1.msra.mxu0 0.0
    %150 = vmatprep.mubr.f32.mxu0 0.0
    %151 = vmatmul.mubr.f32.gmra.mrb[0].mxu0 %v81
    %v152 = vpop.f32.mrb[0].mxu0
    %v153 = vadd.f32 %v78, %v152
    %v154 = vpop.f32.mrb[0].mxu0
    %155 = vmatprep.mubr.f32.mxu0 0.0
    %156 = vmatmul.mubr.f32.gmra.mrb[0].mxu0 %v84
    %v157 = vpop.f32.mrb[0].mxu0
    %v158 = vadd.f32 %v78, %v157
    %v159 = vpop.f32.mrb[0].mxu0
    %160 = vdwg.mxu0
    %161 = vst.msk [vmem:[#allocation2] sm:$0xff] %vm25, %v153
    %162 = vst.msk [vmem:[#allocation2 + $0x8] sm:$0xff] %vm25, %v158
    // Predicated region
    $region22: #{transformer_mkii_forward.23} parent=1 // pred_check
      _
    $region23: #{transformer_mkii_forward.23} parent=1 // pred_check_branch
      %164 = sbr.rel (0) target = $region25
    $region24: #{transformer_mkii_forward.23} parent=1 // pred_region
      %s166 = ssub.s32 256, 256
      %167 = vsyncadd [#allocation3], %s166
      %s168 = sshll.u32 [#allocation2], 4
      %s169 = int_to_ptr.vmem [resolvable:$true] %s168
      %174 = dma.vmem_to_hbm [thread:$0]  %s169, 256, %s5, [#allocation3], 128, 128, 8
    $region25: #{transformer_mkii_forward.23} parent=1 // pred_fallthru
      _
    // Predicated region
    $region26: #{transformer_mkii_forward.23} parent=1 // pred_check
      _
    $region27: #{transformer_mkii_forward.23} parent=1 // pred_check_branch
      %176 = sbr.rel (0) target = $region29
    $region28: #{transformer_mkii_forward.23} parent=1 // pred_region
      %177 = dma.done [#allocation3], 256
    $region29: #{transformer_mkii_forward.23} parent=1 // pred_fallthru
      _
    %178 = vsyncpa [#allocation3], 1

</llo_original>
